<compile_context>
chip_gen: v6e
topology: v6e:2x2x1
jax: 0.10.0
libtpu: 0.0.40
codegen_flags: <defaults>
</compile_context>

<pallas_src>
import functools

import jax
import jax.numpy as jnp
from jax import lax
from jax.experimental import pallas as pl
from jax.experimental.pallas import tpu as pltpu


# ---------------------------------------------------------------------------
# In-kernel helpers
# ---------------------------------------------------------------------------

def _leaky(z):
    return jnp.where(z > 0, z, 0.01 * z)


def _sigmoid(x):
    # numerically stable sigmoid via tanh (EUP slot on TPU)
    return 0.5 * (jnp.tanh(0.5 * x) + 1.0)


# ---------------------------------------------------------------------------
# Fused kernel: whole DENSE_2D_CR_ADD_SIM forward for one grid step
# ---------------------------------------------------------------------------

def _fused_kernel(x_ref, w1_ref, w2_ref, wcd_ref, w3_ref,
                  sew1_ref, sew2_ref, b_ref, out_ref,
                  *, hw, w, cq, cp, hd):
    """x_ref: (M, Csh) f32, M = n_img*hw raster rows, lanes = [src1 | src2]."""
    f32 = jnp.float32
    x = x_ref[...]
    m, csh = x.shape
    n_img = m // hw

    # 0/1 border masks shared by all three convs (per-row, lane-broadcast).
    r = lax.broadcasted_iota(jnp.int32, (m, 1), 0)
    col = r % w
    rloc = r % hw
    cmask_l = (col > 0).astype(f32)          # column x-1 exists
    cmask_r = (col < w - 1).astype(f32)      # column x+1 exists
    rmask_t = (rloc >= w).astype(f32)        # row y-1 exists (per image)
    rmask_b = (rloc < hw - w).astype(f32)    # row y+1 exists (per image)

    def conv3x3(xin, wk_ref):
        # Deep-K matmul over the three column shifts; the +-1 row shifts are
        # applied to the (M, Cout) outputs (w-row shift = tile aligned).
        cin = xin.shape[1]
        zrow = jnp.zeros((1, cin), f32)
        xl = jnp.concatenate([zrow, xin[:-1]], axis=0) * cmask_l   # reads x-1
        xr = jnp.concatenate([xin[1:], zrow], axis=0) * cmask_r    # reads x+1
        # TODO(synk): on real HW the two 1-row shifts above are cheaper as
        # pltpu.roll (XLU slot); concat form kept for interpret portability.
        cs3 = jnp.concatenate([xl, xin, xr], axis=-1)              # (M, 3Cin)
        top = jnp.dot(cs3, wk_ref[0], preferred_element_type=f32)  # kh = 0
        mid = jnp.dot(cs3, wk_ref[1], preferred_element_type=f32)  # kh = 1
        bot = jnp.dot(cs3, wk_ref[2], preferred_element_type=f32)  # kh = 2
        zo = jnp.zeros((w, top.shape[1]), f32)
        acc = mid
        acc = acc + rmask_t * jnp.concatenate([zo, top[:-w]], axis=0)
        acc = acc + rmask_b * jnp.concatenate([bot[w:], zo], axis=0)
        return acc

    bias = b_ref[...]                        # (6, Csh) packed bias slab

    # non_linear[0]: BasicBlock(Csh->Cq); 1x1 downsample + BN folded into w1.
    h1 = _leaky(conv3x3(x, w1_ref) + bias[0:1, :cq])

    # non_linear[1]: BasicBlock(Cq->Cq); identity shortcut folded into w2.
    h2 = _leaky(conv3x3(h1, w2_ref) + bias[1:2, :cq])

    # non_linear[2] (1x1 conv) + grouped softmax over the N=2 databases:
    # softmax over a pair == sigmoid of the pair difference; the difference
    # is folded into the 1x1 weights host-side.
    diff = jnp.dot(h2, wcd_ref[...], preferred_element_type=f32) + bias[2:3, :csh]
    masked = _sigmoid(diff) * x                                    # (M, Csh)

    # dimensionality_reduction: BasicBlock(Csh->Cp), downsample folded.
    red = _leaky(conv3x3(masked, w3_ref) + bias[3:4, :cp])         # (M, Cp)

    # Both SE blocks fused (FC1 side-by-side, FC2 block-diagonal): per-image
    # global mean pool -> one (n_img, 2*Cp) gate covering [out_s1 | out_s2].
    mus = [jnp.mean(red[i * hw:(i + 1) * hw, :], axis=0, keepdims=True)
           for i in range(n_img)]
    mu = mus[0] if n_img == 1 else jnp.concatenate(mus, axis=0)    # (n_img, Cp)
    sq = jnp.maximum(
        jnp.dot(mu, sew1_ref[...], preferred_element_type=f32)
        + bias[4:5, :2 * hd], 0.0)
    gate = _sigmoid(jnp.dot(sq, sew2_ref[...], preferred_element_type=f32)
                    + bias[5:6, :csh])                             # (n_img, 2Cp)

    # Lane-dense (M, 2*Cp) output slab [SE1(red)+s1 | SE2(red)+s2].
    outs = []
    for i in range(n_img):
        ri = red[i * hw:(i + 1) * hw, :]
        gi = gate[i:i + 1, :]
        outs.append(jnp.concatenate([ri * gi[:, :cp], ri * gi[:, cp:]], axis=-1))
    gated = outs[0] if n_img == 1 else jnp.concatenate(outs, axis=0)
    out_ref[...] = gated + x


# ---------------------------------------------------------------------------
# Module forward (Pallas-backed)
# ---------------------------------------------------------------------------

@functools.partial(jax.jit, static_argnames=("n_db", "collapse_batch"))
def dense_2d_cr_add_sim(spatial_features_2d, p, n_db=2, collapse_batch=False):
    """collapse_batch=True stacks the whole batch on sublanes (grid=(1,),
    M=B*H*W) -- the single-TC v5e/v6e choice; default grid=(B,) "parallel"
    shards batch elements across v7x's two TensorCores."""
    total, cp, h, w = spatial_features_2d.shape
    b = total // 2
    hw = h * w
    csh = n_db * cp                      # shared_channels
    assert n_db == 2 and csh == 2 * cp   # module structure needs 2 sources
    cq = csh // 4
    hd = p['se1_w1'].shape[1]
    f32 = jnp.float32

    # TODO(synk): common_utils.split_batch_dict (source-tag based batch split)
    # is emulated by assuming the first half of the batch is source-one frames.
    x_nhwc = jnp.transpose(spatial_features_2d, (0, 2, 3, 1)).astype(f32)
    concat = jnp.concatenate([x_nhwc[:b], x_nhwc[b:]],
                             axis=-1).reshape(b, hw, csh)

    # --- host-side folding: BN scale -> weights, 1x1 downsample / identity
    #     shortcut -> center tap, BN + downsample-BN biases -> one bias -----
    def fold_bb(w33, s, bias, wds=None, sds=None, bds=None, identity=False):
        cin, cout = w33.shape[2], w33.shape[3]
        wk = (w33 * s.reshape(1, 1, 1, cout)).reshape(3, 3 * cin, cout)
        extra = jnp.zeros((cin, cout), f32)
        bout = bias
        if wds is not None:
            extra = extra + wds * sds.reshape(1, cout)
            bout = bout + bds
        if identity:
            extra = extra + jnp.eye(cin, dtype=f32)      # cin == cout
        wk = wk.at[1, cin:2 * cin, :].add(extra)          # center tap (1, 1)
        return wk, bout

    w1, b1 = fold_bb(p['nl_bb1_w3'], p['nl_bb1_s'], p['nl_bb1_b'],
                     p['nl_bb1_wds'], p['nl_bb1_sds'], p['nl_bb1_bds'])
    w2, b2 = fold_bb(p['nl_bb2_w3'], p['nl_bb2_s'], p['nl_bb2_b'],
                     identity=True)
    w3, b3 = fold_bb(p['dr_w3'], p['dr_s'], p['dr_b'],
                     p['dr_wds'], p['dr_sds'], p['dr_bds'])

    # Grouped (N=2) softmax == sigmoid of the pair-differenced logits; the
    # channel pairing of shared.view(B, C//N, N, H, W) is (2k, 2k+1) = c ^ 1.
    pair = jnp.arange(csh) ^ 1
    wcd = p['nl_conv_w'] - p['nl_conv_w'][:, pair]
    bcd = p['nl_conv_b'] - p['nl_conv_b'][:, pair]

    # Fuse the two SE blocks: FC1 side-by-side, FC2 block-diagonal.
    sew1 = jnp.concatenate([p['se1_w1'], p['se2_w1']], axis=1)     # (cp, 2hd)
    seb1 = jnp.concatenate([p['se1_b1'], p['se2_b1']], axis=1)
    zhd = jnp.zeros((hd, cp), f32)
    sew2 = jnp.concatenate(
        [jnp.concatenate([p['se1_w2'], zhd], axis=1),
         jnp.concatenate([zhd, p['se2_w2']], axis=1)], axis=0)     # (2hd, 2cp)
    seb2 = jnp.concatenate([p['se1_b2'], p['se2_b2']], axis=1)

    # All per-channel biases packed into one lane-padded slab (operand cut).
    def _row(v):
        v = v.reshape(1, -1)
        return jnp.pad(v, ((0, 0), (0, csh - v.shape[1])))
    bias_slab = jnp.concatenate(
        [_row(b1), _row(b2), _row(bcd), _row(b3), _row(seb1), _row(seb2)],
        axis=0)                                                    # (6, csh)

    weights = [w1, w2, wcd, w3, sew1, sew2, bias_slab]

    if collapse_batch:
        xin, grid, rows = concat.reshape(1, b * hw, csh), (1,), b * hw
    else:
        xin, grid, rows = concat, (b,), hw

    kernel = functools.partial(_fused_kernel, hw=hw, w=w, cq=cq, cp=cp, hd=hd)
    # TODO(synk): for BEV-scale H,W add HW strip-tiling (tile-aligned strip
    # height, 1-row halo) and an explicit vmem_limit_bytes; at these sizes
    # everything fits comfortably in default scoped VMEM on all generations.
    out_flat = pl.pallas_call(
        kernel,
        out_shape=jax.ShapeDtypeStruct((grid[0], rows, csh), f32),
        grid=grid,
        in_specs=[pl.BlockSpec((None, rows, csh), lambda i: (i, 0, 0))]
                + [pl.BlockSpec(a.shape, lambda i, nd=a.ndim: (0,) * nd)
                   for a in weights],
        out_specs=pl.BlockSpec((None, rows, csh), lambda i: (i, 0, 0)),
        compiler_params=pltpu.CompilerParams(
            dimension_semantics=("parallel",)),
    )(xin, *weights)

    out = out_flat.reshape(b, hw, csh)
    out = jnp.concatenate([out[:, :, :cp], out[:, :, cp:]], axis=0)
    return jnp.transpose(out.reshape(2 * b, h, w, cp), (0, 3, 1, 2))


# ---------------------------------------------------------------------------
# Pure-JAX reference (f32, HIGHEST precision)
# ---------------------------------------------------------------------------

def reference_forward(spatial_features_2d, p, n_db=2):
    total, cp, h, w = spatial_features_2d.shape
    b = total // 2
    hi = lax.Precision.HIGHEST
    x = jnp.transpose(spatial_features_2d, (0, 2, 3, 1)).astype(jnp.float32)
    s1, s2 = x[:b], x[b:]
    concat = jnp.concatenate([s1, s2], axis=-1)

    def conv3(x4, w33):
        return lax.conv_general_dilated(
            x4, w33, (1, 1), ((1, 1), (1, 1)),
            dimension_numbers=('NHWC', 'HWIO', 'NHWC'), precision=hi)

    def conv1(x4, wmat):
        return jnp.einsum('bhwc,cd->bhwd', x4, wmat, precision=hi)

    def bb(x4, w33, s, bias, wds=None, sds=None, bds=None):
        y = conv3(x4, w33) * s + bias
        ident = x4 if wds is None else (conv1(x4, wds) * sds + bds)
        z = y + ident
        return jnp.where(z > 0, z, 0.01 * z)

    h1 = bb(concat, p['nl_bb1_w3'], p['nl_bb1_s'], p['nl_bb1_b'],
            p['nl_bb1_wds'], p['nl_bb1_sds'], p['nl_bb1_bds'])
    h2 = bb(h1, p['nl_bb2_w3'], p['nl_bb2_s'], p['nl_bb2_b'])
    shared = conv1(h2, p['nl_conv_w']) + p['nl_conv_b']
    c = shared.shape[-1]
    g = c // n_db
    mask = jax.nn.softmax(shared.reshape(b, h, w, g, n_db), axis=-1)
    masked = (mask * concat.reshape(b, h, w, g, n_db)).reshape(b, h, w, c)
    red = bb(masked, p['dr_w3'], p['dr_s'], p['dr_b'],
             p['dr_wds'], p['dr_sds'], p['dr_bds'])

    def se(x4, w1, b1, w2, b2):
        mu = jnp.mean(x4, axis=(1, 2))
        hid = jnp.maximum(mu @ w1 + b1, 0.0)
        gate = jax.nn.sigmoid(hid @ w2 + b2)
        return x4 * gate[:, None, None, :]

    out1 = se(red, p['se1_w1'], p['se1_b1'], p['se1_w2'], p['se1_b2']) + s1
    out2 = se(red, p['se2_w1'], p['se2_b1'], p['se2_w2'], p['se2_b2']) + s2
    out = jnp.concatenate([out1, out2], axis=0)
    return jnp.transpose(out, (0, 3, 1, 2))


# ---------------------------------------------------------------------------
# Deterministic parameter init (shapes per module __init__; BN folded)
# ---------------------------------------------------------------------------

def init_params(key, per_task_channels, n_db, r=16):
    csh = n_db * per_task_channels           # shared_channels
    cq = csh // 4
    cp = per_task_channels
    hd = cp // r                              # SE hidden
    keys = iter(jax.random.split(key, 32))

    def nrm(shape, std):
        return (std * jax.random.normal(next(keys), shape)).astype(jnp.float32)

    def bn_scale(c):
        return (1.0 + 0.1 * nrm((1, c), 1.0)).astype(jnp.float32)

    def bn_bias(c):
        return (0.1 * nrm((1, c), 1.0)).astype(jnp.float32)

    p = {}
    # non_linear: BasicBlock(csh -> cq, downsample 1x1 + BN); weights HWIO
    p['nl_bb1_w3'] = nrm((3, 3, csh, cq), (2.0 / (9 * csh)) ** 0.5)
    p['nl_bb1_s'], p['nl_bb1_b'] = bn_scale(cq), bn_bias(cq)
    p['nl_bb1_wds'] = nrm((csh, cq), (2.0 / csh) ** 0.5)
    p['nl_bb1_sds'], p['nl_bb1_bds'] = bn_scale(cq), bn_bias(cq)
    # non_linear: BasicBlock(cq -> cq)
    p['nl_bb2_w3'] = nrm((3, 3, cq, cq), (2.0 / (9 * cq)) ** 0.5)
    p['nl_bb2_s'], p['nl_bb2_b'] = bn_scale(cq), bn_bias(cq)
    # non_linear: Conv2d(cq -> csh, 1x1, bias=True)
    p['nl_conv_w'] = nrm((cq, csh), (2.0 / cq) ** 0.5)
    p['nl_conv_b'] = bn_bias(csh)
    # dimensionality_reduction: BasicBlock(csh -> cp, downsample 1x1 + BN)
    p['dr_w3'] = nrm((3, 3, csh, cp), (2.0 / (9 * csh)) ** 0.5)
    p['dr_s'], p['dr_b'] = bn_scale(cp), bn_bias(cp)
    p['dr_wds'] = nrm((csh, cp), (2.0 / csh) ** 0.5)
    p['dr_sds'], p['dr_bds'] = bn_scale(cp), bn_bias(cp)
    # SE blocks (Linear(cp, cp//r) -> ReLU -> Linear(cp//r, cp) -> Sigmoid)
    for name in ('se1', 'se2'):
        p[f'{name}_w1'] = nrm((cp, hd), (2.0 / cp) ** 0.5)
        p[f'{name}_b1'] = bn_bias(hd)
        p[f'{name}_w2'] = nrm((hd, cp), (2.0 / hd) ** 0.5)
        p[f'{name}_b2'] = bn_bias(cp)
    return p


# ---------------------------------------------------------------------------
# Main
# ---------------------------------------------------------------------------

if __name__ == "__main__":
    key = jax.random.PRNGKey(0)
    kx, kp = jax.random.split(key)

    # model_cfg: NUM_OF_DB=2, INPUT_CONV_CHANNEL=64 -> shared_channels=128
    n_db = 2
    per_task_channels = 64
    b_per_source, h, w = 2, 16, 16

    x = jax.random.normal(kx, (2 * b_per_source, per_task_channels, h, w),
                          dtype=jnp.float32)
    params = init_params(kp, per_task_channels, n_db)

    ref = jax.block_until_ready(reference_forward(x, params, n_db=n_db))

    # default grid=(B,) "parallel" (v7x, 2 TC) and the single-TC batch-collapse
    for collapse in (False, True):
        out = jax.block_until_ready(
            dense_2d_cr_add_sim(x, params, n_db=n_db, collapse_batch=collapse))
        assert out.shape == x.shape, (out.shape, x.shape)
        max_err = float(jnp.max(jnp.abs(out - ref)))
        if not bool(jnp.allclose(out, ref, atol=2e-3, rtol=2e-3)):
            raise AssertionError(
                f"Pallas mismatch (collapse_batch={collapse}), max|err|={max_err}")

    print("KERNEL_OK")
</pallas_src>

<mosaic_0001>
module attributes {stable_mosaic.version = 11 : i64} {
  func.func @_fused_kernel(%arg0: i32, %arg1: memref<1x256x128xf32, #tpu.memory_space<vmem>>, %arg2: memref<3x384x32xf32, #tpu.memory_space<vmem>>, %arg3: memref<3x96x32xf32, #tpu.memory_space<vmem>>, %arg4: memref<32x128xf32, #tpu.memory_space<vmem>>, %arg5: memref<3x384x64xf32, #tpu.memory_space<vmem>>, %arg6: memref<64x8xf32, #tpu.memory_space<vmem>>, %arg7: memref<8x128xf32, #tpu.memory_space<vmem>>, %arg8: memref<6x128xf32, #tpu.memory_space<vmem>>, %arg9: memref<1x256x128xf32, #tpu.memory_space<vmem>>) attributes {dimension_semantics = [#tpu.dimension_semantics<parallel>], iteration_bounds = array<i64: 2>, scalar_prefetch = 0 : i64, scratch_operands = 0 : i64, tpu.core_type = #tpu.core_type<tc>, window_params = [{transform_indices = @transform_0, window_bounds = array<i64: 1, 256, 128>}, {pipeline_mode = #tpu.pipeline_mode<synchronous>, transform_indices = @transform_1, window_bounds = array<i64: 3, 384, 32>}, {pipeline_mode = #tpu.pipeline_mode<synchronous>, transform_indices = @transform_2, window_bounds = array<i64: 3, 96, 32>}, {pipeline_mode = #tpu.pipeline_mode<synchronous>, transform_indices = @transform_3, window_bounds = array<i64: 32, 128>}, {pipeline_mode = #tpu.pipeline_mode<synchronous>, transform_indices = @transform_4, window_bounds = array<i64: 3, 384, 64>}, {pipeline_mode = #tpu.pipeline_mode<synchronous>, transform_indices = @transform_5, window_bounds = array<i64: 64, 8>}, {pipeline_mode = #tpu.pipeline_mode<synchronous>, transform_indices = @transform_6, window_bounds = array<i64: 8, 128>}, {pipeline_mode = #tpu.pipeline_mode<synchronous>, transform_indices = @transform_7, window_bounds = array<i64: 6, 128>}, {transform_indices = @transform_8, window_bounds = array<i64: 1, 256, 128>}]} {
    %c0 = arith.constant 0 : index
    %c0_0 = arith.constant 0 : index
    %c0_1 = arith.constant 0 : index
    %0 = vector.load %arg1[%c0, %c0_0, %c0_1] : memref<1x256x128xf32, #tpu.memory_space<vmem>>, vector<1x256x128xf32>
    %1 = vector.shape_cast %0 : vector<1x256x128xf32> to vector<256x128xf32>
    %2 = tpu.iota {dimensions = array<i32: 0>} : vector<256x1xi32>
    %c16_i32 = arith.constant 16 : i32
    %c0_i32 = arith.constant 0 : i32
    %3 = arith.cmpi eq, %c16_i32, %c0_i32 : i32
    %c1_i32 = arith.constant 1 : i32
    %4 = arith.select %3, %c1_i32, %c16_i32 : i32
    %5 = vector.broadcast %4 : i32 to vector<256x1xi32>
    %6 = arith.remsi %2, %5 : vector<256x1xi32>
    %c0_i32_2 = arith.constant 0 : i32
    %7 = vector.broadcast %c0_i32_2 : i32 to vector<256x1xi32>
    %8 = arith.cmpi ne, %6, %7 : vector<256x1xi32>
    %c0_i32_3 = arith.constant 0 : i32
    %9 = vector.broadcast %c0_i32_3 : i32 to vector<256x1xi32>
    %10 = arith.cmpi slt, %6, %9 : vector<256x1xi32>
    %c0_i32_4 = arith.constant 0 : i32
    %11 = arith.cmpi slt, %4, %c0_i32_4 : i32
    %12 = vector.broadcast %11 : i1 to vector<256x1xi1>
    %13 = vector.broadcast %12 : vector<256x1xi1> to vector<256x1xi1>
    %14 = arith.xori %10, %13 : vector<256x1xi1>
    %15 = arith.andi %14, %8 : vector<256x1xi1>
    %16 = vector.broadcast %4 : i32 to vector<256x1xi32>
    %17 = arith.addi %6, %16 : vector<256x1xi32>
    %18 = arith.select %15, %17, %6 : vector<256x1xi1>, vector<256x1xi32>
    %c256_i32 = arith.constant 256 : i32
    %c0_i32_5 = arith.constant 0 : i32
    %19 = arith.cmpi eq, %c256_i32, %c0_i32_5 : i32
    %c1_i32_6 = arith.constant 1 : i32
    %20 = arith.select %19, %c1_i32_6, %c256_i32 : i32
    %21 = vector.broadcast %20 : i32 to vector<256x1xi32>
    %22 = arith.remsi %2, %21 : vector<256x1xi32>
    %c0_i32_7 = arith.constant 0 : i32
    %23 = vector.broadcast %c0_i32_7 : i32 to vector<256x1xi32>
    %24 = arith.cmpi ne, %22, %23 : vector<256x1xi32>
    %c0_i32_8 = arith.constant 0 : i32
    %25 = vector.broadcast %c0_i32_8 : i32 to vector<256x1xi32>
    %26 = arith.cmpi slt, %22, %25 : vector<256x1xi32>
    %c0_i32_9 = arith.constant 0 : i32
    %27 = arith.cmpi slt, %20, %c0_i32_9 : i32
    %28 = vector.broadcast %27 : i1 to vector<256x1xi1>
    %29 = vector.broadcast %28 : vector<256x1xi1> to vector<256x1xi1>
    %30 = arith.xori %26, %29 : vector<256x1xi1>
    %31 = arith.andi %30, %24 : vector<256x1xi1>
    %32 = vector.broadcast %20 : i32 to vector<256x1xi32>
    %33 = arith.addi %22, %32 : vector<256x1xi32>
    %34 = arith.select %31, %33, %22 : vector<256x1xi1>, vector<256x1xi32>
    %c0_i32_10 = arith.constant 0 : i32
    %35 = vector.broadcast %c0_i32_10 : i32 to vector<256x1xi32>
    %36 = arith.cmpi sgt, %18, %35 : vector<256x1xi32>
    %37 = arith.extui %36 : vector<256x1xi1> to vector<256x1xi32>
    %38 = arith.sitofp %37 : vector<256x1xi32> to vector<256x1xf32>
    %c15_i32 = arith.constant 15 : i32
    %39 = vector.broadcast %c15_i32 : i32 to vector<256x1xi32>
    %40 = arith.cmpi slt, %18, %39 : vector<256x1xi32>
    %41 = arith.extui %40 : vector<256x1xi1> to vector<256x1xi32>
    %42 = arith.sitofp %41 : vector<256x1xi32> to vector<256x1xf32>
    %c16_i32_11 = arith.constant 16 : i32
    %43 = vector.broadcast %c16_i32_11 : i32 to vector<256x1xi32>
    %44 = arith.cmpi sge, %34, %43 : vector<256x1xi32>
    %45 = arith.extui %44 : vector<256x1xi1> to vector<256x1xi32>
    %46 = arith.sitofp %45 : vector<256x1xi32> to vector<256x1xf32>
    %c240_i32 = arith.constant 240 : i32
    %47 = vector.broadcast %c240_i32 : i32 to vector<256x1xi32>
    %48 = arith.cmpi slt, %34, %47 : vector<256x1xi32>
    %49 = arith.extui %48 : vector<256x1xi1> to vector<256x1xi32>
    %50 = arith.sitofp %49 : vector<256x1xi32> to vector<256x1xf32>
    %c0_12 = arith.constant 0 : index
    %c0_13 = arith.constant 0 : index
    %51 = vector.load %arg8[%c0_12, %c0_13] : memref<6x128xf32, #tpu.memory_space<vmem>>, vector<6x128xf32>
    %cst = arith.constant 0.000000e+00 : f32
    %52 = vector.broadcast %cst : f32 to vector<1x128xf32>
    %53 = vector.extract_strided_slice %1 {offsets = [0, 0], sizes = [255, 128], strides = [1, 1]} : vector<256x128xf32> to vector<255x128xf32>
    %54 = tpu.concatenate %52, %53 in 0 : vector<1x128xf32>, vector<255x128xf32> -> vector<256x128xf32>
    %55 = vector.broadcast %38 : vector<256x1xf32> to vector<256x128xf32>
    %56 = arith.mulf %54, %55 : vector<256x128xf32>
    %57 = vector.extract_strided_slice %1 {offsets = [1, 0], sizes = [255, 128], strides = [1, 1]} : vector<256x128xf32> to vector<255x128xf32>
    %58 = tpu.concatenate %57, %52 in 0 : vector<255x128xf32>, vector<1x128xf32> -> vector<256x128xf32>
    %59 = vector.broadcast %42 : vector<256x1xf32> to vector<256x128xf32>
    %60 = arith.mulf %58, %59 : vector<256x128xf32>
    %61 = tpu.concatenate %56, %1, %60 in 1 : vector<256x128xf32>, vector<256x128xf32>, vector<256x128xf32> -> vector<256x384xf32>
    %c0_14 = arith.constant 0 : index
    %c0_15 = arith.constant 0 : index
    %c0_16 = arith.constant 0 : index
    %62 = vector.load %arg2[%c0_14, %c0_15, %c0_16] : memref<3x384x32xf32, #tpu.memory_space<vmem>>, vector<1x384x32xf32>
    %63 = vector.shape_cast %62 : vector<1x384x32xf32> to vector<384x32xf32>
    %cst_17 = arith.constant dense<0.000000e+00> : vector<256x32xf32>
    %64 = tpu.matmul %61, %63, %cst_17 {dimension_numbers = #tpu.dot_dimension_numbers<[1], [0], [0], [1], [0, 0, 1, 1], [], []>} : vector<256x384xf32>, vector<384x32xf32>, vector<256x32xf32> -> vector<256x32xf32>
    %c1 = arith.constant 1 : index
    %c0_18 = arith.constant 0 : index
    %c0_19 = arith.constant 0 : index
    %65 = vector.load %arg2[%c1, %c0_18, %c0_19] : memref<3x384x32xf32, #tpu.memory_space<vmem>>, vector<1x384x32xf32>
    %66 = vector.shape_cast %65 : vector<1x384x32xf32> to vector<384x32xf32>
    %cst_20 = arith.constant dense<0.000000e+00> : vector<256x32xf32>
    %67 = tpu.matmul %61, %66, %cst_20 {dimension_numbers = #tpu.dot_dimension_numbers<[1], [0], [0], [1], [0, 0, 1, 1], [], []>} : vector<256x384xf32>, vector<384x32xf32>, vector<256x32xf32> -> vector<256x32xf32>
    %c2 = arith.constant 2 : index
    %c0_21 = arith.constant 0 : index
    %c0_22 = arith.constant 0 : index
    %68 = vector.load %arg2[%c2, %c0_21, %c0_22] : memref<3x384x32xf32, #tpu.memory_space<vmem>>, vector<1x384x32xf32>
    %69 = vector.shape_cast %68 : vector<1x384x32xf32> to vector<384x32xf32>
    %cst_23 = arith.constant dense<0.000000e+00> : vector<256x32xf32>
    %70 = tpu.matmul %61, %69, %cst_23 {dimension_numbers = #tpu.dot_dimension_numbers<[1], [0], [0], [1], [0, 0, 1, 1], [], []>} : vector<256x384xf32>, vector<384x32xf32>, vector<256x32xf32> -> vector<256x32xf32>
    %cst_24 = arith.constant 0.000000e+00 : f32
    %71 = vector.broadcast %cst_24 : f32 to vector<16x32xf32>
    %72 = vector.extract_strided_slice %64 {offsets = [0, 0], sizes = [240, 32], strides = [1, 1]} : vector<256x32xf32> to vector<240x32xf32>
    %73 = tpu.concatenate %71, %72 in 0 : vector<16x32xf32>, vector<240x32xf32> -> vector<256x32xf32>
    %74 = vector.broadcast %46 : vector<256x1xf32> to vector<256x32xf32>
    %75 = arith.mulf %74, %73 : vector<256x32xf32>
    %76 = arith.addf %67, %75 : vector<256x32xf32>
    %77 = vector.extract_strided_slice %70 {offsets = [16, 0], sizes = [240, 32], strides = [1, 1]} : vector<256x32xf32> to vector<240x32xf32>
    %78 = tpu.concatenate %77, %71 in 0 : vector<240x32xf32>, vector<16x32xf32> -> vector<256x32xf32>
    %79 = vector.broadcast %50 : vector<256x1xf32> to vector<256x32xf32>
    %80 = arith.mulf %79, %78 : vector<256x32xf32>
    %81 = arith.addf %76, %80 : vector<256x32xf32>
    %82 = vector.extract_strided_slice %51 {offsets = [0, 0], sizes = [1, 32], strides = [1, 1]} : vector<6x128xf32> to vector<1x32xf32>
    %83 = vector.broadcast %82 : vector<1x32xf32> to vector<256x32xf32>
    %84 = arith.addf %81, %83 : vector<256x32xf32>
    %cst_25 = arith.constant 0.000000e+00 : f32
    %85 = vector.broadcast %cst_25 : f32 to vector<256x32xf32>
    %86 = arith.cmpf ogt, %84, %85 : vector<256x32xf32>
    %cst_26 = arith.constant 0.00999999977 : f32
    %87 = vector.broadcast %cst_26 : f32 to vector<256x32xf32>
    %88 = arith.mulf %87, %84 : vector<256x32xf32>
    %89 = arith.select %86, %84, %88 : vector<256x32xi1>, vector<256x32xf32>
    %cst_27 = arith.constant 0.000000e+00 : f32
    %90 = vector.broadcast %cst_27 : f32 to vector<1x32xf32>
    %91 = vector.extract_strided_slice %89 {offsets = [0, 0], sizes = [255, 32], strides = [1, 1]} : vector<256x32xf32> to vector<255x32xf32>
    %92 = tpu.concatenate %90, %91 in 0 : vector<1x32xf32>, vector<255x32xf32> -> vector<256x32xf32>
    %93 = vector.broadcast %38 : vector<256x1xf32> to vector<256x32xf32>
    %94 = arith.mulf %92, %93 : vector<256x32xf32>
    %95 = vector.extract_strided_slice %89 {offsets = [1, 0], sizes = [255, 32], strides = [1, 1]} : vector<256x32xf32> to vector<255x32xf32>
    %96 = tpu.concatenate %95, %90 in 0 : vector<255x32xf32>, vector<1x32xf32> -> vector<256x32xf32>
    %97 = vector.broadcast %42 : vector<256x1xf32> to vector<256x32xf32>
    %98 = arith.mulf %96, %97 : vector<256x32xf32>
    %99 = tpu.concatenate %94, %89, %98 in 1 : vector<256x32xf32>, vector<256x32xf32>, vector<256x32xf32> -> vector<256x96xf32>
    %c0_28 = arith.constant 0 : index
    %c0_29 = arith.constant 0 : index
    %c0_30 = arith.constant 0 : index
    %100 = vector.load %arg3[%c0_28, %c0_29, %c0_30] : memref<3x96x32xf32, #tpu.memory_space<vmem>>, vector<1x96x32xf32>
    %101 = vector.shape_cast %100 : vector<1x96x32xf32> to vector<96x32xf32>
    %cst_31 = arith.constant dense<0.000000e+00> : vector<256x32xf32>
    %102 = tpu.matmul %99, %101, %cst_31 {dimension_numbers = #tpu.dot_dimension_numbers<[1], [0], [0], [1], [0, 0, 1, 1], [], []>} : vector<256x96xf32>, vector<96x32xf32>, vector<256x32xf32> -> vector<256x32xf32>
    %c1_32 = arith.constant 1 : index
    %c0_33 = arith.constant 0 : index
    %c0_34 = arith.constant 0 : index
    %103 = vector.load %arg3[%c1_32, %c0_33, %c0_34] : memref<3x96x32xf32, #tpu.memory_space<vmem>>, vector<1x96x32xf32>
    %104 = vector.shape_cast %103 : vector<1x96x32xf32> to vector<96x32xf32>
    %cst_35 = arith.constant dense<0.000000e+00> : vector<256x32xf32>
    %105 = tpu.matmul %99, %104, %cst_35 {dimension_numbers = #tpu.dot_dimension_numbers<[1], [0], [0], [1], [0, 0, 1, 1], [], []>} : vector<256x96xf32>, vector<96x32xf32>, vector<256x32xf32> -> vector<256x32xf32>
    %c2_36 = arith.constant 2 : index
    %c0_37 = arith.constant 0 : index
    %c0_38 = arith.constant 0 : index
    %106 = vector.load %arg3[%c2_36, %c0_37, %c0_38] : memref<3x96x32xf32, #tpu.memory_space<vmem>>, vector<1x96x32xf32>
    %107 = vector.shape_cast %106 : vector<1x96x32xf32> to vector<96x32xf32>
    %cst_39 = arith.constant dense<0.000000e+00> : vector<256x32xf32>
    %108 = tpu.matmul %99, %107, %cst_39 {dimension_numbers = #tpu.dot_dimension_numbers<[1], [0], [0], [1], [0, 0, 1, 1], [], []>} : vector<256x96xf32>, vector<96x32xf32>, vector<256x32xf32> -> vector<256x32xf32>
    %cst_40 = arith.constant 0.000000e+00 : f32
    %109 = vector.broadcast %cst_40 : f32 to vector<16x32xf32>
    %110 = vector.extract_strided_slice %102 {offsets = [0, 0], sizes = [240, 32], strides = [1, 1]} : vector<256x32xf32> to vector<240x32xf32>
    %111 = tpu.concatenate %109, %110 in 0 : vector<16x32xf32>, vector<240x32xf32> -> vector<256x32xf32>
    %112 = vector.broadcast %46 : vector<256x1xf32> to vector<256x32xf32>
    %113 = arith.mulf %112, %111 : vector<256x32xf32>
    %114 = arith.addf %105, %113 : vector<256x32xf32>
    %115 = vector.extract_strided_slice %108 {offsets = [16, 0], sizes = [240, 32], strides = [1, 1]} : vector<256x32xf32> to vector<240x32xf32>
    %116 = tpu.concatenate %115, %109 in 0 : vector<240x32xf32>, vector<16x32xf32> -> vector<256x32xf32>
    %117 = vector.broadcast %50 : vector<256x1xf32> to vector<256x32xf32>
    %118 = arith.mulf %117, %116 : vector<256x32xf32>
    %119 = arith.addf %114, %118 : vector<256x32xf32>
    %120 = vector.extract_strided_slice %51 {offsets = [1, 0], sizes = [1, 32], strides = [1, 1]} : vector<6x128xf32> to vector<1x32xf32>
    %121 = vector.broadcast %120 : vector<1x32xf32> to vector<256x32xf32>
    %122 = arith.addf %119, %121 : vector<256x32xf32>
    %cst_41 = arith.constant 0.000000e+00 : f32
    %123 = vector.broadcast %cst_41 : f32 to vector<256x32xf32>
    %124 = arith.cmpf ogt, %122, %123 : vector<256x32xf32>
    %cst_42 = arith.constant 0.00999999977 : f32
    %125 = vector.broadcast %cst_42 : f32 to vector<256x32xf32>
    %126 = arith.mulf %125, %122 : vector<256x32xf32>
    %127 = arith.select %124, %122, %126 : vector<256x32xi1>, vector<256x32xf32>
    %c0_43 = arith.constant 0 : index
    %c0_44 = arith.constant 0 : index
    %128 = vector.load %arg4[%c0_43, %c0_44] : memref<32x128xf32, #tpu.memory_space<vmem>>, vector<32x128xf32>
    %cst_45 = arith.constant dense<0.000000e+00> : vector<256x128xf32>
    %129 = tpu.matmul %127, %128, %cst_45 {dimension_numbers = #tpu.dot_dimension_numbers<[1], [0], [0], [1], [0, 0, 1, 1], [], []>} : vector<256x32xf32>, vector<32x128xf32>, vector<256x128xf32> -> vector<256x128xf32>
    %130 = vector.extract_strided_slice %51 {offsets = [2, 0], sizes = [1, 128], strides = [1, 1]} : vector<6x128xf32> to vector<1x128xf32>
    %131 = vector.broadcast %130 : vector<1x128xf32> to vector<256x128xf32>
    %132 = arith.addf %129, %131 : vector<256x128xf32>
    %cst_46 = arith.constant 5.000000e-01 : f32
    %133 = vector.broadcast %cst_46 : f32 to vector<256x128xf32>
    %134 = arith.mulf %133, %132 : vector<256x128xf32>
    %135 = math.tanh %134 : vector<256x128xf32>
    %cst_47 = arith.constant 1.000000e+00 : f32
    %136 = vector.broadcast %cst_47 : f32 to vector<256x128xf32>
    %137 = arith.addf %135, %136 : vector<256x128xf32>
    %cst_48 = arith.constant 5.000000e-01 : f32
    %138 = vector.broadcast %cst_48 : f32 to vector<256x128xf32>
    %139 = arith.mulf %138, %137 : vector<256x128xf32>
    %140 = arith.mulf %139, %1 : vector<256x128xf32>
    %cst_49 = arith.constant 0.000000e+00 : f32
    %141 = vector.broadcast %cst_49 : f32 to vector<1x128xf32>
    %142 = vector.extract_strided_slice %140 {offsets = [0, 0], sizes = [255, 128], strides = [1, 1]} : vector<256x128xf32> to vector<255x128xf32>
    %143 = tpu.concatenate %141, %142 in 0 : vector<1x128xf32>, vector<255x128xf32> -> vector<256x128xf32>
    %144 = vector.broadcast %38 : vector<256x1xf32> to vector<256x128xf32>
    %145 = arith.mulf %143, %144 : vector<256x128xf32>
    %146 = vector.extract_strided_slice %140 {offsets = [1, 0], sizes = [255, 128], strides = [1, 1]} : vector<256x128xf32> to vector<255x128xf32>
    %147 = tpu.concatenate %146, %141 in 0 : vector<255x128xf32>, vector<1x128xf32> -> vector<256x128xf32>
    %148 = vector.broadcast %42 : vector<256x1xf32> to vector<256x128xf32>
    %149 = arith.mulf %147, %148 : vector<256x128xf32>
    %150 = tpu.concatenate %145, %140, %149 in 1 : vector<256x128xf32>, vector<256x128xf32>, vector<256x128xf32> -> vector<256x384xf32>
    %c0_50 = arith.constant 0 : index
    %c0_51 = arith.constant 0 : index
    %c0_52 = arith.constant 0 : index
    %151 = vector.load %arg5[%c0_50, %c0_51, %c0_52] : memref<3x384x64xf32, #tpu.memory_space<vmem>>, vector<1x384x64xf32>
    %152 = vector.shape_cast %151 : vector<1x384x64xf32> to vector<384x64xf32>
    %cst_53 = arith.constant dense<0.000000e+00> : vector<256x64xf32>
    %153 = tpu.matmul %150, %152, %cst_53 {dimension_numbers = #tpu.dot_dimension_numbers<[1], [0], [0], [1], [0, 0, 1, 1], [], []>} : vector<256x384xf32>, vector<384x64xf32>, vector<256x64xf32> -> vector<256x64xf32>
    %c1_54 = arith.constant 1 : index
    %c0_55 = arith.constant 0 : index
    %c0_56 = arith.constant 0 : index
    %154 = vector.load %arg5[%c1_54, %c0_55, %c0_56] : memref<3x384x64xf32, #tpu.memory_space<vmem>>, vector<1x384x64xf32>
    %155 = vector.shape_cast %154 : vector<1x384x64xf32> to vector<384x64xf32>
    %cst_57 = arith.constant dense<0.000000e+00> : vector<256x64xf32>
    %156 = tpu.matmul %150, %155, %cst_57 {dimension_numbers = #tpu.dot_dimension_numbers<[1], [0], [0], [1], [0, 0, 1, 1], [], []>} : vector<256x384xf32>, vector<384x64xf32>, vector<256x64xf32> -> vector<256x64xf32>
    %c2_58 = arith.constant 2 : index
    %c0_59 = arith.constant 0 : index
    %c0_60 = arith.constant 0 : index
    %157 = vector.load %arg5[%c2_58, %c0_59, %c0_60] : memref<3x384x64xf32, #tpu.memory_space<vmem>>, vector<1x384x64xf32>
    %158 = vector.shape_cast %157 : vector<1x384x64xf32> to vector<384x64xf32>
    %cst_61 = arith.constant dense<0.000000e+00> : vector<256x64xf32>
    %159 = tpu.matmul %150, %158, %cst_61 {dimension_numbers = #tpu.dot_dimension_numbers<[1], [0], [0], [1], [0, 0, 1, 1], [], []>} : vector<256x384xf32>, vector<384x64xf32>, vector<256x64xf32> -> vector<256x64xf32>
    %cst_62 = arith.constant 0.000000e+00 : f32
    %160 = vector.broadcast %cst_62 : f32 to vector<16x64xf32>
    %161 = vector.extract_strided_slice %153 {offsets = [0, 0], sizes = [240, 64], strides = [1, 1]} : vector<256x64xf32> to vector<240x64xf32>
    %162 = tpu.concatenate %160, %161 in 0 : vector<16x64xf32>, vector<240x64xf32> -> vector<256x64xf32>
    %163 = vector.broadcast %46 : vector<256x1xf32> to vector<256x64xf32>
    %164 = arith.mulf %163, %162 : vector<256x64xf32>
    %165 = arith.addf %156, %164 : vector<256x64xf32>
    %166 = vector.extract_strided_slice %159 {offsets = [16, 0], sizes = [240, 64], strides = [1, 1]} : vector<256x64xf32> to vector<240x64xf32>
    %167 = tpu.concatenate %166, %160 in 0 : vector<240x64xf32>, vector<16x64xf32> -> vector<256x64xf32>
    %168 = vector.broadcast %50 : vector<256x1xf32> to vector<256x64xf32>
    %169 = arith.mulf %168, %167 : vector<256x64xf32>
    %170 = arith.addf %165, %169 : vector<256x64xf32>
    %171 = vector.extract_strided_slice %51 {offsets = [3, 0], sizes = [1, 64], strides = [1, 1]} : vector<6x128xf32> to vector<1x64xf32>
    %172 = vector.broadcast %171 : vector<1x64xf32> to vector<256x64xf32>
    %173 = arith.addf %170, %172 : vector<256x64xf32>
    %cst_63 = arith.constant 0.000000e+00 : f32
    %174 = vector.broadcast %cst_63 : f32 to vector<256x64xf32>
    %175 = arith.cmpf ogt, %173, %174 : vector<256x64xf32>
    %cst_64 = arith.constant 0.00999999977 : f32
    %176 = vector.broadcast %cst_64 : f32 to vector<256x64xf32>
    %177 = arith.mulf %176, %173 : vector<256x64xf32>
    %178 = arith.select %175, %173, %177 : vector<256x64xi1>, vector<256x64xf32>
    %cst_65 = arith.constant dense<0.000000e+00> : vector<64xf32>
    %179 = vector.multi_reduction <add>, %178, %cst_65 [0] : vector<256x64xf32> to vector<64xf32>
    %180 = vector.shape_cast %179 : vector<64xf32> to vector<1x64xf32>
    %cst_66 = arith.constant 2.560000e+02 : f32
    %181 = vector.broadcast %cst_66 : f32 to vector<1x64xf32>
    %182 = arith.divf %180, %181 : vector<1x64xf32>
    %c0_67 = arith.constant 0 : index
    %c0_68 = arith.constant 0 : index
    %183 = vector.load %arg6[%c0_67, %c0_68] : memref<64x8xf32, #tpu.memory_space<vmem>>, vector<64x8xf32>
    %cst_69 = arith.constant dense<0.000000e+00> : vector<1x8xf32>
    %184 = tpu.matmul %182, %183, %cst_69 {dimension_numbers = #tpu.dot_dimension_numbers<[1], [0], [0], [1], [0, 0, 1, 1], [], []>} : vector<1x64xf32>, vector<64x8xf32>, vector<1x8xf32> -> vector<1x8xf32>
    %185 = vector.extract_strided_slice %51 {offsets = [4, 0], sizes = [1, 8], strides = [1, 1]} : vector<6x128xf32> to vector<1x8xf32>
    %186 = arith.addf %184, %185 : vector<1x8xf32>
    %cst_70 = arith.constant 0.000000e+00 : f32
    %187 = vector.broadcast %cst_70 : f32 to vector<1x8xf32>
    %188 = arith.maximumf %186, %187 : vector<1x8xf32>
    %c0_71 = arith.constant 0 : index
    %c0_72 = arith.constant 0 : index
    %189 = vector.load %arg7[%c0_71, %c0_72] : memref<8x128xf32, #tpu.memory_space<vmem>>, vector<8x128xf32>
    %cst_73 = arith.constant dense<0.000000e+00> : vector<1x128xf32>
    %190 = tpu.matmul %188, %189, %cst_73 {dimension_numbers = #tpu.dot_dimension_numbers<[1], [0], [0], [1], [0, 0, 1, 1], [], []>} : vector<1x8xf32>, vector<8x128xf32>, vector<1x128xf32> -> vector<1x128xf32>
    %191 = vector.extract_strided_slice %51 {offsets = [5, 0], sizes = [1, 128], strides = [1, 1]} : vector<6x128xf32> to vector<1x128xf32>
    %192 = arith.addf %190, %191 : vector<1x128xf32>
    %cst_74 = arith.constant 5.000000e-01 : f32
    %193 = vector.broadcast %cst_74 : f32 to vector<1x128xf32>
    %194 = arith.mulf %193, %192 : vector<1x128xf32>
    %195 = math.tanh %194 : vector<1x128xf32>
    %cst_75 = arith.constant 1.000000e+00 : f32
    %196 = vector.broadcast %cst_75 : f32 to vector<1x128xf32>
    %197 = arith.addf %195, %196 : vector<1x128xf32>
    %cst_76 = arith.constant 5.000000e-01 : f32
    %198 = vector.broadcast %cst_76 : f32 to vector<1x128xf32>
    %199 = arith.mulf %198, %197 : vector<1x128xf32>
    %200 = vector.extract_strided_slice %199 {offsets = [0, 0], sizes = [1, 64], strides = [1, 1]} : vector<1x128xf32> to vector<1x64xf32>
    %201 = vector.broadcast %200 : vector<1x64xf32> to vector<256x64xf32>
    %202 = arith.mulf %178, %201 : vector<256x64xf32>
    %203 = vector.extract_strided_slice %199 {offsets = [0, 64], sizes = [1, 64], strides = [1, 1]} : vector<1x128xf32> to vector<1x64xf32>
    %204 = vector.broadcast %203 : vector<1x64xf32> to vector<256x64xf32>
    %205 = arith.mulf %178, %204 : vector<256x64xf32>
    %206 = tpu.concatenate %202, %205 in 1 : vector<256x64xf32>, vector<256x64xf32> -> vector<256x128xf32>
    %207 = arith.addf %206, %1 : vector<256x128xf32>
    %c0_77 = arith.constant 0 : index
    %c0_78 = arith.constant 0 : index
    %c0_79 = arith.constant 0 : index
    %208 = vector.load %arg9[%c0_77, %c0_78, %c0_79] : memref<1x256x128xf32, #tpu.memory_space<vmem>>, vector<1x256x128xf32>
    %209 = vector.shape_cast %208 : vector<1x256x128xf32> to vector<256x128xf32>
    %210 = vector.shape_cast %207 : vector<256x128xf32> to vector<1x256x128xf32>
    tpu.vector_store %arg9[%c0_77, %c0_78, %c0_79], %210 {strides = array<i32>} : memref<1x256x128xf32, #tpu.memory_space<vmem>>, vector<1x256x128xf32>,
    return
  }
  func.func @transform_0(%arg0: i32) -> (i32, i32, i32) {
    %c0_i32 = arith.constant 0 : i32
    %c0_i32_0 = arith.constant 0 : i32
    %c0_i32_1 = arith.constant 0 : i32
    return %arg0, %c0_i32, %c0_i32_0 : i32, i32, i32
  }
  func.func @transform_1(%arg0: i32) -> (i32, i32, i32) {
    %c0_i32 = arith.constant 0 : i32
    %c0_i32_0 = arith.constant 0 : i32
    %c0_i32_1 = arith.constant 0 : i32
    %c0_i32_2 = arith.constant 0 : i32
    return %c0_i32, %c0_i32_0, %c0_i32_1 : i32, i32, i32
  }
  func.func @transform_2(%arg0: i32) -> (i32, i32, i32) {
    %c0_i32 = arith.constant 0 : i32
    %c0_i32_0 = arith.constant 0 : i32
    %c0_i32_1 = arith.constant 0 : i32
    %c0_i32_2 = arith.constant 0 : i32
    return %c0_i32, %c0_i32_0, %c0_i32_1 : i32, i32, i32
  }
  func.func @transform_3(%arg0: i32) -> (i32, i32) {
    %c0_i32 = arith.constant 0 : i32
    %c0_i32_0 = arith.constant 0 : i32
    %c0_i32_1 = arith.constant 0 : i32
    return %c0_i32, %c0_i32_0 : i32, i32
  }
  func.func @transform_4(%arg0: i32) -> (i32, i32, i32) {
    %c0_i32 = arith.constant 0 : i32
    %c0_i32_0 = arith.constant 0 : i32
    %c0_i32_1 = arith.constant 0 : i32
    %c0_i32_2 = arith.constant 0 : i32
    return %c0_i32, %c0_i32_0, %c0_i32_1 : i32, i32, i32
  }
  func.func @transform_5(%arg0: i32) -> (i32, i32) {
    %c0_i32 = arith.constant 0 : i32
    %c0_i32_0 = arith.constant 0 : i32
    %c0_i32_1 = arith.constant 0 : i32
    return %c0_i32, %c0_i32_0 : i32, i32
  }
  func.func @transform_6(%arg0: i32) -> (i32, i32) {
    %c0_i32 = arith.constant 0 : i32
    %c0_i32_0 = arith.constant 0 : i32
    %c0_i32_1 = arith.constant 0 : i32
    return %c0_i32, %c0_i32_0 : i32, i32
  }
  func.func @transform_7(%arg0: i32) -> (i32, i32) {
    %c0_i32 = arith.constant 0 : i32
    %c0_i32_0 = arith.constant 0 : i32
    %c0_i32_1 = arith.constant 0 : i32
    return %c0_i32, %c0_i32_0 : i32, i32
  }
  func.func @transform_8(%arg0: i32) -> (i32, i32, i32) {
    %c0_i32 = arith.constant 0 : i32
    %c0_i32_0 = arith.constant 0 : i32
    %c0_i32_1 = arith.constant 0 : i32
    return %arg0, %c0_i32, %c0_i32_0 : i32, i32, i32
  }
}

</mosaic_0001>

<llo_original>
// kernel: dense_2d_cr_add_sim.1
$region0: #{dense_2d_cr_add_sim.1}
  #allocation0 [shape = 'u32[]', space=smem, size = 0x4, offset = 0x4, fixed_abs, tag = 'smem constant byte address 0x4 - core index']
  #allocation1 [shape = 'u32[144,128]{1,0:T(1,128)}', space=vmem, size = 0x12000, scoped, tag = 'internal scratch']
  %s0 = inlined_call_operand.vmem [shape: f32[2,256,128], index: 0, kind: input, shape index: {}]
  %s1 = inlined_call_operand.vmem [shape: f32[3,384,32], index: 1, kind: input, shape index: {}]
  %s2 = inlined_call_operand.vmem [shape: f32[3,96,32], index: 2, kind: input, shape index: {}]
  %s3 = inlined_call_operand.vmem [shape: f32[32,128], index: 3, kind: input, shape index: {}]
  %s4 = inlined_call_operand.vmem [shape: f32[3,384,64], index: 4, kind: input, shape index: {}]
  %s5 = inlined_call_operand.vmem [shape: f32[64,8], index: 5, kind: input, shape index: {}]
  %s6 = inlined_call_operand.vmem [shape: f32[8,128], index: 6, kind: input, shape index: {}]
  %s7 = inlined_call_operand.vmem [shape: f32[6,128], index: 7, kind: input, shape index: {}]
  %s8 = inlined_call_operand.vmem [shape: f32[2,256,128], index: 8, kind: output, shape index: {}]
  %s9 = sld [smem:[#allocation0]]
  $region65: #{dense_2d_cr_add_sim.1} parent=0
    _
  %s11 = ssub.s32 1, %s9
  %s12 = scalar_select 0, %s11, %s9
  loop: start=0, step=1, limit=4
  $region2: #{dense_2d_cr_add_sim.1} parent=0 // loop_pre_header
    _
  $region3: #{dense_2d_cr_add_sim.1} parent=0 // loop_header
    %s14 = sphi 0, %s18
    %p15 = scmp.ge.s32.totalorder %s14, 4
    %s24 = sphi 0, %s26
    %s27 = sphi 0, %s24
    %s28 = sphi 0, %s27
    %s44 = sphi 0, %s28
    %s48 = sphi 0, %s48
    %s50 = sphi 0, %s48
    %s51 = sphi 0, %s50
    %s65 = sphi 0, %s51
    %s69 = sphi 0, %s69
    %s71 = sphi 0, %s69
    %s72 = sphi 0, %s71
    %s86 = sphi 0, %s72
    %s90 = sphi 0, %s90
    %s92 = sphi 0, %s90
    %s93 = sphi 0, %s92
    %s107 = sphi 0, %s93
    %s111 = sphi 0, %s111
    %s113 = sphi 0, %s111
    %s114 = sphi 0, %s113
    %s128 = sphi 0, %s114
    %s132 = sphi 0, %s132
    %s134 = sphi 0, %s132
    %s135 = sphi 0, %s134
    %s149 = sphi 0, %s135
    %s153 = sphi 0, %s153
    %s155 = sphi 0, %s153
    %s156 = sphi 0, %s155
    %s170 = sphi 0, %s156
    %s174 = sphi 0, %s174
    %s176 = sphi 0, %s174
    %s177 = sphi 0, %s176
    %s191 = sphi 0, %s177
    %s197 = sphi 0, %s199
    %s200 = sphi 0, %s197
    %s201 = sphi 0, %s200
    %s217 = sphi 0, %s201
  $region4: #{dense_2d_cr_add_sim.1} parent=0 // loop_header_branch
    %17 = sbr.rel (%p15) target = $region8
  $region5: #{dense_2d_cr_add_sim.1} parent=0 // loop_body
    %s19 = ssub.s32 %s14, 1
    %s20 = ssub.s32 %s14, 2
    %s21 = sadd.s32 %s14, 1
    %s22 = ssub.s32 %s14, %s21
    %p23 = scmp.eq.s32.totalorder %s22, 0
    %s25 = sadd.s32 %s24, 1
    %s26 = scalar_select %p23, %s24, %s25
    %p29 = pneg %p23
    %p30 = scmp.eq.s32.totalorder %s14, 1
    %p31 = por %p29, %p30
    %p32 = scmp.ne.s32.totalorder %s24, %s27
    %p33 = scmp.eq.s32.totalorder %s14, 0
    %p34 = por %p32, %p33
    %p35 = scmp.ne.s32.totalorder %s24, %s27
    %p36 = scmp.eq.s32.totalorder %s19, 1
    %p37 = por %p35, %p36
    %p38 = scmp.ne.s32.totalorder %s27, %s28
    %p39 = scmp.eq.s32.totalorder %s19, 0
    %p40 = por %p38, %p39
    %p41 = scmp.ne.s32.totalorder %s27, %s28
    %p42 = scmp.eq.s32.totalorder %s20, 1
    %p43 = por %p41, %p42
    %p45 = scmp.ne.s32.totalorder %s28, %s44
    %p46 = scmp.eq.s32.totalorder %s20, 0
    %p47 = por %p45, %p46
    %s49 = sadd.s32 %s48, 1
    %p52 = scmp.eq.s32.totalorder %s14, 1
    %p53 = scmp.ne.s32.totalorder %s48, %s50
    %p54 = scmp.eq.s32.totalorder %s14, 0
    %p55 = por %p53, %p54
    %p56 = scmp.ne.s32.totalorder %s48, %s50
    %p57 = scmp.eq.s32.totalorder %s19, 1
    %p58 = por %p56, %p57
    %p59 = scmp.ne.s32.totalorder %s50, %s51
    %p60 = scmp.eq.s32.totalorder %s19, 0
    %p61 = por %p59, %p60
    %p62 = scmp.ne.s32.totalorder %s50, %s51
    %p63 = scmp.eq.s32.totalorder %s20, 1
    %p64 = por %p62, %p63
    %p66 = scmp.ne.s32.totalorder %s51, %s65
    %p67 = scmp.eq.s32.totalorder %s20, 0
    %p68 = por %p66, %p67
    %s70 = sadd.s32 %s69, 1
    %p73 = scmp.eq.s32.totalorder %s14, 1
    %p74 = scmp.ne.s32.totalorder %s69, %s71
    %p75 = scmp.eq.s32.totalorder %s14, 0
    %p76 = por %p74, %p75
    %p77 = scmp.ne.s32.totalorder %s69, %s71
    %p78 = scmp.eq.s32.totalorder %s19, 1
    %p79 = por %p77, %p78
    %p80 = scmp.ne.s32.totalorder %s71, %s72
    %p81 = scmp.eq.s32.totalorder %s19, 0
    %p82 = por %p80, %p81
    %p83 = scmp.ne.s32.totalorder %s71, %s72
    %p84 = scmp.eq.s32.totalorder %s20, 1
    %p85 = por %p83, %p84
    %p87 = scmp.ne.s32.totalorder %s72, %s86
    %p88 = scmp.eq.s32.totalorder %s20, 0
    %p89 = por %p87, %p88
    %s91 = sadd.s32 %s90, 1
    %p94 = scmp.eq.s32.totalorder %s14, 1
    %p95 = scmp.ne.s32.totalorder %s90, %s92
    %p96 = scmp.eq.s32.totalorder %s14, 0
    %p97 = por %p95, %p96
    %p98 = scmp.ne.s32.totalorder %s90, %s92
    %p99 = scmp.eq.s32.totalorder %s19, 1
    %p100 = por %p98, %p99
    %p101 = scmp.ne.s32.totalorder %s92, %s93
    %p102 = scmp.eq.s32.totalorder %s19, 0
    %p103 = por %p101, %p102
    %p104 = scmp.ne.s32.totalorder %s92, %s93
    %p105 = scmp.eq.s32.totalorder %s20, 1
    %p106 = por %p104, %p105
    %p108 = scmp.ne.s32.totalorder %s93, %s107
    %p109 = scmp.eq.s32.totalorder %s20, 0
    %p110 = por %p108, %p109
    %s112 = sadd.s32 %s111, 1
    %p115 = scmp.eq.s32.totalorder %s14, 1
    %p116 = scmp.ne.s32.totalorder %s111, %s113
    %p117 = scmp.eq.s32.totalorder %s14, 0
    %p118 = por %p116, %p117
    %p119 = scmp.ne.s32.totalorder %s111, %s113
    %p120 = scmp.eq.s32.totalorder %s19, 1
    %p121 = por %p119, %p120
    %p122 = scmp.ne.s32.totalorder %s113, %s114
    %p123 = scmp.eq.s32.totalorder %s19, 0
    %p124 = por %p122, %p123
    %p125 = scmp.ne.s32.totalorder %s113, %s114
    %p126 = scmp.eq.s32.totalorder %s20, 1
    %p127 = por %p125, %p126
    %p129 = scmp.ne.s32.totalorder %s114, %s128
    %p130 = scmp.eq.s32.totalorder %s20, 0
    %p131 = por %p129, %p130
    %s133 = sadd.s32 %s132, 1
    %p136 = scmp.eq.s32.totalorder %s14, 1
    %p137 = scmp.ne.s32.totalorder %s132, %s134
    %p138 = scmp.eq.s32.totalorder %s14, 0
    %p139 = por %p137, %p138
    %p140 = scmp.ne.s32.totalorder %s132, %s134
    %p141 = scmp.eq.s32.totalorder %s19, 1
    %p142 = por %p140, %p141
    %p143 = scmp.ne.s32.totalorder %s134, %s135
    %p144 = scmp.eq.s32.totalorder %s19, 0
    %p145 = por %p143, %p144
    %p146 = scmp.ne.s32.totalorder %s134, %s135
    %p147 = scmp.eq.s32.totalorder %s20, 1
    %p148 = por %p146, %p147
    %p150 = scmp.ne.s32.totalorder %s135, %s149
    %p151 = scmp.eq.s32.totalorder %s20, 0
    %p152 = por %p150, %p151
    %s154 = sadd.s32 %s153, 1
    %p157 = scmp.eq.s32.totalorder %s14, 1
    %p158 = scmp.ne.s32.totalorder %s153, %s155
    %p159 = scmp.eq.s32.totalorder %s14, 0
    %p160 = por %p158, %p159
    %p161 = scmp.ne.s32.totalorder %s153, %s155
    %p162 = scmp.eq.s32.totalorder %s19, 1
    %p163 = por %p161, %p162
    %p164 = scmp.ne.s32.totalorder %s155, %s156
    %p165 = scmp.eq.s32.totalorder %s19, 0
    %p166 = por %p164, %p165
    %p167 = scmp.ne.s32.totalorder %s155, %s156
    %p168 = scmp.eq.s32.totalorder %s20, 1
    %p169 = por %p167, %p168
    %p171 = scmp.ne.s32.totalorder %s156, %s170
    %p172 = scmp.eq.s32.totalorder %s20, 0
    %p173 = por %p171, %p172
    %s175 = sadd.s32 %s174, 1
    %p178 = scmp.eq.s32.totalorder %s14, 1
    %p179 = scmp.ne.s32.totalorder %s174, %s176
    %p180 = scmp.eq.s32.totalorder %s14, 0
    %p181 = por %p179, %p180
    %p182 = scmp.ne.s32.totalorder %s174, %s176
    %p183 = scmp.eq.s32.totalorder %s19, 1
    %p184 = por %p182, %p183
    %p185 = scmp.ne.s32.totalorder %s176, %s177
    %p186 = scmp.eq.s32.totalorder %s19, 0
    %p187 = por %p185, %p186
    %p188 = scmp.ne.s32.totalorder %s176, %s177
    %p189 = scmp.eq.s32.totalorder %s20, 1
    %p190 = por %p188, %p189
    %p192 = scmp.ne.s32.totalorder %s177, %s191
    %p193 = scmp.eq.s32.totalorder %s20, 0
    %p194 = por %p192, %p193
    %s195 = ssub.s32 %s14, %s21
    %p196 = scmp.eq.s32.totalorder %s195, 0
    %s198 = sadd.s32 %s197, 1
    %s199 = scalar_select %p196, %s197, %s198
    %p202 = pneg %p196
    %p203 = scmp.eq.s32.totalorder %s14, 1
    %p204 = por %p202, %p203
    %p205 = scmp.ne.s32.totalorder %s197, %s200
    %p206 = scmp.eq.s32.totalorder %s14, 0
    %p207 = por %p205, %p206
    %p208 = scmp.ne.s32.totalorder %s197, %s200
    %p209 = scmp.eq.s32.totalorder %s19, 1
    %p210 = por %p208, %p209
    %p211 = scmp.ne.s32.totalorder %s200, %s201
    %p212 = scmp.eq.s32.totalorder %s19, 0
    %p213 = por %p211, %p212
    %p214 = scmp.ne.s32.totalorder %s200, %s201
    %p215 = scmp.eq.s32.totalorder %s20, 1
    %p216 = por %p214, %p215
    %p218 = scmp.ne.s32.totalorder %s201, %s217
    %p219 = scmp.eq.s32.totalorder %s20, 0
    %p220 = por %p218, %p219
    %p221 = scmp.le.s32.totalorder 1, %s14
    %p222 = scmp.lt.s32.totalorder %s14, 3
    %p223 = pnand %p221, %p222
    %p224 = pneg %p223
    // Predicated region
    $region9: #{dense_2d_cr_add_sim.1} parent=5 // pred_check
      _
    $region10: #{dense_2d_cr_add_sim.1} parent=5 // pred_check_branch
      %226 = sbr.rel (%p223) target = $region12
    $region11: #{dense_2d_cr_add_sim.1} parent=5 // pred_region
      %s227 = ssub.s32 %s14, 1
      // Predicated region
      $region13: #{dense_2d_cr_add_sim.1} parent=11 // pred_check
        %p228 = pneg %p61
      $region14: #{dense_2d_cr_add_sim.1} parent=11 // pred_check_branch
        %230 = sbr.rel (%p228) target = $region16
      $region15: #{dense_2d_cr_add_sim.1} parent=11 // pred_region
        _
      $region16: #{dense_2d_cr_add_sim.1} parent=11 // pred_fallthru
        _
      // Predicated region
      $region17: #{dense_2d_cr_add_sim.1} parent=11 // pred_check
        %p231 = pneg %p82
      $region18: #{dense_2d_cr_add_sim.1} parent=11 // pred_check_branch
        %233 = sbr.rel (%p231) target = $region20
      $region19: #{dense_2d_cr_add_sim.1} parent=11 // pred_region
        _
      $region20: #{dense_2d_cr_add_sim.1} parent=11 // pred_fallthru
        _
      // Predicated region
      $region21: #{dense_2d_cr_add_sim.1} parent=11 // pred_check
        %p234 = pneg %p103
      $region22: #{dense_2d_cr_add_sim.1} parent=11 // pred_check_branch
        %236 = sbr.rel (%p234) target = $region24
      $region23: #{dense_2d_cr_add_sim.1} parent=11 // pred_region
        _
      $region24: #{dense_2d_cr_add_sim.1} parent=11 // pred_fallthru
        _
      // Predicated region
      $region25: #{dense_2d_cr_add_sim.1} parent=11 // pred_check
        %p237 = pneg %p124
      $region26: #{dense_2d_cr_add_sim.1} parent=11 // pred_check_branch
        %239 = sbr.rel (%p237) target = $region28
      $region27: #{dense_2d_cr_add_sim.1} parent=11 // pred_region
        _
      $region28: #{dense_2d_cr_add_sim.1} parent=11 // pred_fallthru
        _
      // Predicated region
      $region29: #{dense_2d_cr_add_sim.1} parent=11 // pred_check
        %p240 = pneg %p145
      $region30: #{dense_2d_cr_add_sim.1} parent=11 // pred_check_branch
        %242 = sbr.rel (%p240) target = $region32
      $region31: #{dense_2d_cr_add_sim.1} parent=11 // pred_region
        _
      $region32: #{dense_2d_cr_add_sim.1} parent=11 // pred_fallthru
        _
      // Predicated region
      $region33: #{dense_2d_cr_add_sim.1} parent=11 // pred_check
        %p243 = pneg %p166
      $region34: #{dense_2d_cr_add_sim.1} parent=11 // pred_check_branch
        %245 = sbr.rel (%p243) target = $region36
      $region35: #{dense_2d_cr_add_sim.1} parent=11 // pred_region
        _
      $region36: #{dense_2d_cr_add_sim.1} parent=11 // pred_fallthru
        _
      // Predicated region
      $region37: #{dense_2d_cr_add_sim.1} parent=11 // pred_check
        %p246 = pneg %p187
      $region38: #{dense_2d_cr_add_sim.1} parent=11 // pred_check_branch
        %248 = sbr.rel (%p246) target = $region40
      $region39: #{dense_2d_cr_add_sim.1} parent=11 // pred_region
        _
      $region40: #{dense_2d_cr_add_sim.1} parent=11 // pred_fallthru
        _
    $region12: #{dense_2d_cr_add_sim.1} parent=5 // pred_fallthru
      _
    %p249 = scmp.lt.s32.totalorder %s14, 2
    // Predicated region
    $region41: #{dense_2d_cr_add_sim.1} parent=5 // pred_check
      %p250 = pneg %p249
    $region42: #{dense_2d_cr_add_sim.1} parent=5 // pred_check_branch
      %252 = sbr.rel (%p250) target = $region44
    $region43: #{dense_2d_cr_add_sim.1} parent=5 // pred_region
      // Predicated region
      $region45: #{dense_2d_cr_add_sim.1} parent=43 // pred_check
        %p253 = pneg %p34
      $region46: #{dense_2d_cr_add_sim.1} parent=43 // pred_check_branch
        %255 = sbr.rel (%p253) target = $region48
      $region47: #{dense_2d_cr_add_sim.1} parent=43 // pred_region
        %p256 = scmp.lt.s32.totalorder %s14, 1
        %s257 = scalar_select %p256, %s14, 1
        %s258 = smul.addr %s257, 32
        %s259 = smul.addr %s258, 8
        %s260 = scalar_lea.vmem %s0, %s259
      $region48: #{dense_2d_cr_add_sim.1} parent=43 // pred_fallthru
        _
    $region44: #{dense_2d_cr_add_sim.1} parent=5 // pred_fallthru
      _
    %p261 = scmp.le.s32.totalorder 1, %s14
    %p262 = scmp.lt.s32.totalorder %s14, 3
    %p263 = pnand %p261, %p262
    %p264 = pneg %p263
    // Predicated region
    $region49: #{dense_2d_cr_add_sim.1} parent=5 // pred_check
      _
    $region50: #{dense_2d_cr_add_sim.1} parent=5 // pred_check_branch
      %266 = sbr.rel (%p263) target = $region52
    $region51: #{dense_2d_cr_add_sim.1} parent=5 // pred_region
      %s267 = ssub.s32 %s14, 1
      %p268 = scmp.lt.s32.totalorder %s19, 1
      %s269 = scalar_select %p268, %s19, 1
      %s270 = smul.addr %s269, 32
      %s271 = smul.addr %s270, 8
      %s272 = scalar_lea.vmem %s0, %s271
      %p273 = pneg %p40
      %p274 = pneg %p37
      %p275 = pneg %p61
      %p276 = pneg %p58
      %p277 = pneg %p82
      %p278 = pneg %p79
      %p279 = pneg %p103
      %p280 = pneg %p100
      %p281 = pneg %p124
      %p282 = pneg %p121
      %p283 = pneg %p145
      %p284 = pneg %p142
      %p285 = pneg %p166
      %p286 = pneg %p163
      %p287 = pneg %p187
      %p288 = pneg %p184
      %p289 = pneg %p213
      %p290 = pneg %p210
      %p291 = scmp.lt.s32.totalorder %s19, 1
      %s292 = scalar_select %p291, %s19, 1
      %s293 = smul.addr %s292, 32
      %s294 = smul.addr %s293, 8
      %s295 = scalar_lea.vmem %s8, %s294
      %p296 = scmp.lt.s32.totalorder %s19, 1
      %s297 = scalar_select %p296, %s19, 1
      %s298 = smul.addr %s297, 32
      %s299 = smul.addr %s298, 8
      %s300 = scalar_lea.vmem %s0, %s299
      %p301 = scmp.lt.s32.totalorder %s19, 1
      %s302 = scalar_select %p301, %s19, 1
      %s303 = smul.addr %s302, 32
      %s304 = smul.addr %s303, 8
      %s305 = scalar_lea.vmem %s8, %s304
      %v306 = vld [vmem:[%s300] sm:$0xff]
      %v307 = vld [vmem:[%s300 + $0x8] sm:$0xff]
      %v308 = vld [vmem:[%s300 + $0x10] sm:$0xff]
      %v309 = vld [vmem:[%s300 + $0x18] sm:$0xff]
      %v310 = vld [vmem:[%s300 + $0x20] sm:$0xff]
      %v311 = vld [vmem:[%s300 + $0x28] sm:$0xff]
      %v312 = vld [vmem:[%s300 + $0x30] sm:$0xff]
      %v313 = vld [vmem:[%s300 + $0x38] sm:$0xff]
      %v314 = vld [vmem:[%s300 + $0x40] sm:$0xff]
      %v315 = vld [vmem:[%s300 + $0x48] sm:$0xff]
      %v316 = vld [vmem:[%s300 + $0x50] sm:$0xff]
      %v317 = vld [vmem:[%s300 + $0x58] sm:$0xff]
      %v318 = vld [vmem:[%s300 + $0x60] sm:$0xff]
      %v319 = vld [vmem:[%s300 + $0x68] sm:$0xff]
      %v320 = vld [vmem:[%s300 + $0x70] sm:$0xff]
      %v321 = vld [vmem:[%s300 + $0x78] sm:$0xff]
      %v322 = vld [vmem:[%s300 + $0x80] sm:$0xff]
      %v323 = vld [vmem:[%s300 + $0x88] sm:$0xff]
      %v324 = vld [vmem:[%s300 + $0x90] sm:$0xff]
      %v325 = vld [vmem:[%s300 + $0x98] sm:$0xff]
      %v326 = vld [vmem:[%s300 + $0xa0] sm:$0xff]
      %v327 = vld [vmem:[%s300 + $0xa8] sm:$0xff]
      %v328 = vld [vmem:[%s300 + $0xb0] sm:$0xff]
      %v329 = vld [vmem:[%s300 + $0xb8] sm:$0xff]
      %v330 = vld [vmem:[%s300 + $0xc0] sm:$0xff]
      %v331 = vld [vmem:[%s300 + $0xc8] sm:$0xff]
      %v332 = vld [vmem:[%s300 + $0xd0] sm:$0xff]
      %v333 = vld [vmem:[%s300 + $0xd8] sm:$0xff]
      %v334 = vld [vmem:[%s300 + $0xe0] sm:$0xff]
      %v335 = vld [vmem:[%s300 + $0xe8] sm:$0xff]
      %v336 = vld [vmem:[%s300 + $0xf0] sm:$0xff]
      %v337 = vld [vmem:[%s300 + $0xf8] sm:$0xff]
      %v338 = vlaneseq
      %v339 = vshrl.u32 %v338, 7
      %v340 = vadd.s32 %v339, 8
      %v341 = vadd.s32 %v339, 16
      %v342 = vadd.s32 %v339, 24
      %v343 = vadd.s32 %v339, 32
      %v344 = vadd.s32 %v339, 40
      %v345 = vadd.s32 %v339, 48
      %v346 = vadd.s32 %v339, 56
      %v347 = vadd.s32 %v339, 64
      %v348 = vadd.s32 %v339, 72
      %v349 = vadd.s32 %v339, 80
      %v350 = vadd.s32 %v339, 88
      %v351 = vadd.s32 %v339, 96
      %v352 = vadd.s32 %v339, 104
      %v353 = vadd.s32 %v339, 112
      %v354 = vadd.s32 %v339, 120
      %v355 = vadd.s32 %v339, 128
      %v356 = vadd.s32 %v339, 136
      %v357 = vadd.s32 %v339, 144
      %v358 = vadd.s32 %v339, 152
      %v359 = vadd.s32 %v339, 160
      %v360 = vadd.s32 %v339, 168
      %v361 = vadd.s32 %v339, 176
      %v362 = vadd.s32 %v339, 184
      %v363 = vadd.s32 %v339, 192
      %v364 = vadd.s32 %v339, 200
      %v365 = vadd.s32 %v339, 208
      %v366 = vadd.s32 %v339, 216
      %v367 = vadd.s32 %v339, 224
      %v368 = vadd.s32 %v339, 232
      %v369 = vadd.s32 %v339, 240
      %v370 = vadd.s32 %v339, 248
      %vm371 = vcmp.lt.s32.totalorder %v339, 0
      %v372 = vsub.s32 0, %v339
      %v373 = vsel %vm371, %v372, %v339
      %v374 = vshrl.u32 %v373, 4
      %v375 = vand.u32 %v373, 15
      %v376 = vsub.s32 0, %v375
      %v377 = vsel %vm371, %v376, %v375
      %vm378 = vcmp.lt.s32.totalorder %v340, 0
      %v379 = vsub.s32 0, %v340
      %v380 = vsel %vm378, %v379, %v340
      %v381 = vshrl.u32 %v380, 4
      %v382 = vand.u32 %v380, 15
      %v383 = vsub.s32 0, %v382
      %v384 = vsel %vm378, %v383, %v382
      %vm385 = vcmp.lt.s32.totalorder %v341, 0
      %v386 = vsub.s32 0, %v341
      %v387 = vsel %vm385, %v386, %v341
      %v388 = vshrl.u32 %v387, 4
      %v389 = vand.u32 %v387, 15
      %v390 = vsub.s32 0, %v389
      %v391 = vsel %vm385, %v390, %v389
      %vm392 = vcmp.lt.s32.totalorder %v342, 0
      %v393 = vsub.s32 0, %v342
      %v394 = vsel %vm392, %v393, %v342
      %v395 = vshrl.u32 %v394, 4
      %v396 = vand.u32 %v394, 15
      %v397 = vsub.s32 0, %v396
      %v398 = vsel %vm392, %v397, %v396
      %vm399 = vcmp.lt.s32.totalorder %v343, 0
      %v400 = vsub.s32 0, %v343
      %v401 = vsel %vm399, %v400, %v343
      %v402 = vshrl.u32 %v401, 4
      %v403 = vand.u32 %v401, 15
      %v404 = vsub.s32 0, %v403
      %v405 = vsel %vm399, %v404, %v403
      %vm406 = vcmp.lt.s32.totalorder %v344, 0
      %v407 = vsub.s32 0, %v344
      %v408 = vsel %vm406, %v407, %v344
      %v409 = vshrl.u32 %v408, 4
      %v410 = vand.u32 %v408, 15
      %v411 = vsub.s32 0, %v410
      %v412 = vsel %vm406, %v411, %v410
      %vm413 = vcmp.lt.s32.totalorder %v345, 0
      %v414 = vsub.s32 0, %v345
      %v415 = vsel %vm413, %v414, %v345
      %v416 = vshrl.u32 %v415, 4
      %v417 = vand.u32 %v415, 15
      %v418 = vsub.s32 0, %v417
      %v419 = vsel %vm413, %v418, %v417
      %vm420 = vcmp.lt.s32.totalorder %v346, 0
      %v421 = vsub.s32 0, %v346
      %v422 = vsel %vm420, %v421, %v346
      %v423 = vshrl.u32 %v422, 4
      %v424 = vand.u32 %v422, 15
      %v425 = vsub.s32 0, %v424
      %v426 = vsel %vm420, %v425, %v424
      %vm427 = vcmp.lt.s32.totalorder %v347, 0
      %v428 = vsub.s32 0, %v347
      %v429 = vsel %vm427, %v428, %v347
      %v430 = vshrl.u32 %v429, 4
      %v431 = vand.u32 %v429, 15
      %v432 = vsub.s32 0, %v431
      %v433 = vsel %vm427, %v432, %v431
      %vm434 = vcmp.lt.s32.totalorder %v348, 0
      %v435 = vsub.s32 0, %v348
      %v436 = vsel %vm434, %v435, %v348
      %v437 = vshrl.u32 %v436, 4
      %v438 = vand.u32 %v436, 15
      %v439 = vsub.s32 0, %v438
      %v440 = vsel %vm434, %v439, %v438
      %vm441 = vcmp.lt.s32.totalorder %v349, 0
      %v442 = vsub.s32 0, %v349
      %v443 = vsel %vm441, %v442, %v349
      %v444 = vshrl.u32 %v443, 4
      %v445 = vand.u32 %v443, 15
      %v446 = vsub.s32 0, %v445
      %v447 = vsel %vm441, %v446, %v445
      %vm448 = vcmp.lt.s32.totalorder %v350, 0
      %v449 = vsub.s32 0, %v350
      %v450 = vsel %vm448, %v449, %v350
      %v451 = vshrl.u32 %v450, 4
      %v452 = vand.u32 %v450, 15
      %v453 = vsub.s32 0, %v452
      %v454 = vsel %vm448, %v453, %v452
      %vm455 = vcmp.lt.s32.totalorder %v351, 0
      %v456 = vsub.s32 0, %v351
      %v457 = vsel %vm455, %v456, %v351
      %v458 = vshrl.u32 %v457, 4
      %v459 = vand.u32 %v457, 15
      %v460 = vsub.s32 0, %v459
      %v461 = vsel %vm455, %v460, %v459
      %vm462 = vcmp.lt.s32.totalorder %v352, 0
      %v463 = vsub.s32 0, %v352
      %v464 = vsel %vm462, %v463, %v352
      %v465 = vshrl.u32 %v464, 4
      %v466 = vand.u32 %v464, 15
      %v467 = vsub.s32 0, %v466
      %v468 = vsel %vm462, %v467, %v466
      %vm469 = vcmp.lt.s32.totalorder %v353, 0
      %v470 = vsub.s32 0, %v353
      %v471 = vsel %vm469, %v470, %v353
      %v472 = vshrl.u32 %v471, 4
      %v473 = vand.u32 %v471, 15
      %v474 = vsub.s32 0, %v473
      %v475 = vsel %vm469, %v474, %v473
      %vm476 = vcmp.lt.s32.totalorder %v354, 0
      %v477 = vsub.s32 0, %v354
      %v478 = vsel %vm476, %v477, %v354
      %v479 = vshrl.u32 %v478, 4
      %v480 = vand.u32 %v478, 15
      %v481 = vsub.s32 0, %v480
      %v482 = vsel %vm476, %v481, %v480
      %vm483 = vcmp.lt.s32.totalorder %v355, 0
      %v484 = vsub.s32 0, %v355
      %v485 = vsel %vm483, %v484, %v355
      %v486 = vshrl.u32 %v485, 4
      %v487 = vand.u32 %v485, 15
      %v488 = vsub.s32 0, %v487
      %v489 = vsel %vm483, %v488, %v487
      %vm490 = vcmp.lt.s32.totalorder %v356, 0
      %v491 = vsub.s32 0, %v356
      %v492 = vsel %vm490, %v491, %v356
      %v493 = vshrl.u32 %v492, 4
      %v494 = vand.u32 %v492, 15
      %v495 = vsub.s32 0, %v494
      %v496 = vsel %vm490, %v495, %v494
      %vm497 = vcmp.lt.s32.totalorder %v357, 0
      %v498 = vsub.s32 0, %v357
      %v499 = vsel %vm497, %v498, %v357
      %v500 = vshrl.u32 %v499, 4
      %v501 = vand.u32 %v499, 15
      %v502 = vsub.s32 0, %v501
      %v503 = vsel %vm497, %v502, %v501
      %vm504 = vcmp.lt.s32.totalorder %v358, 0
      %v505 = vsub.s32 0, %v358
      %v506 = vsel %vm504, %v505, %v358
      %v507 = vshrl.u32 %v506, 4
      %v508 = vand.u32 %v506, 15
      %v509 = vsub.s32 0, %v508
      %v510 = vsel %vm504, %v509, %v508
      %vm511 = vcmp.lt.s32.totalorder %v359, 0
      %v512 = vsub.s32 0, %v359
      %v513 = vsel %vm511, %v512, %v359
      %v514 = vshrl.u32 %v513, 4
      %v515 = vand.u32 %v513, 15
      %v516 = vsub.s32 0, %v515
      %v517 = vsel %vm511, %v516, %v515
      %vm518 = vcmp.lt.s32.totalorder %v360, 0
      %v519 = vsub.s32 0, %v360
      %v520 = vsel %vm518, %v519, %v360
      %v521 = vshrl.u32 %v520, 4
      %v522 = vand.u32 %v520, 15
      %v523 = vsub.s32 0, %v522
      %v524 = vsel %vm518, %v523, %v522
      %vm525 = vcmp.lt.s32.totalorder %v361, 0
      %v526 = vsub.s32 0, %v361
      %v527 = vsel %vm525, %v526, %v361
      %v528 = vshrl.u32 %v527, 4
      %v529 = vand.u32 %v527, 15
      %v530 = vsub.s32 0, %v529
      %v531 = vsel %vm525, %v530, %v529
      %vm532 = vcmp.lt.s32.totalorder %v362, 0
      %v533 = vsub.s32 0, %v362
      %v534 = vsel %vm532, %v533, %v362
      %v535 = vshrl.u32 %v534, 4
      %v536 = vand.u32 %v534, 15
      %v537 = vsub.s32 0, %v536
      %v538 = vsel %vm532, %v537, %v536
      %vm539 = vcmp.lt.s32.totalorder %v363, 0
      %v540 = vsub.s32 0, %v363
      %v541 = vsel %vm539, %v540, %v363
      %v542 = vshrl.u32 %v541, 4
      %v543 = vand.u32 %v541, 15
      %v544 = vsub.s32 0, %v543
      %v545 = vsel %vm539, %v544, %v543
      %vm546 = vcmp.lt.s32.totalorder %v364, 0
      %v547 = vsub.s32 0, %v364
      %v548 = vsel %vm546, %v547, %v364
      %v549 = vshrl.u32 %v548, 4
      %v550 = vand.u32 %v548, 15
      %v551 = vsub.s32 0, %v550
      %v552 = vsel %vm546, %v551, %v550
      %vm553 = vcmp.lt.s32.totalorder %v365, 0
      %v554 = vsub.s32 0, %v365
      %v555 = vsel %vm553, %v554, %v365
      %v556 = vshrl.u32 %v555, 4
      %v557 = vand.u32 %v555, 15
      %v558 = vsub.s32 0, %v557
      %v559 = vsel %vm553, %v558, %v557
      %vm560 = vcmp.lt.s32.totalorder %v366, 0
      %v561 = vsub.s32 0, %v366
      %v562 = vsel %vm560, %v561, %v366
      %v563 = vshrl.u32 %v562, 4
      %v564 = vand.u32 %v562, 15
      %v565 = vsub.s32 0, %v564
      %v566 = vsel %vm560, %v565, %v564
      %vm567 = vcmp.lt.s32.totalorder %v367, 0
      %v568 = vsub.s32 0, %v367
      %v569 = vsel %vm567, %v568, %v367
      %v570 = vshrl.u32 %v569, 4
      %v571 = vand.u32 %v569, 15
      %v572 = vsub.s32 0, %v571
      %v573 = vsel %vm567, %v572, %v571
      %vm574 = vcmp.lt.s32.totalorder %v368, 0
      %v575 = vsub.s32 0, %v368
      %v576 = vsel %vm574, %v575, %v368
      %v577 = vshrl.u32 %v576, 4
      %v578 = vand.u32 %v576, 15
      %v579 = vsub.s32 0, %v578
      %v580 = vsel %vm574, %v579, %v578
      %vm581 = vcmp.lt.s32.totalorder %v369, 0
      %v582 = vsub.s32 0, %v369
      %v583 = vsel %vm581, %v582, %v369
      %v584 = vshrl.u32 %v583, 4
      %v585 = vand.u32 %v583, 15
      %v586 = vsub.s32 0, %v585
      %v587 = vsel %vm581, %v586, %v585
      %vm588 = vcmp.lt.s32.totalorder %v370, 0
      %v589 = vsub.s32 0, %v370
      %v590 = vsel %vm588, %v589, %v370
      %v591 = vshrl.u32 %v590, 4
      %v592 = vand.u32 %v590, 15
      %v593 = vsub.s32 0, %v592
      %v594 = vsel %vm588, %v593, %v592
      %vm595 = vcmp.ne.s32.totalorder %v377, 0
      %vm596 = vcmp.ne.s32.totalorder %v384, 0
      %vm597 = vcmp.ne.s32.totalorder %v391, 0
      %vm598 = vcmp.ne.s32.totalorder %v398, 0
      %vm599 = vcmp.ne.s32.totalorder %v405, 0
      %vm600 = vcmp.ne.s32.totalorder %v412, 0
      %vm601 = vcmp.ne.s32.totalorder %v419, 0
      %vm602 = vcmp.ne.s32.totalorder %v426, 0
      %vm603 = vcmp.ne.s32.totalorder %v433, 0
      %vm604 = vcmp.ne.s32.totalorder %v440, 0
      %vm605 = vcmp.ne.s32.totalorder %v447, 0
      %vm606 = vcmp.ne.s32.totalorder %v454, 0
      %vm607 = vcmp.ne.s32.totalorder %v461, 0
      %vm608 = vcmp.ne.s32.totalorder %v468, 0
      %vm609 = vcmp.ne.s32.totalorder %v475, 0
      %vm610 = vcmp.ne.s32.totalorder %v482, 0
      %vm611 = vcmp.ne.s32.totalorder %v489, 0
      %vm612 = vcmp.ne.s32.totalorder %v496, 0
      %vm613 = vcmp.ne.s32.totalorder %v503, 0
      %vm614 = vcmp.ne.s32.totalorder %v510, 0
      %vm615 = vcmp.ne.s32.totalorder %v517, 0
      %vm616 = vcmp.ne.s32.totalorder %v524, 0
      %vm617 = vcmp.ne.s32.totalorder %v531, 0
      %vm618 = vcmp.ne.s32.totalorder %v538, 0
      %vm619 = vcmp.ne.s32.totalorder %v545, 0
      %vm620 = vcmp.ne.s32.totalorder %v552, 0
      %vm621 = vcmp.ne.s32.totalorder %v559, 0
      %vm622 = vcmp.ne.s32.totalorder %v566, 0
      %vm623 = vcmp.ne.s32.totalorder %v573, 0
      %vm624 = vcmp.ne.s32.totalorder %v580, 0
      %vm625 = vcmp.ne.s32.totalorder %v587, 0
      %vm626 = vcmp.ne.s32.totalorder %v594, 0
      %vm627 = vcmp.lt.s32.totalorder %v377, 0
      %vm628 = vcmp.lt.s32.totalorder %v384, 0
      %vm629 = vcmp.lt.s32.totalorder %v391, 0
      %vm630 = vcmp.lt.s32.totalorder %v398, 0
      %vm631 = vcmp.lt.s32.totalorder %v405, 0
      %vm632 = vcmp.lt.s32.totalorder %v412, 0
      %vm633 = vcmp.lt.s32.totalorder %v419, 0
      %vm634 = vcmp.lt.s32.totalorder %v426, 0
      %vm635 = vcmp.lt.s32.totalorder %v433, 0
      %vm636 = vcmp.lt.s32.totalorder %v440, 0
      %vm637 = vcmp.lt.s32.totalorder %v447, 0
      %vm638 = vcmp.lt.s32.totalorder %v454, 0
      %vm639 = vcmp.lt.s32.totalorder %v461, 0
      %vm640 = vcmp.lt.s32.totalorder %v468, 0
      %vm641 = vcmp.lt.s32.totalorder %v475, 0
      %vm642 = vcmp.lt.s32.totalorder %v482, 0
      %vm643 = vcmp.lt.s32.totalorder %v489, 0
      %vm644 = vcmp.lt.s32.totalorder %v496, 0
      %vm645 = vcmp.lt.s32.totalorder %v503, 0
      %vm646 = vcmp.lt.s32.totalorder %v510, 0
      %vm647 = vcmp.lt.s32.totalorder %v517, 0
      %vm648 = vcmp.lt.s32.totalorder %v524, 0
      %vm649 = vcmp.lt.s32.totalorder %v531, 0
      %vm650 = vcmp.lt.s32.totalorder %v538, 0
      %vm651 = vcmp.lt.s32.totalorder %v545, 0
      %vm652 = vcmp.lt.s32.totalorder %v552, 0
      %vm653 = vcmp.lt.s32.totalorder %v559, 0
      %vm654 = vcmp.lt.s32.totalorder %v566, 0
      %vm655 = vcmp.lt.s32.totalorder %v573, 0
      %vm656 = vcmp.lt.s32.totalorder %v580, 0
      %vm657 = vcmp.lt.s32.totalorder %v587, 0
      %vm658 = vcmp.lt.s32.totalorder %v594, 0
      %vm659 = vmand %vm627, %vm595
      %vm660 = vmand %vm628, %vm596
      %vm661 = vmand %vm629, %vm597
      %vm662 = vmand %vm630, %vm598
      %vm663 = vmand %vm631, %vm599
      %vm664 = vmand %vm632, %vm600
      %vm665 = vmand %vm633, %vm601
      %vm666 = vmand %vm634, %vm602
      %vm667 = vmand %vm635, %vm603
      %vm668 = vmand %vm636, %vm604
      %vm669 = vmand %vm637, %vm605
      %vm670 = vmand %vm638, %vm606
      %vm671 = vmand %vm639, %vm607
      %vm672 = vmand %vm640, %vm608
      %vm673 = vmand %vm641, %vm609
      %vm674 = vmand %vm642, %vm610
      %vm675 = vmand %vm643, %vm611
      %vm676 = vmand %vm644, %vm612
      %vm677 = vmand %vm645, %vm613
      %vm678 = vmand %vm646, %vm614
      %vm679 = vmand %vm647, %vm615
      %vm680 = vmand %vm648, %vm616
      %vm681 = vmand %vm649, %vm617
      %vm682 = vmand %vm650, %vm618
      %vm683 = vmand %vm651, %vm619
      %vm684 = vmand %vm652, %vm620
      %vm685 = vmand %vm653, %vm621
      %vm686 = vmand %vm654, %vm622
      %vm687 = vmand %vm655, %vm623
      %vm688 = vmand %vm656, %vm624
      %vm689 = vmand %vm657, %vm625
      %vm690 = vmand %vm658, %vm626
      %v691 = vadd.s32 %v377, 16
      %v692 = vadd.s32 %v384, 16
      %v693 = vadd.s32 %v391, 16
      %v694 = vadd.s32 %v398, 16
      %v695 = vadd.s32 %v405, 16
      %v696 = vadd.s32 %v412, 16
      %v697 = vadd.s32 %v419, 16
      %v698 = vadd.s32 %v426, 16
      %v699 = vadd.s32 %v433, 16
      %v700 = vadd.s32 %v440, 16
      %v701 = vadd.s32 %v447, 16
      %v702 = vadd.s32 %v454, 16
      %v703 = vadd.s32 %v461, 16
      %v704 = vadd.s32 %v468, 16
      %v705 = vadd.s32 %v475, 16
      %v706 = vadd.s32 %v482, 16
      %v707 = vadd.s32 %v489, 16
      %v708 = vadd.s32 %v496, 16
      %v709 = vadd.s32 %v503, 16
      %v710 = vadd.s32 %v510, 16
      %v711 = vadd.s32 %v517, 16
      %v712 = vadd.s32 %v524, 16
      %v713 = vadd.s32 %v531, 16
      %v714 = vadd.s32 %v538, 16
      %v715 = vadd.s32 %v545, 16
      %v716 = vadd.s32 %v552, 16
      %v717 = vadd.s32 %v559, 16
      %v718 = vadd.s32 %v566, 16
      %v719 = vadd.s32 %v573, 16
      %v720 = vadd.s32 %v580, 16
      %v721 = vadd.s32 %v587, 16
      %v722 = vadd.s32 %v594, 16
      %v723 = vsel %vm659, %v691, %v377
      %v724 = vsel %vm660, %v692, %v384
      %v725 = vsel %vm661, %v693, %v391
      %v726 = vsel %vm662, %v694, %v398
      %v727 = vsel %vm663, %v695, %v405
      %v728 = vsel %vm664, %v696, %v412
      %v729 = vsel %vm665, %v697, %v419
      %v730 = vsel %vm666, %v698, %v426
      %v731 = vsel %vm667, %v699, %v433
      %v732 = vsel %vm668, %v700, %v440
      %v733 = vsel %vm669, %v701, %v447
      %v734 = vsel %vm670, %v702, %v454
      %v735 = vsel %vm671, %v703, %v461
      %v736 = vsel %vm672, %v704, %v468
      %v737 = vsel %vm673, %v705, %v475
      %v738 = vsel %vm674, %v706, %v482
      %v739 = vsel %vm675, %v707, %v489
      %v740 = vsel %vm676, %v708, %v496
      %v741 = vsel %vm677, %v709, %v503
      %v742 = vsel %vm678, %v710, %v510
      %v743 = vsel %vm679, %v711, %v517
      %v744 = vsel %vm680, %v712, %v524
      %v745 = vsel %vm681, %v713, %v531
      %v746 = vsel %vm682, %v714, %v538
      %v747 = vsel %vm683, %v715, %v545
      %v748 = vsel %vm684, %v716, %v552
      %v749 = vsel %vm685, %v717, %v559
      %v750 = vsel %vm686, %v718, %v566
      %v751 = vsel %vm687, %v719, %v573
      %v752 = vsel %vm688, %v720, %v580
      %v753 = vsel %vm689, %v721, %v587
      %v754 = vsel %vm690, %v722, %v594
      %vm755 = vcmp.lt.s32.totalorder %v339, 0
      %v756 = vsub.s32 0, %v339
      %v757 = vsel %vm755, %v756, %v339
      %v758 = vshrl.u32 %v757, 8
      %v759 = vand.u32 %v757, 255
      %v760 = vsub.s32 0, %v759
      %v761 = vsel %vm755, %v760, %v759
      %vm762 = vcmp.lt.s32.totalorder %v340, 0
      %v763 = vsub.s32 0, %v340
      %v764 = vsel %vm762, %v763, %v340
      %v765 = vshrl.u32 %v764, 8
      %v766 = vand.u32 %v764, 255
      %v767 = vsub.s32 0, %v766
      %v768 = vsel %vm762, %v767, %v766
      %vm769 = vcmp.lt.s32.totalorder %v341, 0
      %v770 = vsub.s32 0, %v341
      %v771 = vsel %vm769, %v770, %v341
      %v772 = vshrl.u32 %v771, 8
      %v773 = vand.u32 %v771, 255
      %v774 = vsub.s32 0, %v773
      %v775 = vsel %vm769, %v774, %v773
      %vm776 = vcmp.lt.s32.totalorder %v342, 0
      %v777 = vsub.s32 0, %v342
      %v778 = vsel %vm776, %v777, %v342
      %v779 = vshrl.u32 %v778, 8
      %v780 = vand.u32 %v778, 255
      %v781 = vsub.s32 0, %v780
      %v782 = vsel %vm776, %v781, %v780
      %vm783 = vcmp.lt.s32.totalorder %v343, 0
      %v784 = vsub.s32 0, %v343
      %v785 = vsel %vm783, %v784, %v343
      %v786 = vshrl.u32 %v785, 8
      %v787 = vand.u32 %v785, 255
      %v788 = vsub.s32 0, %v787
      %v789 = vsel %vm783, %v788, %v787
      %vm790 = vcmp.lt.s32.totalorder %v344, 0
      %v791 = vsub.s32 0, %v344
      %v792 = vsel %vm790, %v791, %v344
      %v793 = vshrl.u32 %v792, 8
      %v794 = vand.u32 %v792, 255
      %v795 = vsub.s32 0, %v794
      %v796 = vsel %vm790, %v795, %v794
      %vm797 = vcmp.lt.s32.totalorder %v345, 0
      %v798 = vsub.s32 0, %v345
      %v799 = vsel %vm797, %v798, %v345
      %v800 = vshrl.u32 %v799, 8
      %v801 = vand.u32 %v799, 255
      %v802 = vsub.s32 0, %v801
      %v803 = vsel %vm797, %v802, %v801
      %vm804 = vcmp.lt.s32.totalorder %v346, 0
      %v805 = vsub.s32 0, %v346
      %v806 = vsel %vm804, %v805, %v346
      %v807 = vshrl.u32 %v806, 8
      %v808 = vand.u32 %v806, 255
      %v809 = vsub.s32 0, %v808
      %v810 = vsel %vm804, %v809, %v808
      %vm811 = vcmp.lt.s32.totalorder %v347, 0
      %v812 = vsub.s32 0, %v347
      %v813 = vsel %vm811, %v812, %v347
      %v814 = vshrl.u32 %v813, 8
      %v815 = vand.u32 %v813, 255
      %v816 = vsub.s32 0, %v815
      %v817 = vsel %vm811, %v816, %v815
      %vm818 = vcmp.lt.s32.totalorder %v348, 0
      %v819 = vsub.s32 0, %v348
      %v820 = vsel %vm818, %v819, %v348
      %v821 = vshrl.u32 %v820, 8
      %v822 = vand.u32 %v820, 255
      %v823 = vsub.s32 0, %v822
      %v824 = vsel %vm818, %v823, %v822
      %vm825 = vcmp.lt.s32.totalorder %v349, 0
      %v826 = vsub.s32 0, %v349
      %v827 = vsel %vm825, %v826, %v349
      %v828 = vshrl.u32 %v827, 8
      %v829 = vand.u32 %v827, 255
      %v830 = vsub.s32 0, %v829
      %v831 = vsel %vm825, %v830, %v829
      %vm832 = vcmp.lt.s32.totalorder %v350, 0
      %v833 = vsub.s32 0, %v350
      %v834 = vsel %vm832, %v833, %v350
      %v835 = vshrl.u32 %v834, 8
      %v836 = vand.u32 %v834, 255
      %v837 = vsub.s32 0, %v836
      %v838 = vsel %vm832, %v837, %v836
      %vm839 = vcmp.lt.s32.totalorder %v351, 0
      %v840 = vsub.s32 0, %v351
      %v841 = vsel %vm839, %v840, %v351
      %v842 = vshrl.u32 %v841, 8
      %v843 = vand.u32 %v841, 255
      %v844 = vsub.s32 0, %v843
      %v845 = vsel %vm839, %v844, %v843
      %vm846 = vcmp.lt.s32.totalorder %v352, 0
      %v847 = vsub.s32 0, %v352
      %v848 = vsel %vm846, %v847, %v352
      %v849 = vshrl.u32 %v848, 8
      %v850 = vand.u32 %v848, 255
      %v851 = vsub.s32 0, %v850
      %v852 = vsel %vm846, %v851, %v850
      %vm853 = vcmp.lt.s32.totalorder %v353, 0
      %v854 = vsub.s32 0, %v353
      %v855 = vsel %vm853, %v854, %v353
      %v856 = vshrl.u32 %v855, 8
      %v857 = vand.u32 %v855, 255
      %v858 = vsub.s32 0, %v857
      %v859 = vsel %vm853, %v858, %v857
      %vm860 = vcmp.lt.s32.totalorder %v354, 0
      %v861 = vsub.s32 0, %v354
      %v862 = vsel %vm860, %v861, %v354
      %v863 = vshrl.u32 %v862, 8
      %v864 = vand.u32 %v862, 255
      %v865 = vsub.s32 0, %v864
      %v866 = vsel %vm860, %v865, %v864
      %vm867 = vcmp.lt.s32.totalorder %v355, 0
      %v868 = vsub.s32 0, %v355
      %v869 = vsel %vm867, %v868, %v355
      %v870 = vshrl.u32 %v869, 8
      %v871 = vand.u32 %v869, 255
      %v872 = vsub.s32 0, %v871
      %v873 = vsel %vm867, %v872, %v871
      %vm874 = vcmp.lt.s32.totalorder %v356, 0
      %v875 = vsub.s32 0, %v356
      %v876 = vsel %vm874, %v875, %v356
      %v877 = vshrl.u32 %v876, 8
      %v878 = vand.u32 %v876, 255
      %v879 = vsub.s32 0, %v878
      %v880 = vsel %vm874, %v879, %v878
      %vm881 = vcmp.lt.s32.totalorder %v357, 0
      %v882 = vsub.s32 0, %v357
      %v883 = vsel %vm881, %v882, %v357
      %v884 = vshrl.u32 %v883, 8
      %v885 = vand.u32 %v883, 255
      %v886 = vsub.s32 0, %v885
      %v887 = vsel %vm881, %v886, %v885
      %vm888 = vcmp.lt.s32.totalorder %v358, 0
      %v889 = vsub.s32 0, %v358
      %v890 = vsel %vm888, %v889, %v358
      %v891 = vshrl.u32 %v890, 8
      %v892 = vand.u32 %v890, 255
      %v893 = vsub.s32 0, %v892
      %v894 = vsel %vm888, %v893, %v892
      %vm895 = vcmp.lt.s32.totalorder %v359, 0
      %v896 = vsub.s32 0, %v359
      %v897 = vsel %vm895, %v896, %v359
      %v898 = vshrl.u32 %v897, 8
      %v899 = vand.u32 %v897, 255
      %v900 = vsub.s32 0, %v899
      %v901 = vsel %vm895, %v900, %v899
      %vm902 = vcmp.lt.s32.totalorder %v360, 0
      %v903 = vsub.s32 0, %v360
      %v904 = vsel %vm902, %v903, %v360
      %v905 = vshrl.u32 %v904, 8
      %v906 = vand.u32 %v904, 255
      %v907 = vsub.s32 0, %v906
      %v908 = vsel %vm902, %v907, %v906
      %vm909 = vcmp.lt.s32.totalorder %v361, 0
      %v910 = vsub.s32 0, %v361
      %v911 = vsel %vm909, %v910, %v361
      %v912 = vshrl.u32 %v911, 8
      %v913 = vand.u32 %v911, 255
      %v914 = vsub.s32 0, %v913
      %v915 = vsel %vm909, %v914, %v913
      %vm916 = vcmp.lt.s32.totalorder %v362, 0
      %v917 = vsub.s32 0, %v362
      %v918 = vsel %vm916, %v917, %v362
      %v919 = vshrl.u32 %v918, 8
      %v920 = vand.u32 %v918, 255
      %v921 = vsub.s32 0, %v920
      %v922 = vsel %vm916, %v921, %v920
      %vm923 = vcmp.lt.s32.totalorder %v363, 0
      %v924 = vsub.s32 0, %v363
      %v925 = vsel %vm923, %v924, %v363
      %v926 = vshrl.u32 %v925, 8
      %v927 = vand.u32 %v925, 255
      %v928 = vsub.s32 0, %v927
      %v929 = vsel %vm923, %v928, %v927
      %vm930 = vcmp.lt.s32.totalorder %v364, 0
      %v931 = vsub.s32 0, %v364
      %v932 = vsel %vm930, %v931, %v364
      %v933 = vshrl.u32 %v932, 8
      %v934 = vand.u32 %v932, 255
      %v935 = vsub.s32 0, %v934
      %v936 = vsel %vm930, %v935, %v934
      %vm937 = vcmp.lt.s32.totalorder %v365, 0
      %v938 = vsub.s32 0, %v365
      %v939 = vsel %vm937, %v938, %v365
      %v940 = vshrl.u32 %v939, 8
      %v941 = vand.u32 %v939, 255
      %v942 = vsub.s32 0, %v941
      %v943 = vsel %vm937, %v942, %v941
      %vm944 = vcmp.lt.s32.totalorder %v366, 0
      %v945 = vsub.s32 0, %v366
      %v946 = vsel %vm944, %v945, %v366
      %v947 = vshrl.u32 %v946, 8
      %v948 = vand.u32 %v946, 255
      %v949 = vsub.s32 0, %v948
      %v950 = vsel %vm944, %v949, %v948
      %vm951 = vcmp.lt.s32.totalorder %v367, 0
      %v952 = vsub.s32 0, %v367
      %v953 = vsel %vm951, %v952, %v367
      %v954 = vshrl.u32 %v953, 8
      %v955 = vand.u32 %v953, 255
      %v956 = vsub.s32 0, %v955
      %v957 = vsel %vm951, %v956, %v955
      %vm958 = vcmp.lt.s32.totalorder %v368, 0
      %v959 = vsub.s32 0, %v368
      %v960 = vsel %vm958, %v959, %v368
      %v961 = vshrl.u32 %v960, 8
      %v962 = vand.u32 %v960, 255
      %v963 = vsub.s32 0, %v962
      %v964 = vsel %vm958, %v963, %v962
      %vm965 = vcmp.lt.s32.totalorder %v369, 0
      %v966 = vsub.s32 0, %v369
      %v967 = vsel %vm965, %v966, %v369
      %v968 = vshrl.u32 %v967, 8
      %v969 = vand.u32 %v967, 255
      %v970 = vsub.s32 0, %v969
      %v971 = vsel %vm965, %v970, %v969
      %vm972 = vcmp.lt.s32.totalorder %v370, 0
      %v973 = vsub.s32 0, %v370
      %v974 = vsel %vm972, %v973, %v370
      %v975 = vshrl.u32 %v974, 8
      %v976 = vand.u32 %v974, 255
      %v977 = vsub.s32 0, %v976
      %v978 = vsel %vm972, %v977, %v976
      %vm979 = vcmp.ne.s32.totalorder %v761, 0
      %vm980 = vcmp.ne.s32.totalorder %v768, 0
      %vm981 = vcmp.ne.s32.totalorder %v775, 0
      %vm982 = vcmp.ne.s32.totalorder %v782, 0
      %vm983 = vcmp.ne.s32.totalorder %v789, 0
      %vm984 = vcmp.ne.s32.totalorder %v796, 0
      %vm985 = vcmp.ne.s32.totalorder %v803, 0
      %vm986 = vcmp.ne.s32.totalorder %v810, 0
      %vm987 = vcmp.ne.s32.totalorder %v817, 0
      %vm988 = vcmp.ne.s32.totalorder %v824, 0
      %vm989 = vcmp.ne.s32.totalorder %v831, 0
      %vm990 = vcmp.ne.s32.totalorder %v838, 0
      %vm991 = vcmp.ne.s32.totalorder %v845, 0
      %vm992 = vcmp.ne.s32.totalorder %v852, 0
      %vm993 = vcmp.ne.s32.totalorder %v859, 0
      %vm994 = vcmp.ne.s32.totalorder %v866, 0
      %vm995 = vcmp.ne.s32.totalorder %v873, 0
      %vm996 = vcmp.ne.s32.totalorder %v880, 0
      %vm997 = vcmp.ne.s32.totalorder %v887, 0
      %vm998 = vcmp.ne.s32.totalorder %v894, 0
      %vm999 = vcmp.ne.s32.totalorder %v901, 0
      %vm1000 = vcmp.ne.s32.totalorder %v908, 0
      %vm1001 = vcmp.ne.s32.totalorder %v915, 0
      %vm1002 = vcmp.ne.s32.totalorder %v922, 0
      %vm1003 = vcmp.ne.s32.totalorder %v929, 0
      %vm1004 = vcmp.ne.s32.totalorder %v936, 0
      %vm1005 = vcmp.ne.s32.totalorder %v943, 0
      %vm1006 = vcmp.ne.s32.totalorder %v950, 0
      %vm1007 = vcmp.ne.s32.totalorder %v957, 0
      %vm1008 = vcmp.ne.s32.totalorder %v964, 0
      %vm1009 = vcmp.ne.s32.totalorder %v971, 0
      %vm1010 = vcmp.ne.s32.totalorder %v978, 0
      %vm1011 = vcmp.lt.s32.totalorder %v761, 0
      %vm1012 = vcmp.lt.s32.totalorder %v768, 0
      %vm1013 = vcmp.lt.s32.totalorder %v775, 0
      %vm1014 = vcmp.lt.s32.totalorder %v782, 0
      %vm1015 = vcmp.lt.s32.totalorder %v789, 0
      %vm1016 = vcmp.lt.s32.totalorder %v796, 0
      %vm1017 = vcmp.lt.s32.totalorder %v803, 0
      %vm1018 = vcmp.lt.s32.totalorder %v810, 0
      %vm1019 = vcmp.lt.s32.totalorder %v817, 0
      %vm1020 = vcmp.lt.s32.totalorder %v824, 0
      %vm1021 = vcmp.lt.s32.totalorder %v831, 0
      %vm1022 = vcmp.lt.s32.totalorder %v838, 0
      %vm1023 = vcmp.lt.s32.totalorder %v845, 0
      %vm1024 = vcmp.lt.s32.totalorder %v852, 0
      %vm1025 = vcmp.lt.s32.totalorder %v859, 0
      %vm1026 = vcmp.lt.s32.totalorder %v866, 0
      %vm1027 = vcmp.lt.s32.totalorder %v873, 0
      %vm1028 = vcmp.lt.s32.totalorder %v880, 0
      %vm1029 = vcmp.lt.s32.totalorder %v887, 0
      %vm1030 = vcmp.lt.s32.totalorder %v894, 0
      %vm1031 = vcmp.lt.s32.totalorder %v901, 0
      %vm1032 = vcmp.lt.s32.totalorder %v908, 0
      %vm1033 = vcmp.lt.s32.totalorder %v915, 0
      %vm1034 = vcmp.lt.s32.totalorder %v922, 0
      %vm1035 = vcmp.lt.s32.totalorder %v929, 0
      %vm1036 = vcmp.lt.s32.totalorder %v936, 0
      %vm1037 = vcmp.lt.s32.totalorder %v943, 0
      %vm1038 = vcmp.lt.s32.totalorder %v950, 0
      %vm1039 = vcmp.lt.s32.totalorder %v957, 0
      %vm1040 = vcmp.lt.s32.totalorder %v964, 0
      %vm1041 = vcmp.lt.s32.totalorder %v971, 0
      %vm1042 = vcmp.lt.s32.totalorder %v978, 0
      %vm1043 = vmand %vm1011, %vm979
      %vm1044 = vmand %vm1012, %vm980
      %vm1045 = vmand %vm1013, %vm981
      %vm1046 = vmand %vm1014, %vm982
      %vm1047 = vmand %vm1015, %vm983
      %vm1048 = vmand %vm1016, %vm984
      %vm1049 = vmand %vm1017, %vm985
      %vm1050 = vmand %vm1018, %vm986
      %vm1051 = vmand %vm1019, %vm987
      %vm1052 = vmand %vm1020, %vm988
      %vm1053 = vmand %vm1021, %vm989
      %vm1054 = vmand %vm1022, %vm990
      %vm1055 = vmand %vm1023, %vm991
      %vm1056 = vmand %vm1024, %vm992
      %vm1057 = vmand %vm1025, %vm993
      %vm1058 = vmand %vm1026, %vm994
      %vm1059 = vmand %vm1027, %vm995
      %vm1060 = vmand %vm1028, %vm996
      %vm1061 = vmand %vm1029, %vm997
      %vm1062 = vmand %vm1030, %vm998
      %vm1063 = vmand %vm1031, %vm999
      %vm1064 = vmand %vm1032, %vm1000
      %vm1065 = vmand %vm1033, %vm1001
      %vm1066 = vmand %vm1034, %vm1002
      %vm1067 = vmand %vm1035, %vm1003
      %vm1068 = vmand %vm1036, %vm1004
      %vm1069 = vmand %vm1037, %vm1005
      %vm1070 = vmand %vm1038, %vm1006
      %vm1071 = vmand %vm1039, %vm1007
      %vm1072 = vmand %vm1040, %vm1008
      %vm1073 = vmand %vm1041, %vm1009
      %vm1074 = vmand %vm1042, %vm1010
      %v1075 = vadd.s32 %v761, 256
      %v1076 = vadd.s32 %v768, 256
      %v1077 = vadd.s32 %v775, 256
      %v1078 = vadd.s32 %v782, 256
      %v1079 = vadd.s32 %v789, 256
      %v1080 = vadd.s32 %v796, 256
      %v1081 = vadd.s32 %v803, 256
      %v1082 = vadd.s32 %v810, 256
      %v1083 = vadd.s32 %v817, 256
      %v1084 = vadd.s32 %v824, 256
      %v1085 = vadd.s32 %v831, 256
      %v1086 = vadd.s32 %v838, 256
      %v1087 = vadd.s32 %v845, 256
      %v1088 = vadd.s32 %v852, 256
      %v1089 = vadd.s32 %v859, 256
      %v1090 = vadd.s32 %v866, 256
      %v1091 = vadd.s32 %v873, 256
      %v1092 = vadd.s32 %v880, 256
      %v1093 = vadd.s32 %v887, 256
      %v1094 = vadd.s32 %v894, 256
      %v1095 = vadd.s32 %v901, 256
      %v1096 = vadd.s32 %v908, 256
      %v1097 = vadd.s32 %v915, 256
      %v1098 = vadd.s32 %v922, 256
      %v1099 = vadd.s32 %v929, 256
      %v1100 = vadd.s32 %v936, 256
      %v1101 = vadd.s32 %v943, 256
      %v1102 = vadd.s32 %v950, 256
      %v1103 = vadd.s32 %v957, 256
      %v1104 = vadd.s32 %v964, 256
      %v1105 = vadd.s32 %v971, 256
      %v1106 = vadd.s32 %v978, 256
      %v1107 = vsel %vm1043, %v1075, %v761
      %v1108 = vsel %vm1044, %v1076, %v768
      %v1109 = vsel %vm1045, %v1077, %v775
      %v1110 = vsel %vm1046, %v1078, %v782
      %v1111 = vsel %vm1047, %v1079, %v789
      %v1112 = vsel %vm1048, %v1080, %v796
      %v1113 = vsel %vm1049, %v1081, %v803
      %v1114 = vsel %vm1050, %v1082, %v810
      %v1115 = vsel %vm1051, %v1083, %v817
      %v1116 = vsel %vm1052, %v1084, %v824
      %v1117 = vsel %vm1053, %v1085, %v831
      %v1118 = vsel %vm1054, %v1086, %v838
      %v1119 = vsel %vm1055, %v1087, %v845
      %v1120 = vsel %vm1056, %v1088, %v852
      %v1121 = vsel %vm1057, %v1089, %v859
      %v1122 = vsel %vm1058, %v1090, %v866
      %v1123 = vsel %vm1059, %v1091, %v873
      %v1124 = vsel %vm1060, %v1092, %v880
      %v1125 = vsel %vm1061, %v1093, %v887
      %v1126 = vsel %vm1062, %v1094, %v894
      %v1127 = vsel %vm1063, %v1095, %v901
      %v1128 = vsel %vm1064, %v1096, %v908
      %v1129 = vsel %vm1065, %v1097, %v915
      %v1130 = vsel %vm1066, %v1098, %v922
      %v1131 = vsel %vm1067, %v1099, %v929
      %v1132 = vsel %vm1068, %v1100, %v936
      %v1133 = vsel %vm1069, %v1101, %v943
      %v1134 = vsel %vm1070, %v1102, %v950
      %v1135 = vsel %vm1071, %v1103, %v957
      %v1136 = vsel %vm1072, %v1104, %v964
      %v1137 = vsel %vm1073, %v1105, %v971
      %v1138 = vsel %vm1074, %v1106, %v978
      %vm1139 = vcmp.gt.s32.totalorder %v723, 0
      %vm1140 = vcmp.gt.s32.totalorder %v724, 0
      %vm1141 = vcmp.gt.s32.totalorder %v725, 0
      %vm1142 = vcmp.gt.s32.totalorder %v726, 0
      %vm1143 = vcmp.gt.s32.totalorder %v727, 0
      %vm1144 = vcmp.gt.s32.totalorder %v728, 0
      %vm1145 = vcmp.gt.s32.totalorder %v729, 0
      %vm1146 = vcmp.gt.s32.totalorder %v730, 0
      %vm1147 = vcmp.gt.s32.totalorder %v731, 0
      %vm1148 = vcmp.gt.s32.totalorder %v732, 0
      %vm1149 = vcmp.gt.s32.totalorder %v733, 0
      %vm1150 = vcmp.gt.s32.totalorder %v734, 0
      %vm1151 = vcmp.gt.s32.totalorder %v735, 0
      %vm1152 = vcmp.gt.s32.totalorder %v736, 0
      %vm1153 = vcmp.gt.s32.totalorder %v737, 0
      %vm1154 = vcmp.gt.s32.totalorder %v738, 0
      %vm1155 = vcmp.gt.s32.totalorder %v739, 0
      %vm1156 = vcmp.gt.s32.totalorder %v740, 0
      %vm1157 = vcmp.gt.s32.totalorder %v741, 0
      %vm1158 = vcmp.gt.s32.totalorder %v742, 0
      %vm1159 = vcmp.gt.s32.totalorder %v743, 0
      %vm1160 = vcmp.gt.s32.totalorder %v744, 0
      %vm1161 = vcmp.gt.s32.totalorder %v745, 0
      %vm1162 = vcmp.gt.s32.totalorder %v746, 0
      %vm1163 = vcmp.gt.s32.totalorder %v747, 0
      %vm1164 = vcmp.gt.s32.totalorder %v748, 0
      %vm1165 = vcmp.gt.s32.totalorder %v749, 0
      %vm1166 = vcmp.gt.s32.totalorder %v750, 0
      %vm1167 = vcmp.gt.s32.totalorder %v751, 0
      %vm1168 = vcmp.gt.s32.totalorder %v752, 0
      %vm1169 = vcmp.gt.s32.totalorder %v753, 0
      %vm1170 = vcmp.gt.s32.totalorder %v754, 0
      %v1171 = vsel %vm1139, 1, 0
      %v1172 = vsel %vm1140, 1, 0
      %v1173 = vsel %vm1141, 1, 0
      %v1174 = vsel %vm1142, 1, 0
      %v1175 = vsel %vm1143, 1, 0
      %v1176 = vsel %vm1144, 1, 0
      %v1177 = vsel %vm1145, 1, 0
      %v1178 = vsel %vm1146, 1, 0
      %v1179 = vsel %vm1147, 1, 0
      %v1180 = vsel %vm1148, 1, 0
      %v1181 = vsel %vm1149, 1, 0
      %v1182 = vsel %vm1150, 1, 0
      %v1183 = vsel %vm1151, 1, 0
      %v1184 = vsel %vm1152, 1, 0
      %v1185 = vsel %vm1153, 1, 0
      %v1186 = vsel %vm1154, 1, 0
      %v1187 = vsel %vm1155, 1, 0
      %v1188 = vsel %vm1156, 1, 0
      %v1189 = vsel %vm1157, 1, 0
      %v1190 = vsel %vm1158, 1, 0
      %v1191 = vsel %vm1159, 1, 0
      %v1192 = vsel %vm1160, 1, 0
      %v1193 = vsel %vm1161, 1, 0
      %v1194 = vsel %vm1162, 1, 0
      %v1195 = vsel %vm1163, 1, 0
      %v1196 = vsel %vm1164, 1, 0
      %v1197 = vsel %vm1165, 1, 0
      %v1198 = vsel %vm1166, 1, 0
      %v1199 = vsel %vm1167, 1, 0
      %v1200 = vsel %vm1168, 1, 0
      %v1201 = vsel %vm1169, 1, 0
      %v1202 = vsel %vm1170, 1, 0
      %v1203 = vcvt.s32.f32 %v1171
      %v1204 = vcvt.s32.f32 %v1172
      %v1205 = vcvt.s32.f32 %v1173
      %v1206 = vcvt.s32.f32 %v1174
      %v1207 = vcvt.s32.f32 %v1175
      %v1208 = vcvt.s32.f32 %v1176
      %v1209 = vcvt.s32.f32 %v1177
      %v1210 = vcvt.s32.f32 %v1178
      %v1211 = vcvt.s32.f32 %v1179
      %v1212 = vcvt.s32.f32 %v1180
      %v1213 = vcvt.s32.f32 %v1181
      %v1214 = vcvt.s32.f32 %v1182
      %v1215 = vcvt.s32.f32 %v1183
      %v1216 = vcvt.s32.f32 %v1184
      %v1217 = vcvt.s32.f32 %v1185
      %v1218 = vcvt.s32.f32 %v1186
      %v1219 = vcvt.s32.f32 %v1187
      %v1220 = vcvt.s32.f32 %v1188
      %v1221 = vcvt.s32.f32 %v1189
      %v1222 = vcvt.s32.f32 %v1190
      %v1223 = vcvt.s32.f32 %v1191
      %v1224 = vcvt.s32.f32 %v1192
      %v1225 = vcvt.s32.f32 %v1193
      %v1226 = vcvt.s32.f32 %v1194
      %v1227 = vcvt.s32.f32 %v1195
      %v1228 = vcvt.s32.f32 %v1196
      %v1229 = vcvt.s32.f32 %v1197
      %v1230 = vcvt.s32.f32 %v1198
      %v1231 = vcvt.s32.f32 %v1199
      %v1232 = vcvt.s32.f32 %v1200
      %v1233 = vcvt.s32.f32 %v1201
      %v1234 = vcvt.s32.f32 %v1202
      %vm1235 = vcmp.lt.s32.totalorder %v723, 15
      %vm1236 = vcmp.lt.s32.totalorder %v724, 15
      %vm1237 = vcmp.lt.s32.totalorder %v725, 15
      %vm1238 = vcmp.lt.s32.totalorder %v726, 15
      %vm1239 = vcmp.lt.s32.totalorder %v727, 15
      %vm1240 = vcmp.lt.s32.totalorder %v728, 15
      %vm1241 = vcmp.lt.s32.totalorder %v729, 15
      %vm1242 = vcmp.lt.s32.totalorder %v730, 15
      %vm1243 = vcmp.lt.s32.totalorder %v731, 15
      %vm1244 = vcmp.lt.s32.totalorder %v732, 15
      %vm1245 = vcmp.lt.s32.totalorder %v733, 15
      %vm1246 = vcmp.lt.s32.totalorder %v734, 15
      %vm1247 = vcmp.lt.s32.totalorder %v735, 15
      %vm1248 = vcmp.lt.s32.totalorder %v736, 15
      %vm1249 = vcmp.lt.s32.totalorder %v737, 15
      %vm1250 = vcmp.lt.s32.totalorder %v738, 15
      %vm1251 = vcmp.lt.s32.totalorder %v739, 15
      %vm1252 = vcmp.lt.s32.totalorder %v740, 15
      %vm1253 = vcmp.lt.s32.totalorder %v741, 15
      %vm1254 = vcmp.lt.s32.totalorder %v742, 15
      %vm1255 = vcmp.lt.s32.totalorder %v743, 15
      %vm1256 = vcmp.lt.s32.totalorder %v744, 15
      %vm1257 = vcmp.lt.s32.totalorder %v745, 15
      %vm1258 = vcmp.lt.s32.totalorder %v746, 15
      %vm1259 = vcmp.lt.s32.totalorder %v747, 15
      %vm1260 = vcmp.lt.s32.totalorder %v748, 15
      %vm1261 = vcmp.lt.s32.totalorder %v749, 15
      %vm1262 = vcmp.lt.s32.totalorder %v750, 15
      %vm1263 = vcmp.lt.s32.totalorder %v751, 15
      %vm1264 = vcmp.lt.s32.totalorder %v752, 15
      %vm1265 = vcmp.lt.s32.totalorder %v753, 15
      %vm1266 = vcmp.lt.s32.totalorder %v754, 15
      %v1267 = vsel %vm1235, 1, 0
      %v1268 = vsel %vm1236, 1, 0
      %v1269 = vsel %vm1237, 1, 0
      %v1270 = vsel %vm1238, 1, 0
      %v1271 = vsel %vm1239, 1, 0
      %v1272 = vsel %vm1240, 1, 0
      %v1273 = vsel %vm1241, 1, 0
      %v1274 = vsel %vm1242, 1, 0
      %v1275 = vsel %vm1243, 1, 0
      %v1276 = vsel %vm1244, 1, 0
      %v1277 = vsel %vm1245, 1, 0
      %v1278 = vsel %vm1246, 1, 0
      %v1279 = vsel %vm1247, 1, 0
      %v1280 = vsel %vm1248, 1, 0
      %v1281 = vsel %vm1249, 1, 0
      %v1282 = vsel %vm1250, 1, 0
      %v1283 = vsel %vm1251, 1, 0
      %v1284 = vsel %vm1252, 1, 0
      %v1285 = vsel %vm1253, 1, 0
      %v1286 = vsel %vm1254, 1, 0
      %v1287 = vsel %vm1255, 1, 0
      %v1288 = vsel %vm1256, 1, 0
      %v1289 = vsel %vm1257, 1, 0
      %v1290 = vsel %vm1258, 1, 0
      %v1291 = vsel %vm1259, 1, 0
      %v1292 = vsel %vm1260, 1, 0
      %v1293 = vsel %vm1261, 1, 0
      %v1294 = vsel %vm1262, 1, 0
      %v1295 = vsel %vm1263, 1, 0
      %v1296 = vsel %vm1264, 1, 0
      %v1297 = vsel %vm1265, 1, 0
      %v1298 = vsel %vm1266, 1, 0
      %v1299 = vcvt.s32.f32 %v1267
      %v1300 = vcvt.s32.f32 %v1268
      %v1301 = vcvt.s32.f32 %v1269
      %v1302 = vcvt.s32.f32 %v1270
      %v1303 = vcvt.s32.f32 %v1271
      %v1304 = vcvt.s32.f32 %v1272
      %v1305 = vcvt.s32.f32 %v1273
      %v1306 = vcvt.s32.f32 %v1274
      %v1307 = vcvt.s32.f32 %v1275
      %v1308 = vcvt.s32.f32 %v1276
      %v1309 = vcvt.s32.f32 %v1277
      %v1310 = vcvt.s32.f32 %v1278
      %v1311 = vcvt.s32.f32 %v1279
      %v1312 = vcvt.s32.f32 %v1280
      %v1313 = vcvt.s32.f32 %v1281
      %v1314 = vcvt.s32.f32 %v1282
      %v1315 = vcvt.s32.f32 %v1283
      %v1316 = vcvt.s32.f32 %v1284
      %v1317 = vcvt.s32.f32 %v1285
      %v1318 = vcvt.s32.f32 %v1286
      %v1319 = vcvt.s32.f32 %v1287
      %v1320 = vcvt.s32.f32 %v1288
      %v1321 = vcvt.s32.f32 %v1289
      %v1322 = vcvt.s32.f32 %v1290
      %v1323 = vcvt.s32.f32 %v1291
      %v1324 = vcvt.s32.f32 %v1292
      %v1325 = vcvt.s32.f32 %v1293
      %v1326 = vcvt.s32.f32 %v1294
      %v1327 = vcvt.s32.f32 %v1295
      %v1328 = vcvt.s32.f32 %v1296
      %v1329 = vcvt.s32.f32 %v1297
      %v1330 = vcvt.s32.f32 %v1298
      %vm1331 = vcmp.ge.s32.totalorder %v1107, 16
      %vm1332 = vcmp.ge.s32.totalorder %v1108, 16
      %vm1333 = vcmp.ge.s32.totalorder %v1109, 16
      %vm1334 = vcmp.ge.s32.totalorder %v1110, 16
      %vm1335 = vcmp.ge.s32.totalorder %v1111, 16
      %vm1336 = vcmp.ge.s32.totalorder %v1112, 16
      %vm1337 = vcmp.ge.s32.totalorder %v1113, 16
      %vm1338 = vcmp.ge.s32.totalorder %v1114, 16
      %vm1339 = vcmp.ge.s32.totalorder %v1115, 16
      %vm1340 = vcmp.ge.s32.totalorder %v1116, 16
      %vm1341 = vcmp.ge.s32.totalorder %v1117, 16
      %vm1342 = vcmp.ge.s32.totalorder %v1118, 16
      %vm1343 = vcmp.ge.s32.totalorder %v1119, 16
      %vm1344 = vcmp.ge.s32.totalorder %v1120, 16
      %vm1345 = vcmp.ge.s32.totalorder %v1121, 16
      %vm1346 = vcmp.ge.s32.totalorder %v1122, 16
      %vm1347 = vcmp.ge.s32.totalorder %v1123, 16
      %vm1348 = vcmp.ge.s32.totalorder %v1124, 16
      %vm1349 = vcmp.ge.s32.totalorder %v1125, 16
      %vm1350 = vcmp.ge.s32.totalorder %v1126, 16
      %vm1351 = vcmp.ge.s32.totalorder %v1127, 16
      %vm1352 = vcmp.ge.s32.totalorder %v1128, 16
      %vm1353 = vcmp.ge.s32.totalorder %v1129, 16
      %vm1354 = vcmp.ge.s32.totalorder %v1130, 16
      %vm1355 = vcmp.ge.s32.totalorder %v1131, 16
      %vm1356 = vcmp.ge.s32.totalorder %v1132, 16
      %vm1357 = vcmp.ge.s32.totalorder %v1133, 16
      %vm1358 = vcmp.ge.s32.totalorder %v1134, 16
      %vm1359 = vcmp.ge.s32.totalorder %v1135, 16
      %vm1360 = vcmp.ge.s32.totalorder %v1136, 16
      %vm1361 = vcmp.ge.s32.totalorder %v1137, 16
      %vm1362 = vcmp.ge.s32.totalorder %v1138, 16
      %v1363 = vsel %vm1331, 1, 0
      %v1364 = vsel %vm1332, 1, 0
      %v1365 = vsel %vm1333, 1, 0
      %v1366 = vsel %vm1334, 1, 0
      %v1367 = vsel %vm1335, 1, 0
      %v1368 = vsel %vm1336, 1, 0
      %v1369 = vsel %vm1337, 1, 0
      %v1370 = vsel %vm1338, 1, 0
      %v1371 = vsel %vm1339, 1, 0
      %v1372 = vsel %vm1340, 1, 0
      %v1373 = vsel %vm1341, 1, 0
      %v1374 = vsel %vm1342, 1, 0
      %v1375 = vsel %vm1343, 1, 0
      %v1376 = vsel %vm1344, 1, 0
      %v1377 = vsel %vm1345, 1, 0
      %v1378 = vsel %vm1346, 1, 0
      %v1379 = vsel %vm1347, 1, 0
      %v1380 = vsel %vm1348, 1, 0
      %v1381 = vsel %vm1349, 1, 0
      %v1382 = vsel %vm1350, 1, 0
      %v1383 = vsel %vm1351, 1, 0
      %v1384 = vsel %vm1352, 1, 0
      %v1385 = vsel %vm1353, 1, 0
      %v1386 = vsel %vm1354, 1, 0
      %v1387 = vsel %vm1355, 1, 0
      %v1388 = vsel %vm1356, 1, 0
      %v1389 = vsel %vm1357, 1, 0
      %v1390 = vsel %vm1358, 1, 0
      %v1391 = vsel %vm1359, 1, 0
      %v1392 = vsel %vm1360, 1, 0
      %v1393 = vsel %vm1361, 1, 0
      %v1394 = vsel %vm1362, 1, 0
      %v1395 = vcvt.s32.f32 %v1363
      %v1396 = vcvt.s32.f32 %v1364
      %v1397 = vcvt.s32.f32 %v1365
      %v1398 = vcvt.s32.f32 %v1366
      %v1399 = vcvt.s32.f32 %v1367
      %v1400 = vcvt.s32.f32 %v1368
      %v1401 = vcvt.s32.f32 %v1369
      %v1402 = vcvt.s32.f32 %v1370
      %v1403 = vcvt.s32.f32 %v1371
      %v1404 = vcvt.s32.f32 %v1372
      %v1405 = vcvt.s32.f32 %v1373
      %v1406 = vcvt.s32.f32 %v1374
      %v1407 = vcvt.s32.f32 %v1375
      %v1408 = vcvt.s32.f32 %v1376
      %v1409 = vcvt.s32.f32 %v1377
      %v1410 = vcvt.s32.f32 %v1378
      %v1411 = vcvt.s32.f32 %v1379
      %v1412 = vcvt.s32.f32 %v1380
      %v1413 = vcvt.s32.f32 %v1381
      %v1414 = vcvt.s32.f32 %v1382
      %v1415 = vcvt.s32.f32 %v1383
      %v1416 = vcvt.s32.f32 %v1384
      %v1417 = vcvt.s32.f32 %v1385
      %v1418 = vcvt.s32.f32 %v1386
      %v1419 = vcvt.s32.f32 %v1387
      %v1420 = vcvt.s32.f32 %v1388
      %v1421 = vcvt.s32.f32 %v1389
      %v1422 = vcvt.s32.f32 %v1390
      %v1423 = vcvt.s32.f32 %v1391
      %v1424 = vcvt.s32.f32 %v1392
      %v1425 = vcvt.s32.f32 %v1393
      %v1426 = vcvt.s32.f32 %v1394
      %vm1427 = vcmp.lt.s32.totalorder %v1107, 240
      %vm1428 = vcmp.lt.s32.totalorder %v1108, 240
      %vm1429 = vcmp.lt.s32.totalorder %v1109, 240
      %vm1430 = vcmp.lt.s32.totalorder %v1110, 240
      %vm1431 = vcmp.lt.s32.totalorder %v1111, 240
      %vm1432 = vcmp.lt.s32.totalorder %v1112, 240
      %vm1433 = vcmp.lt.s32.totalorder %v1113, 240
      %vm1434 = vcmp.lt.s32.totalorder %v1114, 240
      %vm1435 = vcmp.lt.s32.totalorder %v1115, 240
      %vm1436 = vcmp.lt.s32.totalorder %v1116, 240
      %vm1437 = vcmp.lt.s32.totalorder %v1117, 240
      %vm1438 = vcmp.lt.s32.totalorder %v1118, 240
      %vm1439 = vcmp.lt.s32.totalorder %v1119, 240
      %vm1440 = vcmp.lt.s32.totalorder %v1120, 240
      %vm1441 = vcmp.lt.s32.totalorder %v1121, 240
      %vm1442 = vcmp.lt.s32.totalorder %v1122, 240
      %vm1443 = vcmp.lt.s32.totalorder %v1123, 240
      %vm1444 = vcmp.lt.s32.totalorder %v1124, 240
      %vm1445 = vcmp.lt.s32.totalorder %v1125, 240
      %vm1446 = vcmp.lt.s32.totalorder %v1126, 240
      %vm1447 = vcmp.lt.s32.totalorder %v1127, 240
      %vm1448 = vcmp.lt.s32.totalorder %v1128, 240
      %vm1449 = vcmp.lt.s32.totalorder %v1129, 240
      %vm1450 = vcmp.lt.s32.totalorder %v1130, 240
      %vm1451 = vcmp.lt.s32.totalorder %v1131, 240
      %vm1452 = vcmp.lt.s32.totalorder %v1132, 240
      %vm1453 = vcmp.lt.s32.totalorder %v1133, 240
      %vm1454 = vcmp.lt.s32.totalorder %v1134, 240
      %vm1455 = vcmp.lt.s32.totalorder %v1135, 240
      %vm1456 = vcmp.lt.s32.totalorder %v1136, 240
      %vm1457 = vcmp.lt.s32.totalorder %v1137, 240
      %vm1458 = vcmp.lt.s32.totalorder %v1138, 240
      %v1459 = vsel %vm1427, 1, 0
      %v1460 = vsel %vm1428, 1, 0
      %v1461 = vsel %vm1429, 1, 0
      %v1462 = vsel %vm1430, 1, 0
      %v1463 = vsel %vm1431, 1, 0
      %v1464 = vsel %vm1432, 1, 0
      %v1465 = vsel %vm1433, 1, 0
      %v1466 = vsel %vm1434, 1, 0
      %v1467 = vsel %vm1435, 1, 0
      %v1468 = vsel %vm1436, 1, 0
      %v1469 = vsel %vm1437, 1, 0
      %v1470 = vsel %vm1438, 1, 0
      %v1471 = vsel %vm1439, 1, 0
      %v1472 = vsel %vm1440, 1, 0
      %v1473 = vsel %vm1441, 1, 0
      %v1474 = vsel %vm1442, 1, 0
      %v1475 = vsel %vm1443, 1, 0
      %v1476 = vsel %vm1444, 1, 0
      %v1477 = vsel %vm1445, 1, 0
      %v1478 = vsel %vm1446, 1, 0
      %v1479 = vsel %vm1447, 1, 0
      %v1480 = vsel %vm1448, 1, 0
      %v1481 = vsel %vm1449, 1, 0
      %v1482 = vsel %vm1450, 1, 0
      %v1483 = vsel %vm1451, 1, 0
      %v1484 = vsel %vm1452, 1, 0
      %v1485 = vsel %vm1453, 1, 0
      %v1486 = vsel %vm1454, 1, 0
      %v1487 = vsel %vm1455, 1, 0
      %v1488 = vsel %vm1456, 1, 0
      %v1489 = vsel %vm1457, 1, 0
      %v1490 = vsel %vm1458, 1, 0
      %v1491 = vcvt.s32.f32 %v1459
      %v1492 = vcvt.s32.f32 %v1460
      %v1493 = vcvt.s32.f32 %v1461
      %v1494 = vcvt.s32.f32 %v1462
      %v1495 = vcvt.s32.f32 %v1463
      %v1496 = vcvt.s32.f32 %v1464
      %v1497 = vcvt.s32.f32 %v1465
      %v1498 = vcvt.s32.f32 %v1466
      %v1499 = vcvt.s32.f32 %v1467
      %v1500 = vcvt.s32.f32 %v1468
      %v1501 = vcvt.s32.f32 %v1469
      %v1502 = vcvt.s32.f32 %v1470
      %v1503 = vcvt.s32.f32 %v1471
      %v1504 = vcvt.s32.f32 %v1472
      %v1505 = vcvt.s32.f32 %v1473
      %v1506 = vcvt.s32.f32 %v1474
      %v1507 = vcvt.s32.f32 %v1475
      %v1508 = vcvt.s32.f32 %v1476
      %v1509 = vcvt.s32.f32 %v1477
      %v1510 = vcvt.s32.f32 %v1478
      %v1511 = vcvt.s32.f32 %v1479
      %v1512 = vcvt.s32.f32 %v1480
      %v1513 = vcvt.s32.f32 %v1481
      %v1514 = vcvt.s32.f32 %v1482
      %v1515 = vcvt.s32.f32 %v1483
      %v1516 = vcvt.s32.f32 %v1484
      %v1517 = vcvt.s32.f32 %v1485
      %v1518 = vcvt.s32.f32 %v1486
      %v1519 = vcvt.s32.f32 %v1487
      %v1520 = vcvt.s32.f32 %v1488
      %v1521 = vcvt.s32.f32 %v1489
      %v1522 = vcvt.s32.f32 %v1490
      %v1523 = vld [vmem:[%s7] sm:$0x3f]
      %vm1556 = vcmask 1040384
      %v1557 = vrot.slane %v306, 7
      %v1558 = vrot.slane %v307, 7
      %v1559 = vsel %vm1556, %v1557, %v1558
      %v1560 = vrot.slane %v308, 7
      %v1561 = vsel %vm1556, %v1558, %v1560
      %v1562 = vrot.slane %v309, 7
      %v1563 = vsel %vm1556, %v1560, %v1562
      %v1564 = vrot.slane %v310, 7
      %v1565 = vsel %vm1556, %v1562, %v1564
      %v1566 = vrot.slane %v311, 7
      %v1567 = vsel %vm1556, %v1564, %v1566
      %v1568 = vrot.slane %v312, 7
      %v1569 = vsel %vm1556, %v1566, %v1568
      %v1570 = vrot.slane %v313, 7
      %v1571 = vsel %vm1556, %v1568, %v1570
      %v1572 = vrot.slane %v314, 7
      %v1573 = vsel %vm1556, %v1570, %v1572
      %v1574 = vrot.slane %v315, 7
      %v1575 = vsel %vm1556, %v1572, %v1574
      %v1576 = vrot.slane %v316, 7
      %v1577 = vsel %vm1556, %v1574, %v1576
      %v1578 = vrot.slane %v317, 7
      %v1579 = vsel %vm1556, %v1576, %v1578
      %v1580 = vrot.slane %v318, 7
      %v1581 = vsel %vm1556, %v1578, %v1580
      %v1582 = vrot.slane %v319, 7
      %v1583 = vsel %vm1556, %v1580, %v1582
      %v1584 = vrot.slane %v320, 7
      %v1585 = vsel %vm1556, %v1582, %v1584
      %v1586 = vrot.slane %v321, 7
      %v1587 = vsel %vm1556, %v1584, %v1586
      %v1588 = vrot.slane %v322, 7
      %v1589 = vsel %vm1556, %v1586, %v1588
      %v1590 = vrot.slane %v323, 7
      %v1591 = vsel %vm1556, %v1588, %v1590
      %v1592 = vrot.slane %v324, 7
      %v1593 = vsel %vm1556, %v1590, %v1592
      %v1594 = vrot.slane %v325, 7
      %v1595 = vsel %vm1556, %v1592, %v1594
      %v1596 = vrot.slane %v326, 7
      %v1597 = vsel %vm1556, %v1594, %v1596
      %v1598 = vrot.slane %v327, 7
      %v1599 = vsel %vm1556, %v1596, %v1598
      %v1600 = vrot.slane %v328, 7
      %v1601 = vsel %vm1556, %v1598, %v1600
      %v1602 = vrot.slane %v329, 7
      %v1603 = vsel %vm1556, %v1600, %v1602
      %v1604 = vrot.slane %v330, 7
      %v1605 = vsel %vm1556, %v1602, %v1604
      %v1606 = vrot.slane %v331, 7
      %v1607 = vsel %vm1556, %v1604, %v1606
      %v1608 = vrot.slane %v332, 7
      %v1609 = vsel %vm1556, %v1606, %v1608
      %v1610 = vrot.slane %v333, 7
      %v1611 = vsel %vm1556, %v1608, %v1610
      %v1612 = vrot.slane %v334, 7
      %v1613 = vsel %vm1556, %v1610, %v1612
      %v1614 = vrot.slane %v335, 7
      %v1615 = vsel %vm1556, %v1612, %v1614
      %v1616 = vrot.slane %v336, 7
      %v1617 = vsel %vm1556, %v1614, %v1616
      %v1618 = vrot.slane %v337, 7
      %v1619 = vsel %vm1556, %v1616, %v1618
      %v1652 = vsel %vm1556, 0.0, %v1557
      %v1653 = vmul.f32 %v1652, %v1203
      %v1654 = vmul.f32 %v1559, %v1204
      %v1655 = vmul.f32 %v1561, %v1205
      %v1656 = vmul.f32 %v1563, %v1206
      %v1657 = vmul.f32 %v1565, %v1207
      %v1658 = vmul.f32 %v1567, %v1208
      %v1659 = vmul.f32 %v1569, %v1209
      %v1660 = vmul.f32 %v1571, %v1210
      %v1661 = vmul.f32 %v1573, %v1211
      %v1662 = vmul.f32 %v1575, %v1212
      %v1663 = vmul.f32 %v1577, %v1213
      %v1664 = vmul.f32 %v1579, %v1214
      %v1665 = vmul.f32 %v1581, %v1215
      %v1666 = vmul.f32 %v1583, %v1216
      %v1667 = vmul.f32 %v1585, %v1217
      %v1668 = vmul.f32 %v1587, %v1218
      %v1669 = vmul.f32 %v1589, %v1219
      %v1670 = vmul.f32 %v1591, %v1220
      %v1671 = vmul.f32 %v1593, %v1221
      %v1672 = vmul.f32 %v1595, %v1222
      %v1673 = vmul.f32 %v1597, %v1223
      %v1674 = vmul.f32 %v1599, %v1224
      %v1675 = vmul.f32 %v1601, %v1225
      %v1676 = vmul.f32 %v1603, %v1226
      %v1677 = vmul.f32 %v1605, %v1227
      %v1678 = vmul.f32 %v1607, %v1228
      %v1679 = vmul.f32 %v1609, %v1229
      %v1680 = vmul.f32 %v1611, %v1230
      %v1681 = vmul.f32 %v1613, %v1231
      %v1682 = vmul.f32 %v1615, %v1232
      %v1683 = vmul.f32 %v1617, %v1233
      %v1684 = vmul.f32 %v1619, %v1234
      %vm1685 = vcmask 1046528
      %v1686 = vrot.slane %v306, 1
      %v1687 = vrot.slane %v307, 1
      %v1688 = vsel %vm1685, %v1686, %v1687
      %v1689 = vrot.slane %v308, 1
      %v1690 = vsel %vm1685, %v1687, %v1689
      %v1691 = vrot.slane %v309, 1
      %v1692 = vsel %vm1685, %v1689, %v1691
      %v1693 = vrot.slane %v310, 1
      %v1694 = vsel %vm1685, %v1691, %v1693
      %v1695 = vrot.slane %v311, 1
      %v1696 = vsel %vm1685, %v1693, %v1695
      %v1697 = vrot.slane %v312, 1
      %v1698 = vsel %vm1685, %v1695, %v1697
      %v1699 = vrot.slane %v313, 1
      %v1700 = vsel %vm1685, %v1697, %v1699
      %v1701 = vrot.slane %v314, 1
      %v1702 = vsel %vm1685, %v1699, %v1701
      %v1703 = vrot.slane %v315, 1
      %v1704 = vsel %vm1685, %v1701, %v1703
      %v1705 = vrot.slane %v316, 1
      %v1706 = vsel %vm1685, %v1703, %v1705
      %v1707 = vrot.slane %v317, 1
      %v1708 = vsel %vm1685, %v1705, %v1707
      %v1709 = vrot.slane %v318, 1
      %v1710 = vsel %vm1685, %v1707, %v1709
      %v1711 = vrot.slane %v319, 1
      %v1712 = vsel %vm1685, %v1709, %v1711
      %v1713 = vrot.slane %v320, 1
      %v1714 = vsel %vm1685, %v1711, %v1713
      %v1715 = vrot.slane %v321, 1
      %v1716 = vsel %vm1685, %v1713, %v1715
      %v1717 = vrot.slane %v322, 1
      %v1718 = vsel %vm1685, %v1715, %v1717
      %v1719 = vrot.slane %v323, 1
      %v1720 = vsel %vm1685, %v1717, %v1719
      %v1721 = vrot.slane %v324, 1
      %v1722 = vsel %vm1685, %v1719, %v1721
      %v1723 = vrot.slane %v325, 1
      %v1724 = vsel %vm1685, %v1721, %v1723
      %v1725 = vrot.slane %v326, 1
      %v1726 = vsel %vm1685, %v1723, %v1725
      %v1727 = vrot.slane %v327, 1
      %v1728 = vsel %vm1685, %v1725, %v1727
      %v1729 = vrot.slane %v328, 1
      %v1730 = vsel %vm1685, %v1727, %v1729
      %v1731 = vrot.slane %v329, 1
      %v1732 = vsel %vm1685, %v1729, %v1731
      %v1733 = vrot.slane %v330, 1
      %v1734 = vsel %vm1685, %v1731, %v1733
      %v1735 = vrot.slane %v331, 1
      %v1736 = vsel %vm1685, %v1733, %v1735
      %v1737 = vrot.slane %v332, 1
      %v1738 = vsel %vm1685, %v1735, %v1737
      %v1739 = vrot.slane %v333, 1
      %v1740 = vsel %vm1685, %v1737, %v1739
      %v1741 = vrot.slane %v334, 1
      %v1742 = vsel %vm1685, %v1739, %v1741
      %v1743 = vrot.slane %v335, 1
      %v1744 = vsel %vm1685, %v1741, %v1743
      %v1745 = vrot.slane %v336, 1
      %v1746 = vsel %vm1685, %v1743, %v1745
      %v1747 = vrot.slane %v337, 1
      %v1748 = vsel %vm1685, %v1745, %v1747
      %v1781 = vsel %vm1685, %v1747, 0.0
      %v1782 = vmul.f32 %v1688, %v1299
      %v1783 = vmul.f32 %v1690, %v1300
      %v1784 = vmul.f32 %v1692, %v1301
      %v1785 = vmul.f32 %v1694, %v1302
      %v1786 = vmul.f32 %v1696, %v1303
      %v1787 = vmul.f32 %v1698, %v1304
      %v1788 = vmul.f32 %v1700, %v1305
      %v1789 = vmul.f32 %v1702, %v1306
      %v1790 = vmul.f32 %v1704, %v1307
      %v1791 = vmul.f32 %v1706, %v1308
      %v1792 = vmul.f32 %v1708, %v1309
      %v1793 = vmul.f32 %v1710, %v1310
      %v1794 = vmul.f32 %v1712, %v1311
      %v1795 = vmul.f32 %v1714, %v1312
      %v1796 = vmul.f32 %v1716, %v1313
      %v1797 = vmul.f32 %v1718, %v1314
      %v1798 = vmul.f32 %v1720, %v1315
      %v1799 = vmul.f32 %v1722, %v1316
      %v1800 = vmul.f32 %v1724, %v1317
      %v1801 = vmul.f32 %v1726, %v1318
      %v1802 = vmul.f32 %v1728, %v1319
      %v1803 = vmul.f32 %v1730, %v1320
      %v1804 = vmul.f32 %v1732, %v1321
      %v1805 = vmul.f32 %v1734, %v1322
      %v1806 = vmul.f32 %v1736, %v1323
      %v1807 = vmul.f32 %v1738, %v1324
      %v1808 = vmul.f32 %v1740, %v1325
      %v1809 = vmul.f32 %v1742, %v1326
      %v1810 = vmul.f32 %v1744, %v1327
      %v1811 = vmul.f32 %v1746, %v1328
      %v1812 = vmul.f32 %v1748, %v1329
      %v1813 = vmul.f32 %v1781, %v1330
      %v1814 = vld [vmem:[%s1] sm:$0xff]
      %v1815 = vld [vmem:[%s1 + $0x8] sm:$0xff]
      %v1816 = vld [vmem:[%s1 + $0x10] sm:$0xff]
      %v1817 = vld [vmem:[%s1 + $0x18] sm:$0xff]
      %v1818 = vld [vmem:[%s1 + $0x20] sm:$0xff]
      %v1819 = vld [vmem:[%s1 + $0x28] sm:$0xff]
      %v1820 = vld [vmem:[%s1 + $0x30] sm:$0xff]
      %v1821 = vld [vmem:[%s1 + $0x38] sm:$0xff]
      %v1822 = vld [vmem:[%s1 + $0x40] sm:$0xff]
      %v1823 = vld [vmem:[%s1 + $0x48] sm:$0xff]
      %v1824 = vld [vmem:[%s1 + $0x50] sm:$0xff]
      %v1825 = vld [vmem:[%s1 + $0x58] sm:$0xff]
      %v1826 = vld [vmem:[%s1 + $0x60] sm:$0xff]
      %v1827 = vld [vmem:[%s1 + $0x68] sm:$0xff]
      %v1828 = vld [vmem:[%s1 + $0x70] sm:$0xff]
      %v1829 = vld [vmem:[%s1 + $0x78] sm:$0xff]
      %v1830 = vld [vmem:[%s1 + $0x80] sm:$0xff]
      %v1831 = vld [vmem:[%s1 + $0x88] sm:$0xff]
      %v1832 = vld [vmem:[%s1 + $0x90] sm:$0xff]
      %v1833 = vld [vmem:[%s1 + $0x98] sm:$0xff]
      %v1834 = vld [vmem:[%s1 + $0xa0] sm:$0xff]
      %v1835 = vld [vmem:[%s1 + $0xa8] sm:$0xff]
      %v1836 = vld [vmem:[%s1 + $0xb0] sm:$0xff]
      %v1837 = vld [vmem:[%s1 + $0xb8] sm:$0xff]
      %v1838 = vld [vmem:[%s1 + $0xc0] sm:$0xff]
      %v1839 = vld [vmem:[%s1 + $0xc8] sm:$0xff]
      %v1840 = vld [vmem:[%s1 + $0xd0] sm:$0xff]
      %v1841 = vld [vmem:[%s1 + $0xd8] sm:$0xff]
      %v1842 = vld [vmem:[%s1 + $0xe0] sm:$0xff]
      %v1843 = vld [vmem:[%s1 + $0xe8] sm:$0xff]
      %v1844 = vld [vmem:[%s1 + $0xf0] sm:$0xff]
      %v1845 = vld [vmem:[%s1 + $0xf8] sm:$0xff]
      %v1846 = vld [vmem:[%s1 + $0x100] sm:$0xff]
      %v1847 = vld [vmem:[%s1 + $0x108] sm:$0xff]
      %v1848 = vld [vmem:[%s1 + $0x110] sm:$0xff]
      %v1849 = vld [vmem:[%s1 + $0x118] sm:$0xff]
      %v1850 = vld [vmem:[%s1 + $0x120] sm:$0xff]
      %v1851 = vld [vmem:[%s1 + $0x128] sm:$0xff]
      %v1852 = vld [vmem:[%s1 + $0x130] sm:$0xff]
      %v1853 = vld [vmem:[%s1 + $0x138] sm:$0xff]
      %v1854 = vld [vmem:[%s1 + $0x140] sm:$0xff]
      %v1855 = vld [vmem:[%s1 + $0x148] sm:$0xff]
      %v1856 = vld [vmem:[%s1 + $0x150] sm:$0xff]
      %v1857 = vld [vmem:[%s1 + $0x158] sm:$0xff]
      %v1858 = vld [vmem:[%s1 + $0x160] sm:$0xff]
      %v1859 = vld [vmem:[%s1 + $0x168] sm:$0xff]
      %v1860 = vld [vmem:[%s1 + $0x170] sm:$0xff]
      %v1861 = vld [vmem:[%s1 + $0x178] sm:$0xff]
      %1862 = vmatprep.subr.mxu0 0.0
      %1863 = vmatpush1.msra.mxu0 %v1829
      %1864 = vmatprep.subr.mxu0 0.0
      %1865 = vmatpush1.msra.mxu0 %v1828
      %1866 = vmatprep.subr.mxu0 0.0
      %1867 = vmatpush1.msra.mxu0 %v1827
      %1868 = vmatprep.subr.mxu0 0.0
      %1869 = vmatpush1.msra.mxu0 %v1826
      %1870 = vmatprep.subr.mxu0 0.0
      %1871 = vmatpush1.msra.mxu0 %v1825
      %1872 = vmatprep.subr.mxu0 0.0
      %1873 = vmatpush1.msra.mxu0 %v1824
      %1874 = vmatprep.subr.mxu0 0.0
      %1875 = vmatpush1.msra.mxu0 %v1823
      %1876 = vmatprep.subr.mxu0 0.0
      %1877 = vmatpush1.msra.mxu0 %v1822
      %1878 = vmatprep.subr.mxu0 0.0
      %1879 = vmatpush1.msra.mxu0 %v1821
      %1880 = vmatprep.subr.mxu0 0.0
      %1881 = vmatpush1.msra.mxu0 %v1820
      %1882 = vmatprep.subr.mxu0 0.0
      %1883 = vmatpush1.msra.mxu0 %v1819
      %1884 = vmatprep.subr.mxu0 0.0
      %1885 = vmatpush1.msra.mxu0 %v1818
      %1886 = vmatprep.subr.mxu0 0.0
      %1887 = vmatpush1.msra.mxu0 %v1817
      %1888 = vmatprep.subr.mxu0 0.0
      %1889 = vmatpush1.msra.mxu0 %v1816
      %1890 = vmatprep.subr.mxu0 0.0
      %1891 = vmatpush1.msra.mxu0 %v1815
      %1892 = vmatprep.subr.mxu0 0.0
      %1893 = vmatpush1.msra.mxu0 %v1814
      %1894 = vmatprep.subr.mxu0 0.0
      %1895 = vmatpush2.msra.mxu0 %v1845
      %1896 = vmatprep.subr.mxu0 0.0
      %1897 = vmatpush2.msra.mxu0 %v1844
      %1898 = vmatprep.subr.mxu0 0.0
      %1899 = vmatpush2.msra.mxu0 %v1843
      %1900 = vmatprep.subr.mxu0 0.0
      %1901 = vmatpush2.msra.mxu0 %v1842
      %1902 = vmatprep.subr.mxu0 0.0
      %1903 = vmatpush2.msra.mxu0 %v1841
      %1904 = vmatprep.subr.mxu0 0.0
      %1905 = vmatpush2.msra.mxu0 %v1840
      %1906 = vmatprep.subr.mxu0 0.0
      %1907 = vmatpush2.msra.mxu0 %v1839
      %1908 = vmatprep.subr.mxu0 0.0
      %1909 = vmatpush2.msra.mxu0 %v1838
      %1910 = vmatprep.subr.mxu0 0.0
      %1911 = vmatpush2.msra.mxu0 %v1837
      %1912 = vmatprep.subr.mxu0 0.0
      %1913 = vmatpush2.msra.mxu0 %v1836
      %1914 = vmatprep.subr.mxu0 0.0
      %1915 = vmatpush2.msra.mxu0 %v1835
      %1916 = vmatprep.subr.mxu0 0.0
      %1917 = vmatpush2.msra.mxu0 %v1834
      %1918 = vmatprep.subr.mxu0 0.0
      %1919 = vmatpush2.msra.mxu0 %v1833
      %1920 = vmatprep.subr.mxu0 0.0
      %1921 = vmatpush2.msra.mxu0 %v1832
      %1922 = vmatprep.subr.mxu0 0.0
      %1923 = vmatpush2.msra.mxu0 %v1831
      %1924 = vmatprep.subr.mxu0 0.0
      %1925 = vmatpush2.msra.mxu0 %v1830
      %1926 = vmatprep.mubr.f32.mxu0 %v306
      %1927 = vmatmul.mubr.f32.gmra.mxu0 %v1653
      %v1928 = vpop.f32.mrf.mxu0
      %v1929 = vadd.f32 0.0, %v1928
      %v1930 = vpop.f32.mrf.mxu0
      %1931 = vmatprep.mubr.f32.mxu0 %v307
      %1932 = vmatmul.mubr.f32.gmra.mxu0 %v1654
      %v1933 = vpop.f32.mrf.mxu0
      %v1934 = vadd.f32 0.0, %v1933
      %v1935 = vpop.f32.mrf.mxu0
      %1936 = vmatprep.mubr.f32.mxu0 %v308
      %1937 = vmatmul.mubr.f32.gmra.mxu0 %v1655
      %v1938 = vpop.f32.mrf.mxu0
      %v1939 = vadd.f32 0.0, %v1938
      %v1940 = vpop.f32.mrf.mxu0
      %1941 = vmatprep.mubr.f32.mxu0 %v309
      %1942 = vmatmul.mubr.f32.gmra.mxu0 %v1656
      %v1943 = vpop.f32.mrf.mxu0
      %v1944 = vadd.f32 0.0, %v1943
      %v1945 = vpop.f32.mrf.mxu0
      %1946 = vmatprep.mubr.f32.mxu0 %v310
      %1947 = vmatmul.mubr.f32.gmra.mxu0 %v1657
      %v1948 = vpop.f32.mrf.mxu0
      %v1949 = vadd.f32 0.0, %v1948
      %v1950 = vpop.f32.mrf.mxu0
      %1951 = vmatprep.mubr.f32.mxu0 %v311
      %1952 = vmatmul.mubr.f32.gmra.mxu0 %v1658
      %v1953 = vpop.f32.mrf.mxu0
      %v1954 = vadd.f32 0.0, %v1953
      %v1955 = vpop.f32.mrf.mxu0
      %1956 = vmatprep.mubr.f32.mxu0 %v312
      %1957 = vmatmul.mubr.f32.gmra.mxu0 %v1659
      %v1958 = vpop.f32.mrf.mxu0
      %v1959 = vadd.f32 0.0, %v1958
      %v1960 = vpop.f32.mrf.mxu0
      %1961 = vmatprep.mubr.f32.mxu0 %v313
      %1962 = vmatmul.mubr.f32.gmra.mxu0 %v1660
      %v1963 = vpop.f32.mrf.mxu0
      %v1964 = vadd.f32 0.0, %v1963
      %v1965 = vpop.f32.mrf.mxu0
      %1966 = vmatprep.mubr.f32.mxu0 %v314
      %1967 = vmatmul.mubr.f32.gmra.mxu0 %v1661
      %v1968 = vpop.f32.mrf.mxu0
      %v1969 = vadd.f32 0.0, %v1968
      %v1970 = vpop.f32.mrf.mxu0
      %1971 = vmatprep.mubr.f32.mxu0 %v315
      %1972 = vmatmul.mubr.f32.gmra.mxu0 %v1662
      %v1973 = vpop.f32.mrf.mxu0
      %v1974 = vadd.f32 0.0, %v1973
      %v1975 = vpop.f32.mrf.mxu0
      %1976 = vmatprep.mubr.f32.mxu0 %v316
      %1977 = vmatmul.mubr.f32.gmra.mxu0 %v1663
      %v1978 = vpop.f32.mrf.mxu0
      %v1979 = vadd.f32 0.0, %v1978
      %v1980 = vpop.f32.mrf.mxu0
      %1981 = vmatprep.mubr.f32.mxu0 %v317
      %1982 = vmatmul.mubr.f32.gmra.mxu0 %v1664
      %v1983 = vpop.f32.mrf.mxu0
      %v1984 = vadd.f32 0.0, %v1983
      %v1985 = vpop.f32.mrf.mxu0
      %1986 = vmatprep.mubr.f32.mxu0 %v318
      %1987 = vmatmul.mubr.f32.gmra.mxu0 %v1665
      %v1988 = vpop.f32.mrf.mxu0
      %v1989 = vadd.f32 0.0, %v1988
      %v1990 = vpop.f32.mrf.mxu0
      %1991 = vmatprep.mubr.f32.mxu0 %v319
      %1992 = vmatmul.mubr.f32.gmra.mxu0 %v1666
      %v1993 = vpop.f32.mrf.mxu0
      %v1994 = vadd.f32 0.0, %v1993
      %v1995 = vpop.f32.mrf.mxu0
      %1996 = vmatprep.mubr.f32.mxu0 %v320
      %1997 = vmatmul.mubr.f32.gmra.mxu0 %v1667
      %v1998 = vpop.f32.mrf.mxu0
      %v1999 = vadd.f32 0.0, %v1998
      %v2000 = vpop.f32.mrf.mxu0
      %2001 = vmatprep.mubr.f32.mxu0 %v321
      %2002 = vmatmul.mubr.f32.gmra.mxu0 %v1668
      %v2003 = vpop.f32.mrf.mxu0
      %v2004 = vadd.f32 0.0, %v2003
      %v2005 = vpop.f32.mrf.mxu0
      %2006 = vmatprep.mubr.f32.mxu0 %v322
      %2007 = vmatmul.mubr.f32.gmra.mxu0 %v1669
      %v2008 = vpop.f32.mrf.mxu0
      %v2009 = vadd.f32 0.0, %v2008
      %v2010 = vpop.f32.mrf.mxu0
      %2011 = vmatprep.mubr.f32.mxu0 %v323
      %2012 = vmatmul.mubr.f32.gmra.mxu0 %v1670
      %v2013 = vpop.f32.mrf.mxu0
      %v2014 = vadd.f32 0.0, %v2013
      %v2015 = vpop.f32.mrf.mxu0
      %2016 = vmatprep.mubr.f32.mxu0 %v324
      %2017 = vmatmul.mubr.f32.gmra.mxu0 %v1671
      %v2018 = vpop.f32.mrf.mxu0
      %v2019 = vadd.f32 0.0, %v2018
      %v2020 = vpop.f32.mrf.mxu0
      %2021 = vmatprep.mubr.f32.mxu0 %v325
      %2022 = vmatmul.mubr.f32.gmra.mxu0 %v1672
      %v2023 = vpop.f32.mrf.mxu0
      %v2024 = vadd.f32 0.0, %v2023
      %v2025 = vpop.f32.mrf.mxu0
      %2026 = vmatprep.mubr.f32.mxu0 %v326
      %2027 = vmatmul.mubr.f32.gmra.mxu0 %v1673
      %v2028 = vpop.f32.mrf.mxu0
      %v2029 = vadd.f32 0.0, %v2028
      %v2030 = vpop.f32.mrf.mxu0
      %2031 = vmatprep.mubr.f32.mxu0 %v327
      %2032 = vmatmul.mubr.f32.gmra.mxu0 %v1674
      %v2033 = vpop.f32.mrf.mxu0
      %v2034 = vadd.f32 0.0, %v2033
      %v2035 = vpop.f32.mrf.mxu0
      %2036 = vmatprep.mubr.f32.mxu0 %v328
      %2037 = vmatmul.mubr.f32.gmra.mxu0 %v1675
      %v2038 = vpop.f32.mrf.mxu0
      %v2039 = vadd.f32 0.0, %v2038
      %v2040 = vpop.f32.mrf.mxu0
      %2041 = vmatprep.mubr.f32.mxu0 %v329
      %2042 = vmatmul.mubr.f32.gmra.mxu0 %v1676
      %v2043 = vpop.f32.mrf.mxu0
      %v2044 = vadd.f32 0.0, %v2043
      %v2045 = vpop.f32.mrf.mxu0
      %2046 = vmatprep.mubr.f32.mxu0 %v330
      %2047 = vmatmul.mubr.f32.gmra.mxu0 %v1677
      %v2048 = vpop.f32.mrf.mxu0
      %v2049 = vadd.f32 0.0, %v2048
      %v2050 = vpop.f32.mrf.mxu0
      %2051 = vmatprep.mubr.f32.mxu0 %v331
      %2052 = vmatmul.mubr.f32.gmra.mxu0 %v1678
      %v2053 = vpop.f32.mrf.mxu0
      %v2054 = vadd.f32 0.0, %v2053
      %v2055 = vpop.f32.mrf.mxu0
      %2056 = vmatprep.mubr.f32.mxu0 %v332
      %2057 = vmatmul.mubr.f32.gmra.mxu0 %v1679
      %v2058 = vpop.f32.mrf.mxu0
      %v2059 = vadd.f32 0.0, %v2058
      %v2060 = vpop.f32.mrf.mxu0
      %2061 = vmatprep.mubr.f32.mxu0 %v333
      %2062 = vmatmul.mubr.f32.gmra.mxu0 %v1680
      %v2063 = vpop.f32.mrf.mxu0
      %v2064 = vadd.f32 0.0, %v2063
      %v2065 = vpop.f32.mrf.mxu0
      %2066 = vmatprep.mubr.f32.mxu0 %v334
      %2067 = vmatmul.mubr.f32.gmra.mxu0 %v1681
      %v2068 = vpop.f32.mrf.mxu0
      %v2069 = vadd.f32 0.0, %v2068
      %v2070 = vpop.f32.mrf.mxu0
      %2071 = vmatprep.mubr.f32.mxu0 %v335
      %2072 = vmatmul.mubr.f32.gmra.mxu0 %v1682
      %v2073 = vpop.f32.mrf.mxu0
      %v2074 = vadd.f32 0.0, %v2073
      %v2075 = vpop.f32.mrf.mxu0
      %2076 = vmatprep.mubr.f32.mxu0 %v336
      %2077 = vmatmul.mubr.f32.gmra.mxu0 %v1683
      %v2078 = vpop.f32.mrf.mxu0
      %v2079 = vpop.f32.mrf.mxu0
      %2080 = vmatprep.mubr.f32.mxu0 %v337
      %2081 = vmatmul.mubr.f32.gmra.mxu0 %v1684
      %v2082 = vpop.f32.mrf.mxu0
      %v2083 = vpop.f32.mrf.mxu0
      %2084 = vdwg.mxu0
      %2085 = vmatprep.subr.mxu0 0.0
      %2086 = vmatpush1.msra.mxu0 %v1861
      %2087 = vmatprep.subr.mxu0 0.0
      %2088 = vmatpush1.msra.mxu0 %v1860
      %2089 = vmatprep.subr.mxu0 0.0
      %2090 = vmatpush1.msra.mxu0 %v1859
      %2091 = vmatprep.subr.mxu0 0.0
      %2092 = vmatpush1.msra.mxu0 %v1858
      %2093 = vmatprep.subr.mxu0 0.0
      %2094 = vmatpush1.msra.mxu0 %v1857
      %2095 = vmatprep.subr.mxu0 0.0
      %2096 = vmatpush1.msra.mxu0 %v1856
      %2097 = vmatprep.subr.mxu0 0.0
      %2098 = vmatpush1.msra.mxu0 %v1855
      %2099 = vmatprep.subr.mxu0 0.0
      %2100 = vmatpush1.msra.mxu0 %v1854
      %2101 = vmatprep.subr.mxu0 0.0
      %2102 = vmatpush1.msra.mxu0 %v1853
      %2103 = vmatprep.subr.mxu0 0.0
      %2104 = vmatpush1.msra.mxu0 %v1852
      %2105 = vmatprep.subr.mxu0 0.0
      %2106 = vmatpush1.msra.mxu0 %v1851
      %2107 = vmatprep.subr.mxu0 0.0
      %2108 = vmatpush1.msra.mxu0 %v1850
      %2109 = vmatprep.subr.mxu0 0.0
      %2110 = vmatpush1.msra.mxu0 %v1849
      %2111 = vmatprep.subr.mxu0 0.0
      %2112 = vmatpush1.msra.mxu0 %v1848
      %2113 = vmatprep.subr.mxu0 0.0
      %2114 = vmatpush1.msra.mxu0 %v1847
      %2115 = vmatprep.subr.mxu0 0.0
      %2116 = vmatpush1.msra.mxu0 %v1846
      %2117 = vmatprep.subr.mxu0 0.0
      %2118 = vmatpush2.msra.mxu0 0.0
      %2119 = vmatprep.subr.mxu0 0.0
      %2120 = vmatpush2.msra.mxu0 0.0
      %2121 = vmatprep.subr.mxu0 0.0
      %2122 = vmatpush2.msra.mxu0 0.0
      %2123 = vmatprep.subr.mxu0 0.0
      %2124 = vmatpush2.msra.mxu0 0.0
      %2125 = vmatprep.subr.mxu0 0.0
      %2126 = vmatpush2.msra.mxu0 0.0
      %2127 = vmatprep.subr.mxu0 0.0
      %2128 = vmatpush2.msra.mxu0 0.0
      %2129 = vmatprep.subr.mxu0 0.0
      %2130 = vmatpush2.msra.mxu0 0.0
      %2131 = vmatprep.subr.mxu0 0.0
      %2132 = vmatpush2.msra.mxu0 0.0
      %2133 = vmatprep.subr.mxu0 0.0
      %2134 = vmatpush2.msra.mxu0 0.0
      %2135 = vmatprep.subr.mxu0 0.0
      %2136 = vmatpush2.msra.mxu0 0.0
      %2137 = vmatprep.subr.mxu0 0.0
      %2138 = vmatpush2.msra.mxu0 0.0
      %2139 = vmatprep.subr.mxu0 0.0
      %2140 = vmatpush2.msra.mxu0 0.0
      %2141 = vmatprep.subr.mxu0 0.0
      %2142 = vmatpush2.msra.mxu0 0.0
      %2143 = vmatprep.subr.mxu0 0.0
      %2144 = vmatpush2.msra.mxu0 0.0
      %2145 = vmatprep.subr.mxu0 0.0
      %2146 = vmatpush2.msra.mxu0 0.0
      %2147 = vmatprep.subr.mxu0 0.0
      %2148 = vmatpush2.msra.mxu0 0.0
      %2149 = vmatprep.mubr.f32.mxu0 0.0
      %2150 = vmatmul.mubr.f32.gmra.mxu0 %v1782
      %v2151 = vpop.f32.mrf.mxu0
      %v2152 = vadd.f32 %v1929, %v2151
      %v2153 = vpop.f32.mrf.mxu0
      %2154 = vmatprep.mubr.f32.mxu0 0.0
      %2155 = vmatmul.mubr.f32.gmra.mxu0 %v1783
      %v2156 = vpop.f32.mrf.mxu0
      %v2157 = vadd.f32 %v1934, %v2156
      %v2158 = vpop.f32.mrf.mxu0
      %2159 = vmatprep.mubr.f32.mxu0 0.0
      %2160 = vmatmul.mubr.f32.gmra.mxu0 %v1784
      %v2161 = vpop.f32.mrf.mxu0
      %v2162 = vadd.f32 %v1939, %v2161
      %v2163 = vpop.f32.mrf.mxu0
      %2164 = vmatprep.mubr.f32.mxu0 0.0
      %2165 = vmatmul.mubr.f32.gmra.mxu0 %v1785
      %v2166 = vpop.f32.mrf.mxu0
      %v2167 = vadd.f32 %v1944, %v2166
      %v2168 = vpop.f32.mrf.mxu0
      %2169 = vmatprep.mubr.f32.mxu0 0.0
      %2170 = vmatmul.mubr.f32.gmra.mxu0 %v1786
      %v2171 = vpop.f32.mrf.mxu0
      %v2172 = vadd.f32 %v1949, %v2171
      %v2173 = vpop.f32.mrf.mxu0
      %2174 = vmatprep.mubr.f32.mxu0 0.0
      %2175 = vmatmul.mubr.f32.gmra.mxu0 %v1787
      %v2176 = vpop.f32.mrf.mxu0
      %v2177 = vadd.f32 %v1954, %v2176
      %v2178 = vpop.f32.mrf.mxu0
      %2179 = vmatprep.mubr.f32.mxu0 0.0
      %2180 = vmatmul.mubr.f32.gmra.mxu0 %v1788
      %v2181 = vpop.f32.mrf.mxu0
      %v2182 = vadd.f32 %v1959, %v2181
      %v2183 = vpop.f32.mrf.mxu0
      %2184 = vmatprep.mubr.f32.mxu0 0.0
      %2185 = vmatmul.mubr.f32.gmra.mxu0 %v1789
      %v2186 = vpop.f32.mrf.mxu0
      %v2187 = vadd.f32 %v1964, %v2186
      %v2188 = vpop.f32.mrf.mxu0
      %2189 = vmatprep.mubr.f32.mxu0 0.0
      %2190 = vmatmul.mubr.f32.gmra.mxu0 %v1790
      %v2191 = vpop.f32.mrf.mxu0
      %v2192 = vadd.f32 %v1969, %v2191
      %v2193 = vpop.f32.mrf.mxu0
      %2194 = vmatprep.mubr.f32.mxu0 0.0
      %2195 = vmatmul.mubr.f32.gmra.mxu0 %v1791
      %v2196 = vpop.f32.mrf.mxu0
      %v2197 = vadd.f32 %v1974, %v2196
      %v2198 = vpop.f32.mrf.mxu0
      %2199 = vmatprep.mubr.f32.mxu0 0.0
      %2200 = vmatmul.mubr.f32.gmra.mxu0 %v1792
      %v2201 = vpop.f32.mrf.mxu0
      %v2202 = vadd.f32 %v1979, %v2201
      %v2203 = vpop.f32.mrf.mxu0
      %2204 = vmatprep.mubr.f32.mxu0 0.0
      %2205 = vmatmul.mubr.f32.gmra.mxu0 %v1793
      %v2206 = vpop.f32.mrf.mxu0
      %v2207 = vadd.f32 %v1984, %v2206
      %v2208 = vpop.f32.mrf.mxu0
      %2209 = vmatprep.mubr.f32.mxu0 0.0
      %2210 = vmatmul.mubr.f32.gmra.mxu0 %v1794
      %v2211 = vpop.f32.mrf.mxu0
      %v2212 = vadd.f32 %v1989, %v2211
      %v2213 = vpop.f32.mrf.mxu0
      %2214 = vmatprep.mubr.f32.mxu0 0.0
      %2215 = vmatmul.mubr.f32.gmra.mxu0 %v1795
      %v2216 = vpop.f32.mrf.mxu0
      %v2217 = vadd.f32 %v1994, %v2216
      %v2218 = vpop.f32.mrf.mxu0
      %2219 = vmatprep.mubr.f32.mxu0 0.0
      %2220 = vmatmul.mubr.f32.gmra.mxu0 %v1796
      %v2221 = vpop.f32.mrf.mxu0
      %v2222 = vadd.f32 %v1999, %v2221
      %v2223 = vpop.f32.mrf.mxu0
      %2224 = vmatprep.mubr.f32.mxu0 0.0
      %2225 = vmatmul.mubr.f32.gmra.mxu0 %v1797
      %v2226 = vpop.f32.mrf.mxu0
      %v2227 = vadd.f32 %v2004, %v2226
      %v2228 = vpop.f32.mrf.mxu0
      %2229 = vmatprep.mubr.f32.mxu0 0.0
      %2230 = vmatmul.mubr.f32.gmra.mxu0 %v1798
      %v2231 = vpop.f32.mrf.mxu0
      %v2232 = vadd.f32 %v2009, %v2231
      %v2233 = vpop.f32.mrf.mxu0
      %2234 = vmatprep.mubr.f32.mxu0 0.0
      %2235 = vmatmul.mubr.f32.gmra.mxu0 %v1799
      %v2236 = vpop.f32.mrf.mxu0
      %v2237 = vadd.f32 %v2014, %v2236
      %v2238 = vpop.f32.mrf.mxu0
      %2239 = vmatprep.mubr.f32.mxu0 0.0
      %2240 = vmatmul.mubr.f32.gmra.mxu0 %v1800
      %v2241 = vpop.f32.mrf.mxu0
      %v2242 = vadd.f32 %v2019, %v2241
      %v2243 = vpop.f32.mrf.mxu0
      %2244 = vmatprep.mubr.f32.mxu0 0.0
      %2245 = vmatmul.mubr.f32.gmra.mxu0 %v1801
      %v2246 = vpop.f32.mrf.mxu0
      %v2247 = vadd.f32 %v2024, %v2246
      %v2248 = vpop.f32.mrf.mxu0
      %2249 = vmatprep.mubr.f32.mxu0 0.0
      %2250 = vmatmul.mubr.f32.gmra.mxu0 %v1802
      %v2251 = vpop.f32.mrf.mxu0
      %v2252 = vadd.f32 %v2029, %v2251
      %v2253 = vpop.f32.mrf.mxu0
      %2254 = vmatprep.mubr.f32.mxu0 0.0
      %2255 = vmatmul.mubr.f32.gmra.mxu0 %v1803
      %v2256 = vpop.f32.mrf.mxu0
      %v2257 = vadd.f32 %v2034, %v2256
      %v2258 = vpop.f32.mrf.mxu0
      %2259 = vmatprep.mubr.f32.mxu0 0.0
      %2260 = vmatmul.mubr.f32.gmra.mxu0 %v1804
      %v2261 = vpop.f32.mrf.mxu0
      %v2262 = vadd.f32 %v2039, %v2261
      %v2263 = vpop.f32.mrf.mxu0
      %2264 = vmatprep.mubr.f32.mxu0 0.0
      %2265 = vmatmul.mubr.f32.gmra.mxu0 %v1805
      %v2266 = vpop.f32.mrf.mxu0
      %v2267 = vadd.f32 %v2044, %v2266
      %v2268 = vpop.f32.mrf.mxu0
      %2269 = vmatprep.mubr.f32.mxu0 0.0
      %2270 = vmatmul.mubr.f32.gmra.mxu0 %v1806
      %v2271 = vpop.f32.mrf.mxu0
      %v2272 = vadd.f32 %v2049, %v2271
      %v2273 = vpop.f32.mrf.mxu0
      %2274 = vmatprep.mubr.f32.mxu0 0.0
      %2275 = vmatmul.mubr.f32.gmra.mxu0 %v1807
      %v2276 = vpop.f32.mrf.mxu0
      %v2277 = vadd.f32 %v2054, %v2276
      %v2278 = vpop.f32.mrf.mxu0
      %2279 = vmatprep.mubr.f32.mxu0 0.0
      %2280 = vmatmul.mubr.f32.gmra.mxu0 %v1808
      %v2281 = vpop.f32.mrf.mxu0
      %v2282 = vadd.f32 %v2059, %v2281
      %v2283 = vpop.f32.mrf.mxu0
      %2284 = vmatprep.mubr.f32.mxu0 0.0
      %2285 = vmatmul.mubr.f32.gmra.mxu0 %v1809
      %v2286 = vpop.f32.mrf.mxu0
      %v2287 = vadd.f32 %v2064, %v2286
      %v2288 = vpop.f32.mrf.mxu0
      %2289 = vmatprep.mubr.f32.mxu0 0.0
      %2290 = vmatmul.mubr.f32.gmra.mxu0 %v1810
      %v2291 = vpop.f32.mrf.mxu0
      %v2292 = vadd.f32 %v2069, %v2291
      %v2293 = vpop.f32.mrf.mxu0
      %2294 = vmatprep.mubr.f32.mxu0 0.0
      %2295 = vmatmul.mubr.f32.gmra.mxu0 %v1811
      %v2296 = vpop.f32.mrf.mxu0
      %v2297 = vadd.f32 %v2074, %v2296
      %v2298 = vpop.f32.mrf.mxu0
      %2299 = vmatprep.mubr.f32.mxu0 0.0
      %2300 = vmatmul.mubr.f32.gmra.mxu0 %v1812
      %v2301 = vpop.f32.mrf.mxu0
      %v2302 = vpop.f32.mrf.mxu0
      %2303 = vmatprep.mubr.f32.mxu0 0.0
      %2304 = vmatmul.mubr.f32.gmra.mxu0 %v1813
      %v2305 = vpop.f32.mrf.mxu0
      %v2306 = vpop.f32.mrf.mxu0
      %2307 = vdwg.mxu0
      %s2308 = scalar_lea.vmem %s1, 384
      %v2309 = vld [vmem:[%s2308] sm:$0xff]
      %v2310 = vld [vmem:[%s2308 + $0x8] sm:$0xff]
      %v2311 = vld [vmem:[%s2308 + $0x10] sm:$0xff]
      %v2312 = vld [vmem:[%s2308 + $0x18] sm:$0xff]
      %v2313 = vld [vmem:[%s2308 + $0x20] sm:$0xff]
      %v2314 = vld [vmem:[%s2308 + $0x28] sm:$0xff]
      %v2315 = vld [vmem:[%s2308 + $0x30] sm:$0xff]
      %v2316 = vld [vmem:[%s2308 + $0x38] sm:$0xff]
      %v2317 = vld [vmem:[%s2308 + $0x40] sm:$0xff]
      %v2318 = vld [vmem:[%s2308 + $0x48] sm:$0xff]
      %v2319 = vld [vmem:[%s2308 + $0x50] sm:$0xff]
      %v2320 = vld [vmem:[%s2308 + $0x58] sm:$0xff]
      %v2321 = vld [vmem:[%s2308 + $0x60] sm:$0xff]
      %v2322 = vld [vmem:[%s2308 + $0x68] sm:$0xff]
      %v2323 = vld [vmem:[%s2308 + $0x70] sm:$0xff]
      %v2324 = vld [vmem:[%s2308 + $0x78] sm:$0xff]
      %v2325 = vld [vmem:[%s2308 + $0x80] sm:$0xff]
      %v2326 = vld [vmem:[%s2308 + $0x88] sm:$0xff]
      %v2327 = vld [vmem:[%s2308 + $0x90] sm:$0xff]
      %v2328 = vld [vmem:[%s2308 + $0x98] sm:$0xff]
      %v2329 = vld [vmem:[%s2308 + $0xa0] sm:$0xff]
      %v2330 = vld [vmem:[%s2308 + $0xa8] sm:$0xff]
      %v2331 = vld [vmem:[%s2308 + $0xb0] sm:$0xff]
      %v2332 = vld [vmem:[%s2308 + $0xb8] sm:$0xff]
      %v2333 = vld [vmem:[%s2308 + $0xc0] sm:$0xff]
      %v2334 = vld [vmem:[%s2308 + $0xc8] sm:$0xff]
      %v2335 = vld [vmem:[%s2308 + $0xd0] sm:$0xff]
      %v2336 = vld [vmem:[%s2308 + $0xd8] sm:$0xff]
      %v2337 = vld [vmem:[%s2308 + $0xe0] sm:$0xff]
      %v2338 = vld [vmem:[%s2308 + $0xe8] sm:$0xff]
      %v2339 = vld [vmem:[%s2308 + $0xf0] sm:$0xff]
      %v2340 = vld [vmem:[%s2308 + $0xf8] sm:$0xff]
      %v2341 = vld [vmem:[%s2308 + $0x100] sm:$0xff]
      %v2342 = vld [vmem:[%s2308 + $0x108] sm:$0xff]
      %v2343 = vld [vmem:[%s2308 + $0x110] sm:$0xff]
      %v2344 = vld [vmem:[%s2308 + $0x118] sm:$0xff]
      %v2345 = vld [vmem:[%s2308 + $0x120] sm:$0xff]
      %v2346 = vld [vmem:[%s2308 + $0x128] sm:$0xff]
      %v2347 = vld [vmem:[%s2308 + $0x130] sm:$0xff]
      %v2348 = vld [vmem:[%s2308 + $0x138] sm:$0xff]
      %v2349 = vld [vmem:[%s2308 + $0x140] sm:$0xff]
      %v2350 = vld [vmem:[%s2308 + $0x148] sm:$0xff]
      %v2351 = vld [vmem:[%s2308 + $0x150] sm:$0xff]
      %v2352 = vld [vmem:[%s2308 + $0x158] sm:$0xff]
      %v2353 = vld [vmem:[%s2308 + $0x160] sm:$0xff]
      %v2354 = vld [vmem:[%s2308 + $0x168] sm:$0xff]
      %v2355 = vld [vmem:[%s2308 + $0x170] sm:$0xff]
      %v2356 = vld [vmem:[%s2308 + $0x178] sm:$0xff]
      %s2357 = scalar_lea.vmem %s1, 768
      %v2358 = vld [vmem:[%s2357] sm:$0xff]
      %v2359 = vld [vmem:[%s2357 + $0x8] sm:$0xff]
      %v2360 = vld [vmem:[%s2357 + $0x10] sm:$0xff]
      %v2361 = vld [vmem:[%s2357 + $0x18] sm:$0xff]
      %v2362 = vld [vmem:[%s2357 + $0x20] sm:$0xff]
      %v2363 = vld [vmem:[%s2357 + $0x28] sm:$0xff]
      %v2364 = vld [vmem:[%s2357 + $0x30] sm:$0xff]
      %v2365 = vld [vmem:[%s2357 + $0x38] sm:$0xff]
      %v2366 = vld [vmem:[%s2357 + $0x40] sm:$0xff]
      %v2367 = vld [vmem:[%s2357 + $0x48] sm:$0xff]
      %v2368 = vld [vmem:[%s2357 + $0x50] sm:$0xff]
      %v2369 = vld [vmem:[%s2357 + $0x58] sm:$0xff]
      %v2370 = vld [vmem:[%s2357 + $0x60] sm:$0xff]
      %v2371 = vld [vmem:[%s2357 + $0x68] sm:$0xff]
      %v2372 = vld [vmem:[%s2357 + $0x70] sm:$0xff]
      %v2373 = vld [vmem:[%s2357 + $0x78] sm:$0xff]
      %v2374 = vld [vmem:[%s2357 + $0x80] sm:$0xff]
      %v2375 = vld [vmem:[%s2357 + $0x88] sm:$0xff]
      %v2376 = vld [vmem:[%s2357 + $0x90] sm:$0xff]
      %v2377 = vld [vmem:[%s2357 + $0x98] sm:$0xff]
      %v2378 = vld [vmem:[%s2357 + $0xa0] sm:$0xff]
      %v2379 = vld [vmem:[%s2357 + $0xa8] sm:$0xff]
      %v2380 = vld [vmem:[%s2357 + $0xb0] sm:$0xff]
      %v2381 = vld [vmem:[%s2357 + $0xb8] sm:$0xff]
      %v2382 = vld [vmem:[%s2357 + $0xc0] sm:$0xff]
      %v2383 = vld [vmem:[%s2357 + $0xc8] sm:$0xff]
      %v2384 = vld [vmem:[%s2357 + $0xd0] sm:$0xff]
      %v2385 = vld [vmem:[%s2357 + $0xd8] sm:$0xff]
      %v2386 = vld [vmem:[%s2357 + $0xe0] sm:$0xff]
      %v2387 = vld [vmem:[%s2357 + $0xe8] sm:$0xff]
      %v2388 = vld [vmem:[%s2357 + $0xf0] sm:$0xff]
      %v2389 = vld [vmem:[%s2357 + $0xf8] sm:$0xff]
      %v2390 = vld [vmem:[%s2357 + $0x100] sm:$0xff]
      %v2391 = vld [vmem:[%s2357 + $0x108] sm:$0xff]
      %v2392 = vld [vmem:[%s2357 + $0x110] sm:$0xff]
      %v2393 = vld [vmem:[%s2357 + $0x118] sm:$0xff]
      %v2394 = vld [vmem:[%s2357 + $0x120] sm:$0xff]
      %v2395 = vld [vmem:[%s2357 + $0x128] sm:$0xff]
      %v2396 = vld [vmem:[%s2357 + $0x130] sm:$0xff]
      %v2397 = vld [vmem:[%s2357 + $0x138] sm:$0xff]
      %v2398 = vld [vmem:[%s2357 + $0x140] sm:$0xff]
      %v2399 = vld [vmem:[%s2357 + $0x148] sm:$0xff]
      %v2400 = vld [vmem:[%s2357 + $0x150] sm:$0xff]
      %v2401 = vld [vmem:[%s2357 + $0x158] sm:$0xff]
      %v2402 = vld [vmem:[%s2357 + $0x160] sm:$0xff]
      %v2403 = vld [vmem:[%s2357 + $0x168] sm:$0xff]
      %v2404 = vld [vmem:[%s2357 + $0x170] sm:$0xff]
      %v2405 = vld [vmem:[%s2357 + $0x178] sm:$0xff]
      %2406 = vmatprep.subr.mxu0 0.0
      %2407 = vmatpush1.msra.mxu0 %v2373
      %2408 = vmatprep.subr.mxu0 0.0
      %2409 = vmatpush1.msra.mxu0 %v2372
      %2410 = vmatprep.subr.mxu0 0.0
      %2411 = vmatpush1.msra.mxu0 %v2371
      %2412 = vmatprep.subr.mxu0 0.0
      %2413 = vmatpush1.msra.mxu0 %v2370
      %2414 = vmatprep.subr.mxu0 0.0
      %2415 = vmatpush1.msra.mxu0 %v2369
      %2416 = vmatprep.subr.mxu0 0.0
      %2417 = vmatpush1.msra.mxu0 %v2368
      %2418 = vmatprep.subr.mxu0 0.0
      %2419 = vmatpush1.msra.mxu0 %v2367
      %2420 = vmatprep.subr.mxu0 0.0
      %2421 = vmatpush1.msra.mxu0 %v2366
      %2422 = vmatprep.subr.mxu0 0.0
      %2423 = vmatpush1.msra.mxu0 %v2365
      %2424 = vmatprep.subr.mxu0 0.0
      %2425 = vmatpush1.msra.mxu0 %v2364
      %2426 = vmatprep.subr.mxu0 0.0
      %2427 = vmatpush1.msra.mxu0 %v2363
      %2428 = vmatprep.subr.mxu0 0.0
      %2429 = vmatpush1.msra.mxu0 %v2362
      %2430 = vmatprep.subr.mxu0 0.0
      %2431 = vmatpush1.msra.mxu0 %v2361
      %2432 = vmatprep.subr.mxu0 0.0
      %2433 = vmatpush1.msra.mxu0 %v2360
      %2434 = vmatprep.subr.mxu0 0.0
      %2435 = vmatpush1.msra.mxu0 %v2359
      %2436 = vmatprep.subr.mxu0 0.0
      %2437 = vmatpush1.msra.mxu0 %v2358
      %2438 = vmatprep.subr.mxu0 0.0
      %2439 = vmatpush2.msra.mxu0 %v2389
      %2440 = vmatprep.subr.mxu0 0.0
      %2441 = vmatpush2.msra.mxu0 %v2388
      %2442 = vmatprep.subr.mxu0 0.0
      %2443 = vmatpush2.msra.mxu0 %v2387
      %2444 = vmatprep.subr.mxu0 0.0
      %2445 = vmatpush2.msra.mxu0 %v2386
      %2446 = vmatprep.subr.mxu0 0.0
      %2447 = vmatpush2.msra.mxu0 %v2385
      %2448 = vmatprep.subr.mxu0 0.0
      %2449 = vmatpush2.msra.mxu0 %v2384
      %2450 = vmatprep.subr.mxu0 0.0
      %2451 = vmatpush2.msra.mxu0 %v2383
      %2452 = vmatprep.subr.mxu0 0.0
      %2453 = vmatpush2.msra.mxu0 %v2382
      %2454 = vmatprep.subr.mxu0 0.0
      %2455 = vmatpush2.msra.mxu0 %v2381
      %2456 = vmatprep.subr.mxu0 0.0
      %2457 = vmatpush2.msra.mxu0 %v2380
      %2458 = vmatprep.subr.mxu0 0.0
      %2459 = vmatpush2.msra.mxu0 %v2379
      %2460 = vmatprep.subr.mxu0 0.0
      %2461 = vmatpush2.msra.mxu0 %v2378
      %2462 = vmatprep.subr.mxu0 0.0
      %2463 = vmatpush2.msra.mxu0 %v2377
      %2464 = vmatprep.subr.mxu0 0.0
      %2465 = vmatpush2.msra.mxu0 %v2376
      %2466 = vmatprep.subr.mxu0 0.0
      %2467 = vmatpush2.msra.mxu0 %v2375
      %2468 = vmatprep.subr.mxu0 0.0
      %2469 = vmatpush2.msra.mxu0 %v2374
      %2470 = vmatprep.mubr.f32.mxu0 %v306
      %2471 = vmatmul.mubr.f32.gmra.mxu0 %v1653
      %v2472 = vpop.f32.mrf.mxu0
      %v2473 = vpop.f32.mrf.mxu0
      %2474 = vmatprep.mubr.f32.mxu0 %v307
      %2475 = vmatmul.mubr.f32.gmra.mxu0 %v1654
      %v2476 = vpop.f32.mrf.mxu0
      %v2477 = vpop.f32.mrf.mxu0
      %2478 = vmatprep.mubr.f32.mxu0 %v308
      %2479 = vmatmul.mubr.f32.gmra.mxu0 %v1655
      %v2480 = vpop.f32.mrf.mxu0
      %v2481 = vadd.f32 0.0, %v2480
      %v2482 = vpop.f32.mrf.mxu0
      %2483 = vmatprep.mubr.f32.mxu0 %v309
      %2484 = vmatmul.mubr.f32.gmra.mxu0 %v1656
      %v2485 = vpop.f32.mrf.mxu0
      %v2486 = vadd.f32 0.0, %v2485
      %v2487 = vpop.f32.mrf.mxu0
      %2488 = vmatprep.mubr.f32.mxu0 %v310
      %2489 = vmatmul.mubr.f32.gmra.mxu0 %v1657
      %v2490 = vpop.f32.mrf.mxu0
      %v2491 = vadd.f32 0.0, %v2490
      %v2492 = vpop.f32.mrf.mxu0
      %2493 = vmatprep.mubr.f32.mxu0 %v311
      %2494 = vmatmul.mubr.f32.gmra.mxu0 %v1658
      %v2495 = vpop.f32.mrf.mxu0
      %v2496 = vadd.f32 0.0, %v2495
      %v2497 = vpop.f32.mrf.mxu0
      %2498 = vmatprep.mubr.f32.mxu0 %v312
      %2499 = vmatmul.mubr.f32.gmra.mxu0 %v1659
      %v2500 = vpop.f32.mrf.mxu0
      %v2501 = vadd.f32 0.0, %v2500
      %v2502 = vpop.f32.mrf.mxu0
      %2503 = vmatprep.mubr.f32.mxu0 %v313
      %2504 = vmatmul.mubr.f32.gmra.mxu0 %v1660
      %v2505 = vpop.f32.mrf.mxu0
      %v2506 = vadd.f32 0.0, %v2505
      %v2507 = vpop.f32.mrf.mxu0
      %2508 = vmatprep.mubr.f32.mxu0 %v314
      %2509 = vmatmul.mubr.f32.gmra.mxu0 %v1661
      %v2510 = vpop.f32.mrf.mxu0
      %v2511 = vadd.f32 0.0, %v2510
      %v2512 = vpop.f32.mrf.mxu0
      %2513 = vmatprep.mubr.f32.mxu0 %v315
      %2514 = vmatmul.mubr.f32.gmra.mxu0 %v1662
      %v2515 = vpop.f32.mrf.mxu0
      %v2516 = vadd.f32 0.0, %v2515
      %v2517 = vpop.f32.mrf.mxu0
      %2518 = vmatprep.mubr.f32.mxu0 %v316
      %2519 = vmatmul.mubr.f32.gmra.mxu0 %v1663
      %v2520 = vpop.f32.mrf.mxu0
      %v2521 = vadd.f32 0.0, %v2520
      %v2522 = vpop.f32.mrf.mxu0
      %2523 = vmatprep.mubr.f32.mxu0 %v317
      %2524 = vmatmul.mubr.f32.gmra.mxu0 %v1664
      %v2525 = vpop.f32.mrf.mxu0
      %v2526 = vadd.f32 0.0, %v2525
      %v2527 = vpop.f32.mrf.mxu0
      %2528 = vmatprep.mubr.f32.mxu0 %v318
      %2529 = vmatmul.mubr.f32.gmra.mxu0 %v1665
      %v2530 = vpop.f32.mrf.mxu0
      %v2531 = vadd.f32 0.0, %v2530
      %v2532 = vpop.f32.mrf.mxu0
      %2533 = vmatprep.mubr.f32.mxu0 %v319
      %2534 = vmatmul.mubr.f32.gmra.mxu0 %v1666
      %v2535 = vpop.f32.mrf.mxu0
      %v2536 = vadd.f32 0.0, %v2535
      %v2537 = vpop.f32.mrf.mxu0
      %2538 = vmatprep.mubr.f32.mxu0 %v320
      %2539 = vmatmul.mubr.f32.gmra.mxu0 %v1667
      %v2540 = vpop.f32.mrf.mxu0
      %v2541 = vadd.f32 0.0, %v2540
      %v2542 = vpop.f32.mrf.mxu0
      %2543 = vmatprep.mubr.f32.mxu0 %v321
      %2544 = vmatmul.mubr.f32.gmra.mxu0 %v1668
      %v2545 = vpop.f32.mrf.mxu0
      %v2546 = vadd.f32 0.0, %v2545
      %v2547 = vpop.f32.mrf.mxu0
      %2548 = vmatprep.mubr.f32.mxu0 %v322
      %2549 = vmatmul.mubr.f32.gmra.mxu0 %v1669
      %v2550 = vpop.f32.mrf.mxu0
      %v2551 = vadd.f32 0.0, %v2550
      %v2552 = vpop.f32.mrf.mxu0
      %2553 = vmatprep.mubr.f32.mxu0 %v323
      %2554 = vmatmul.mubr.f32.gmra.mxu0 %v1670
      %v2555 = vpop.f32.mrf.mxu0
      %v2556 = vadd.f32 0.0, %v2555
      %v2557 = vpop.f32.mrf.mxu0
      %2558 = vmatprep.mubr.f32.mxu0 %v324
      %2559 = vmatmul.mubr.f32.gmra.mxu0 %v1671
      %v2560 = vpop.f32.mrf.mxu0
      %v2561 = vadd.f32 0.0, %v2560
      %v2562 = vpop.f32.mrf.mxu0
      %2563 = vmatprep.mubr.f32.mxu0 %v325
      %2564 = vmatmul.mubr.f32.gmra.mxu0 %v1672
      %v2565 = vpop.f32.mrf.mxu0
      %v2566 = vadd.f32 0.0, %v2565
      %v2567 = vpop.f32.mrf.mxu0
      %2568 = vmatprep.mubr.f32.mxu0 %v326
      %2569 = vmatmul.mubr.f32.gmra.mxu0 %v1673
      %v2570 = vpop.f32.mrf.mxu0
      %v2571 = vadd.f32 0.0, %v2570
      %v2572 = vpop.f32.mrf.mxu0
      %2573 = vmatprep.mubr.f32.mxu0 %v327
      %2574 = vmatmul.mubr.f32.gmra.mxu0 %v1674
      %v2575 = vpop.f32.mrf.mxu0
      %v2576 = vadd.f32 0.0, %v2575
      %v2577 = vpop.f32.mrf.mxu0
      %2578 = vmatprep.mubr.f32.mxu0 %v328
      %2579 = vmatmul.mubr.f32.gmra.mxu0 %v1675
      %v2580 = vpop.f32.mrf.mxu0
      %v2581 = vadd.f32 0.0, %v2580
      %v2582 = vpop.f32.mrf.mxu0
      %2583 = vmatprep.mubr.f32.mxu0 %v329
      %2584 = vmatmul.mubr.f32.gmra.mxu0 %v1676
      %v2585 = vpop.f32.mrf.mxu0
      %v2586 = vadd.f32 0.0, %v2585
      %v2587 = vpop.f32.mrf.mxu0
      %2588 = vmatprep.mubr.f32.mxu0 %v330
      %2589 = vmatmul.mubr.f32.gmra.mxu0 %v1677
      %v2590 = vpop.f32.mrf.mxu0
      %v2591 = vadd.f32 0.0, %v2590
      %v2592 = vpop.f32.mrf.mxu0
      %2593 = vmatprep.mubr.f32.mxu0 %v331
      %2594 = vmatmul.mubr.f32.gmra.mxu0 %v1678
      %v2595 = vpop.f32.mrf.mxu0
      %v2596 = vadd.f32 0.0, %v2595
      %v2597 = vpop.f32.mrf.mxu0
      %2598 = vmatprep.mubr.f32.mxu0 %v332
      %2599 = vmatmul.mubr.f32.gmra.mxu0 %v1679
      %v2600 = vpop.f32.mrf.mxu0
      %v2601 = vadd.f32 0.0, %v2600
      %v2602 = vpop.f32.mrf.mxu0
      %2603 = vmatprep.mubr.f32.mxu0 %v333
      %2604 = vmatmul.mubr.f32.gmra.mxu0 %v1680
      %v2605 = vpop.f32.mrf.mxu0
      %v2606 = vadd.f32 0.0, %v2605
      %v2607 = vpop.f32.mrf.mxu0
      %2608 = vmatprep.mubr.f32.mxu0 %v334
      %2609 = vmatmul.mubr.f32.gmra.mxu0 %v1681
      %v2610 = vpop.f32.mrf.mxu0
      %v2611 = vadd.f32 0.0, %v2610
      %v2612 = vpop.f32.mrf.mxu0
      %2613 = vmatprep.mubr.f32.mxu0 %v335
      %2614 = vmatmul.mubr.f32.gmra.mxu0 %v1682
      %v2615 = vpop.f32.mrf.mxu0
      %v2616 = vadd.f32 0.0, %v2615
      %v2617 = vpop.f32.mrf.mxu0
      %2618 = vmatprep.mubr.f32.mxu0 %v336
      %2619 = vmatmul.mubr.f32.gmra.mxu0 %v1683
      %v2620 = vpop.f32.mrf.mxu0
      %v2621 = vadd.f32 0.0, %v2620
      %v2622 = vpop.f32.mrf.mxu0
      %2623 = vmatprep.mubr.f32.mxu0 %v337
      %2624 = vmatmul.mubr.f32.gmra.mxu0 %v1684
      %v2625 = vpop.f32.mrf.mxu0
      %v2626 = vadd.f32 0.0, %v2625
      %v2627 = vpop.f32.mrf.mxu0
      %2628 = vdwg.mxu0
      %2629 = vmatprep.subr.mxu0 0.0
      %2630 = vmatpush1.msra.mxu0 %v2405
      %2631 = vmatprep.subr.mxu0 0.0
      %2632 = vmatpush1.msra.mxu0 %v2404
      %2633 = vmatprep.subr.mxu0 0.0
      %2634 = vmatpush1.msra.mxu0 %v2403
      %2635 = vmatprep.subr.mxu0 0.0
      %2636 = vmatpush1.msra.mxu0 %v2402
      %2637 = vmatprep.subr.mxu0 0.0
      %2638 = vmatpush1.msra.mxu0 %v2401
      %2639 = vmatprep.subr.mxu0 0.0
      %2640 = vmatpush1.msra.mxu0 %v2400
      %2641 = vmatprep.subr.mxu0 0.0
      %2642 = vmatpush1.msra.mxu0 %v2399
      %2643 = vmatprep.subr.mxu0 0.0
      %2644 = vmatpush1.msra.mxu0 %v2398
      %2645 = vmatprep.subr.mxu0 0.0
      %2646 = vmatpush1.msra.mxu0 %v2397
      %2647 = vmatprep.subr.mxu0 0.0
      %2648 = vmatpush1.msra.mxu0 %v2396
      %2649 = vmatprep.subr.mxu0 0.0
      %2650 = vmatpush1.msra.mxu0 %v2395
      %2651 = vmatprep.subr.mxu0 0.0
      %2652 = vmatpush1.msra.mxu0 %v2394
      %2653 = vmatprep.subr.mxu0 0.0
      %2654 = vmatpush1.msra.mxu0 %v2393
      %2655 = vmatprep.subr.mxu0 0.0
      %2656 = vmatpush1.msra.mxu0 %v2392
      %2657 = vmatprep.subr.mxu0 0.0
      %2658 = vmatpush1.msra.mxu0 %v2391
      %2659 = vmatprep.subr.mxu0 0.0
      %2660 = vmatpush1.msra.mxu0 %v2390
      %2661 = vmatprep.subr.mxu0 0.0
      %2662 = vmatpush2.msra.mxu0 0.0
      %2663 = vmatprep.subr.mxu0 0.0
      %2664 = vmatpush2.msra.mxu0 0.0
      %2665 = vmatprep.subr.mxu0 0.0
      %2666 = vmatpush2.msra.mxu0 0.0
      %2667 = vmatprep.subr.mxu0 0.0
      %2668 = vmatpush2.msra.mxu0 0.0
      %2669 = vmatprep.subr.mxu0 0.0
      %2670 = vmatpush2.msra.mxu0 0.0
      %2671 = vmatprep.subr.mxu0 0.0
      %2672 = vmatpush2.msra.mxu0 0.0
      %2673 = vmatprep.subr.mxu0 0.0
      %2674 = vmatpush2.msra.mxu0 0.0
      %2675 = vmatprep.subr.mxu0 0.0
      %2676 = vmatpush2.msra.mxu0 0.0
      %2677 = vmatprep.subr.mxu0 0.0
      %2678 = vmatpush2.msra.mxu0 0.0
      %2679 = vmatprep.subr.mxu0 0.0
      %2680 = vmatpush2.msra.mxu0 0.0
      %2681 = vmatprep.subr.mxu0 0.0
      %2682 = vmatpush2.msra.mxu0 0.0
      %2683 = vmatprep.subr.mxu0 0.0
      %2684 = vmatpush2.msra.mxu0 0.0
      %2685 = vmatprep.subr.mxu0 0.0
      %2686 = vmatpush2.msra.mxu0 0.0
      %2687 = vmatprep.subr.mxu0 0.0
      %2688 = vmatpush2.msra.mxu0 0.0
      %2689 = vmatprep.subr.mxu0 0.0
      %2690 = vmatpush2.msra.mxu0 0.0
      %2691 = vmatprep.subr.mxu0 0.0
      %2692 = vmatpush2.msra.mxu0 0.0
      %2693 = vmatprep.mubr.f32.mxu0 0.0
      %2694 = vmatmul.mubr.f32.gmra.mxu0 %v1782
      %v2695 = vpop.f32.mrf.mxu0
      %v2696 = vpop.f32.mrf.mxu0
      %2697 = vmatprep.mubr.f32.mxu0 0.0
      %2698 = vmatmul.mubr.f32.gmra.mxu0 %v1783
      %v2699 = vpop.f32.mrf.mxu0
      %v2700 = vpop.f32.mrf.mxu0
      %2701 = vmatprep.mubr.f32.mxu0 0.0
      %2702 = vmatmul.mubr.f32.gmra.mxu0 %v1784
      %v2703 = vpop.f32.mrf.mxu0
      %v2704 = vadd.f32 %v2481, %v2703
      %v2705 = vpop.f32.mrf.mxu0
      %2706 = vmatprep.mubr.f32.mxu0 0.0
      %2707 = vmatmul.mubr.f32.gmra.mxu0 %v1785
      %v2708 = vpop.f32.mrf.mxu0
      %v2709 = vadd.f32 %v2486, %v2708
      %v2710 = vpop.f32.mrf.mxu0
      %2711 = vmatprep.mubr.f32.mxu0 0.0
      %2712 = vmatmul.mubr.f32.gmra.mxu0 %v1786
      %v2713 = vpop.f32.mrf.mxu0
      %v2714 = vadd.f32 %v2491, %v2713
      %v2715 = vpop.f32.mrf.mxu0
      %2716 = vmatprep.mubr.f32.mxu0 0.0
      %2717 = vmatmul.mubr.f32.gmra.mxu0 %v1787
      %v2718 = vpop.f32.mrf.mxu0
      %v2719 = vadd.f32 %v2496, %v2718
      %v2720 = vpop.f32.mrf.mxu0
      %2721 = vmatprep.mubr.f32.mxu0 0.0
      %2722 = vmatmul.mubr.f32.gmra.mxu0 %v1788
      %v2723 = vpop.f32.mrf.mxu0
      %v2724 = vadd.f32 %v2501, %v2723
      %v2725 = vpop.f32.mrf.mxu0
      %2726 = vmatprep.mubr.f32.mxu0 0.0
      %2727 = vmatmul.mubr.f32.gmra.mxu0 %v1789
      %v2728 = vpop.f32.mrf.mxu0
      %v2729 = vadd.f32 %v2506, %v2728
      %v2730 = vpop.f32.mrf.mxu0
      %2731 = vmatprep.mubr.f32.mxu0 0.0
      %2732 = vmatmul.mubr.f32.gmra.mxu0 %v1790
      %v2733 = vpop.f32.mrf.mxu0
      %v2734 = vadd.f32 %v2511, %v2733
      %v2735 = vpop.f32.mrf.mxu0
      %2736 = vmatprep.mubr.f32.mxu0 0.0
      %2737 = vmatmul.mubr.f32.gmra.mxu0 %v1791
      %v2738 = vpop.f32.mrf.mxu0
      %v2739 = vadd.f32 %v2516, %v2738
      %v2740 = vpop.f32.mrf.mxu0
      %2741 = vmatprep.mubr.f32.mxu0 0.0
      %2742 = vmatmul.mubr.f32.gmra.mxu0 %v1792
      %v2743 = vpop.f32.mrf.mxu0
      %v2744 = vadd.f32 %v2521, %v2743
      %v2745 = vpop.f32.mrf.mxu0
      %2746 = vmatprep.mubr.f32.mxu0 0.0
      %2747 = vmatmul.mubr.f32.gmra.mxu0 %v1793
      %v2748 = vpop.f32.mrf.mxu0
      %v2749 = vadd.f32 %v2526, %v2748
      %v2750 = vpop.f32.mrf.mxu0
      %2751 = vmatprep.mubr.f32.mxu0 0.0
      %2752 = vmatmul.mubr.f32.gmra.mxu0 %v1794
      %v2753 = vpop.f32.mrf.mxu0
      %v2754 = vadd.f32 %v2531, %v2753
      %v2755 = vpop.f32.mrf.mxu0
      %2756 = vmatprep.mubr.f32.mxu0 0.0
      %2757 = vmatmul.mubr.f32.gmra.mxu0 %v1795
      %v2758 = vpop.f32.mrf.mxu0
      %v2759 = vadd.f32 %v2536, %v2758
      %v2760 = vpop.f32.mrf.mxu0
      %2761 = vmatprep.mubr.f32.mxu0 0.0
      %2762 = vmatmul.mubr.f32.gmra.mxu0 %v1796
      %v2763 = vpop.f32.mrf.mxu0
      %v2764 = vadd.f32 %v2541, %v2763
      %v2765 = vpop.f32.mrf.mxu0
      %2766 = vmatprep.mubr.f32.mxu0 0.0
      %2767 = vmatmul.mubr.f32.gmra.mxu0 %v1797
      %v2768 = vpop.f32.mrf.mxu0
      %v2769 = vadd.f32 %v2546, %v2768
      %v2770 = vpop.f32.mrf.mxu0
      %2771 = vmatprep.mubr.f32.mxu0 0.0
      %2772 = vmatmul.mubr.f32.gmra.mxu0 %v1798
      %v2773 = vpop.f32.mrf.mxu0
      %v2774 = vadd.f32 %v2551, %v2773
      %v2775 = vpop.f32.mrf.mxu0
      %2776 = vmatprep.mubr.f32.mxu0 0.0
      %2777 = vmatmul.mubr.f32.gmra.mxu0 %v1799
      %v2778 = vpop.f32.mrf.mxu0
      %v2779 = vadd.f32 %v2556, %v2778
      %v2780 = vpop.f32.mrf.mxu0
      %2781 = vmatprep.mubr.f32.mxu0 0.0
      %2782 = vmatmul.mubr.f32.gmra.mxu0 %v1800
      %v2783 = vpop.f32.mrf.mxu0
      %v2784 = vadd.f32 %v2561, %v2783
      %v2785 = vpop.f32.mrf.mxu0
      %2786 = vmatprep.mubr.f32.mxu0 0.0
      %2787 = vmatmul.mubr.f32.gmra.mxu0 %v1801
      %v2788 = vpop.f32.mrf.mxu0
      %v2789 = vadd.f32 %v2566, %v2788
      %v2790 = vpop.f32.mrf.mxu0
      %2791 = vmatprep.mubr.f32.mxu0 0.0
      %2792 = vmatmul.mubr.f32.gmra.mxu0 %v1802
      %v2793 = vpop.f32.mrf.mxu0
      %v2794 = vadd.f32 %v2571, %v2793
      %v2795 = vpop.f32.mrf.mxu0
      %2796 = vmatprep.mubr.f32.mxu0 0.0
      %2797 = vmatmul.mubr.f32.gmra.mxu0 %v1803
      %v2798 = vpop.f32.mrf.mxu0
      %v2799 = vadd.f32 %v2576, %v2798
      %v2800 = vpop.f32.mrf.mxu0
      %2801 = vmatprep.mubr.f32.mxu0 0.0
      %2802 = vmatmul.mubr.f32.gmra.mxu0 %v1804
      %v2803 = vpop.f32.mrf.mxu0
      %v2804 = vadd.f32 %v2581, %v2803
      %v2805 = vpop.f32.mrf.mxu0
      %2806 = vmatprep.mubr.f32.mxu0 0.0
      %2807 = vmatmul.mubr.f32.gmra.mxu0 %v1805
      %v2808 = vpop.f32.mrf.mxu0
      %v2809 = vadd.f32 %v2586, %v2808
      %v2810 = vpop.f32.mrf.mxu0
      %2811 = vmatprep.mubr.f32.mxu0 0.0
      %2812 = vmatmul.mubr.f32.gmra.mxu0 %v1806
      %v2813 = vpop.f32.mrf.mxu0
      %v2814 = vadd.f32 %v2591, %v2813
      %v2815 = vpop.f32.mrf.mxu0
      %2816 = vmatprep.mubr.f32.mxu0 0.0
      %2817 = vmatmul.mubr.f32.gmra.mxu0 %v1807
      %v2818 = vpop.f32.mrf.mxu0
      %v2819 = vadd.f32 %v2596, %v2818
      %v2820 = vpop.f32.mrf.mxu0
      %2821 = vmatprep.mubr.f32.mxu0 0.0
      %2822 = vmatmul.mubr.f32.gmra.mxu0 %v1808
      %v2823 = vpop.f32.mrf.mxu0
      %v2824 = vadd.f32 %v2601, %v2823
      %v2825 = vpop.f32.mrf.mxu0
      %2826 = vmatprep.mubr.f32.mxu0 0.0
      %2827 = vmatmul.mubr.f32.gmra.mxu0 %v1809
      %v2828 = vpop.f32.mrf.mxu0
      %v2829 = vadd.f32 %v2606, %v2828
      %v2830 = vpop.f32.mrf.mxu0
      %2831 = vmatprep.mubr.f32.mxu0 0.0
      %2832 = vmatmul.mubr.f32.gmra.mxu0 %v1810
      %v2833 = vpop.f32.mrf.mxu0
      %v2834 = vadd.f32 %v2611, %v2833
      %v2835 = vpop.f32.mrf.mxu0
      %2836 = vmatprep.mubr.f32.mxu0 0.0
      %2837 = vmatmul.mubr.f32.gmra.mxu0 %v1811
      %v2838 = vpop.f32.mrf.mxu0
      %v2839 = vadd.f32 %v2616, %v2838
      %v2840 = vpop.f32.mrf.mxu0
      %2841 = vmatprep.mubr.f32.mxu0 0.0
      %2842 = vmatmul.mubr.f32.gmra.mxu0 %v1812
      %v2843 = vpop.f32.mrf.mxu0
      %v2844 = vadd.f32 %v2621, %v2843
      %v2845 = vpop.f32.mrf.mxu0
      %2846 = vmatprep.mubr.f32.mxu0 0.0
      %2847 = vmatmul.mubr.f32.gmra.mxu0 %v1813
      %v2848 = vpop.f32.mrf.mxu0
      %v2849 = vadd.f32 %v2626, %v2848
      %v2850 = vpop.f32.mrf.mxu0
      %2851 = vdwg.mxu0
      %v2852 = vmul.f32 %v1395, 0.0
      %v2853 = vmul.f32 %v1396, 0.0
      %v2854 = vmul.f32 %v1397, %v2152
      %v2855 = vmul.f32 %v1398, %v2157
      %v2856 = vmul.f32 %v1399, %v2162
      %v2857 = vmul.f32 %v1400, %v2167
      %v2858 = vmul.f32 %v1401, %v2172
      %v2859 = vmul.f32 %v1402, %v2177
      %v2860 = vmul.f32 %v1403, %v2182
      %v2861 = vmul.f32 %v1404, %v2187
      %v2862 = vmul.f32 %v1405, %v2192
      %v2863 = vmul.f32 %v1406, %v2197
      %v2864 = vmul.f32 %v1407, %v2202
      %v2865 = vmul.f32 %v1408, %v2207
      %v2866 = vmul.f32 %v1409, %v2212
      %v2867 = vmul.f32 %v1410, %v2217
      %v2868 = vmul.f32 %v1411, %v2222
      %v2869 = vmul.f32 %v1412, %v2227
      %v2870 = vmul.f32 %v1413, %v2232
      %v2871 = vmul.f32 %v1414, %v2237
      %v2872 = vmul.f32 %v1415, %v2242
      %v2873 = vmul.f32 %v1416, %v2247
      %v2874 = vmul.f32 %v1417, %v2252
      %v2875 = vmul.f32 %v1418, %v2257
      %v2876 = vmul.f32 %v1419, %v2262
      %v2877 = vmul.f32 %v1420, %v2267
      %v2878 = vmul.f32 %v1421, %v2272
      %v2879 = vmul.f32 %v1422, %v2277
      %v2880 = vmul.f32 %v1423, %v2282
      %v2881 = vmul.f32 %v1424, %v2287
      %v2882 = vmul.f32 %v1425, %v2292
      %v2883 = vmul.f32 %v1426, %v2297
      %2884 = vmatprep.subr.mxu0 0.0
      %2885 = vmatpush1.msra.mxu0 %v2324
      %2886 = vmatprep.subr.mxu0 0.0
      %2887 = vmatpush1.msra.mxu0 %v2323
      %2888 = vmatprep.subr.mxu0 0.0
      %2889 = vmatpush1.msra.mxu0 %v2322
      %2890 = vmatprep.subr.mxu0 0.0
      %2891 = vmatpush1.msra.mxu0 %v2321
      %2892 = vmatprep.subr.mxu0 0.0
      %2893 = vmatpush1.msra.mxu0 %v2320
      %2894 = vmatprep.subr.mxu0 0.0
      %2895 = vmatpush1.msra.mxu0 %v2319
      %2896 = vmatprep.subr.mxu0 0.0
      %2897 = vmatpush1.msra.mxu0 %v2318
      %2898 = vmatprep.subr.mxu0 0.0
      %2899 = vmatpush1.msra.mxu0 %v2317
      %2900 = vmatprep.subr.mxu0 0.0
      %2901 = vmatpush1.msra.mxu0 %v2316
      %2902 = vmatprep.subr.mxu0 0.0
      %2903 = vmatpush1.msra.mxu0 %v2315
      %2904 = vmatprep.subr.mxu0 0.0
      %2905 = vmatpush1.msra.mxu0 %v2314
      %2906 = vmatprep.subr.mxu0 0.0
      %2907 = vmatpush1.msra.mxu0 %v2313
      %2908 = vmatprep.subr.mxu0 0.0
      %2909 = vmatpush1.msra.mxu0 %v2312
      %2910 = vmatprep.subr.mxu0 0.0
      %2911 = vmatpush1.msra.mxu0 %v2311
      %2912 = vmatprep.subr.mxu0 0.0
      %2913 = vmatpush1.msra.mxu0 %v2310
      %2914 = vmatprep.subr.mxu0 0.0
      %2915 = vmatpush1.msra.mxu0 %v2309
      %2916 = vmatprep.subr.mxu0 0.0
      %2917 = vmatpush2.msra.mxu0 %v2340
      %2918 = vmatprep.subr.mxu0 0.0
      %2919 = vmatpush2.msra.mxu0 %v2339
      %2920 = vmatprep.subr.mxu0 0.0
      %2921 = vmatpush2.msra.mxu0 %v2338
      %2922 = vmatprep.subr.mxu0 0.0
      %2923 = vmatpush2.msra.mxu0 %v2337
      %2924 = vmatprep.subr.mxu0 0.0
      %2925 = vmatpush2.msra.mxu0 %v2336
      %2926 = vmatprep.subr.mxu0 0.0
      %2927 = vmatpush2.msra.mxu0 %v2335
      %2928 = vmatprep.subr.mxu0 0.0
      %2929 = vmatpush2.msra.mxu0 %v2334
      %2930 = vmatprep.subr.mxu0 0.0
      %2931 = vmatpush2.msra.mxu0 %v2333
      %2932 = vmatprep.subr.mxu0 0.0
      %2933 = vmatpush2.msra.mxu0 %v2332
      %2934 = vmatprep.subr.mxu0 0.0
      %2935 = vmatpush2.msra.mxu0 %v2331
      %2936 = vmatprep.subr.mxu0 0.0
      %2937 = vmatpush2.msra.mxu0 %v2330
      %2938 = vmatprep.subr.mxu0 0.0
      %2939 = vmatpush2.msra.mxu0 %v2329
      %2940 = vmatprep.subr.mxu0 0.0
      %2941 = vmatpush2.msra.mxu0 %v2328
      %2942 = vmatprep.subr.mxu0 0.0
      %2943 = vmatpush2.msra.mxu0 %v2327
      %2944 = vmatprep.subr.mxu0 0.0
      %2945 = vmatpush2.msra.mxu0 %v2326
      %2946 = vmatprep.subr.mxu0 0.0
      %2947 = vmatpush2.msra.mxu0 %v2325
      %2948 = vmatprep.mubr.f32.mxu0 %v306
      %2949 = vmatmul.mubr.f32.gmra.mxu0 %v1653
      %v2950 = vpop.f32.mrf.mxu0
      %v2951 = vadd.f32 %v2852, %v2950
      %v2952 = vpop.f32.mrf.mxu0
      %2953 = vmatprep.mubr.f32.mxu0 %v307
      %2954 = vmatmul.mubr.f32.gmra.mxu0 %v1654
      %v2955 = vpop.f32.mrf.mxu0
      %v2956 = vadd.f32 %v2853, %v2955
      %v2957 = vpop.f32.mrf.mxu0
      %2958 = vmatprep.mubr.f32.mxu0 %v308
      %2959 = vmatmul.mubr.f32.gmra.mxu0 %v1655
      %v2960 = vpop.f32.mrf.mxu0
      %v2961 = vadd.f32 %v2854, %v2960
      %v2962 = vpop.f32.mrf.mxu0
      %2963 = vmatprep.mubr.f32.mxu0 %v309
      %2964 = vmatmul.mubr.f32.gmra.mxu0 %v1656
      %v2965 = vpop.f32.mrf.mxu0
      %v2966 = vadd.f32 %v2855, %v2965
      %v2967 = vpop.f32.mrf.mxu0
      %2968 = vmatprep.mubr.f32.mxu0 %v310
      %2969 = vmatmul.mubr.f32.gmra.mxu0 %v1657
      %v2970 = vpop.f32.mrf.mxu0
      %v2971 = vadd.f32 %v2856, %v2970
      %v2972 = vpop.f32.mrf.mxu0
      %2973 = vmatprep.mubr.f32.mxu0 %v311
      %2974 = vmatmul.mubr.f32.gmra.mxu0 %v1658
      %v2975 = vpop.f32.mrf.mxu0
      %v2976 = vadd.f32 %v2857, %v2975
      %v2977 = vpop.f32.mrf.mxu0
      %2978 = vmatprep.mubr.f32.mxu0 %v312
      %2979 = vmatmul.mubr.f32.gmra.mxu0 %v1659
      %v2980 = vpop.f32.mrf.mxu0
      %v2981 = vadd.f32 %v2858, %v2980
      %v2982 = vpop.f32.mrf.mxu0
      %2983 = vmatprep.mubr.f32.mxu0 %v313
      %2984 = vmatmul.mubr.f32.gmra.mxu0 %v1660
      %v2985 = vpop.f32.mrf.mxu0
      %v2986 = vadd.f32 %v2859, %v2985
      %v2987 = vpop.f32.mrf.mxu0
      %2988 = vmatprep.mubr.f32.mxu0 %v314
      %2989 = vmatmul.mubr.f32.gmra.mxu0 %v1661
      %v2990 = vpop.f32.mrf.mxu0
      %v2991 = vadd.f32 %v2860, %v2990
      %v2992 = vpop.f32.mrf.mxu0
      %2993 = vmatprep.mubr.f32.mxu0 %v315
      %2994 = vmatmul.mubr.f32.gmra.mxu0 %v1662
      %v2995 = vpop.f32.mrf.mxu0
      %v2996 = vadd.f32 %v2861, %v2995
      %v2997 = vpop.f32.mrf.mxu0
      %2998 = vmatprep.mubr.f32.mxu0 %v316
      %2999 = vmatmul.mubr.f32.gmra.mxu0 %v1663
      %v3000 = vpop.f32.mrf.mxu0
      %v3001 = vadd.f32 %v2862, %v3000
      %v3002 = vpop.f32.mrf.mxu0
      %3003 = vmatprep.mubr.f32.mxu0 %v317
      %3004 = vmatmul.mubr.f32.gmra.mxu0 %v1664
      %v3005 = vpop.f32.mrf.mxu0
      %v3006 = vadd.f32 %v2863, %v3005
      %v3007 = vpop.f32.mrf.mxu0
      %3008 = vmatprep.mubr.f32.mxu0 %v318
      %3009 = vmatmul.mubr.f32.gmra.mxu0 %v1665
      %v3010 = vpop.f32.mrf.mxu0
      %v3011 = vadd.f32 %v2864, %v3010
      %v3012 = vpop.f32.mrf.mxu0
      %3013 = vmatprep.mubr.f32.mxu0 %v319
      %3014 = vmatmul.mubr.f32.gmra.mxu0 %v1666
      %v3015 = vpop.f32.mrf.mxu0
      %v3016 = vadd.f32 %v2865, %v3015
      %v3017 = vpop.f32.mrf.mxu0
      %3018 = vmatprep.mubr.f32.mxu0 %v320
      %3019 = vmatmul.mubr.f32.gmra.mxu0 %v1667
      %v3020 = vpop.f32.mrf.mxu0
      %v3021 = vadd.f32 %v2866, %v3020
      %v3022 = vpop.f32.mrf.mxu0
      %3023 = vmatprep.mubr.f32.mxu0 %v321
      %3024 = vmatmul.mubr.f32.gmra.mxu0 %v1668
      %v3025 = vpop.f32.mrf.mxu0
      %v3026 = vadd.f32 %v2867, %v3025
      %v3027 = vpop.f32.mrf.mxu0
      %3028 = vmatprep.mubr.f32.mxu0 %v322
      %3029 = vmatmul.mubr.f32.gmra.mxu0 %v1669
      %v3030 = vpop.f32.mrf.mxu0
      %v3031 = vadd.f32 %v2868, %v3030
      %v3032 = vpop.f32.mrf.mxu0
      %3033 = vmatprep.mubr.f32.mxu0 %v323
      %3034 = vmatmul.mubr.f32.gmra.mxu0 %v1670
      %v3035 = vpop.f32.mrf.mxu0
      %v3036 = vadd.f32 %v2869, %v3035
      %v3037 = vpop.f32.mrf.mxu0
      %3038 = vmatprep.mubr.f32.mxu0 %v324
      %3039 = vmatmul.mubr.f32.gmra.mxu0 %v1671
      %v3040 = vpop.f32.mrf.mxu0
      %v3041 = vadd.f32 %v2870, %v3040
      %v3042 = vpop.f32.mrf.mxu0
      %3043 = vmatprep.mubr.f32.mxu0 %v325
      %3044 = vmatmul.mubr.f32.gmra.mxu0 %v1672
      %v3045 = vpop.f32.mrf.mxu0
      %v3046 = vadd.f32 %v2871, %v3045
      %v3047 = vpop.f32.mrf.mxu0
      %3048 = vmatprep.mubr.f32.mxu0 %v326
      %3049 = vmatmul.mubr.f32.gmra.mxu0 %v1673
      %v3050 = vpop.f32.mrf.mxu0
      %v3051 = vadd.f32 %v2872, %v3050
      %v3052 = vpop.f32.mrf.mxu0
      %3053 = vmatprep.mubr.f32.mxu0 %v327
      %3054 = vmatmul.mubr.f32.gmra.mxu0 %v1674
      %v3055 = vpop.f32.mrf.mxu0
      %v3056 = vadd.f32 %v2873, %v3055
      %v3057 = vpop.f32.mrf.mxu0
      %3058 = vmatprep.mubr.f32.mxu0 %v328
      %3059 = vmatmul.mubr.f32.gmra.mxu0 %v1675
      %v3060 = vpop.f32.mrf.mxu0
      %v3061 = vadd.f32 %v2874, %v3060
      %v3062 = vpop.f32.mrf.mxu0
      %3063 = vmatprep.mubr.f32.mxu0 %v329
      %3064 = vmatmul.mubr.f32.gmra.mxu0 %v1676
      %v3065 = vpop.f32.mrf.mxu0
      %v3066 = vadd.f32 %v2875, %v3065
      %v3067 = vpop.f32.mrf.mxu0
      %3068 = vmatprep.mubr.f32.mxu0 %v330
      %3069 = vmatmul.mubr.f32.gmra.mxu0 %v1677
      %v3070 = vpop.f32.mrf.mxu0
      %v3071 = vadd.f32 %v2876, %v3070
      %v3072 = vpop.f32.mrf.mxu0
      %3073 = vmatprep.mubr.f32.mxu0 %v331
      %3074 = vmatmul.mubr.f32.gmra.mxu0 %v1678
      %v3075 = vpop.f32.mrf.mxu0
      %v3076 = vadd.f32 %v2877, %v3075
      %v3077 = vpop.f32.mrf.mxu0
      %3078 = vmatprep.mubr.f32.mxu0 %v332
      %3079 = vmatmul.mubr.f32.gmra.mxu0 %v1679
      %v3080 = vpop.f32.mrf.mxu0
      %v3081 = vadd.f32 %v2878, %v3080
      %v3082 = vpop.f32.mrf.mxu0
      %3083 = vmatprep.mubr.f32.mxu0 %v333
      %3084 = vmatmul.mubr.f32.gmra.mxu0 %v1680
      %v3085 = vpop.f32.mrf.mxu0
      %v3086 = vadd.f32 %v2879, %v3085
      %v3087 = vpop.f32.mrf.mxu0
      %3088 = vmatprep.mubr.f32.mxu0 %v334
      %3089 = vmatmul.mubr.f32.gmra.mxu0 %v1681
      %v3090 = vpop.f32.mrf.mxu0
      %v3091 = vadd.f32 %v2880, %v3090
      %v3092 = vpop.f32.mrf.mxu0
      %3093 = vmatprep.mubr.f32.mxu0 %v335
      %3094 = vmatmul.mubr.f32.gmra.mxu0 %v1682
      %v3095 = vpop.f32.mrf.mxu0
      %v3096 = vadd.f32 %v2881, %v3095
      %v3097 = vpop.f32.mrf.mxu0
      %3098 = vmatprep.mubr.f32.mxu0 %v336
      %3099 = vmatmul.mubr.f32.gmra.mxu0 %v1683
      %v3100 = vpop.f32.mrf.mxu0
      %v3101 = vadd.f32 %v2882, %v3100
      %v3102 = vpop.f32.mrf.mxu0
      %3103 = vmatprep.mubr.f32.mxu0 %v337
      %3104 = vmatmul.mubr.f32.gmra.mxu0 %v1684
      %v3105 = vpop.f32.mrf.mxu0
      %v3106 = vadd.f32 %v2883, %v3105
      %v3107 = vpop.f32.mrf.mxu0
      %3108 = vdwg.mxu0
      %3109 = vmatprep.subr.mxu0 0.0
      %3110 = vmatpush1.msra.mxu0 %v2356
      %3111 = vmatprep.subr.mxu0 0.0
      %3112 = vmatpush1.msra.mxu0 %v2355
      %3113 = vmatprep.subr.mxu0 0.0
      %3114 = vmatpush1.msra.mxu0 %v2354
      %3115 = vmatprep.subr.mxu0 0.0
      %3116 = vmatpush1.msra.mxu0 %v2353
      %3117 = vmatprep.subr.mxu0 0.0
      %3118 = vmatpush1.msra.mxu0 %v2352
      %3119 = vmatprep.subr.mxu0 0.0
      %3120 = vmatpush1.msra.mxu0 %v2351
      %3121 = vmatprep.subr.mxu0 0.0
      %3122 = vmatpush1.msra.mxu0 %v2350
      %3123 = vmatprep.subr.mxu0 0.0
      %3124 = vmatpush1.msra.mxu0 %v2349
      %3125 = vmatprep.subr.mxu0 0.0
      %3126 = vmatpush1.msra.mxu0 %v2348
      %3127 = vmatprep.subr.mxu0 0.0
      %3128 = vmatpush1.msra.mxu0 %v2347
      %3129 = vmatprep.subr.mxu0 0.0
      %3130 = vmatpush1.msra.mxu0 %v2346
      %3131 = vmatprep.subr.mxu0 0.0
      %3132 = vmatpush1.msra.mxu0 %v2345
      %3133 = vmatprep.subr.mxu0 0.0
      %3134 = vmatpush1.msra.mxu0 %v2344
      %3135 = vmatprep.subr.mxu0 0.0
      %3136 = vmatpush1.msra.mxu0 %v2343
      %3137 = vmatprep.subr.mxu0 0.0
      %3138 = vmatpush1.msra.mxu0 %v2342
      %3139 = vmatprep.subr.mxu0 0.0
      %3140 = vmatpush1.msra.mxu0 %v2341
      %3141 = vmatprep.subr.mxu0 0.0
      %3142 = vmatpush2.msra.mxu0 0.0
      %3143 = vmatprep.subr.mxu0 0.0
      %3144 = vmatpush2.msra.mxu0 0.0
      %3145 = vmatprep.subr.mxu0 0.0
      %3146 = vmatpush2.msra.mxu0 0.0
      %3147 = vmatprep.subr.mxu0 0.0
      %3148 = vmatpush2.msra.mxu0 0.0
      %3149 = vmatprep.subr.mxu0 0.0
      %3150 = vmatpush2.msra.mxu0 0.0
      %3151 = vmatprep.subr.mxu0 0.0
      %3152 = vmatpush2.msra.mxu0 0.0
      %3153 = vmatprep.subr.mxu0 0.0
      %3154 = vmatpush2.msra.mxu0 0.0
      %3155 = vmatprep.subr.mxu0 0.0
      %3156 = vmatpush2.msra.mxu0 0.0
      %3157 = vmatprep.subr.mxu0 0.0
      %3158 = vmatpush2.msra.mxu0 0.0
      %3159 = vmatprep.subr.mxu0 0.0
      %3160 = vmatpush2.msra.mxu0 0.0
      %3161 = vmatprep.subr.mxu0 0.0
      %3162 = vmatpush2.msra.mxu0 0.0
      %3163 = vmatprep.subr.mxu0 0.0
      %3164 = vmatpush2.msra.mxu0 0.0
      %3165 = vmatprep.subr.mxu0 0.0
      %3166 = vmatpush2.msra.mxu0 0.0
      %3167 = vmatprep.subr.mxu0 0.0
      %3168 = vmatpush2.msra.mxu0 0.0
      %3169 = vmatprep.subr.mxu0 0.0
      %3170 = vmatpush2.msra.mxu0 0.0
      %3171 = vmatprep.subr.mxu0 0.0
      %3172 = vmatpush2.msra.mxu0 0.0
      %3173 = vmatprep.mubr.f32.mxu0 0.0
      %3174 = vmatmul.mubr.f32.gmra.mxu0 %v1782
      %v3175 = vpop.f32.mrf.mxu0
      %v3176 = vadd.f32 %v2951, %v3175
      %v3177 = vpop.f32.mrf.mxu0
      %3178 = vmatprep.mubr.f32.mxu0 0.0
      %3179 = vmatmul.mubr.f32.gmra.mxu0 %v1783
      %v3180 = vpop.f32.mrf.mxu0
      %v3181 = vadd.f32 %v2956, %v3180
      %v3182 = vpop.f32.mrf.mxu0
      %3183 = vmatprep.mubr.f32.mxu0 0.0
      %3184 = vmatmul.mubr.f32.gmra.mxu0 %v1784
      %v3185 = vpop.f32.mrf.mxu0
      %v3186 = vadd.f32 %v2961, %v3185
      %v3187 = vpop.f32.mrf.mxu0
      %3188 = vmatprep.mubr.f32.mxu0 0.0
      %3189 = vmatmul.mubr.f32.gmra.mxu0 %v1785
      %v3190 = vpop.f32.mrf.mxu0
      %v3191 = vadd.f32 %v2966, %v3190
      %v3192 = vpop.f32.mrf.mxu0
      %3193 = vmatprep.mubr.f32.mxu0 0.0
      %3194 = vmatmul.mubr.f32.gmra.mxu0 %v1786
      %v3195 = vpop.f32.mrf.mxu0
      %v3196 = vadd.f32 %v2971, %v3195
      %v3197 = vpop.f32.mrf.mxu0
      %3198 = vmatprep.mubr.f32.mxu0 0.0
      %3199 = vmatmul.mubr.f32.gmra.mxu0 %v1787
      %v3200 = vpop.f32.mrf.mxu0
      %v3201 = vadd.f32 %v2976, %v3200
      %v3202 = vpop.f32.mrf.mxu0
      %3203 = vmatprep.mubr.f32.mxu0 0.0
      %3204 = vmatmul.mubr.f32.gmra.mxu0 %v1788
      %v3205 = vpop.f32.mrf.mxu0
      %v3206 = vadd.f32 %v2981, %v3205
      %v3207 = vpop.f32.mrf.mxu0
      %3208 = vmatprep.mubr.f32.mxu0 0.0
      %3209 = vmatmul.mubr.f32.gmra.mxu0 %v1789
      %v3210 = vpop.f32.mrf.mxu0
      %v3211 = vadd.f32 %v2986, %v3210
      %v3212 = vpop.f32.mrf.mxu0
      %3213 = vmatprep.mubr.f32.mxu0 0.0
      %3214 = vmatmul.mubr.f32.gmra.mxu0 %v1790
      %v3215 = vpop.f32.mrf.mxu0
      %v3216 = vadd.f32 %v2991, %v3215
      %v3217 = vpop.f32.mrf.mxu0
      %3218 = vmatprep.mubr.f32.mxu0 0.0
      %3219 = vmatmul.mubr.f32.gmra.mxu0 %v1791
      %v3220 = vpop.f32.mrf.mxu0
      %v3221 = vadd.f32 %v2996, %v3220
      %v3222 = vpop.f32.mrf.mxu0
      %3223 = vmatprep.mubr.f32.mxu0 0.0
      %3224 = vmatmul.mubr.f32.gmra.mxu0 %v1792
      %v3225 = vpop.f32.mrf.mxu0
      %v3226 = vadd.f32 %v3001, %v3225
      %v3227 = vpop.f32.mrf.mxu0
      %3228 = vmatprep.mubr.f32.mxu0 0.0
      %3229 = vmatmul.mubr.f32.gmra.mxu0 %v1793
      %v3230 = vpop.f32.mrf.mxu0
      %v3231 = vadd.f32 %v3006, %v3230
      %v3232 = vpop.f32.mrf.mxu0
      %3233 = vmatprep.mubr.f32.mxu0 0.0
      %3234 = vmatmul.mubr.f32.gmra.mxu0 %v1794
      %v3235 = vpop.f32.mrf.mxu0
      %v3236 = vadd.f32 %v3011, %v3235
      %v3237 = vpop.f32.mrf.mxu0
      %3238 = vmatprep.mubr.f32.mxu0 0.0
      %3239 = vmatmul.mubr.f32.gmra.mxu0 %v1795
      %v3240 = vpop.f32.mrf.mxu0
      %v3241 = vadd.f32 %v3016, %v3240
      %v3242 = vpop.f32.mrf.mxu0
      %3243 = vmatprep.mubr.f32.mxu0 0.0
      %3244 = vmatmul.mubr.f32.gmra.mxu0 %v1796
      %v3245 = vpop.f32.mrf.mxu0
      %v3246 = vadd.f32 %v3021, %v3245
      %v3247 = vpop.f32.mrf.mxu0
      %3248 = vmatprep.mubr.f32.mxu0 0.0
      %3249 = vmatmul.mubr.f32.gmra.mxu0 %v1797
      %v3250 = vpop.f32.mrf.mxu0
      %v3251 = vadd.f32 %v3026, %v3250
      %v3252 = vpop.f32.mrf.mxu0
      %3253 = vmatprep.mubr.f32.mxu0 0.0
      %3254 = vmatmul.mubr.f32.gmra.mxu0 %v1798
      %v3255 = vpop.f32.mrf.mxu0
      %v3256 = vadd.f32 %v3031, %v3255
      %v3257 = vpop.f32.mrf.mxu0
      %3258 = vmatprep.mubr.f32.mxu0 0.0
      %3259 = vmatmul.mubr.f32.gmra.mxu0 %v1799
      %v3260 = vpop.f32.mrf.mxu0
      %v3261 = vadd.f32 %v3036, %v3260
      %v3262 = vpop.f32.mrf.mxu0
      %3263 = vmatprep.mubr.f32.mxu0 0.0
      %3264 = vmatmul.mubr.f32.gmra.mxu0 %v1800
      %v3265 = vpop.f32.mrf.mxu0
      %v3266 = vadd.f32 %v3041, %v3265
      %v3267 = vpop.f32.mrf.mxu0
      %3268 = vmatprep.mubr.f32.mxu0 0.0
      %3269 = vmatmul.mubr.f32.gmra.mxu0 %v1801
      %v3270 = vpop.f32.mrf.mxu0
      %v3271 = vadd.f32 %v3046, %v3270
      %v3272 = vpop.f32.mrf.mxu0
      %3273 = vmatprep.mubr.f32.mxu0 0.0
      %3274 = vmatmul.mubr.f32.gmra.mxu0 %v1802
      %v3275 = vpop.f32.mrf.mxu0
      %v3276 = vadd.f32 %v3051, %v3275
      %v3277 = vpop.f32.mrf.mxu0
      %3278 = vmatprep.mubr.f32.mxu0 0.0
      %3279 = vmatmul.mubr.f32.gmra.mxu0 %v1803
      %v3280 = vpop.f32.mrf.mxu0
      %v3281 = vadd.f32 %v3056, %v3280
      %v3282 = vpop.f32.mrf.mxu0
      %3283 = vmatprep.mubr.f32.mxu0 0.0
      %3284 = vmatmul.mubr.f32.gmra.mxu0 %v1804
      %v3285 = vpop.f32.mrf.mxu0
      %v3286 = vadd.f32 %v3061, %v3285
      %v3287 = vpop.f32.mrf.mxu0
      %3288 = vmatprep.mubr.f32.mxu0 0.0
      %3289 = vmatmul.mubr.f32.gmra.mxu0 %v1805
      %v3290 = vpop.f32.mrf.mxu0
      %v3291 = vadd.f32 %v3066, %v3290
      %v3292 = vpop.f32.mrf.mxu0
      %3293 = vmatprep.mubr.f32.mxu0 0.0
      %3294 = vmatmul.mubr.f32.gmra.mxu0 %v1806
      %v3295 = vpop.f32.mrf.mxu0
      %v3296 = vadd.f32 %v3071, %v3295
      %v3297 = vpop.f32.mrf.mxu0
      %3298 = vmatprep.mubr.f32.mxu0 0.0
      %3299 = vmatmul.mubr.f32.gmra.mxu0 %v1807
      %v3300 = vpop.f32.mrf.mxu0
      %v3301 = vadd.f32 %v3076, %v3300
      %v3302 = vpop.f32.mrf.mxu0
      %3303 = vmatprep.mubr.f32.mxu0 0.0
      %3304 = vmatmul.mubr.f32.gmra.mxu0 %v1808
      %v3305 = vpop.f32.mrf.mxu0
      %v3306 = vadd.f32 %v3081, %v3305
      %v3307 = vpop.f32.mrf.mxu0
      %3308 = vmatprep.mubr.f32.mxu0 0.0
      %3309 = vmatmul.mubr.f32.gmra.mxu0 %v1809
      %v3310 = vpop.f32.mrf.mxu0
      %v3311 = vadd.f32 %v3086, %v3310
      %v3312 = vpop.f32.mrf.mxu0
      %3313 = vmatprep.mubr.f32.mxu0 0.0
      %3314 = vmatmul.mubr.f32.gmra.mxu0 %v1810
      %v3315 = vpop.f32.mrf.mxu0
      %v3316 = vadd.f32 %v3091, %v3315
      %v3317 = vpop.f32.mrf.mxu0
      %3318 = vmatprep.mubr.f32.mxu0 0.0
      %3319 = vmatmul.mubr.f32.gmra.mxu0 %v1811
      %v3320 = vpop.f32.mrf.mxu0
      %v3321 = vadd.f32 %v3096, %v3320
      %v3322 = vpop.f32.mrf.mxu0
      %3323 = vmatprep.mubr.f32.mxu0 0.0
      %3324 = vmatmul.mubr.f32.gmra.mxu0 %v1812
      %v3325 = vpop.f32.mrf.mxu0
      %v3326 = vadd.f32 %v3101, %v3325
      %v3327 = vpop.f32.mrf.mxu0
      %3328 = vmatprep.mubr.f32.mxu0 0.0
      %3329 = vmatmul.mubr.f32.gmra.mxu0 %v1813
      %v3330 = vpop.f32.mrf.mxu0
      %v3331 = vadd.f32 %v3106, %v3330
      %v3332 = vpop.f32.mrf.mxu0
      %3333 = vdwg.mxu0
      %v3334 = vmul.f32 %v1491, %v2704
      %v3335 = vmul.f32 %v1492, %v2709
      %v3336 = vmul.f32 %v1493, %v2714
      %v3337 = vmul.f32 %v1494, %v2719
      %v3338 = vmul.f32 %v1495, %v2724
      %v3339 = vmul.f32 %v1496, %v2729
      %v3340 = vmul.f32 %v1497, %v2734
      %v3341 = vmul.f32 %v1498, %v2739
      %v3342 = vmul.f32 %v1499, %v2744
      %v3343 = vmul.f32 %v1500, %v2749
      %v3344 = vmul.f32 %v1501, %v2754
      %v3345 = vmul.f32 %v1502, %v2759
      %v3346 = vmul.f32 %v1503, %v2764
      %v3347 = vmul.f32 %v1504, %v2769
      %v3348 = vmul.f32 %v1505, %v2774
      %v3349 = vmul.f32 %v1506, %v2779
      %v3350 = vmul.f32 %v1507, %v2784
      %v3351 = vmul.f32 %v1508, %v2789
      %v3352 = vmul.f32 %v1509, %v2794
      %v3353 = vmul.f32 %v1510, %v2799
      %v3354 = vmul.f32 %v1511, %v2804
      %v3355 = vmul.f32 %v1512, %v2809
      %v3356 = vmul.f32 %v1513, %v2814
      %v3357 = vmul.f32 %v1514, %v2819
      %v3358 = vmul.f32 %v1515, %v2824
      %v3359 = vmul.f32 %v1516, %v2829
      %v3360 = vmul.f32 %v1517, %v2834
      %v3361 = vmul.f32 %v1518, %v2839
      %v3362 = vmul.f32 %v1519, %v2844
      %v3363 = vmul.f32 %v1520, %v2849
      %v3364 = vmul.f32 %v1521, 0.0
      %v3365 = vmul.f32 %v1522, 0.0
      %v3366 = vadd.f32 %v3176, %v3334
      %v3367 = vadd.f32 %v3181, %v3335
      %v3368 = vadd.f32 %v3186, %v3336
      %v3369 = vadd.f32 %v3191, %v3337
      %v3370 = vadd.f32 %v3196, %v3338
      %v3371 = vadd.f32 %v3201, %v3339
      %v3372 = vadd.f32 %v3206, %v3340
      %v3373 = vadd.f32 %v3211, %v3341
      %v3374 = vadd.f32 %v3216, %v3342
      %v3375 = vadd.f32 %v3221, %v3343
      %v3376 = vadd.f32 %v3226, %v3344
      %v3377 = vadd.f32 %v3231, %v3345
      %v3378 = vadd.f32 %v3236, %v3346
      %v3379 = vadd.f32 %v3241, %v3347
      %v3380 = vadd.f32 %v3246, %v3348
      %v3381 = vadd.f32 %v3251, %v3349
      %v3382 = vadd.f32 %v3256, %v3350
      %v3383 = vadd.f32 %v3261, %v3351
      %v3384 = vadd.f32 %v3266, %v3352
      %v3385 = vadd.f32 %v3271, %v3353
      %v3386 = vadd.f32 %v3276, %v3354
      %v3387 = vadd.f32 %v3281, %v3355
      %v3388 = vadd.f32 %v3286, %v3356
      %v3389 = vadd.f32 %v3291, %v3357
      %v3390 = vadd.f32 %v3296, %v3358
      %v3391 = vadd.f32 %v3301, %v3359
      %v3392 = vadd.f32 %v3306, %v3360
      %v3393 = vadd.f32 %v3311, %v3361
      %v3394 = vadd.f32 %v3316, %v3362
      %v3395 = vadd.f32 %v3321, %v3363
      %v3396 = vadd.f32 %v3326, %v3364
      %v3397 = vadd.f32 %v3331, %v3365
      %v3398 = vlaneseq
      %v3399 = vshrl.u32 %v3398, 7
      %v3400 = vsub.s32 0, %v3399
      %v3401 = vrot.slane %v1523, %v3400
      %v3402 = vadd.f32 %v3366, %v3401
      %v3403 = vadd.f32 %v3367, %v3401
      %v3404 = vadd.f32 %v3368, %v3401
      %v3405 = vadd.f32 %v3369, %v3401
      %v3406 = vadd.f32 %v3370, %v3401
      %v3407 = vadd.f32 %v3371, %v3401
      %v3408 = vadd.f32 %v3372, %v3401
      %v3409 = vadd.f32 %v3373, %v3401
      %v3410 = vadd.f32 %v3374, %v3401
      %v3411 = vadd.f32 %v3375, %v3401
      %v3412 = vadd.f32 %v3376, %v3401
      %v3413 = vadd.f32 %v3377, %v3401
      %v3414 = vadd.f32 %v3378, %v3401
      %v3415 = vadd.f32 %v3379, %v3401
      %v3416 = vadd.f32 %v3380, %v3401
      %v3417 = vadd.f32 %v3381, %v3401
      %v3418 = vadd.f32 %v3382, %v3401
      %v3419 = vadd.f32 %v3383, %v3401
      %v3420 = vadd.f32 %v3384, %v3401
      %v3421 = vadd.f32 %v3385, %v3401
      %v3422 = vadd.f32 %v3386, %v3401
      %v3423 = vadd.f32 %v3387, %v3401
      %v3424 = vadd.f32 %v3388, %v3401
      %v3425 = vadd.f32 %v3389, %v3401
      %v3426 = vadd.f32 %v3390, %v3401
      %v3427 = vadd.f32 %v3391, %v3401
      %v3428 = vadd.f32 %v3392, %v3401
      %v3429 = vadd.f32 %v3393, %v3401
      %v3430 = vadd.f32 %v3394, %v3401
      %v3431 = vadd.f32 %v3395, %v3401
      %v3432 = vadd.f32 %v3396, %v3401
      %v3433 = vadd.f32 %v3397, %v3401
      %vm3434 = vcmp.gt.f32.partialorder %v3402, 0.0
      %vm3435 = vcmp.gt.f32.partialorder %v3403, 0.0
      %vm3436 = vcmp.gt.f32.partialorder %v3404, 0.0
      %vm3437 = vcmp.gt.f32.partialorder %v3405, 0.0
      %vm3438 = vcmp.gt.f32.partialorder %v3406, 0.0
      %vm3439 = vcmp.gt.f32.partialorder %v3407, 0.0
      %vm3440 = vcmp.gt.f32.partialorder %v3408, 0.0
      %vm3441 = vcmp.gt.f32.partialorder %v3409, 0.0
      %vm3442 = vcmp.gt.f32.partialorder %v3410, 0.0
      %vm3443 = vcmp.gt.f32.partialorder %v3411, 0.0
      %vm3444 = vcmp.gt.f32.partialorder %v3412, 0.0
      %vm3445 = vcmp.gt.f32.partialorder %v3413, 0.0
      %vm3446 = vcmp.gt.f32.partialorder %v3414, 0.0
      %vm3447 = vcmp.gt.f32.partialorder %v3415, 0.0
      %vm3448 = vcmp.gt.f32.partialorder %v3416, 0.0
      %vm3449 = vcmp.gt.f32.partialorder %v3417, 0.0
      %vm3450 = vcmp.gt.f32.partialorder %v3418, 0.0
      %vm3451 = vcmp.gt.f32.partialorder %v3419, 0.0
      %vm3452 = vcmp.gt.f32.partialorder %v3420, 0.0
      %vm3453 = vcmp.gt.f32.partialorder %v3421, 0.0
      %vm3454 = vcmp.gt.f32.partialorder %v3422, 0.0
      %vm3455 = vcmp.gt.f32.partialorder %v3423, 0.0
      %vm3456 = vcmp.gt.f32.partialorder %v3424, 0.0
      %vm3457 = vcmp.gt.f32.partialorder %v3425, 0.0
      %vm3458 = vcmp.gt.f32.partialorder %v3426, 0.0
      %vm3459 = vcmp.gt.f32.partialorder %v3427, 0.0
      %vm3460 = vcmp.gt.f32.partialorder %v3428, 0.0
      %vm3461 = vcmp.gt.f32.partialorder %v3429, 0.0
      %vm3462 = vcmp.gt.f32.partialorder %v3430, 0.0
      %vm3463 = vcmp.gt.f32.partialorder %v3431, 0.0
      %vm3464 = vcmp.gt.f32.partialorder %v3432, 0.0
      %vm3465 = vcmp.gt.f32.partialorder %v3433, 0.0
      %v3466 = vmul.f32 %v3402, 0.01
      %v3467 = vmul.f32 %v3403, 0.01
      %v3468 = vmul.f32 %v3404, 0.01
      %v3469 = vmul.f32 %v3405, 0.01
      %v3470 = vmul.f32 %v3406, 0.01
      %v3471 = vmul.f32 %v3407, 0.01
      %v3472 = vmul.f32 %v3408, 0.01
      %v3473 = vmul.f32 %v3409, 0.01
      %v3474 = vmul.f32 %v3410, 0.01
      %v3475 = vmul.f32 %v3411, 0.01
      %v3476 = vmul.f32 %v3412, 0.01
      %v3477 = vmul.f32 %v3413, 0.01
      %v3478 = vmul.f32 %v3414, 0.01
      %v3479 = vmul.f32 %v3415, 0.01
      %v3480 = vmul.f32 %v3416, 0.01
      %v3481 = vmul.f32 %v3417, 0.01
      %v3482 = vmul.f32 %v3418, 0.01
      %v3483 = vmul.f32 %v3419, 0.01
      %v3484 = vmul.f32 %v3420, 0.01
      %v3485 = vmul.f32 %v3421, 0.01
      %v3486 = vmul.f32 %v3422, 0.01
      %v3487 = vmul.f32 %v3423, 0.01
      %v3488 = vmul.f32 %v3424, 0.01
      %v3489 = vmul.f32 %v3425, 0.01
      %v3490 = vmul.f32 %v3426, 0.01
      %v3491 = vmul.f32 %v3427, 0.01
      %v3492 = vmul.f32 %v3428, 0.01
      %v3493 = vmul.f32 %v3429, 0.01
      %v3494 = vmul.f32 %v3430, 0.01
      %v3495 = vmul.f32 %v3431, 0.01
      %v3496 = vmul.f32 %v3432, 0.01
      %v3497 = vmul.f32 %v3433, 0.01
      %v3498 = vsel %vm3434, %v3402, %v3466
      %v3499 = vsel %vm3435, %v3403, %v3467
      %v3500 = vsel %vm3436, %v3404, %v3468
      %v3501 = vsel %vm3437, %v3405, %v3469
      %v3502 = vsel %vm3438, %v3406, %v3470
      %v3503 = vsel %vm3439, %v3407, %v3471
      %v3504 = vsel %vm3440, %v3408, %v3472
      %v3505 = vsel %vm3441, %v3409, %v3473
      %v3506 = vsel %vm3442, %v3410, %v3474
      %v3507 = vsel %vm3443, %v3411, %v3475
      %v3508 = vsel %vm3444, %v3412, %v3476
      %v3509 = vsel %vm3445, %v3413, %v3477
      %v3510 = vsel %vm3446, %v3414, %v3478
      %v3511 = vsel %vm3447, %v3415, %v3479
      %v3512 = vsel %vm3448, %v3416, %v3480
      %v3513 = vsel %vm3449, %v3417, %v3481
      %v3514 = vsel %vm3450, %v3418, %v3482
      %v3515 = vsel %vm3451, %v3419, %v3483
      %v3516 = vsel %vm3452, %v3420, %v3484
      %v3517 = vsel %vm3453, %v3421, %v3485
      %v3518 = vsel %vm3454, %v3422, %v3486
      %v3519 = vsel %vm3455, %v3423, %v3487
      %v3520 = vsel %vm3456, %v3424, %v3488
      %v3521 = vsel %vm3457, %v3425, %v3489
      %v3522 = vsel %vm3458, %v3426, %v3490
      %v3523 = vsel %vm3459, %v3427, %v3491
      %v3524 = vsel %vm3460, %v3428, %v3492
      %v3525 = vsel %vm3461, %v3429, %v3493
      %v3526 = vsel %vm3462, %v3430, %v3494
      %v3527 = vsel %vm3463, %v3431, %v3495
      %v3528 = vsel %vm3464, %v3432, %v3496
      %v3529 = vsel %vm3465, %v3433, %v3497
      %v3562 = vrot.slane %v3498, 7
      %v3563 = vrot.slane %v3499, 7
      %v3564 = vsel %vm1556, %v3562, %v3563
      %v3565 = vrot.slane %v3500, 7
      %v3566 = vsel %vm1556, %v3563, %v3565
      %v3567 = vrot.slane %v3501, 7
      %v3568 = vsel %vm1556, %v3565, %v3567
      %v3569 = vrot.slane %v3502, 7
      %v3570 = vsel %vm1556, %v3567, %v3569
      %v3571 = vrot.slane %v3503, 7
      %v3572 = vsel %vm1556, %v3569, %v3571
      %v3573 = vrot.slane %v3504, 7
      %v3574 = vsel %vm1556, %v3571, %v3573
      %v3575 = vrot.slane %v3505, 7
      %v3576 = vsel %vm1556, %v3573, %v3575
      %v3577 = vrot.slane %v3506, 7
      %v3578 = vsel %vm1556, %v3575, %v3577
      %v3579 = vrot.slane %v3507, 7
      %v3580 = vsel %vm1556, %v3577, %v3579
      %v3581 = vrot.slane %v3508, 7
      %v3582 = vsel %vm1556, %v3579, %v3581
      %v3583 = vrot.slane %v3509, 7
      %v3584 = vsel %vm1556, %v3581, %v3583
      %v3585 = vrot.slane %v3510, 7
      %v3586 = vsel %vm1556, %v3583, %v3585
      %v3587 = vrot.slane %v3511, 7
      %v3588 = vsel %vm1556, %v3585, %v3587
      %v3589 = vrot.slane %v3512, 7
      %v3590 = vsel %vm1556, %v3587, %v3589
      %v3591 = vrot.slane %v3513, 7
      %v3592 = vsel %vm1556, %v3589, %v3591
      %v3593 = vrot.slane %v3514, 7
      %v3594 = vsel %vm1556, %v3591, %v3593
      %v3595 = vrot.slane %v3515, 7
      %v3596 = vsel %vm1556, %v3593, %v3595
      %v3597 = vrot.slane %v3516, 7
      %v3598 = vsel %vm1556, %v3595, %v3597
      %v3599 = vrot.slane %v3517, 7
      %v3600 = vsel %vm1556, %v3597, %v3599
      %v3601 = vrot.slane %v3518, 7
      %v3602 = vsel %vm1556, %v3599, %v3601
      %v3603 = vrot.slane %v3519, 7
      %v3604 = vsel %vm1556, %v3601, %v3603
      %v3605 = vrot.slane %v3520, 7
      %v3606 = vsel %vm1556, %v3603, %v3605
      %v3607 = vrot.slane %v3521, 7
      %v3608 = vsel %vm1556, %v3605, %v3607
      %v3609 = vrot.slane %v3522, 7
      %v3610 = vsel %vm1556, %v3607, %v3609
      %v3611 = vrot.slane %v3523, 7
      %v3612 = vsel %vm1556, %v3609, %v3611
      %v3613 = vrot.slane %v3524, 7
      %v3614 = vsel %vm1556, %v3611, %v3613
      %v3615 = vrot.slane %v3525, 7
      %v3616 = vsel %vm1556, %v3613, %v3615
      %v3617 = vrot.slane %v3526, 7
      %v3618 = vsel %vm1556, %v3615, %v3617
      %v3619 = vrot.slane %v3527, 7
      %v3620 = vsel %vm1556, %v3617, %v3619
      %v3621 = vrot.slane %v3528, 7
      %v3622 = vsel %vm1556, %v3619, %v3621
      %v3623 = vrot.slane %v3529, 7
      %v3624 = vsel %vm1556, %v3621, %v3623
      %v3657 = vsel %vm1556, 0.0, %v3562
      %v3658 = vmul.f32 %v3657, %v1203
      %v3659 = vmul.f32 %v3564, %v1204
      %v3660 = vmul.f32 %v3566, %v1205
      %v3661 = vmul.f32 %v3568, %v1206
      %v3662 = vmul.f32 %v3570, %v1207
      %v3663 = vmul.f32 %v3572, %v1208
      %v3664 = vmul.f32 %v3574, %v1209
      %v3665 = vmul.f32 %v3576, %v1210
      %v3666 = vmul.f32 %v3578, %v1211
      %v3667 = vmul.f32 %v3580, %v1212
      %v3668 = vmul.f32 %v3582, %v1213
      %v3669 = vmul.f32 %v3584, %v1214
      %v3670 = vmul.f32 %v3586, %v1215
      %v3671 = vmul.f32 %v3588, %v1216
      %v3672 = vmul.f32 %v3590, %v1217
      %v3673 = vmul.f32 %v3592, %v1218
      %v3674 = vmul.f32 %v3594, %v1219
      %v3675 = vmul.f32 %v3596, %v1220
      %v3676 = vmul.f32 %v3598, %v1221
      %v3677 = vmul.f32 %v3600, %v1222
      %v3678 = vmul.f32 %v3602, %v1223
      %v3679 = vmul.f32 %v3604, %v1224
      %v3680 = vmul.f32 %v3606, %v1225
      %v3681 = vmul.f32 %v3608, %v1226
      %v3682 = vmul.f32 %v3610, %v1227
      %v3683 = vmul.f32 %v3612, %v1228
      %v3684 = vmul.f32 %v3614, %v1229
      %v3685 = vmul.f32 %v3616, %v1230
      %v3686 = vmul.f32 %v3618, %v1231
      %v3687 = vmul.f32 %v3620, %v1232
      %v3688 = vmul.f32 %v3622, %v1233
      %v3689 = vmul.f32 %v3624, %v1234
      %v3690 = vrot.slane %v3498, 1
      %v3691 = vrot.slane %v3499, 1
      %v3692 = vsel %vm1685, %v3690, %v3691
      %v3693 = vrot.slane %v3500, 1
      %v3694 = vsel %vm1685, %v3691, %v3693
      %v3695 = vrot.slane %v3501, 1
      %v3696 = vsel %vm1685, %v3693, %v3695
      %v3697 = vrot.slane %v3502, 1
      %v3698 = vsel %vm1685, %v3695, %v3697
      %v3699 = vrot.slane %v3503, 1
      %v3700 = vsel %vm1685, %v3697, %v3699
      %v3701 = vrot.slane %v3504, 1
      %v3702 = vsel %vm1685, %v3699, %v3701
      %v3703 = vrot.slane %v3505, 1
      %v3704 = vsel %vm1685, %v3701, %v3703
      %v3705 = vrot.slane %v3506, 1
      %v3706 = vsel %vm1685, %v3703, %v3705
      %v3707 = vrot.slane %v3507, 1
      %v3708 = vsel %vm1685, %v3705, %v3707
      %v3709 = vrot.slane %v3508, 1
      %v3710 = vsel %vm1685, %v3707, %v3709
      %v3711 = vrot.slane %v3509, 1
      %v3712 = vsel %vm1685, %v3709, %v3711
      %v3713 = vrot.slane %v3510, 1
      %v3714 = vsel %vm1685, %v3711, %v3713
      %v3715 = vrot.slane %v3511, 1
      %v3716 = vsel %vm1685, %v3713, %v3715
      %v3717 = vrot.slane %v3512, 1
      %v3718 = vsel %vm1685, %v3715, %v3717
      %v3719 = vrot.slane %v3513, 1
      %v3720 = vsel %vm1685, %v3717, %v3719
      %v3721 = vrot.slane %v3514, 1
      %v3722 = vsel %vm1685, %v3719, %v3721
      %v3723 = vrot.slane %v3515, 1
      %v3724 = vsel %vm1685, %v3721, %v3723
      %v3725 = vrot.slane %v3516, 1
      %v3726 = vsel %vm1685, %v3723, %v3725
      %v3727 = vrot.slane %v3517, 1
      %v3728 = vsel %vm1685, %v3725, %v3727
      %v3729 = vrot.slane %v3518, 1
      %v3730 = vsel %vm1685, %v3727, %v3729
      %v3731 = vrot.slane %v3519, 1
      %v3732 = vsel %vm1685, %v3729, %v3731
      %v3733 = vrot.slane %v3520, 1
      %v3734 = vsel %vm1685, %v3731, %v3733
      %v3735 = vrot.slane %v3521, 1
      %v3736 = vsel %vm1685, %v3733, %v3735
      %v3737 = vrot.slane %v3522, 1
      %v3738 = vsel %vm1685, %v3735, %v3737
      %v3739 = vrot.slane %v3523, 1
      %v3740 = vsel %vm1685, %v3737, %v3739
      %v3741 = vrot.slane %v3524, 1
      %v3742 = vsel %vm1685, %v3739, %v3741
      %v3743 = vrot.slane %v3525, 1
      %v3744 = vsel %vm1685, %v3741, %v3743
      %v3745 = vrot.slane %v3526, 1
      %v3746 = vsel %vm1685, %v3743, %v3745
      %v3747 = vrot.slane %v3527, 1
      %v3748 = vsel %vm1685, %v3745, %v3747
      %v3749 = vrot.slane %v3528, 1
      %v3750 = vsel %vm1685, %v3747, %v3749
      %v3751 = vrot.slane %v3529, 1
      %v3752 = vsel %vm1685, %v3749, %v3751
      %v3785 = vsel %vm1685, %v3751, 0.0
      %v3786 = vmul.f32 %v3692, %v1299
      %v3787 = vmul.f32 %v3694, %v1300
      %v3788 = vmul.f32 %v3696, %v1301
      %v3789 = vmul.f32 %v3698, %v1302
      %v3790 = vmul.f32 %v3700, %v1303
      %v3791 = vmul.f32 %v3702, %v1304
      %v3792 = vmul.f32 %v3704, %v1305
      %v3793 = vmul.f32 %v3706, %v1306
      %v3794 = vmul.f32 %v3708, %v1307
      %v3795 = vmul.f32 %v3710, %v1308
      %v3796 = vmul.f32 %v3712, %v1309
      %v3797 = vmul.f32 %v3714, %v1310
      %v3798 = vmul.f32 %v3716, %v1311
      %v3799 = vmul.f32 %v3718, %v1312
      %v3800 = vmul.f32 %v3720, %v1313
      %v3801 = vmul.f32 %v3722, %v1314
      %v3802 = vmul.f32 %v3724, %v1315
      %v3803 = vmul.f32 %v3726, %v1316
      %v3804 = vmul.f32 %v3728, %v1317
      %v3805 = vmul.f32 %v3730, %v1318
      %v3806 = vmul.f32 %v3732, %v1319
      %v3807 = vmul.f32 %v3734, %v1320
      %v3808 = vmul.f32 %v3736, %v1321
      %v3809 = vmul.f32 %v3738, %v1322
      %v3810 = vmul.f32 %v3740, %v1323
      %v3811 = vmul.f32 %v3742, %v1324
      %v3812 = vmul.f32 %v3744, %v1325
      %v3813 = vmul.f32 %v3746, %v1326
      %v3814 = vmul.f32 %v3748, %v1327
      %v3815 = vmul.f32 %v3750, %v1328
      %v3816 = vmul.f32 %v3752, %v1329
      %v3817 = vmul.f32 %v3785, %v1330
      %3818 = vrot.lane.b32.xlu0 %v3498, 32
      %v3819 = vpop.permute.xlu0 %3818
      %3820 = vrot.lane.b32.xlu0 %v3499, 32
      %v3821 = vpop.permute.xlu0 %3820
      %3822 = vrot.lane.b32.xlu0 %v3500, 32
      %v3823 = vpop.permute.xlu0 %3822
      %3824 = vrot.lane.b32.xlu0 %v3501, 32
      %v3825 = vpop.permute.xlu0 %3824
      %3826 = vrot.lane.b32.xlu0 %v3502, 32
      %v3827 = vpop.permute.xlu0 %3826
      %3828 = vrot.lane.b32.xlu0 %v3503, 32
      %v3829 = vpop.permute.xlu0 %3828
      %3830 = vrot.lane.b32.xlu0 %v3504, 32
      %v3831 = vpop.permute.xlu0 %3830
      %3832 = vrot.lane.b32.xlu0 %v3505, 32
      %v3833 = vpop.permute.xlu0 %3832
      %3834 = vrot.lane.b32.xlu0 %v3506, 32
      %v3835 = vpop.permute.xlu0 %3834
      %3836 = vrot.lane.b32.xlu0 %v3507, 32
      %v3837 = vpop.permute.xlu0 %3836
      %3838 = vrot.lane.b32.xlu0 %v3508, 32
      %v3839 = vpop.permute.xlu0 %3838
      %3840 = vrot.lane.b32.xlu0 %v3509, 32
      %v3841 = vpop.permute.xlu0 %3840
      %3842 = vrot.lane.b32.xlu0 %v3510, 32
      %v3843 = vpop.permute.xlu0 %3842
      %3844 = vrot.lane.b32.xlu0 %v3511, 32
      %v3845 = vpop.permute.xlu0 %3844
      %3846 = vrot.lane.b32.xlu0 %v3512, 32
      %v3847 = vpop.permute.xlu0 %3846
      %3848 = vrot.lane.b32.xlu0 %v3513, 32
      %v3849 = vpop.permute.xlu0 %3848
      %3850 = vrot.lane.b32.xlu0 %v3514, 32
      %v3851 = vpop.permute.xlu0 %3850
      %3852 = vrot.lane.b32.xlu0 %v3515, 32
      %v3853 = vpop.permute.xlu0 %3852
      %3854 = vrot.lane.b32.xlu0 %v3516, 32
      %v3855 = vpop.permute.xlu0 %3854
      %3856 = vrot.lane.b32.xlu0 %v3517, 32
      %v3857 = vpop.permute.xlu0 %3856
      %3858 = vrot.lane.b32.xlu0 %v3518, 32
      %v3859 = vpop.permute.xlu0 %3858
      %3860 = vrot.lane.b32.xlu0 %v3519, 32
      %v3861 = vpop.permute.xlu0 %3860
      %3862 = vrot.lane.b32.xlu0 %v3520, 32
      %v3863 = vpop.permute.xlu0 %3862
      %3864 = vrot.lane.b32.xlu0 %v3521, 32
      %v3865 = vpop.permute.xlu0 %3864
      %3866 = vrot.lane.b32.xlu0 %v3522, 32
      %v3867 = vpop.permute.xlu0 %3866
      %3868 = vrot.lane.b32.xlu0 %v3523, 32
      %v3869 = vpop.permute.xlu0 %3868
      %3870 = vrot.lane.b32.xlu0 %v3524, 32
      %v3871 = vpop.permute.xlu0 %3870
      %3872 = vrot.lane.b32.xlu0 %v3525, 32
      %v3873 = vpop.permute.xlu0 %3872
      %3874 = vrot.lane.b32.xlu0 %v3526, 32
      %v3875 = vpop.permute.xlu0 %3874
      %3876 = vrot.lane.b32.xlu0 %v3527, 32
      %v3877 = vpop.permute.xlu0 %3876
      %3878 = vrot.lane.b32.xlu0 %v3528, 32
      %v3879 = vpop.permute.xlu0 %3878
      %3880 = vrot.lane.b32.xlu0 %v3529, 32
      %v3881 = vpop.permute.xlu0 %3880
      %3946 = vrot.lane.b32.xlu0 %v3786, 64
      %v3947 = vpop.permute.xlu0 %3946
      %3948 = vrot.lane.b32.xlu0 %v3787, 64
      %v3949 = vpop.permute.xlu0 %3948
      %3950 = vrot.lane.b32.xlu0 %v3788, 64
      %v3951 = vpop.permute.xlu0 %3950
      %3952 = vrot.lane.b32.xlu0 %v3789, 64
      %v3953 = vpop.permute.xlu0 %3952
      %3954 = vrot.lane.b32.xlu0 %v3790, 64
      %v3955 = vpop.permute.xlu0 %3954
      %3956 = vrot.lane.b32.xlu0 %v3791, 64
      %v3957 = vpop.permute.xlu0 %3956
      %3958 = vrot.lane.b32.xlu0 %v3792, 64
      %v3959 = vpop.permute.xlu0 %3958
      %3960 = vrot.lane.b32.xlu0 %v3793, 64
      %v3961 = vpop.permute.xlu0 %3960
      %3962 = vrot.lane.b32.xlu0 %v3794, 64
      %v3963 = vpop.permute.xlu0 %3962
      %3964 = vrot.lane.b32.xlu0 %v3795, 64
      %v3965 = vpop.permute.xlu0 %3964
      %3966 = vrot.lane.b32.xlu0 %v3796, 64
      %v3967 = vpop.permute.xlu0 %3966
      %3968 = vrot.lane.b32.xlu0 %v3797, 64
      %v3969 = vpop.permute.xlu0 %3968
      %3970 = vrot.lane.b32.xlu0 %v3798, 64
      %v3971 = vpop.permute.xlu0 %3970
      %3972 = vrot.lane.b32.xlu0 %v3799, 64
      %v3973 = vpop.permute.xlu0 %3972
      %3974 = vrot.lane.b32.xlu0 %v3800, 64
      %v3975 = vpop.permute.xlu0 %3974
      %3976 = vrot.lane.b32.xlu0 %v3801, 64
      %v3977 = vpop.permute.xlu0 %3976
      %3978 = vrot.lane.b32.xlu0 %v3802, 64
      %v3979 = vpop.permute.xlu0 %3978
      %3980 = vrot.lane.b32.xlu0 %v3803, 64
      %v3981 = vpop.permute.xlu0 %3980
      %3982 = vrot.lane.b32.xlu0 %v3804, 64
      %v3983 = vpop.permute.xlu0 %3982
      %3984 = vrot.lane.b32.xlu0 %v3805, 64
      %v3985 = vpop.permute.xlu0 %3984
      %3986 = vrot.lane.b32.xlu0 %v3806, 64
      %v3987 = vpop.permute.xlu0 %3986
      %3988 = vrot.lane.b32.xlu0 %v3807, 64
      %v3989 = vpop.permute.xlu0 %3988
      %3990 = vrot.lane.b32.xlu0 %v3808, 64
      %v3991 = vpop.permute.xlu0 %3990
      %3992 = vrot.lane.b32.xlu0 %v3809, 64
      %v3993 = vpop.permute.xlu0 %3992
      %3994 = vrot.lane.b32.xlu0 %v3810, 64
      %v3995 = vpop.permute.xlu0 %3994
      %3996 = vrot.lane.b32.xlu0 %v3811, 64
      %v3997 = vpop.permute.xlu0 %3996
      %3998 = vrot.lane.b32.xlu0 %v3812, 64
      %v3999 = vpop.permute.xlu0 %3998
      %4000 = vrot.lane.b32.xlu0 %v3813, 64
      %v4001 = vpop.permute.xlu0 %4000
      %4002 = vrot.lane.b32.xlu0 %v3814, 64
      %v4003 = vpop.permute.xlu0 %4002
      %4004 = vrot.lane.b32.xlu0 %v3815, 64
      %v4005 = vpop.permute.xlu0 %4004
      %4006 = vrot.lane.b32.xlu0 %v3816, 64
      %v4007 = vpop.permute.xlu0 %4006
      %4008 = vrot.lane.b32.xlu0 %v3817, 64
      %v4009 = vpop.permute.xlu0 %4008
      %vm4042 = vcmask 261120
      %v4043 = vsel %vm4042, %v3658, %v3819
      %v4044 = vsel %vm4042, %v3659, %v3821
      %v4045 = vsel %vm4042, %v3660, %v3823
      %v4046 = vsel %vm4042, %v3661, %v3825
      %v4047 = vsel %vm4042, %v3662, %v3827
      %v4048 = vsel %vm4042, %v3663, %v3829
      %v4049 = vsel %vm4042, %v3664, %v3831
      %v4050 = vsel %vm4042, %v3665, %v3833
      %v4051 = vsel %vm4042, %v3666, %v3835
      %v4052 = vsel %vm4042, %v3667, %v3837
      %v4053 = vsel %vm4042, %v3668, %v3839
      %v4054 = vsel %vm4042, %v3669, %v3841
      %v4055 = vsel %vm4042, %v3670, %v3843
      %v4056 = vsel %vm4042, %v3671, %v3845
      %v4057 = vsel %vm4042, %v3672, %v3847
      %v4058 = vsel %vm4042, %v3673, %v3849
      %v4059 = vsel %vm4042, %v3674, %v3851
      %v4060 = vsel %vm4042, %v3675, %v3853
      %v4061 = vsel %vm4042, %v3676, %v3855
      %v4062 = vsel %vm4042, %v3677, %v3857
      %v4063 = vsel %vm4042, %v3678, %v3859
      %v4064 = vsel %vm4042, %v3679, %v3861
      %v4065 = vsel %vm4042, %v3680, %v3863
      %v4066 = vsel %vm4042, %v3681, %v3865
      %v4067 = vsel %vm4042, %v3682, %v3867
      %v4068 = vsel %vm4042, %v3683, %v3869
      %v4069 = vsel %vm4042, %v3684, %v3871
      %v4070 = vsel %vm4042, %v3685, %v3873
      %v4071 = vsel %vm4042, %v3686, %v3875
      %v4072 = vsel %vm4042, %v3687, %v3877
      %v4073 = vsel %vm4042, %v3688, %v3879
      %v4074 = vsel %vm4042, %v3689, %v3881
      %vm4075 = vcmask 523264
      %v4076 = vsel %vm4075, %v4043, %v3947
      %v4077 = vsel %vm4075, %v4044, %v3949
      %v4078 = vsel %vm4075, %v4045, %v3951
      %v4079 = vsel %vm4075, %v4046, %v3953
      %v4080 = vsel %vm4075, %v4047, %v3955
      %v4081 = vsel %vm4075, %v4048, %v3957
      %v4082 = vsel %vm4075, %v4049, %v3959
      %v4083 = vsel %vm4075, %v4050, %v3961
      %v4084 = vsel %vm4075, %v4051, %v3963
      %v4085 = vsel %vm4075, %v4052, %v3965
      %v4086 = vsel %vm4075, %v4053, %v3967
      %v4087 = vsel %vm4075, %v4054, %v3969
      %v4088 = vsel %vm4075, %v4055, %v3971
      %v4089 = vsel %vm4075, %v4056, %v3973
      %v4090 = vsel %vm4075, %v4057, %v3975
      %v4091 = vsel %vm4075, %v4058, %v3977
      %v4092 = vsel %vm4075, %v4059, %v3979
      %v4093 = vsel %vm4075, %v4060, %v3981
      %v4094 = vsel %vm4075, %v4061, %v3983
      %v4095 = vsel %vm4075, %v4062, %v3985
      %v4096 = vsel %vm4075, %v4063, %v3987
      %v4097 = vsel %vm4075, %v4064, %v3989
      %v4098 = vsel %vm4075, %v4065, %v3991
      %v4099 = vsel %vm4075, %v4066, %v3993
      %v4100 = vsel %vm4075, %v4067, %v3995
      %v4101 = vsel %vm4075, %v4068, %v3997
      %v4102 = vsel %vm4075, %v4069, %v3999
      %v4103 = vsel %vm4075, %v4070, %v4001
      %v4104 = vsel %vm4075, %v4071, %v4003
      %v4105 = vsel %vm4075, %v4072, %v4005
      %v4106 = vsel %vm4075, %v4073, %v4007
      %v4107 = vsel %vm4075, %v4074, %v4009
      %v4108 = vld [vmem:[%s2] sm:$0xff]
      %v4109 = vld [vmem:[%s2 + $0x8] sm:$0xff]
      %v4110 = vld [vmem:[%s2 + $0x10] sm:$0xff]
      %v4111 = vld [vmem:[%s2 + $0x18] sm:$0xff]
      %v4112 = vld [vmem:[%s2 + $0x20] sm:$0xff]
      %v4113 = vld [vmem:[%s2 + $0x28] sm:$0xff]
      %v4114 = vld [vmem:[%s2 + $0x30] sm:$0xff]
      %v4115 = vld [vmem:[%s2 + $0x38] sm:$0xff]
      %v4116 = vld [vmem:[%s2 + $0x40] sm:$0xff]
      %v4117 = vld [vmem:[%s2 + $0x48] sm:$0xff]
      %v4118 = vld [vmem:[%s2 + $0x50] sm:$0xff]
      %v4119 = vld [vmem:[%s2 + $0x58] sm:$0xff]
      %vm4120 = vcmask 785408
      %v4122 = vsel %vm4120, %v4076, 0
      %v4125 = vsel %vm4120, %v4077, 0
      %v4128 = vsel %vm4120, %v4078, 0
      %v4131 = vsel %vm4120, %v4079, 0
      %v4134 = vsel %vm4120, %v4080, 0
      %v4137 = vsel %vm4120, %v4081, 0
      %v4140 = vsel %vm4120, %v4082, 0
      %v4143 = vsel %vm4120, %v4083, 0
      %v4146 = vsel %vm4120, %v4084, 0
      %v4149 = vsel %vm4120, %v4085, 0
      %v4152 = vsel %vm4120, %v4086, 0
      %v4155 = vsel %vm4120, %v4087, 0
      %v4158 = vsel %vm4120, %v4088, 0
      %v4161 = vsel %vm4120, %v4089, 0
      %v4164 = vsel %vm4120, %v4090, 0
      %v4167 = vsel %vm4120, %v4091, 0
      %v4170 = vsel %vm4120, %v4092, 0
      %v4173 = vsel %vm4120, %v4093, 0
      %v4176 = vsel %vm4120, %v4094, 0
      %v4179 = vsel %vm4120, %v4095, 0
      %v4182 = vsel %vm4120, %v4096, 0
      %v4185 = vsel %vm4120, %v4097, 0
      %v4188 = vsel %vm4120, %v4098, 0
      %v4191 = vsel %vm4120, %v4099, 0
      %v4194 = vsel %vm4120, %v4100, 0
      %v4197 = vsel %vm4120, %v4101, 0
      %v4200 = vsel %vm4120, %v4102, 0
      %v4203 = vsel %vm4120, %v4103, 0
      %v4206 = vsel %vm4120, %v4104, 0
      %v4209 = vsel %vm4120, %v4105, 0
      %v4212 = vsel %vm4120, %v4106, 0
      %v4215 = vsel %vm4120, %v4107, 0
      %4217 = vmatprep.subr.mxu0 0.0
      %4218 = vmatpush1.msra.mxu0 0.0
      %4219 = vmatprep.subr.mxu0 0.0
      %4220 = vmatpush1.msra.mxu0 0.0
      %4221 = vmatprep.subr.mxu0 0.0
      %4222 = vmatpush1.msra.mxu0 0.0
      %4223 = vmatprep.subr.mxu0 0.0
      %4224 = vmatpush1.msra.mxu0 0.0
      %4225 = vmatprep.subr.mxu0 0.0
      %4226 = vmatpush1.msra.mxu0 %v4119
      %4227 = vmatprep.subr.mxu0 0.0
      %4228 = vmatpush1.msra.mxu0 %v4118
      %4229 = vmatprep.subr.mxu0 0.0
      %4230 = vmatpush1.msra.mxu0 %v4117
      %4231 = vmatprep.subr.mxu0 0.0
      %4232 = vmatpush1.msra.mxu0 %v4116
      %4233 = vmatprep.subr.mxu0 0.0
      %4234 = vmatpush1.msra.mxu0 %v4115
      %4235 = vmatprep.subr.mxu0 0.0
      %4236 = vmatpush1.msra.mxu0 %v4114
      %4237 = vmatprep.subr.mxu0 0.0
      %4238 = vmatpush1.msra.mxu0 %v4113
      %4239 = vmatprep.subr.mxu0 0.0
      %4240 = vmatpush1.msra.mxu0 %v4112
      %4241 = vmatprep.subr.mxu0 0.0
      %4242 = vmatpush1.msra.mxu0 %v4111
      %4243 = vmatprep.subr.mxu0 0.0
      %4244 = vmatpush1.msra.mxu0 %v4110
      %4245 = vmatprep.subr.mxu0 0.0
      %4246 = vmatpush1.msra.mxu0 %v4109
      %4247 = vmatprep.subr.mxu0 0.0
      %4248 = vmatpush1.msra.mxu0 %v4108
      %4249 = vmatprep.subr.mxu0 0.0
      %4250 = vmatpush2.msra.mxu0 0.0
      %4251 = vmatprep.subr.mxu0 0.0
      %4252 = vmatpush2.msra.mxu0 0.0
      %4253 = vmatprep.subr.mxu0 0.0
      %4254 = vmatpush2.msra.mxu0 0.0
      %4255 = vmatprep.subr.mxu0 0.0
      %4256 = vmatpush2.msra.mxu0 0.0
      %4257 = vmatprep.subr.mxu0 0.0
      %4258 = vmatpush2.msra.mxu0 0.0
      %4259 = vmatprep.subr.mxu0 0.0
      %4260 = vmatpush2.msra.mxu0 0.0
      %4261 = vmatprep.subr.mxu0 0.0
      %4262 = vmatpush2.msra.mxu0 0.0
      %4263 = vmatprep.subr.mxu0 0.0
      %4264 = vmatpush2.msra.mxu0 0.0
      %4265 = vmatprep.subr.mxu0 0.0
      %4266 = vmatpush2.msra.mxu0 0.0
      %4267 = vmatprep.subr.mxu0 0.0
      %4268 = vmatpush2.msra.mxu0 0.0
      %4269 = vmatprep.subr.mxu0 0.0
      %4270 = vmatpush2.msra.mxu0 0.0
      %4271 = vmatprep.subr.mxu0 0.0
      %4272 = vmatpush2.msra.mxu0 0.0
      %4273 = vmatprep.subr.mxu0 0.0
      %4274 = vmatpush2.msra.mxu0 0.0
      %4275 = vmatprep.subr.mxu0 0.0
      %4276 = vmatpush2.msra.mxu0 0.0
      %4277 = vmatprep.subr.mxu0 0.0
      %4278 = vmatpush2.msra.mxu0 0.0
      %4279 = vmatprep.subr.mxu0 0.0
      %4280 = vmatpush2.msra.mxu0 0.0
      %4281 = vmatprep.mubr.f32.mxu0 0.0
      %4282 = vmatmul.mubr.f32.gmra.mxu0 %v4122
      %v4283 = vpop.f32.mrf.mxu0
      %v4284 = vadd.f32 0.0, %v4283
      %v4285 = vpop.f32.mrf.mxu0
      %4286 = vmatprep.mubr.f32.mxu0 0.0
      %4287 = vmatmul.mubr.f32.gmra.mxu0 %v4125
      %v4288 = vpop.f32.mrf.mxu0
      %v4289 = vadd.f32 0.0, %v4288
      %v4290 = vpop.f32.mrf.mxu0
      %4291 = vmatprep.mubr.f32.mxu0 0.0
      %4292 = vmatmul.mubr.f32.gmra.mxu0 %v4128
      %v4293 = vpop.f32.mrf.mxu0
      %v4294 = vadd.f32 0.0, %v4293
      %v4295 = vpop.f32.mrf.mxu0
      %4296 = vmatprep.mubr.f32.mxu0 0.0
      %4297 = vmatmul.mubr.f32.gmra.mxu0 %v4131
      %v4298 = vpop.f32.mrf.mxu0
      %v4299 = vadd.f32 0.0, %v4298
      %v4300 = vpop.f32.mrf.mxu0
      %4301 = vmatprep.mubr.f32.mxu0 0.0
      %4302 = vmatmul.mubr.f32.gmra.mxu0 %v4134
      %v4303 = vpop.f32.mrf.mxu0
      %v4304 = vadd.f32 0.0, %v4303
      %v4305 = vpop.f32.mrf.mxu0
      %4306 = vmatprep.mubr.f32.mxu0 0.0
      %4307 = vmatmul.mubr.f32.gmra.mxu0 %v4137
      %v4308 = vpop.f32.mrf.mxu0
      %v4309 = vadd.f32 0.0, %v4308
      %v4310 = vpop.f32.mrf.mxu0
      %4311 = vmatprep.mubr.f32.mxu0 0.0
      %4312 = vmatmul.mubr.f32.gmra.mxu0 %v4140
      %v4313 = vpop.f32.mrf.mxu0
      %v4314 = vadd.f32 0.0, %v4313
      %v4315 = vpop.f32.mrf.mxu0
      %4316 = vmatprep.mubr.f32.mxu0 0.0
      %4317 = vmatmul.mubr.f32.gmra.mxu0 %v4143
      %v4318 = vpop.f32.mrf.mxu0
      %v4319 = vadd.f32 0.0, %v4318
      %v4320 = vpop.f32.mrf.mxu0
      %4321 = vmatprep.mubr.f32.mxu0 0.0
      %4322 = vmatmul.mubr.f32.gmra.mxu0 %v4146
      %v4323 = vpop.f32.mrf.mxu0
      %v4324 = vadd.f32 0.0, %v4323
      %v4325 = vpop.f32.mrf.mxu0
      %4326 = vmatprep.mubr.f32.mxu0 0.0
      %4327 = vmatmul.mubr.f32.gmra.mxu0 %v4149
      %v4328 = vpop.f32.mrf.mxu0
      %v4329 = vadd.f32 0.0, %v4328
      %v4330 = vpop.f32.mrf.mxu0
      %4331 = vmatprep.mubr.f32.mxu0 0.0
      %4332 = vmatmul.mubr.f32.gmra.mxu0 %v4152
      %v4333 = vpop.f32.mrf.mxu0
      %v4334 = vadd.f32 0.0, %v4333
      %v4335 = vpop.f32.mrf.mxu0
      %4336 = vmatprep.mubr.f32.mxu0 0.0
      %4337 = vmatmul.mubr.f32.gmra.mxu0 %v4155
      %v4338 = vpop.f32.mrf.mxu0
      %v4339 = vadd.f32 0.0, %v4338
      %v4340 = vpop.f32.mrf.mxu0
      %4341 = vmatprep.mubr.f32.mxu0 0.0
      %4342 = vmatmul.mubr.f32.gmra.mxu0 %v4158
      %v4343 = vpop.f32.mrf.mxu0
      %v4344 = vadd.f32 0.0, %v4343
      %v4345 = vpop.f32.mrf.mxu0
      %4346 = vmatprep.mubr.f32.mxu0 0.0
      %4347 = vmatmul.mubr.f32.gmra.mxu0 %v4161
      %v4348 = vpop.f32.mrf.mxu0
      %v4349 = vadd.f32 0.0, %v4348
      %v4350 = vpop.f32.mrf.mxu0
      %4351 = vmatprep.mubr.f32.mxu0 0.0
      %4352 = vmatmul.mubr.f32.gmra.mxu0 %v4164
      %v4353 = vpop.f32.mrf.mxu0
      %v4354 = vadd.f32 0.0, %v4353
      %v4355 = vpop.f32.mrf.mxu0
      %4356 = vmatprep.mubr.f32.mxu0 0.0
      %4357 = vmatmul.mubr.f32.gmra.mxu0 %v4167
      %v4358 = vpop.f32.mrf.mxu0
      %v4359 = vadd.f32 0.0, %v4358
      %v4360 = vpop.f32.mrf.mxu0
      %4361 = vmatprep.mubr.f32.mxu0 0.0
      %4362 = vmatmul.mubr.f32.gmra.mxu0 %v4170
      %v4363 = vpop.f32.mrf.mxu0
      %v4364 = vadd.f32 0.0, %v4363
      %v4365 = vpop.f32.mrf.mxu0
      %4366 = vmatprep.mubr.f32.mxu0 0.0
      %4367 = vmatmul.mubr.f32.gmra.mxu0 %v4173
      %v4368 = vpop.f32.mrf.mxu0
      %v4369 = vadd.f32 0.0, %v4368
      %v4370 = vpop.f32.mrf.mxu0
      %4371 = vmatprep.mubr.f32.mxu0 0.0
      %4372 = vmatmul.mubr.f32.gmra.mxu0 %v4176
      %v4373 = vpop.f32.mrf.mxu0
      %v4374 = vadd.f32 0.0, %v4373
      %v4375 = vpop.f32.mrf.mxu0
      %4376 = vmatprep.mubr.f32.mxu0 0.0
      %4377 = vmatmul.mubr.f32.gmra.mxu0 %v4179
      %v4378 = vpop.f32.mrf.mxu0
      %v4379 = vadd.f32 0.0, %v4378
      %v4380 = vpop.f32.mrf.mxu0
      %4381 = vmatprep.mubr.f32.mxu0 0.0
      %4382 = vmatmul.mubr.f32.gmra.mxu0 %v4182
      %v4383 = vpop.f32.mrf.mxu0
      %v4384 = vadd.f32 0.0, %v4383
      %v4385 = vpop.f32.mrf.mxu0
      %4386 = vmatprep.mubr.f32.mxu0 0.0
      %4387 = vmatmul.mubr.f32.gmra.mxu0 %v4185
      %v4388 = vpop.f32.mrf.mxu0
      %v4389 = vadd.f32 0.0, %v4388
      %v4390 = vpop.f32.mrf.mxu0
      %4391 = vmatprep.mubr.f32.mxu0 0.0
      %4392 = vmatmul.mubr.f32.gmra.mxu0 %v4188
      %v4393 = vpop.f32.mrf.mxu0
      %v4394 = vadd.f32 0.0, %v4393
      %v4395 = vpop.f32.mrf.mxu0
      %4396 = vmatprep.mubr.f32.mxu0 0.0
      %4397 = vmatmul.mubr.f32.gmra.mxu0 %v4191
      %v4398 = vpop.f32.mrf.mxu0
      %v4399 = vadd.f32 0.0, %v4398
      %v4400 = vpop.f32.mrf.mxu0
      %4401 = vmatprep.mubr.f32.mxu0 0.0
      %4402 = vmatmul.mubr.f32.gmra.mxu0 %v4194
      %v4403 = vpop.f32.mrf.mxu0
      %v4404 = vadd.f32 0.0, %v4403
      %v4405 = vpop.f32.mrf.mxu0
      %4406 = vmatprep.mubr.f32.mxu0 0.0
      %4407 = vmatmul.mubr.f32.gmra.mxu0 %v4197
      %v4408 = vpop.f32.mrf.mxu0
      %v4409 = vadd.f32 0.0, %v4408
      %v4410 = vpop.f32.mrf.mxu0
      %4411 = vmatprep.mubr.f32.mxu0 0.0
      %4412 = vmatmul.mubr.f32.gmra.mxu0 %v4200
      %v4413 = vpop.f32.mrf.mxu0
      %v4414 = vadd.f32 0.0, %v4413
      %v4415 = vpop.f32.mrf.mxu0
      %4416 = vmatprep.mubr.f32.mxu0 0.0
      %4417 = vmatmul.mubr.f32.gmra.mxu0 %v4203
      %v4418 = vpop.f32.mrf.mxu0
      %v4419 = vadd.f32 0.0, %v4418
      %v4420 = vpop.f32.mrf.mxu0
      %4421 = vmatprep.mubr.f32.mxu0 0.0
      %4422 = vmatmul.mubr.f32.gmra.mxu0 %v4206
      %v4423 = vpop.f32.mrf.mxu0
      %v4424 = vadd.f32 0.0, %v4423
      %v4425 = vpop.f32.mrf.mxu0
      %4426 = vmatprep.mubr.f32.mxu0 0.0
      %4427 = vmatmul.mubr.f32.gmra.mxu0 %v4209
      %v4428 = vpop.f32.mrf.mxu0
      %v4429 = vadd.f32 0.0, %v4428
      %v4430 = vpop.f32.mrf.mxu0
      %4431 = vmatprep.mubr.f32.mxu0 0.0
      %4432 = vmatmul.mubr.f32.gmra.mxu0 %v4212
      %v4433 = vpop.f32.mrf.mxu0
      %v4434 = vpop.f32.mrf.mxu0
      %4435 = vmatprep.mubr.f32.mxu0 0.0
      %4436 = vmatmul.mubr.f32.gmra.mxu0 %v4215
      %v4437 = vpop.f32.mrf.mxu0
      %v4438 = vpop.f32.mrf.mxu0
      %4439 = vdwg.mxu0
      %s4440 = scalar_lea.vmem %s2, 96
      %v4441 = vld [vmem:[%s4440] sm:$0xff]
      %v4442 = vld [vmem:[%s4440 + $0x8] sm:$0xff]
      %v4443 = vld [vmem:[%s4440 + $0x10] sm:$0xff]
      %v4444 = vld [vmem:[%s4440 + $0x18] sm:$0xff]
      %v4445 = vld [vmem:[%s4440 + $0x20] sm:$0xff]
      %v4446 = vld [vmem:[%s4440 + $0x28] sm:$0xff]
      %v4447 = vld [vmem:[%s4440 + $0x30] sm:$0xff]
      %v4448 = vld [vmem:[%s4440 + $0x38] sm:$0xff]
      %v4449 = vld [vmem:[%s4440 + $0x40] sm:$0xff]
      %v4450 = vld [vmem:[%s4440 + $0x48] sm:$0xff]
      %v4451 = vld [vmem:[%s4440 + $0x50] sm:$0xff]
      %v4452 = vld [vmem:[%s4440 + $0x58] sm:$0xff]
      %s4453 = scalar_lea.vmem %s2, 192
      %v4454 = vld [vmem:[%s4453] sm:$0xff]
      %v4455 = vld [vmem:[%s4453 + $0x8] sm:$0xff]
      %v4456 = vld [vmem:[%s4453 + $0x10] sm:$0xff]
      %v4457 = vld [vmem:[%s4453 + $0x18] sm:$0xff]
      %v4458 = vld [vmem:[%s4453 + $0x20] sm:$0xff]
      %v4459 = vld [vmem:[%s4453 + $0x28] sm:$0xff]
      %v4460 = vld [vmem:[%s4453 + $0x30] sm:$0xff]
      %v4461 = vld [vmem:[%s4453 + $0x38] sm:$0xff]
      %v4462 = vld [vmem:[%s4453 + $0x40] sm:$0xff]
      %v4463 = vld [vmem:[%s4453 + $0x48] sm:$0xff]
      %v4464 = vld [vmem:[%s4453 + $0x50] sm:$0xff]
      %v4465 = vld [vmem:[%s4453 + $0x58] sm:$0xff]
      %4466 = vmatprep.subr.mxu0 0.0
      %4467 = vmatpush1.msra.mxu0 0.0
      %4468 = vmatprep.subr.mxu0 0.0
      %4469 = vmatpush1.msra.mxu0 0.0
      %4470 = vmatprep.subr.mxu0 0.0
      %4471 = vmatpush1.msra.mxu0 0.0
      %4472 = vmatprep.subr.mxu0 0.0
      %4473 = vmatpush1.msra.mxu0 0.0
      %4474 = vmatprep.subr.mxu0 0.0
      %4475 = vmatpush1.msra.mxu0 %v4465
      %4476 = vmatprep.subr.mxu0 0.0
      %4477 = vmatpush1.msra.mxu0 %v4464
      %4478 = vmatprep.subr.mxu0 0.0
      %4479 = vmatpush1.msra.mxu0 %v4463
      %4480 = vmatprep.subr.mxu0 0.0
      %4481 = vmatpush1.msra.mxu0 %v4462
      %4482 = vmatprep.subr.mxu0 0.0
      %4483 = vmatpush1.msra.mxu0 %v4461
      %4484 = vmatprep.subr.mxu0 0.0
      %4485 = vmatpush1.msra.mxu0 %v4460
      %4486 = vmatprep.subr.mxu0 0.0
      %4487 = vmatpush1.msra.mxu0 %v4459
      %4488 = vmatprep.subr.mxu0 0.0
      %4489 = vmatpush1.msra.mxu0 %v4458
      %4490 = vmatprep.subr.mxu0 0.0
      %4491 = vmatpush1.msra.mxu0 %v4457
      %4492 = vmatprep.subr.mxu0 0.0
      %4493 = vmatpush1.msra.mxu0 %v4456
      %4494 = vmatprep.subr.mxu0 0.0
      %4495 = vmatpush1.msra.mxu0 %v4455
      %4496 = vmatprep.subr.mxu0 0.0
      %4497 = vmatpush1.msra.mxu0 %v4454
      %4498 = vmatprep.subr.mxu0 0.0
      %4499 = vmatpush2.msra.mxu0 0.0
      %4500 = vmatprep.subr.mxu0 0.0
      %4501 = vmatpush2.msra.mxu0 0.0
      %4502 = vmatprep.subr.mxu0 0.0
      %4503 = vmatpush2.msra.mxu0 0.0
      %4504 = vmatprep.subr.mxu0 0.0
      %4505 = vmatpush2.msra.mxu0 0.0
      %4506 = vmatprep.subr.mxu0 0.0
      %4507 = vmatpush2.msra.mxu0 0.0
      %4508 = vmatprep.subr.mxu0 0.0
      %4509 = vmatpush2.msra.mxu0 0.0
      %4510 = vmatprep.subr.mxu0 0.0
      %4511 = vmatpush2.msra.mxu0 0.0
      %4512 = vmatprep.subr.mxu0 0.0
      %4513 = vmatpush2.msra.mxu0 0.0
      %4514 = vmatprep.subr.mxu0 0.0
      %4515 = vmatpush2.msra.mxu0 0.0
      %4516 = vmatprep.subr.mxu0 0.0
      %4517 = vmatpush2.msra.mxu0 0.0
      %4518 = vmatprep.subr.mxu0 0.0
      %4519 = vmatpush2.msra.mxu0 0.0
      %4520 = vmatprep.subr.mxu0 0.0
      %4521 = vmatpush2.msra.mxu0 0.0
      %4522 = vmatprep.subr.mxu0 0.0
      %4523 = vmatpush2.msra.mxu0 0.0
      %4524 = vmatprep.subr.mxu0 0.0
      %4525 = vmatpush2.msra.mxu0 0.0
      %4526 = vmatprep.subr.mxu0 0.0
      %4527 = vmatpush2.msra.mxu0 0.0
      %4528 = vmatprep.subr.mxu0 0.0
      %4529 = vmatpush2.msra.mxu0 0.0
      %4530 = vmatprep.mubr.f32.mxu0 0.0
      %4531 = vmatmul.mubr.f32.gmra.mxu0 %v4122
      %v4532 = vpop.f32.mrf.mxu0
      %v4533 = vpop.f32.mrf.mxu0
      %4534 = vmatprep.mubr.f32.mxu0 0.0
      %4535 = vmatmul.mubr.f32.gmra.mxu0 %v4125
      %v4536 = vpop.f32.mrf.mxu0
      %v4537 = vpop.f32.mrf.mxu0
      %4538 = vmatprep.mubr.f32.mxu0 0.0
      %4539 = vmatmul.mubr.f32.gmra.mxu0 %v4128
      %v4540 = vpop.f32.mrf.mxu0
      %v4541 = vadd.f32 0.0, %v4540
      %v4542 = vpop.f32.mrf.mxu0
      %4543 = vmatprep.mubr.f32.mxu0 0.0
      %4544 = vmatmul.mubr.f32.gmra.mxu0 %v4131
      %v4545 = vpop.f32.mrf.mxu0
      %v4546 = vadd.f32 0.0, %v4545
      %v4547 = vpop.f32.mrf.mxu0
      %4548 = vmatprep.mubr.f32.mxu0 0.0
      %4549 = vmatmul.mubr.f32.gmra.mxu0 %v4134
      %v4550 = vpop.f32.mrf.mxu0
      %v4551 = vadd.f32 0.0, %v4550
      %v4552 = vpop.f32.mrf.mxu0
      %4553 = vmatprep.mubr.f32.mxu0 0.0
      %4554 = vmatmul.mubr.f32.gmra.mxu0 %v4137
      %v4555 = vpop.f32.mrf.mxu0
      %v4556 = vadd.f32 0.0, %v4555
      %v4557 = vpop.f32.mrf.mxu0
      %4558 = vmatprep.mubr.f32.mxu0 0.0
      %4559 = vmatmul.mubr.f32.gmra.mxu0 %v4140
      %v4560 = vpop.f32.mrf.mxu0
      %v4561 = vadd.f32 0.0, %v4560
      %v4562 = vpop.f32.mrf.mxu0
      %4563 = vmatprep.mubr.f32.mxu0 0.0
      %4564 = vmatmul.mubr.f32.gmra.mxu0 %v4143
      %v4565 = vpop.f32.mrf.mxu0
      %v4566 = vadd.f32 0.0, %v4565
      %v4567 = vpop.f32.mrf.mxu0
      %4568 = vmatprep.mubr.f32.mxu0 0.0
      %4569 = vmatmul.mubr.f32.gmra.mxu0 %v4146
      %v4570 = vpop.f32.mrf.mxu0
      %v4571 = vadd.f32 0.0, %v4570
      %v4572 = vpop.f32.mrf.mxu0
      %4573 = vmatprep.mubr.f32.mxu0 0.0
      %4574 = vmatmul.mubr.f32.gmra.mxu0 %v4149
      %v4575 = vpop.f32.mrf.mxu0
      %v4576 = vadd.f32 0.0, %v4575
      %v4577 = vpop.f32.mrf.mxu0
      %4578 = vmatprep.mubr.f32.mxu0 0.0
      %4579 = vmatmul.mubr.f32.gmra.mxu0 %v4152
      %v4580 = vpop.f32.mrf.mxu0
      %v4581 = vadd.f32 0.0, %v4580
      %v4582 = vpop.f32.mrf.mxu0
      %4583 = vmatprep.mubr.f32.mxu0 0.0
      %4584 = vmatmul.mubr.f32.gmra.mxu0 %v4155
      %v4585 = vpop.f32.mrf.mxu0
      %v4586 = vadd.f32 0.0, %v4585
      %v4587 = vpop.f32.mrf.mxu0
      %4588 = vmatprep.mubr.f32.mxu0 0.0
      %4589 = vmatmul.mubr.f32.gmra.mxu0 %v4158
      %v4590 = vpop.f32.mrf.mxu0
      %v4591 = vadd.f32 0.0, %v4590
      %v4592 = vpop.f32.mrf.mxu0
      %4593 = vmatprep.mubr.f32.mxu0 0.0
      %4594 = vmatmul.mubr.f32.gmra.mxu0 %v4161
      %v4595 = vpop.f32.mrf.mxu0
      %v4596 = vadd.f32 0.0, %v4595
      %v4597 = vpop.f32.mrf.mxu0
      %4598 = vmatprep.mubr.f32.mxu0 0.0
      %4599 = vmatmul.mubr.f32.gmra.mxu0 %v4164
      %v4600 = vpop.f32.mrf.mxu0
      %v4601 = vadd.f32 0.0, %v4600
      %v4602 = vpop.f32.mrf.mxu0
      %4603 = vmatprep.mubr.f32.mxu0 0.0
      %4604 = vmatmul.mubr.f32.gmra.mxu0 %v4167
      %v4605 = vpop.f32.mrf.mxu0
      %v4606 = vadd.f32 0.0, %v4605
      %v4607 = vpop.f32.mrf.mxu0
      %4608 = vmatprep.mubr.f32.mxu0 0.0
      %4609 = vmatmul.mubr.f32.gmra.mxu0 %v4170
      %v4610 = vpop.f32.mrf.mxu0
      %v4611 = vadd.f32 0.0, %v4610
      %v4612 = vpop.f32.mrf.mxu0
      %4613 = vmatprep.mubr.f32.mxu0 0.0
      %4614 = vmatmul.mubr.f32.gmra.mxu0 %v4173
      %v4615 = vpop.f32.mrf.mxu0
      %v4616 = vadd.f32 0.0, %v4615
      %v4617 = vpop.f32.mrf.mxu0
      %4618 = vmatprep.mubr.f32.mxu0 0.0
      %4619 = vmatmul.mubr.f32.gmra.mxu0 %v4176
      %v4620 = vpop.f32.mrf.mxu0
      %v4621 = vadd.f32 0.0, %v4620
      %v4622 = vpop.f32.mrf.mxu0
      %4623 = vmatprep.mubr.f32.mxu0 0.0
      %4624 = vmatmul.mubr.f32.gmra.mxu0 %v4179
      %v4625 = vpop.f32.mrf.mxu0
      %v4626 = vadd.f32 0.0, %v4625
      %v4627 = vpop.f32.mrf.mxu0
      %4628 = vmatprep.mubr.f32.mxu0 0.0
      %4629 = vmatmul.mubr.f32.gmra.mxu0 %v4182
      %v4630 = vpop.f32.mrf.mxu0
      %v4631 = vadd.f32 0.0, %v4630
      %v4632 = vpop.f32.mrf.mxu0
      %4633 = vmatprep.mubr.f32.mxu0 0.0
      %4634 = vmatmul.mubr.f32.gmra.mxu0 %v4185
      %v4635 = vpop.f32.mrf.mxu0
      %v4636 = vadd.f32 0.0, %v4635
      %v4637 = vpop.f32.mrf.mxu0
      %4638 = vmatprep.mubr.f32.mxu0 0.0
      %4639 = vmatmul.mubr.f32.gmra.mxu0 %v4188
      %v4640 = vpop.f32.mrf.mxu0
      %v4641 = vadd.f32 0.0, %v4640
      %v4642 = vpop.f32.mrf.mxu0
      %4643 = vmatprep.mubr.f32.mxu0 0.0
      %4644 = vmatmul.mubr.f32.gmra.mxu0 %v4191
      %v4645 = vpop.f32.mrf.mxu0
      %v4646 = vadd.f32 0.0, %v4645
      %v4647 = vpop.f32.mrf.mxu0
      %4648 = vmatprep.mubr.f32.mxu0 0.0
      %4649 = vmatmul.mubr.f32.gmra.mxu0 %v4194
      %v4650 = vpop.f32.mrf.mxu0
      %v4651 = vadd.f32 0.0, %v4650
      %v4652 = vpop.f32.mrf.mxu0
      %4653 = vmatprep.mubr.f32.mxu0 0.0
      %4654 = vmatmul.mubr.f32.gmra.mxu0 %v4197
      %v4655 = vpop.f32.mrf.mxu0
      %v4656 = vadd.f32 0.0, %v4655
      %v4657 = vpop.f32.mrf.mxu0
      %4658 = vmatprep.mubr.f32.mxu0 0.0
      %4659 = vmatmul.mubr.f32.gmra.mxu0 %v4200
      %v4660 = vpop.f32.mrf.mxu0
      %v4661 = vadd.f32 0.0, %v4660
      %v4662 = vpop.f32.mrf.mxu0
      %4663 = vmatprep.mubr.f32.mxu0 0.0
      %4664 = vmatmul.mubr.f32.gmra.mxu0 %v4203
      %v4665 = vpop.f32.mrf.mxu0
      %v4666 = vadd.f32 0.0, %v4665
      %v4667 = vpop.f32.mrf.mxu0
      %4668 = vmatprep.mubr.f32.mxu0 0.0
      %4669 = vmatmul.mubr.f32.gmra.mxu0 %v4206
      %v4670 = vpop.f32.mrf.mxu0
      %v4671 = vadd.f32 0.0, %v4670
      %v4672 = vpop.f32.mrf.mxu0
      %4673 = vmatprep.mubr.f32.mxu0 0.0
      %4674 = vmatmul.mubr.f32.gmra.mxu0 %v4209
      %v4675 = vpop.f32.mrf.mxu0
      %v4676 = vadd.f32 0.0, %v4675
      %v4677 = vpop.f32.mrf.mxu0
      %4678 = vmatprep.mubr.f32.mxu0 0.0
      %4679 = vmatmul.mubr.f32.gmra.mxu0 %v4212
      %v4680 = vpop.f32.mrf.mxu0
      %v4681 = vadd.f32 0.0, %v4680
      %v4682 = vpop.f32.mrf.mxu0
      %4683 = vmatprep.mubr.f32.mxu0 0.0
      %4684 = vmatmul.mubr.f32.gmra.mxu0 %v4215
      %v4685 = vpop.f32.mrf.mxu0
      %v4686 = vadd.f32 0.0, %v4685
      %v4687 = vpop.f32.mrf.mxu0
      %4688 = vdwg.mxu0
      %v4689 = vmul.f32 %v1397, %v4284
      %v4690 = vmul.f32 %v1398, %v4289
      %v4691 = vmul.f32 %v1399, %v4294
      %v4692 = vmul.f32 %v1400, %v4299
      %v4693 = vmul.f32 %v1401, %v4304
      %v4694 = vmul.f32 %v1402, %v4309
      %v4695 = vmul.f32 %v1403, %v4314
      %v4696 = vmul.f32 %v1404, %v4319
      %v4697 = vmul.f32 %v1405, %v4324
      %v4698 = vmul.f32 %v1406, %v4329
      %v4699 = vmul.f32 %v1407, %v4334
      %v4700 = vmul.f32 %v1408, %v4339
      %v4701 = vmul.f32 %v1409, %v4344
      %v4702 = vmul.f32 %v1410, %v4349
      %v4703 = vmul.f32 %v1411, %v4354
      %v4704 = vmul.f32 %v1412, %v4359
      %v4705 = vmul.f32 %v1413, %v4364
      %v4706 = vmul.f32 %v1414, %v4369
      %v4707 = vmul.f32 %v1415, %v4374
      %v4708 = vmul.f32 %v1416, %v4379
      %v4709 = vmul.f32 %v1417, %v4384
      %v4710 = vmul.f32 %v1418, %v4389
      %v4711 = vmul.f32 %v1419, %v4394
      %v4712 = vmul.f32 %v1420, %v4399
      %v4713 = vmul.f32 %v1421, %v4404
      %v4714 = vmul.f32 %v1422, %v4409
      %v4715 = vmul.f32 %v1423, %v4414
      %v4716 = vmul.f32 %v1424, %v4419
      %v4717 = vmul.f32 %v1425, %v4424
      %v4718 = vmul.f32 %v1426, %v4429
      %4719 = vmatprep.subr.mxu0 0.0
      %4720 = vmatpush1.msra.mxu0 0.0
      %4721 = vmatprep.subr.mxu0 0.0
      %4722 = vmatpush1.msra.mxu0 0.0
      %4723 = vmatprep.subr.mxu0 0.0
      %4724 = vmatpush1.msra.mxu0 0.0
      %4725 = vmatprep.subr.mxu0 0.0
      %4726 = vmatpush1.msra.mxu0 0.0
      %4727 = vmatprep.subr.mxu0 0.0
      %4728 = vmatpush1.msra.mxu0 %v4452
      %4729 = vmatprep.subr.mxu0 0.0
      %4730 = vmatpush1.msra.mxu0 %v4451
      %4731 = vmatprep.subr.mxu0 0.0
      %4732 = vmatpush1.msra.mxu0 %v4450
      %4733 = vmatprep.subr.mxu0 0.0
      %4734 = vmatpush1.msra.mxu0 %v4449
      %4735 = vmatprep.subr.mxu0 0.0
      %4736 = vmatpush1.msra.mxu0 %v4448
      %4737 = vmatprep.subr.mxu0 0.0
      %4738 = vmatpush1.msra.mxu0 %v4447
      %4739 = vmatprep.subr.mxu0 0.0
      %4740 = vmatpush1.msra.mxu0 %v4446
      %4741 = vmatprep.subr.mxu0 0.0
      %4742 = vmatpush1.msra.mxu0 %v4445
      %4743 = vmatprep.subr.mxu0 0.0
      %4744 = vmatpush1.msra.mxu0 %v4444
      %4745 = vmatprep.subr.mxu0 0.0
      %4746 = vmatpush1.msra.mxu0 %v4443
      %4747 = vmatprep.subr.mxu0 0.0
      %4748 = vmatpush1.msra.mxu0 %v4442
      %4749 = vmatprep.subr.mxu0 0.0
      %4750 = vmatpush1.msra.mxu0 %v4441
      %4751 = vmatprep.subr.mxu0 0.0
      %4752 = vmatpush2.msra.mxu0 0.0
      %4753 = vmatprep.subr.mxu0 0.0
      %4754 = vmatpush2.msra.mxu0 0.0
      %4755 = vmatprep.subr.mxu0 0.0
      %4756 = vmatpush2.msra.mxu0 0.0
      %4757 = vmatprep.subr.mxu0 0.0
      %4758 = vmatpush2.msra.mxu0 0.0
      %4759 = vmatprep.subr.mxu0 0.0
      %4760 = vmatpush2.msra.mxu0 0.0
      %4761 = vmatprep.subr.mxu0 0.0
      %4762 = vmatpush2.msra.mxu0 0.0
      %4763 = vmatprep.subr.mxu0 0.0
      %4764 = vmatpush2.msra.mxu0 0.0
      %4765 = vmatprep.subr.mxu0 0.0
      %4766 = vmatpush2.msra.mxu0 0.0
      %4767 = vmatprep.subr.mxu0 0.0
      %4768 = vmatpush2.msra.mxu0 0.0
      %4769 = vmatprep.subr.mxu0 0.0
      %4770 = vmatpush2.msra.mxu0 0.0
      %4771 = vmatprep.subr.mxu0 0.0
      %4772 = vmatpush2.msra.mxu0 0.0
      %4773 = vmatprep.subr.mxu0 0.0
      %4774 = vmatpush2.msra.mxu0 0.0
      %4775 = vmatprep.subr.mxu0 0.0
      %4776 = vmatpush2.msra.mxu0 0.0
      %4777 = vmatprep.subr.mxu0 0.0
      %4778 = vmatpush2.msra.mxu0 0.0
      %4779 = vmatprep.subr.mxu0 0.0
      %4780 = vmatpush2.msra.mxu0 0.0
      %4781 = vmatprep.subr.mxu0 0.0
      %4782 = vmatpush2.msra.mxu0 0.0
      %4783 = vmatprep.mubr.f32.mxu0 0.0
      %4784 = vmatmul.mubr.f32.gmra.mxu0 %v4122
      %v4785 = vpop.f32.mrf.mxu0
      %v4786 = vadd.f32 %v2852, %v4785
      %v4787 = vpop.f32.mrf.mxu0
      %4788 = vmatprep.mubr.f32.mxu0 0.0
      %4789 = vmatmul.mubr.f32.gmra.mxu0 %v4125
      %v4790 = vpop.f32.mrf.mxu0
      %v4791 = vadd.f32 %v2853, %v4790
      %v4792 = vpop.f32.mrf.mxu0
      %4793 = vmatprep.mubr.f32.mxu0 0.0
      %4794 = vmatmul.mubr.f32.gmra.mxu0 %v4128
      %v4795 = vpop.f32.mrf.mxu0
      %v4796 = vadd.f32 %v4689, %v4795
      %v4797 = vpop.f32.mrf.mxu0
      %4798 = vmatprep.mubr.f32.mxu0 0.0
      %4799 = vmatmul.mubr.f32.gmra.mxu0 %v4131
      %v4800 = vpop.f32.mrf.mxu0
      %v4801 = vadd.f32 %v4690, %v4800
      %v4802 = vpop.f32.mrf.mxu0
      %4803 = vmatprep.mubr.f32.mxu0 0.0
      %4804 = vmatmul.mubr.f32.gmra.mxu0 %v4134
      %v4805 = vpop.f32.mrf.mxu0
      %v4806 = vadd.f32 %v4691, %v4805
      %v4807 = vpop.f32.mrf.mxu0
      %4808 = vmatprep.mubr.f32.mxu0 0.0
      %4809 = vmatmul.mubr.f32.gmra.mxu0 %v4137
      %v4810 = vpop.f32.mrf.mxu0
      %v4811 = vadd.f32 %v4692, %v4810
      %v4812 = vpop.f32.mrf.mxu0
      %4813 = vmatprep.mubr.f32.mxu0 0.0
      %4814 = vmatmul.mubr.f32.gmra.mxu0 %v4140
      %v4815 = vpop.f32.mrf.mxu0
      %v4816 = vadd.f32 %v4693, %v4815
      %v4817 = vpop.f32.mrf.mxu0
      %4818 = vmatprep.mubr.f32.mxu0 0.0
      %4819 = vmatmul.mubr.f32.gmra.mxu0 %v4143
      %v4820 = vpop.f32.mrf.mxu0
      %v4821 = vadd.f32 %v4694, %v4820
      %v4822 = vpop.f32.mrf.mxu0
      %4823 = vmatprep.mubr.f32.mxu0 0.0
      %4824 = vmatmul.mubr.f32.gmra.mxu0 %v4146
      %v4825 = vpop.f32.mrf.mxu0
      %v4826 = vadd.f32 %v4695, %v4825
      %v4827 = vpop.f32.mrf.mxu0
      %4828 = vmatprep.mubr.f32.mxu0 0.0
      %4829 = vmatmul.mubr.f32.gmra.mxu0 %v4149
      %v4830 = vpop.f32.mrf.mxu0
      %v4831 = vadd.f32 %v4696, %v4830
      %v4832 = vpop.f32.mrf.mxu0
      %4833 = vmatprep.mubr.f32.mxu0 0.0
      %4834 = vmatmul.mubr.f32.gmra.mxu0 %v4152
      %v4835 = vpop.f32.mrf.mxu0
      %v4836 = vadd.f32 %v4697, %v4835
      %v4837 = vpop.f32.mrf.mxu0
      %4838 = vmatprep.mubr.f32.mxu0 0.0
      %4839 = vmatmul.mubr.f32.gmra.mxu0 %v4155
      %v4840 = vpop.f32.mrf.mxu0
      %v4841 = vadd.f32 %v4698, %v4840
      %v4842 = vpop.f32.mrf.mxu0
      %4843 = vmatprep.mubr.f32.mxu0 0.0
      %4844 = vmatmul.mubr.f32.gmra.mxu0 %v4158
      %v4845 = vpop.f32.mrf.mxu0
      %v4846 = vadd.f32 %v4699, %v4845
      %v4847 = vpop.f32.mrf.mxu0
      %4848 = vmatprep.mubr.f32.mxu0 0.0
      %4849 = vmatmul.mubr.f32.gmra.mxu0 %v4161
      %v4850 = vpop.f32.mrf.mxu0
      %v4851 = vadd.f32 %v4700, %v4850
      %v4852 = vpop.f32.mrf.mxu0
      %4853 = vmatprep.mubr.f32.mxu0 0.0
      %4854 = vmatmul.mubr.f32.gmra.mxu0 %v4164
      %v4855 = vpop.f32.mrf.mxu0
      %v4856 = vadd.f32 %v4701, %v4855
      %v4857 = vpop.f32.mrf.mxu0
      %4858 = vmatprep.mubr.f32.mxu0 0.0
      %4859 = vmatmul.mubr.f32.gmra.mxu0 %v4167
      %v4860 = vpop.f32.mrf.mxu0
      %v4861 = vadd.f32 %v4702, %v4860
      %v4862 = vpop.f32.mrf.mxu0
      %4863 = vmatprep.mubr.f32.mxu0 0.0
      %4864 = vmatmul.mubr.f32.gmra.mxu0 %v4170
      %v4865 = vpop.f32.mrf.mxu0
      %v4866 = vadd.f32 %v4703, %v4865
      %v4867 = vpop.f32.mrf.mxu0
      %4868 = vmatprep.mubr.f32.mxu0 0.0
      %4869 = vmatmul.mubr.f32.gmra.mxu0 %v4173
      %v4870 = vpop.f32.mrf.mxu0
      %v4871 = vadd.f32 %v4704, %v4870
      %v4872 = vpop.f32.mrf.mxu0
      %4873 = vmatprep.mubr.f32.mxu0 0.0
      %4874 = vmatmul.mubr.f32.gmra.mxu0 %v4176
      %v4875 = vpop.f32.mrf.mxu0
      %v4876 = vadd.f32 %v4705, %v4875
      %v4877 = vpop.f32.mrf.mxu0
      %4878 = vmatprep.mubr.f32.mxu0 0.0
      %4879 = vmatmul.mubr.f32.gmra.mxu0 %v4179
      %v4880 = vpop.f32.mrf.mxu0
      %v4881 = vadd.f32 %v4706, %v4880
      %v4882 = vpop.f32.mrf.mxu0
      %4883 = vmatprep.mubr.f32.mxu0 0.0
      %4884 = vmatmul.mubr.f32.gmra.mxu0 %v4182
      %v4885 = vpop.f32.mrf.mxu0
      %v4886 = vadd.f32 %v4707, %v4885
      %v4887 = vpop.f32.mrf.mxu0
      %4888 = vmatprep.mubr.f32.mxu0 0.0
      %4889 = vmatmul.mubr.f32.gmra.mxu0 %v4185
      %v4890 = vpop.f32.mrf.mxu0
      %v4891 = vadd.f32 %v4708, %v4890
      %v4892 = vpop.f32.mrf.mxu0
      %4893 = vmatprep.mubr.f32.mxu0 0.0
      %4894 = vmatmul.mubr.f32.gmra.mxu0 %v4188
      %v4895 = vpop.f32.mrf.mxu0
      %v4896 = vadd.f32 %v4709, %v4895
      %v4897 = vpop.f32.mrf.mxu0
      %4898 = vmatprep.mubr.f32.mxu0 0.0
      %4899 = vmatmul.mubr.f32.gmra.mxu0 %v4191
      %v4900 = vpop.f32.mrf.mxu0
      %v4901 = vadd.f32 %v4710, %v4900
      %v4902 = vpop.f32.mrf.mxu0
      %4903 = vmatprep.mubr.f32.mxu0 0.0
      %4904 = vmatmul.mubr.f32.gmra.mxu0 %v4194
      %v4905 = vpop.f32.mrf.mxu0
      %v4906 = vadd.f32 %v4711, %v4905
      %v4907 = vpop.f32.mrf.mxu0
      %4908 = vmatprep.mubr.f32.mxu0 0.0
      %4909 = vmatmul.mubr.f32.gmra.mxu0 %v4197
      %v4910 = vpop.f32.mrf.mxu0
      %v4911 = vadd.f32 %v4712, %v4910
      %v4912 = vpop.f32.mrf.mxu0
      %4913 = vmatprep.mubr.f32.mxu0 0.0
      %4914 = vmatmul.mubr.f32.gmra.mxu0 %v4200
      %v4915 = vpop.f32.mrf.mxu0
      %v4916 = vadd.f32 %v4713, %v4915
      %v4917 = vpop.f32.mrf.mxu0
      %4918 = vmatprep.mubr.f32.mxu0 0.0
      %4919 = vmatmul.mubr.f32.gmra.mxu0 %v4203
      %v4920 = vpop.f32.mrf.mxu0
      %v4921 = vadd.f32 %v4714, %v4920
      %v4922 = vpop.f32.mrf.mxu0
      %4923 = vmatprep.mubr.f32.mxu0 0.0
      %4924 = vmatmul.mubr.f32.gmra.mxu0 %v4206
      %v4925 = vpop.f32.mrf.mxu0
      %v4926 = vadd.f32 %v4715, %v4925
      %v4927 = vpop.f32.mrf.mxu0
      %4928 = vmatprep.mubr.f32.mxu0 0.0
      %4929 = vmatmul.mubr.f32.gmra.mxu0 %v4209
      %v4930 = vpop.f32.mrf.mxu0
      %v4931 = vadd.f32 %v4716, %v4930
      %v4932 = vpop.f32.mrf.mxu0
      %4933 = vmatprep.mubr.f32.mxu0 0.0
      %4934 = vmatmul.mubr.f32.gmra.mxu0 %v4212
      %v4935 = vpop.f32.mrf.mxu0
      %v4936 = vadd.f32 %v4717, %v4935
      %v4937 = vpop.f32.mrf.mxu0
      %4938 = vmatprep.mubr.f32.mxu0 0.0
      %4939 = vmatmul.mubr.f32.gmra.mxu0 %v4215
      %v4940 = vpop.f32.mrf.mxu0
      %v4941 = vadd.f32 %v4718, %v4940
      %v4942 = vpop.f32.mrf.mxu0
      %4943 = vdwg.mxu0
      %v4944 = vmul.f32 %v1491, %v4541
      %v4945 = vmul.f32 %v1492, %v4546
      %v4946 = vmul.f32 %v1493, %v4551
      %v4947 = vmul.f32 %v1494, %v4556
      %v4948 = vmul.f32 %v1495, %v4561
      %v4949 = vmul.f32 %v1496, %v4566
      %v4950 = vmul.f32 %v1497, %v4571
      %v4951 = vmul.f32 %v1498, %v4576
      %v4952 = vmul.f32 %v1499, %v4581
      %v4953 = vmul.f32 %v1500, %v4586
      %v4954 = vmul.f32 %v1501, %v4591
      %v4955 = vmul.f32 %v1502, %v4596
      %v4956 = vmul.f32 %v1503, %v4601
      %v4957 = vmul.f32 %v1504, %v4606
      %v4958 = vmul.f32 %v1505, %v4611
      %v4959 = vmul.f32 %v1506, %v4616
      %v4960 = vmul.f32 %v1507, %v4621
      %v4961 = vmul.f32 %v1508, %v4626
      %v4962 = vmul.f32 %v1509, %v4631
      %v4963 = vmul.f32 %v1510, %v4636
      %v4964 = vmul.f32 %v1511, %v4641
      %v4965 = vmul.f32 %v1512, %v4646
      %v4966 = vmul.f32 %v1513, %v4651
      %v4967 = vmul.f32 %v1514, %v4656
      %v4968 = vmul.f32 %v1515, %v4661
      %v4969 = vmul.f32 %v1516, %v4666
      %v4970 = vmul.f32 %v1517, %v4671
      %v4971 = vmul.f32 %v1518, %v4676
      %v4972 = vmul.f32 %v1519, %v4681
      %v4973 = vmul.f32 %v1520, %v4686
      %v4974 = vadd.f32 %v4786, %v4944
      %v4975 = vadd.f32 %v4791, %v4945
      %v4976 = vadd.f32 %v4796, %v4946
      %v4977 = vadd.f32 %v4801, %v4947
      %v4978 = vadd.f32 %v4806, %v4948
      %v4979 = vadd.f32 %v4811, %v4949
      %v4980 = vadd.f32 %v4816, %v4950
      %v4981 = vadd.f32 %v4821, %v4951
      %v4982 = vadd.f32 %v4826, %v4952
      %v4983 = vadd.f32 %v4831, %v4953
      %v4984 = vadd.f32 %v4836, %v4954
      %v4985 = vadd.f32 %v4841, %v4955
      %v4986 = vadd.f32 %v4846, %v4956
      %v4987 = vadd.f32 %v4851, %v4957
      %v4988 = vadd.f32 %v4856, %v4958
      %v4989 = vadd.f32 %v4861, %v4959
      %v4990 = vadd.f32 %v4866, %v4960
      %v4991 = vadd.f32 %v4871, %v4961
      %v4992 = vadd.f32 %v4876, %v4962
      %v4993 = vadd.f32 %v4881, %v4963
      %v4994 = vadd.f32 %v4886, %v4964
      %v4995 = vadd.f32 %v4891, %v4965
      %v4996 = vadd.f32 %v4896, %v4966
      %v4997 = vadd.f32 %v4901, %v4967
      %v4998 = vadd.f32 %v4906, %v4968
      %v4999 = vadd.f32 %v4911, %v4969
      %v5000 = vadd.f32 %v4916, %v4970
      %v5001 = vadd.f32 %v4921, %v4971
      %v5002 = vadd.f32 %v4926, %v4972
      %v5003 = vadd.f32 %v4931, %v4973
      %v5004 = vadd.f32 %v4936, %v3364
      %v5005 = vadd.f32 %v4941, %v3365
      %v5006 = vlaneseq
      %v5007 = vshrl.u32 %v5006, 7
      %v5008 = vsub.s32 1, %v5007
      %v5009 = vrot.slane %v1523, %v5008
      %v5010 = vadd.f32 %v4974, %v5009
      %v5011 = vadd.f32 %v4975, %v5009
      %v5012 = vadd.f32 %v4976, %v5009
      %v5013 = vadd.f32 %v4977, %v5009
      %v5014 = vadd.f32 %v4978, %v5009
      %v5015 = vadd.f32 %v4979, %v5009
      %v5016 = vadd.f32 %v4980, %v5009
      %v5017 = vadd.f32 %v4981, %v5009
      %v5018 = vadd.f32 %v4982, %v5009
      %v5019 = vadd.f32 %v4983, %v5009
      %v5020 = vadd.f32 %v4984, %v5009
      %v5021 = vadd.f32 %v4985, %v5009
      %v5022 = vadd.f32 %v4986, %v5009
      %v5023 = vadd.f32 %v4987, %v5009
      %v5024 = vadd.f32 %v4988, %v5009
      %v5025 = vadd.f32 %v4989, %v5009
      %v5026 = vadd.f32 %v4990, %v5009
      %v5027 = vadd.f32 %v4991, %v5009
      %v5028 = vadd.f32 %v4992, %v5009
      %v5029 = vadd.f32 %v4993, %v5009
      %v5030 = vadd.f32 %v4994, %v5009
      %v5031 = vadd.f32 %v4995, %v5009
      %v5032 = vadd.f32 %v4996, %v5009
      %v5033 = vadd.f32 %v4997, %v5009
      %v5034 = vadd.f32 %v4998, %v5009
      %v5035 = vadd.f32 %v4999, %v5009
      %v5036 = vadd.f32 %v5000, %v5009
      %v5037 = vadd.f32 %v5001, %v5009
      %v5038 = vadd.f32 %v5002, %v5009
      %v5039 = vadd.f32 %v5003, %v5009
      %v5040 = vadd.f32 %v5004, %v5009
      %v5041 = vadd.f32 %v5005, %v5009
      %vm5042 = vcmp.gt.f32.partialorder %v5010, 0.0
      %vm5043 = vcmp.gt.f32.partialorder %v5011, 0.0
      %vm5044 = vcmp.gt.f32.partialorder %v5012, 0.0
      %vm5045 = vcmp.gt.f32.partialorder %v5013, 0.0
      %vm5046 = vcmp.gt.f32.partialorder %v5014, 0.0
      %vm5047 = vcmp.gt.f32.partialorder %v5015, 0.0
      %vm5048 = vcmp.gt.f32.partialorder %v5016, 0.0
      %vm5049 = vcmp.gt.f32.partialorder %v5017, 0.0
      %vm5050 = vcmp.gt.f32.partialorder %v5018, 0.0
      %vm5051 = vcmp.gt.f32.partialorder %v5019, 0.0
      %vm5052 = vcmp.gt.f32.partialorder %v5020, 0.0
      %vm5053 = vcmp.gt.f32.partialorder %v5021, 0.0
      %vm5054 = vcmp.gt.f32.partialorder %v5022, 0.0
      %vm5055 = vcmp.gt.f32.partialorder %v5023, 0.0
      %vm5056 = vcmp.gt.f32.partialorder %v5024, 0.0
      %vm5057 = vcmp.gt.f32.partialorder %v5025, 0.0
      %vm5058 = vcmp.gt.f32.partialorder %v5026, 0.0
      %vm5059 = vcmp.gt.f32.partialorder %v5027, 0.0
      %vm5060 = vcmp.gt.f32.partialorder %v5028, 0.0
      %vm5061 = vcmp.gt.f32.partialorder %v5029, 0.0
      %vm5062 = vcmp.gt.f32.partialorder %v5030, 0.0
      %vm5063 = vcmp.gt.f32.partialorder %v5031, 0.0
      %vm5064 = vcmp.gt.f32.partialorder %v5032, 0.0
      %vm5065 = vcmp.gt.f32.partialorder %v5033, 0.0
      %vm5066 = vcmp.gt.f32.partialorder %v5034, 0.0
      %vm5067 = vcmp.gt.f32.partialorder %v5035, 0.0
      %vm5068 = vcmp.gt.f32.partialorder %v5036, 0.0
      %vm5069 = vcmp.gt.f32.partialorder %v5037, 0.0
      %vm5070 = vcmp.gt.f32.partialorder %v5038, 0.0
      %vm5071 = vcmp.gt.f32.partialorder %v5039, 0.0
      %vm5072 = vcmp.gt.f32.partialorder %v5040, 0.0
      %vm5073 = vcmp.gt.f32.partialorder %v5041, 0.0
      %v5074 = vmul.f32 %v5010, 0.01
      %v5075 = vmul.f32 %v5011, 0.01
      %v5076 = vmul.f32 %v5012, 0.01
      %v5077 = vmul.f32 %v5013, 0.01
      %v5078 = vmul.f32 %v5014, 0.01
      %v5079 = vmul.f32 %v5015, 0.01
      %v5080 = vmul.f32 %v5016, 0.01
      %v5081 = vmul.f32 %v5017, 0.01
      %v5082 = vmul.f32 %v5018, 0.01
      %v5083 = vmul.f32 %v5019, 0.01
      %v5084 = vmul.f32 %v5020, 0.01
      %v5085 = vmul.f32 %v5021, 0.01
      %v5086 = vmul.f32 %v5022, 0.01
      %v5087 = vmul.f32 %v5023, 0.01
      %v5088 = vmul.f32 %v5024, 0.01
      %v5089 = vmul.f32 %v5025, 0.01
      %v5090 = vmul.f32 %v5026, 0.01
      %v5091 = vmul.f32 %v5027, 0.01
      %v5092 = vmul.f32 %v5028, 0.01
      %v5093 = vmul.f32 %v5029, 0.01
      %v5094 = vmul.f32 %v5030, 0.01
      %v5095 = vmul.f32 %v5031, 0.01
      %v5096 = vmul.f32 %v5032, 0.01
      %v5097 = vmul.f32 %v5033, 0.01
      %v5098 = vmul.f32 %v5034, 0.01
      %v5099 = vmul.f32 %v5035, 0.01
      %v5100 = vmul.f32 %v5036, 0.01
      %v5101 = vmul.f32 %v5037, 0.01
      %v5102 = vmul.f32 %v5038, 0.01
      %v5103 = vmul.f32 %v5039, 0.01
      %v5104 = vmul.f32 %v5040, 0.01
      %v5105 = vmul.f32 %v5041, 0.01
      %v5106 = vsel %vm5042, %v5010, %v5074
      %v5107 = vsel %vm5043, %v5011, %v5075
      %v5108 = vsel %vm5044, %v5012, %v5076
      %v5109 = vsel %vm5045, %v5013, %v5077
      %v5110 = vsel %vm5046, %v5014, %v5078
      %v5111 = vsel %vm5047, %v5015, %v5079
      %v5112 = vsel %vm5048, %v5016, %v5080
      %v5113 = vsel %vm5049, %v5017, %v5081
      %v5114 = vsel %vm5050, %v5018, %v5082
      %v5115 = vsel %vm5051, %v5019, %v5083
      %v5116 = vsel %vm5052, %v5020, %v5084
      %v5117 = vsel %vm5053, %v5021, %v5085
      %v5118 = vsel %vm5054, %v5022, %v5086
      %v5119 = vsel %vm5055, %v5023, %v5087
      %v5120 = vsel %vm5056, %v5024, %v5088
      %v5121 = vsel %vm5057, %v5025, %v5089
      %v5122 = vsel %vm5058, %v5026, %v5090
      %v5123 = vsel %vm5059, %v5027, %v5091
      %v5124 = vsel %vm5060, %v5028, %v5092
      %v5125 = vsel %vm5061, %v5029, %v5093
      %v5126 = vsel %vm5062, %v5030, %v5094
      %v5127 = vsel %vm5063, %v5031, %v5095
      %v5128 = vsel %vm5064, %v5032, %v5096
      %v5129 = vsel %vm5065, %v5033, %v5097
      %v5130 = vsel %vm5066, %v5034, %v5098
      %v5131 = vsel %vm5067, %v5035, %v5099
      %v5132 = vsel %vm5068, %v5036, %v5100
      %v5133 = vsel %vm5069, %v5037, %v5101
      %v5134 = vsel %vm5070, %v5038, %v5102
      %v5135 = vsel %vm5071, %v5039, %v5103
      %v5136 = vsel %vm5072, %v5040, %v5104
      %v5137 = vsel %vm5073, %v5041, %v5105
      %v5138 = vld [vmem:[%s3] sm:$0xff]
      %v5139 = vld [vmem:[%s3 + $0x8] sm:$0xff]
      %v5140 = vld [vmem:[%s3 + $0x10] sm:$0xff]
      %v5141 = vld [vmem:[%s3 + $0x18] sm:$0xff]
      %v5142 = vlaneseq
      %v5143 = vshrl.u32 %v5142, 7
      %v5144 = vsub.s32 2, %v5143
      %v5145 = vrot.slane %v1523, %v5144
      %v5147 = vsel %vm4042, %v5106, 0
      %v5150 = vsel %vm4042, %v5107, 0
      %v5153 = vsel %vm4042, %v5108, 0
      %v5156 = vsel %vm4042, %v5109, 0
      %v5159 = vsel %vm4042, %v5110, 0
      %v5162 = vsel %vm4042, %v5111, 0
      %v5165 = vsel %vm4042, %v5112, 0
      %v5168 = vsel %vm4042, %v5113, 0
      %v5171 = vsel %vm4042, %v5114, 0
      %v5174 = vsel %vm4042, %v5115, 0
      %v5177 = vsel %vm4042, %v5116, 0
      %v5180 = vsel %vm4042, %v5117, 0
      %v5183 = vsel %vm4042, %v5118, 0
      %v5186 = vsel %vm4042, %v5119, 0
      %v5189 = vsel %vm4042, %v5120, 0
      %v5192 = vsel %vm4042, %v5121, 0
      %v5195 = vsel %vm4042, %v5122, 0
      %v5198 = vsel %vm4042, %v5123, 0
      %v5201 = vsel %vm4042, %v5124, 0
      %v5204 = vsel %vm4042, %v5125, 0
      %v5207 = vsel %vm4042, %v5126, 0
      %v5210 = vsel %vm4042, %v5127, 0
      %v5213 = vsel %vm4042, %v5128, 0
      %v5216 = vsel %vm4042, %v5129, 0
      %v5219 = vsel %vm4042, %v5130, 0
      %v5222 = vsel %vm4042, %v5131, 0
      %v5225 = vsel %vm4042, %v5132, 0
      %v5228 = vsel %vm4042, %v5133, 0
      %v5231 = vsel %vm4042, %v5134, 0
      %v5234 = vsel %vm4042, %v5135, 0
      %v5237 = vsel %vm4042, %v5136, 0
      %v5240 = vsel %vm4042, %v5137, 0
      %5242 = vmatprep.subr.mxu0 0.0
      %5243 = vmatpush1.msra.mxu0 0.0
      %5244 = vmatprep.subr.mxu0 0.0
      %5245 = vmatpush1.msra.mxu0 0.0
      %5246 = vmatprep.subr.mxu0 0.0
      %5247 = vmatpush1.msra.mxu0 0.0
      %5248 = vmatprep.subr.mxu0 0.0
      %5249 = vmatpush1.msra.mxu0 0.0
      %5250 = vmatprep.subr.mxu0 0.0
      %5251 = vmatpush1.msra.mxu0 0.0
      %5252 = vmatprep.subr.mxu0 0.0
      %5253 = vmatpush1.msra.mxu0 0.0
      %5254 = vmatprep.subr.mxu0 0.0
      %5255 = vmatpush1.msra.mxu0 0.0
      %5256 = vmatprep.subr.mxu0 0.0
      %5257 = vmatpush1.msra.mxu0 0.0
      %5258 = vmatprep.subr.mxu0 0.0
      %5259 = vmatpush1.msra.mxu0 0.0
      %5260 = vmatprep.subr.mxu0 0.0
      %5261 = vmatpush1.msra.mxu0 0.0
      %5262 = vmatprep.subr.mxu0 0.0
      %5263 = vmatpush1.msra.mxu0 0.0
      %5264 = vmatprep.subr.mxu0 0.0
      %5265 = vmatpush1.msra.mxu0 0.0
      %5266 = vmatprep.subr.mxu0 0.0
      %5267 = vmatpush1.msra.mxu0 %v5141
      %5268 = vmatprep.subr.mxu0 0.0
      %5269 = vmatpush1.msra.mxu0 %v5140
      %5270 = vmatprep.subr.mxu0 0.0
      %5271 = vmatpush1.msra.mxu0 %v5139
      %5272 = vmatprep.subr.mxu0 0.0
      %5273 = vmatpush1.msra.mxu0 %v5138
      %5274 = vmatprep.subr.mxu0 0.0
      %5275 = vmatpush2.msra.mxu0 0.0
      %5276 = vmatprep.subr.mxu0 0.0
      %5277 = vmatpush2.msra.mxu0 0.0
      %5278 = vmatprep.subr.mxu0 0.0
      %5279 = vmatpush2.msra.mxu0 0.0
      %5280 = vmatprep.subr.mxu0 0.0
      %5281 = vmatpush2.msra.mxu0 0.0
      %5282 = vmatprep.subr.mxu0 0.0
      %5283 = vmatpush2.msra.mxu0 0.0
      %5284 = vmatprep.subr.mxu0 0.0
      %5285 = vmatpush2.msra.mxu0 0.0
      %5286 = vmatprep.subr.mxu0 0.0
      %5287 = vmatpush2.msra.mxu0 0.0
      %5288 = vmatprep.subr.mxu0 0.0
      %5289 = vmatpush2.msra.mxu0 0.0
      %5290 = vmatprep.subr.mxu0 0.0
      %5291 = vmatpush2.msra.mxu0 0.0
      %5292 = vmatprep.subr.mxu0 0.0
      %5293 = vmatpush2.msra.mxu0 0.0
      %5294 = vmatprep.subr.mxu0 0.0
      %5295 = vmatpush2.msra.mxu0 0.0
      %5296 = vmatprep.subr.mxu0 0.0
      %5297 = vmatpush2.msra.mxu0 0.0
      %5298 = vmatprep.subr.mxu0 0.0
      %5299 = vmatpush2.msra.mxu0 0.0
      %5300 = vmatprep.subr.mxu0 0.0
      %5301 = vmatpush2.msra.mxu0 0.0
      %5302 = vmatprep.subr.mxu0 0.0
      %5303 = vmatpush2.msra.mxu0 0.0
      %5304 = vmatprep.subr.mxu0 0.0
      %5305 = vmatpush2.msra.mxu0 0.0
      %5306 = vmatprep.mubr.f32.mxu0 0.0
      %5307 = vmatmul.mubr.f32.gmra.mxu0 %v5147
      %v5308 = vpop.f32.mrf.mxu0
      %v5309 = vadd.f32 %v5145, %v5308
      %v5310 = vpop.f32.mrf.mxu0
      %5311 = vmatprep.mubr.f32.mxu0 0.0
      %5312 = vmatmul.mubr.f32.gmra.mxu0 %v5150
      %v5313 = vpop.f32.mrf.mxu0
      %v5314 = vadd.f32 %v5145, %v5313
      %v5315 = vpop.f32.mrf.mxu0
      %5316 = vmatprep.mubr.f32.mxu0 0.0
      %5317 = vmatmul.mubr.f32.gmra.mxu0 %v5153
      %v5318 = vpop.f32.mrf.mxu0
      %v5319 = vadd.f32 %v5145, %v5318
      %v5320 = vpop.f32.mrf.mxu0
      %5321 = vmatprep.mubr.f32.mxu0 0.0
      %5322 = vmatmul.mubr.f32.gmra.mxu0 %v5156
      %v5323 = vpop.f32.mrf.mxu0
      %v5324 = vadd.f32 %v5145, %v5323
      %v5325 = vpop.f32.mrf.mxu0
      %5326 = vmatprep.mubr.f32.mxu0 0.0
      %5327 = vmatmul.mubr.f32.gmra.mxu0 %v5159
      %v5328 = vpop.f32.mrf.mxu0
      %v5329 = vadd.f32 %v5145, %v5328
      %v5330 = vpop.f32.mrf.mxu0
      %5331 = vmatprep.mubr.f32.mxu0 0.0
      %5332 = vmatmul.mubr.f32.gmra.mxu0 %v5162
      %v5333 = vpop.f32.mrf.mxu0
      %v5334 = vadd.f32 %v5145, %v5333
      %v5335 = vpop.f32.mrf.mxu0
      %5336 = vmatprep.mubr.f32.mxu0 0.0
      %5337 = vmatmul.mubr.f32.gmra.mxu0 %v5165
      %v5338 = vpop.f32.mrf.mxu0
      %v5339 = vadd.f32 %v5145, %v5338
      %v5340 = vpop.f32.mrf.mxu0
      %5341 = vmatprep.mubr.f32.mxu0 0.0
      %5342 = vmatmul.mubr.f32.gmra.mxu0 %v5168
      %v5343 = vpop.f32.mrf.mxu0
      %v5344 = vadd.f32 %v5145, %v5343
      %v5345 = vpop.f32.mrf.mxu0
      %5346 = vmatprep.mubr.f32.mxu0 0.0
      %5347 = vmatmul.mubr.f32.gmra.mxu0 %v5171
      %v5348 = vpop.f32.mrf.mxu0
      %v5349 = vadd.f32 %v5145, %v5348
      %v5350 = vpop.f32.mrf.mxu0
      %5351 = vmatprep.mubr.f32.mxu0 0.0
      %5352 = vmatmul.mubr.f32.gmra.mxu0 %v5174
      %v5353 = vpop.f32.mrf.mxu0
      %v5354 = vadd.f32 %v5145, %v5353
      %v5355 = vpop.f32.mrf.mxu0
      %5356 = vmatprep.mubr.f32.mxu0 0.0
      %5357 = vmatmul.mubr.f32.gmra.mxu0 %v5177
      %v5358 = vpop.f32.mrf.mxu0
      %v5359 = vadd.f32 %v5145, %v5358
      %v5360 = vpop.f32.mrf.mxu0
      %5361 = vmatprep.mubr.f32.mxu0 0.0
      %5362 = vmatmul.mubr.f32.gmra.mxu0 %v5180
      %v5363 = vpop.f32.mrf.mxu0
      %v5364 = vadd.f32 %v5145, %v5363
      %v5365 = vpop.f32.mrf.mxu0
      %5366 = vmatprep.mubr.f32.mxu0 0.0
      %5367 = vmatmul.mubr.f32.gmra.mxu0 %v5183
      %v5368 = vpop.f32.mrf.mxu0
      %v5369 = vadd.f32 %v5145, %v5368
      %v5370 = vpop.f32.mrf.mxu0
      %5371 = vmatprep.mubr.f32.mxu0 0.0
      %5372 = vmatmul.mubr.f32.gmra.mxu0 %v5186
      %v5373 = vpop.f32.mrf.mxu0
      %v5374 = vadd.f32 %v5145, %v5373
      %v5375 = vpop.f32.mrf.mxu0
      %5376 = vmatprep.mubr.f32.mxu0 0.0
      %5377 = vmatmul.mubr.f32.gmra.mxu0 %v5189
      %v5378 = vpop.f32.mrf.mxu0
      %v5379 = vadd.f32 %v5145, %v5378
      %v5380 = vpop.f32.mrf.mxu0
      %5381 = vmatprep.mubr.f32.mxu0 0.0
      %5382 = vmatmul.mubr.f32.gmra.mxu0 %v5192
      %v5383 = vpop.f32.mrf.mxu0
      %v5384 = vadd.f32 %v5145, %v5383
      %v5385 = vpop.f32.mrf.mxu0
      %5386 = vmatprep.mubr.f32.mxu0 0.0
      %5387 = vmatmul.mubr.f32.gmra.mxu0 %v5195
      %v5388 = vpop.f32.mrf.mxu0
      %v5389 = vadd.f32 %v5145, %v5388
      %v5390 = vpop.f32.mrf.mxu0
      %5391 = vmatprep.mubr.f32.mxu0 0.0
      %5392 = vmatmul.mubr.f32.gmra.mxu0 %v5198
      %v5393 = vpop.f32.mrf.mxu0
      %v5394 = vadd.f32 %v5145, %v5393
      %v5395 = vpop.f32.mrf.mxu0
      %5396 = vmatprep.mubr.f32.mxu0 0.0
      %5397 = vmatmul.mubr.f32.gmra.mxu0 %v5201
      %v5398 = vpop.f32.mrf.mxu0
      %v5399 = vadd.f32 %v5145, %v5398
      %v5400 = vpop.f32.mrf.mxu0
      %5401 = vmatprep.mubr.f32.mxu0 0.0
      %5402 = vmatmul.mubr.f32.gmra.mxu0 %v5204
      %v5403 = vpop.f32.mrf.mxu0
      %v5404 = vadd.f32 %v5145, %v5403
      %v5405 = vpop.f32.mrf.mxu0
      %5406 = vmatprep.mubr.f32.mxu0 0.0
      %5407 = vmatmul.mubr.f32.gmra.mxu0 %v5207
      %v5408 = vpop.f32.mrf.mxu0
      %v5409 = vadd.f32 %v5145, %v5408
      %v5410 = vpop.f32.mrf.mxu0
      %5411 = vmatprep.mubr.f32.mxu0 0.0
      %5412 = vmatmul.mubr.f32.gmra.mxu0 %v5210
      %v5413 = vpop.f32.mrf.mxu0
      %v5414 = vadd.f32 %v5145, %v5413
      %v5415 = vpop.f32.mrf.mxu0
      %5416 = vmatprep.mubr.f32.mxu0 0.0
      %5417 = vmatmul.mubr.f32.gmra.mxu0 %v5213
      %v5418 = vpop.f32.mrf.mxu0
      %v5419 = vadd.f32 %v5145, %v5418
      %v5420 = vpop.f32.mrf.mxu0
      %5421 = vmatprep.mubr.f32.mxu0 0.0
      %5422 = vmatmul.mubr.f32.gmra.mxu0 %v5216
      %v5423 = vpop.f32.mrf.mxu0
      %v5424 = vadd.f32 %v5145, %v5423
      %v5425 = vpop.f32.mrf.mxu0
      %5426 = vmatprep.mubr.f32.mxu0 0.0
      %5427 = vmatmul.mubr.f32.gmra.mxu0 %v5219
      %v5428 = vpop.f32.mrf.mxu0
      %v5429 = vadd.f32 %v5145, %v5428
      %v5430 = vpop.f32.mrf.mxu0
      %5431 = vmatprep.mubr.f32.mxu0 0.0
      %5432 = vmatmul.mubr.f32.gmra.mxu0 %v5222
      %v5433 = vpop.f32.mrf.mxu0
      %v5434 = vadd.f32 %v5145, %v5433
      %v5435 = vpop.f32.mrf.mxu0
      %5436 = vmatprep.mubr.f32.mxu0 0.0
      %5437 = vmatmul.mubr.f32.gmra.mxu0 %v5225
      %v5438 = vpop.f32.mrf.mxu0
      %v5439 = vadd.f32 %v5145, %v5438
      %v5440 = vpop.f32.mrf.mxu0
      %5441 = vmatprep.mubr.f32.mxu0 0.0
      %5442 = vmatmul.mubr.f32.gmra.mxu0 %v5228
      %v5443 = vpop.f32.mrf.mxu0
      %v5444 = vadd.f32 %v5145, %v5443
      %v5445 = vpop.f32.mrf.mxu0
      %5446 = vmatprep.mubr.f32.mxu0 0.0
      %5447 = vmatmul.mubr.f32.gmra.mxu0 %v5231
      %v5448 = vpop.f32.mrf.mxu0
      %v5449 = vadd.f32 %v5145, %v5448
      %v5450 = vpop.f32.mrf.mxu0
      %5451 = vmatprep.mubr.f32.mxu0 0.0
      %5452 = vmatmul.mubr.f32.gmra.mxu0 %v5234
      %v5453 = vpop.f32.mrf.mxu0
      %v5454 = vadd.f32 %v5145, %v5453
      %v5455 = vpop.f32.mrf.mxu0
      %5456 = vmatprep.mubr.f32.mxu0 0.0
      %5457 = vmatmul.mubr.f32.gmra.mxu0 %v5237
      %v5458 = vpop.f32.mrf.mxu0
      %v5459 = vadd.f32 %v5145, %v5458
      %v5460 = vpop.f32.mrf.mxu0
      %5461 = vmatprep.mubr.f32.mxu0 0.0
      %5462 = vmatmul.mubr.f32.gmra.mxu0 %v5240
      %v5463 = vpop.f32.mrf.mxu0
      %v5464 = vadd.f32 %v5145, %v5463
      %v5465 = vpop.f32.mrf.mxu0
      %5466 = vdwg.mxu0
      %v5467 = vmul.f32 %v5309, 0.5
      %v5468 = vmul.f32 %v5314, 0.5
      %v5469 = vmul.f32 %v5319, 0.5
      %v5470 = vmul.f32 %v5324, 0.5
      %v5471 = vmul.f32 %v5329, 0.5
      %v5472 = vmul.f32 %v5334, 0.5
      %v5473 = vmul.f32 %v5339, 0.5
      %v5474 = vmul.f32 %v5344, 0.5
      %v5475 = vmul.f32 %v5349, 0.5
      %v5476 = vmul.f32 %v5354, 0.5
      %v5477 = vmul.f32 %v5359, 0.5
      %v5478 = vmul.f32 %v5364, 0.5
      %v5479 = vmul.f32 %v5369, 0.5
      %v5480 = vmul.f32 %v5374, 0.5
      %v5481 = vmul.f32 %v5379, 0.5
      %v5482 = vmul.f32 %v5384, 0.5
      %v5483 = vmul.f32 %v5389, 0.5
      %v5484 = vmul.f32 %v5394, 0.5
      %v5485 = vmul.f32 %v5399, 0.5
      %v5486 = vmul.f32 %v5404, 0.5
      %v5487 = vmul.f32 %v5409, 0.5
      %v5488 = vmul.f32 %v5414, 0.5
      %v5489 = vmul.f32 %v5419, 0.5
      %v5490 = vmul.f32 %v5424, 0.5
      %v5491 = vmul.f32 %v5429, 0.5
      %v5492 = vmul.f32 %v5434, 0.5
      %v5493 = vmul.f32 %v5439, 0.5
      %v5494 = vmul.f32 %v5444, 0.5
      %v5495 = vmul.f32 %v5449, 0.5
      %v5496 = vmul.f32 %v5454, 0.5
      %v5497 = vmul.f32 %v5459, 0.5
      %v5498 = vmul.f32 %v5464, 0.5
      %v5499 = vtanh.pop %v5467
      %v5500 = vtanh.pop %v5468
      %v5501 = vtanh.pop %v5469
      %v5502 = vtanh.pop %v5470
      %v5503 = vtanh.pop %v5471
      %v5504 = vtanh.pop %v5472
      %v5505 = vtanh.pop %v5473
      %v5506 = vtanh.pop %v5474
      %v5507 = vtanh.pop %v5475
      %v5508 = vtanh.pop %v5476
      %v5509 = vtanh.pop %v5477
      %v5510 = vtanh.pop %v5478
      %v5511 = vtanh.pop %v5479
      %v5512 = vtanh.pop %v5480
      %v5513 = vtanh.pop %v5481
      %v5514 = vtanh.pop %v5482
      %v5515 = vtanh.pop %v5483
      %v5516 = vtanh.pop %v5484
      %v5517 = vtanh.pop %v5485
      %v5518 = vtanh.pop %v5486
      %v5519 = vtanh.pop %v5487
      %v5520 = vtanh.pop %v5488
      %v5521 = vtanh.pop %v5489
      %v5522 = vtanh.pop %v5490
      %v5523 = vtanh.pop %v5491
      %v5524 = vtanh.pop %v5492
      %v5525 = vtanh.pop %v5493
      %v5526 = vtanh.pop %v5494
      %v5527 = vtanh.pop %v5495
      %v5528 = vtanh.pop %v5496
      %v5529 = vtanh.pop %v5497
      %v5530 = vtanh.pop %v5498
      %v5531 = vadd.f32 %v5499, 1.0
      %v5532 = vadd.f32 %v5500, 1.0
      %v5533 = vadd.f32 %v5501, 1.0
      %v5534 = vadd.f32 %v5502, 1.0
      %v5535 = vadd.f32 %v5503, 1.0
      %v5536 = vadd.f32 %v5504, 1.0
      %v5537 = vadd.f32 %v5505, 1.0
      %v5538 = vadd.f32 %v5506, 1.0
      %v5539 = vadd.f32 %v5507, 1.0
      %v5540 = vadd.f32 %v5508, 1.0
      %v5541 = vadd.f32 %v5509, 1.0
      %v5542 = vadd.f32 %v5510, 1.0
      %v5543 = vadd.f32 %v5511, 1.0
      %v5544 = vadd.f32 %v5512, 1.0
      %v5545 = vadd.f32 %v5513, 1.0
      %v5546 = vadd.f32 %v5514, 1.0
      %v5547 = vadd.f32 %v5515, 1.0
      %v5548 = vadd.f32 %v5516, 1.0
      %v5549 = vadd.f32 %v5517, 1.0
      %v5550 = vadd.f32 %v5518, 1.0
      %v5551 = vadd.f32 %v5519, 1.0
      %v5552 = vadd.f32 %v5520, 1.0
      %v5553 = vadd.f32 %v5521, 1.0
      %v5554 = vadd.f32 %v5522, 1.0
      %v5555 = vadd.f32 %v5523, 1.0
      %v5556 = vadd.f32 %v5524, 1.0
      %v5557 = vadd.f32 %v5525, 1.0
      %v5558 = vadd.f32 %v5526, 1.0
      %v5559 = vadd.f32 %v5527, 1.0
      %v5560 = vadd.f32 %v5528, 1.0
      %v5561 = vadd.f32 %v5529, 1.0
      %v5562 = vadd.f32 %v5530, 1.0
      %v5563 = vmul.f32 %v5531, 0.5
      %v5564 = vmul.f32 %v5532, 0.5
      %v5565 = vmul.f32 %v5533, 0.5
      %v5566 = vmul.f32 %v5534, 0.5
      %v5567 = vmul.f32 %v5535, 0.5
      %v5568 = vmul.f32 %v5536, 0.5
      %v5569 = vmul.f32 %v5537, 0.5
      %v5570 = vmul.f32 %v5538, 0.5
      %v5571 = vmul.f32 %v5539, 0.5
      %v5572 = vmul.f32 %v5540, 0.5
      %v5573 = vmul.f32 %v5541, 0.5
      %v5574 = vmul.f32 %v5542, 0.5
      %v5575 = vmul.f32 %v5543, 0.5
      %v5576 = vmul.f32 %v5544, 0.5
      %v5577 = vmul.f32 %v5545, 0.5
      %v5578 = vmul.f32 %v5546, 0.5
      %v5579 = vmul.f32 %v5547, 0.5
      %v5580 = vmul.f32 %v5548, 0.5
      %v5581 = vmul.f32 %v5549, 0.5
      %v5582 = vmul.f32 %v5550, 0.5
      %v5583 = vmul.f32 %v5551, 0.5
      %v5584 = vmul.f32 %v5552, 0.5
      %v5585 = vmul.f32 %v5553, 0.5
      %v5586 = vmul.f32 %v5554, 0.5
      %v5587 = vmul.f32 %v5555, 0.5
      %v5588 = vmul.f32 %v5556, 0.5
      %v5589 = vmul.f32 %v5557, 0.5
      %v5590 = vmul.f32 %v5558, 0.5
      %v5591 = vmul.f32 %v5559, 0.5
      %v5592 = vmul.f32 %v5560, 0.5
      %v5593 = vmul.f32 %v5561, 0.5
      %v5594 = vmul.f32 %v5562, 0.5
      %v5595 = vmul.f32 %v5563, %v306
      %v5596 = vmul.f32 %v5564, %v307
      %v5597 = vmul.f32 %v5565, %v308
      %v5598 = vmul.f32 %v5566, %v309
      %v5599 = vmul.f32 %v5567, %v310
      %v5600 = vmul.f32 %v5568, %v311
      %v5601 = vmul.f32 %v5569, %v312
      %v5602 = vmul.f32 %v5570, %v313
      %v5603 = vmul.f32 %v5571, %v314
      %v5604 = vmul.f32 %v5572, %v315
      %v5605 = vmul.f32 %v5573, %v316
      %v5606 = vmul.f32 %v5574, %v317
      %v5607 = vmul.f32 %v5575, %v318
      %v5608 = vmul.f32 %v5576, %v319
      %v5609 = vmul.f32 %v5577, %v320
      %v5610 = vmul.f32 %v5578, %v321
      %v5611 = vmul.f32 %v5579, %v322
      %v5612 = vmul.f32 %v5580, %v323
      %v5613 = vmul.f32 %v5581, %v324
      %v5614 = vmul.f32 %v5582, %v325
      %v5615 = vmul.f32 %v5583, %v326
      %v5616 = vmul.f32 %v5584, %v327
      %v5617 = vmul.f32 %v5585, %v328
      %v5618 = vmul.f32 %v5586, %v329
      %v5619 = vmul.f32 %v5587, %v330
      %v5620 = vmul.f32 %v5588, %v331
      %v5621 = vmul.f32 %v5589, %v332
      %v5622 = vmul.f32 %v5590, %v333
      %v5623 = vmul.f32 %v5591, %v334
      %v5624 = vmul.f32 %v5592, %v335
      %v5625 = vmul.f32 %v5593, %v336
      %v5626 = vmul.f32 %v5594, %v337
      %v5659 = vrot.slane %v5595, 7
      %v5660 = vrot.slane %v5596, 7
      %v5661 = vsel %vm1556, %v5659, %v5660
      %v5662 = vrot.slane %v5597, 7
      %v5663 = vsel %vm1556, %v5660, %v5662
      %v5664 = vrot.slane %v5598, 7
      %v5665 = vsel %vm1556, %v5662, %v5664
      %v5666 = vrot.slane %v5599, 7
      %v5667 = vsel %vm1556, %v5664, %v5666
      %v5668 = vrot.slane %v5600, 7
      %v5669 = vsel %vm1556, %v5666, %v5668
      %v5670 = vrot.slane %v5601, 7
      %v5671 = vsel %vm1556, %v5668, %v5670
      %v5672 = vrot.slane %v5602, 7
      %v5673 = vsel %vm1556, %v5670, %v5672
      %v5674 = vrot.slane %v5603, 7
      %v5675 = vsel %vm1556, %v5672, %v5674
      %v5676 = vrot.slane %v5604, 7
      %v5677 = vsel %vm1556, %v5674, %v5676
      %v5678 = vrot.slane %v5605, 7
      %v5679 = vsel %vm1556, %v5676, %v5678
      %v5680 = vrot.slane %v5606, 7
      %v5681 = vsel %vm1556, %v5678, %v5680
      %v5682 = vrot.slane %v5607, 7
      %v5683 = vsel %vm1556, %v5680, %v5682
      %v5684 = vrot.slane %v5608, 7
      %v5685 = vsel %vm1556, %v5682, %v5684
      %v5686 = vrot.slane %v5609, 7
      %v5687 = vsel %vm1556, %v5684, %v5686
      %v5688 = vrot.slane %v5610, 7
      %v5689 = vsel %vm1556, %v5686, %v5688
      %v5690 = vrot.slane %v5611, 7
      %v5691 = vsel %vm1556, %v5688, %v5690
      %v5692 = vrot.slane %v5612, 7
      %v5693 = vsel %vm1556, %v5690, %v5692
      %v5694 = vrot.slane %v5613, 7
      %v5695 = vsel %vm1556, %v5692, %v5694
      %v5696 = vrot.slane %v5614, 7
      %v5697 = vsel %vm1556, %v5694, %v5696
      %v5698 = vrot.slane %v5615, 7
      %v5699 = vsel %vm1556, %v5696, %v5698
      %v5700 = vrot.slane %v5616, 7
      %v5701 = vsel %vm1556, %v5698, %v5700
      %v5702 = vrot.slane %v5617, 7
      %v5703 = vsel %vm1556, %v5700, %v5702
      %v5704 = vrot.slane %v5618, 7
      %v5705 = vsel %vm1556, %v5702, %v5704
      %v5706 = vrot.slane %v5619, 7
      %v5707 = vsel %vm1556, %v5704, %v5706
      %v5708 = vrot.slane %v5620, 7
      %v5709 = vsel %vm1556, %v5706, %v5708
      %v5710 = vrot.slane %v5621, 7
      %v5711 = vsel %vm1556, %v5708, %v5710
      %v5712 = vrot.slane %v5622, 7
      %v5713 = vsel %vm1556, %v5710, %v5712
      %v5714 = vrot.slane %v5623, 7
      %v5715 = vsel %vm1556, %v5712, %v5714
      %v5716 = vrot.slane %v5624, 7
      %v5717 = vsel %vm1556, %v5714, %v5716
      %v5718 = vrot.slane %v5625, 7
      %v5719 = vsel %vm1556, %v5716, %v5718
      %v5720 = vrot.slane %v5626, 7
      %v5721 = vsel %vm1556, %v5718, %v5720
      %v5754 = vsel %vm1556, 0.0, %v5659
      %v5755 = vmul.f32 %v5754, %v1203
      %v5756 = vmul.f32 %v5661, %v1204
      %v5757 = vmul.f32 %v5663, %v1205
      %v5758 = vmul.f32 %v5665, %v1206
      %v5759 = vmul.f32 %v5667, %v1207
      %v5760 = vmul.f32 %v5669, %v1208
      %v5761 = vmul.f32 %v5671, %v1209
      %v5762 = vmul.f32 %v5673, %v1210
      %v5763 = vmul.f32 %v5675, %v1211
      %v5764 = vmul.f32 %v5677, %v1212
      %v5765 = vmul.f32 %v5679, %v1213
      %v5766 = vmul.f32 %v5681, %v1214
      %v5767 = vmul.f32 %v5683, %v1215
      %v5768 = vmul.f32 %v5685, %v1216
      %v5769 = vmul.f32 %v5687, %v1217
      %v5770 = vmul.f32 %v5689, %v1218
      %v5771 = vmul.f32 %v5691, %v1219
      %v5772 = vmul.f32 %v5693, %v1220
      %v5773 = vmul.f32 %v5695, %v1221
      %v5774 = vmul.f32 %v5697, %v1222
      %v5775 = vmul.f32 %v5699, %v1223
      %v5776 = vmul.f32 %v5701, %v1224
      %v5777 = vmul.f32 %v5703, %v1225
      %v5778 = vmul.f32 %v5705, %v1226
      %v5779 = vmul.f32 %v5707, %v1227
      %v5780 = vmul.f32 %v5709, %v1228
      %v5781 = vmul.f32 %v5711, %v1229
      %v5782 = vmul.f32 %v5713, %v1230
      %v5783 = vmul.f32 %v5715, %v1231
      %v5784 = vmul.f32 %v5717, %v1232
      %v5785 = vmul.f32 %v5719, %v1233
      %v5786 = vmul.f32 %v5721, %v1234
      %v5787 = vrot.slane %v5595, 1
      %v5788 = vrot.slane %v5596, 1
      %v5789 = vsel %vm1685, %v5787, %v5788
      %v5790 = vrot.slane %v5597, 1
      %v5791 = vsel %vm1685, %v5788, %v5790
      %v5792 = vrot.slane %v5598, 1
      %v5793 = vsel %vm1685, %v5790, %v5792
      %v5794 = vrot.slane %v5599, 1
      %v5795 = vsel %vm1685, %v5792, %v5794
      %v5796 = vrot.slane %v5600, 1
      %v5797 = vsel %vm1685, %v5794, %v5796
      %v5798 = vrot.slane %v5601, 1
      %v5799 = vsel %vm1685, %v5796, %v5798
      %v5800 = vrot.slane %v5602, 1
      %v5801 = vsel %vm1685, %v5798, %v5800
      %v5802 = vrot.slane %v5603, 1
      %v5803 = vsel %vm1685, %v5800, %v5802
      %v5804 = vrot.slane %v5604, 1
      %v5805 = vsel %vm1685, %v5802, %v5804
      %v5806 = vrot.slane %v5605, 1
      %v5807 = vsel %vm1685, %v5804, %v5806
      %v5808 = vrot.slane %v5606, 1
      %v5809 = vsel %vm1685, %v5806, %v5808
      %v5810 = vrot.slane %v5607, 1
      %v5811 = vsel %vm1685, %v5808, %v5810
      %v5812 = vrot.slane %v5608, 1
      %v5813 = vsel %vm1685, %v5810, %v5812
      %v5814 = vrot.slane %v5609, 1
      %v5815 = vsel %vm1685, %v5812, %v5814
      %v5816 = vrot.slane %v5610, 1
      %v5817 = vsel %vm1685, %v5814, %v5816
      %v5818 = vrot.slane %v5611, 1
      %v5819 = vsel %vm1685, %v5816, %v5818
      %v5820 = vrot.slane %v5612, 1
      %v5821 = vsel %vm1685, %v5818, %v5820
      %v5822 = vrot.slane %v5613, 1
      %v5823 = vsel %vm1685, %v5820, %v5822
      %v5824 = vrot.slane %v5614, 1
      %v5825 = vsel %vm1685, %v5822, %v5824
      %v5826 = vrot.slane %v5615, 1
      %v5827 = vsel %vm1685, %v5824, %v5826
      %v5828 = vrot.slane %v5616, 1
      %v5829 = vsel %vm1685, %v5826, %v5828
      %v5830 = vrot.slane %v5617, 1
      %v5831 = vsel %vm1685, %v5828, %v5830
      %v5832 = vrot.slane %v5618, 1
      %v5833 = vsel %vm1685, %v5830, %v5832
      %v5834 = vrot.slane %v5619, 1
      %v5835 = vsel %vm1685, %v5832, %v5834
      %v5836 = vrot.slane %v5620, 1
      %v5837 = vsel %vm1685, %v5834, %v5836
      %v5838 = vrot.slane %v5621, 1
      %v5839 = vsel %vm1685, %v5836, %v5838
      %v5840 = vrot.slane %v5622, 1
      %v5841 = vsel %vm1685, %v5838, %v5840
      %v5842 = vrot.slane %v5623, 1
      %v5843 = vsel %vm1685, %v5840, %v5842
      %v5844 = vrot.slane %v5624, 1
      %v5845 = vsel %vm1685, %v5842, %v5844
      %v5846 = vrot.slane %v5625, 1
      %v5847 = vsel %vm1685, %v5844, %v5846
      %v5848 = vrot.slane %v5626, 1
      %v5849 = vsel %vm1685, %v5846, %v5848
      %v5882 = vsel %vm1685, %v5848, 0.0
      %v5883 = vmul.f32 %v5789, %v1299
      %v5884 = vmul.f32 %v5791, %v1300
      %v5885 = vmul.f32 %v5793, %v1301
      %v5886 = vmul.f32 %v5795, %v1302
      %v5887 = vmul.f32 %v5797, %v1303
      %v5888 = vmul.f32 %v5799, %v1304
      %v5889 = vmul.f32 %v5801, %v1305
      %v5890 = vmul.f32 %v5803, %v1306
      %v5891 = vmul.f32 %v5805, %v1307
      %v5892 = vmul.f32 %v5807, %v1308
      %v5893 = vmul.f32 %v5809, %v1309
      %v5894 = vmul.f32 %v5811, %v1310
      %v5895 = vmul.f32 %v5813, %v1311
      %v5896 = vmul.f32 %v5815, %v1312
      %v5897 = vmul.f32 %v5817, %v1313
      %v5898 = vmul.f32 %v5819, %v1314
      %v5899 = vmul.f32 %v5821, %v1315
      %v5900 = vmul.f32 %v5823, %v1316
      %v5901 = vmul.f32 %v5825, %v1317
      %v5902 = vmul.f32 %v5827, %v1318
      %v5903 = vmul.f32 %v5829, %v1319
      %v5904 = vmul.f32 %v5831, %v1320
      %v5905 = vmul.f32 %v5833, %v1321
      %v5906 = vmul.f32 %v5835, %v1322
      %v5907 = vmul.f32 %v5837, %v1323
      %v5908 = vmul.f32 %v5839, %v1324
      %v5909 = vmul.f32 %v5841, %v1325
      %v5910 = vmul.f32 %v5843, %v1326
      %v5911 = vmul.f32 %v5845, %v1327
      %v5912 = vmul.f32 %v5847, %v1328
      %v5913 = vmul.f32 %v5849, %v1329
      %v5914 = vmul.f32 %v5882, %v1330
      %v5915 = vld [vmem:[%s4] sm:$0xff]
      %v5916 = vld [vmem:[%s4 + $0x8] sm:$0xff]
      %v5917 = vld [vmem:[%s4 + $0x10] sm:$0xff]
      %v5918 = vld [vmem:[%s4 + $0x18] sm:$0xff]
      %v5919 = vld [vmem:[%s4 + $0x20] sm:$0xff]
      %v5920 = vld [vmem:[%s4 + $0x28] sm:$0xff]
      %v5921 = vld [vmem:[%s4 + $0x30] sm:$0xff]
      %v5922 = vld [vmem:[%s4 + $0x38] sm:$0xff]
      %v5923 = vld [vmem:[%s4 + $0x40] sm:$0xff]
      %v5924 = vld [vmem:[%s4 + $0x48] sm:$0xff]
      %v5925 = vld [vmem:[%s4 + $0x50] sm:$0xff]
      %v5926 = vld [vmem:[%s4 + $0x58] sm:$0xff]
      %v5927 = vld [vmem:[%s4 + $0x60] sm:$0xff]
      %v5928 = vld [vmem:[%s4 + $0x68] sm:$0xff]
      %v5929 = vld [vmem:[%s4 + $0x70] sm:$0xff]
      %v5930 = vld [vmem:[%s4 + $0x78] sm:$0xff]
      %v5931 = vld [vmem:[%s4 + $0x80] sm:$0xff]
      %v5932 = vld [vmem:[%s4 + $0x88] sm:$0xff]
      %v5933 = vld [vmem:[%s4 + $0x90] sm:$0xff]
      %v5934 = vld [vmem:[%s4 + $0x98] sm:$0xff]
      %v5935 = vld [vmem:[%s4 + $0xa0] sm:$0xff]
      %v5936 = vld [vmem:[%s4 + $0xa8] sm:$0xff]
      %v5937 = vld [vmem:[%s4 + $0xb0] sm:$0xff]
      %v5938 = vld [vmem:[%s4 + $0xb8] sm:$0xff]
      %v5939 = vld [vmem:[%s4 + $0xc0] sm:$0xff]
      %v5940 = vld [vmem:[%s4 + $0xc8] sm:$0xff]
      %v5941 = vld [vmem:[%s4 + $0xd0] sm:$0xff]
      %v5942 = vld [vmem:[%s4 + $0xd8] sm:$0xff]
      %v5943 = vld [vmem:[%s4 + $0xe0] sm:$0xff]
      %v5944 = vld [vmem:[%s4 + $0xe8] sm:$0xff]
      %v5945 = vld [vmem:[%s4 + $0xf0] sm:$0xff]
      %v5946 = vld [vmem:[%s4 + $0xf8] sm:$0xff]
      %v5947 = vld [vmem:[%s4 + $0x100] sm:$0xff]
      %v5948 = vld [vmem:[%s4 + $0x108] sm:$0xff]
      %v5949 = vld [vmem:[%s4 + $0x110] sm:$0xff]
      %v5950 = vld [vmem:[%s4 + $0x118] sm:$0xff]
      %v5951 = vld [vmem:[%s4 + $0x120] sm:$0xff]
      %v5952 = vld [vmem:[%s4 + $0x128] sm:$0xff]
      %v5953 = vld [vmem:[%s4 + $0x130] sm:$0xff]
      %v5954 = vld [vmem:[%s4 + $0x138] sm:$0xff]
      %v5955 = vld [vmem:[%s4 + $0x140] sm:$0xff]
      %v5956 = vld [vmem:[%s4 + $0x148] sm:$0xff]
      %v5957 = vld [vmem:[%s4 + $0x150] sm:$0xff]
      %v5958 = vld [vmem:[%s4 + $0x158] sm:$0xff]
      %v5959 = vld [vmem:[%s4 + $0x160] sm:$0xff]
      %v5960 = vld [vmem:[%s4 + $0x168] sm:$0xff]
      %v5961 = vld [vmem:[%s4 + $0x170] sm:$0xff]
      %v5962 = vld [vmem:[%s4 + $0x178] sm:$0xff]
      %5963 = vmatprep.subr.mxu0 0.0
      %5964 = vmatpush1.msra.mxu0 %v5930
      %5965 = vmatprep.subr.mxu0 0.0
      %5966 = vmatpush1.msra.mxu0 %v5929
      %5967 = vmatprep.subr.mxu0 0.0
      %5968 = vmatpush1.msra.mxu0 %v5928
      %5969 = vmatprep.subr.mxu0 0.0
      %5970 = vmatpush1.msra.mxu0 %v5927
      %5971 = vmatprep.subr.mxu0 0.0
      %5972 = vmatpush1.msra.mxu0 %v5926
      %5973 = vmatprep.subr.mxu0 0.0
      %5974 = vmatpush1.msra.mxu0 %v5925
      %5975 = vmatprep.subr.mxu0 0.0
      %5976 = vmatpush1.msra.mxu0 %v5924
      %5977 = vmatprep.subr.mxu0 0.0
      %5978 = vmatpush1.msra.mxu0 %v5923
      %5979 = vmatprep.subr.mxu0 0.0
      %5980 = vmatpush1.msra.mxu0 %v5922
      %5981 = vmatprep.subr.mxu0 0.0
      %5982 = vmatpush1.msra.mxu0 %v5921
      %5983 = vmatprep.subr.mxu0 0.0
      %5984 = vmatpush1.msra.mxu0 %v5920
      %5985 = vmatprep.subr.mxu0 0.0
      %5986 = vmatpush1.msra.mxu0 %v5919
      %5987 = vmatprep.subr.mxu0 0.0
      %5988 = vmatpush1.msra.mxu0 %v5918
      %5989 = vmatprep.subr.mxu0 0.0
      %5990 = vmatpush1.msra.mxu0 %v5917
      %5991 = vmatprep.subr.mxu0 0.0
      %5992 = vmatpush1.msra.mxu0 %v5916
      %5993 = vmatprep.subr.mxu0 0.0
      %5994 = vmatpush1.msra.mxu0 %v5915
      %5995 = vmatprep.subr.mxu0 0.0
      %5996 = vmatpush2.msra.mxu0 %v5946
      %5997 = vmatprep.subr.mxu0 0.0
      %5998 = vmatpush2.msra.mxu0 %v5945
      %5999 = vmatprep.subr.mxu0 0.0
      %6000 = vmatpush2.msra.mxu0 %v5944
      %6001 = vmatprep.subr.mxu0 0.0
      %6002 = vmatpush2.msra.mxu0 %v5943
      %6003 = vmatprep.subr.mxu0 0.0
      %6004 = vmatpush2.msra.mxu0 %v5942
      %6005 = vmatprep.subr.mxu0 0.0
      %6006 = vmatpush2.msra.mxu0 %v5941
      %6007 = vmatprep.subr.mxu0 0.0
      %6008 = vmatpush2.msra.mxu0 %v5940
      %6009 = vmatprep.subr.mxu0 0.0
      %6010 = vmatpush2.msra.mxu0 %v5939
      %6011 = vmatprep.subr.mxu0 0.0
      %6012 = vmatpush2.msra.mxu0 %v5938
      %6013 = vmatprep.subr.mxu0 0.0
      %6014 = vmatpush2.msra.mxu0 %v5937
      %6015 = vmatprep.subr.mxu0 0.0
      %6016 = vmatpush2.msra.mxu0 %v5936
      %6017 = vmatprep.subr.mxu0 0.0
      %6018 = vmatpush2.msra.mxu0 %v5935
      %6019 = vmatprep.subr.mxu0 0.0
      %6020 = vmatpush2.msra.mxu0 %v5934
      %6021 = vmatprep.subr.mxu0 0.0
      %6022 = vmatpush2.msra.mxu0 %v5933
      %6023 = vmatprep.subr.mxu0 0.0
      %6024 = vmatpush2.msra.mxu0 %v5932
      %6025 = vmatprep.subr.mxu0 0.0
      %6026 = vmatpush2.msra.mxu0 %v5931
      %6027 = vmatprep.mubr.f32.mxu0 %v5595
      %6028 = vmatmul.mubr.f32.gmra.mxu0 %v5755
      %v6029 = vpop.f32.mrf.mxu0
      %v6030 = vadd.f32 0.0, %v6029
      %v6031 = vpop.f32.mrf.mxu0
      %6032 = vmatprep.mubr.f32.mxu0 %v5596
      %6033 = vmatmul.mubr.f32.gmra.mxu0 %v5756
      %v6034 = vpop.f32.mrf.mxu0
      %v6035 = vadd.f32 0.0, %v6034
      %v6036 = vpop.f32.mrf.mxu0
      %6037 = vmatprep.mubr.f32.mxu0 %v5597
      %6038 = vmatmul.mubr.f32.gmra.mxu0 %v5757
      %v6039 = vpop.f32.mrf.mxu0
      %v6040 = vadd.f32 0.0, %v6039
      %v6041 = vpop.f32.mrf.mxu0
      %6042 = vmatprep.mubr.f32.mxu0 %v5598
      %6043 = vmatmul.mubr.f32.gmra.mxu0 %v5758
      %v6044 = vpop.f32.mrf.mxu0
      %v6045 = vadd.f32 0.0, %v6044
      %v6046 = vpop.f32.mrf.mxu0
      %6047 = vmatprep.mubr.f32.mxu0 %v5599
      %6048 = vmatmul.mubr.f32.gmra.mxu0 %v5759
      %v6049 = vpop.f32.mrf.mxu0
      %v6050 = vadd.f32 0.0, %v6049
      %v6051 = vpop.f32.mrf.mxu0
      %6052 = vmatprep.mubr.f32.mxu0 %v5600
      %6053 = vmatmul.mubr.f32.gmra.mxu0 %v5760
      %v6054 = vpop.f32.mrf.mxu0
      %v6055 = vadd.f32 0.0, %v6054
      %v6056 = vpop.f32.mrf.mxu0
      %6057 = vmatprep.mubr.f32.mxu0 %v5601
      %6058 = vmatmul.mubr.f32.gmra.mxu0 %v5761
      %v6059 = vpop.f32.mrf.mxu0
      %v6060 = vadd.f32 0.0, %v6059
      %v6061 = vpop.f32.mrf.mxu0
      %6062 = vmatprep.mubr.f32.mxu0 %v5602
      %6063 = vmatmul.mubr.f32.gmra.mxu0 %v5762
      %v6064 = vpop.f32.mrf.mxu0
      %v6065 = vadd.f32 0.0, %v6064
      %v6066 = vpop.f32.mrf.mxu0
      %6067 = vmatprep.mubr.f32.mxu0 %v5603
      %6068 = vmatmul.mubr.f32.gmra.mxu0 %v5763
      %v6069 = vpop.f32.mrf.mxu0
      %v6070 = vadd.f32 0.0, %v6069
      %v6071 = vpop.f32.mrf.mxu0
      %6072 = vmatprep.mubr.f32.mxu0 %v5604
      %6073 = vmatmul.mubr.f32.gmra.mxu0 %v5764
      %v6074 = vpop.f32.mrf.mxu0
      %v6075 = vadd.f32 0.0, %v6074
      %v6076 = vpop.f32.mrf.mxu0
      %6077 = vmatprep.mubr.f32.mxu0 %v5605
      %6078 = vmatmul.mubr.f32.gmra.mxu0 %v5765
      %v6079 = vpop.f32.mrf.mxu0
      %v6080 = vadd.f32 0.0, %v6079
      %v6081 = vpop.f32.mrf.mxu0
      %6082 = vmatprep.mubr.f32.mxu0 %v5606
      %6083 = vmatmul.mubr.f32.gmra.mxu0 %v5766
      %v6084 = vpop.f32.mrf.mxu0
      %v6085 = vadd.f32 0.0, %v6084
      %v6086 = vpop.f32.mrf.mxu0
      %6087 = vmatprep.mubr.f32.mxu0 %v5607
      %6088 = vmatmul.mubr.f32.gmra.mxu0 %v5767
      %v6089 = vpop.f32.mrf.mxu0
      %v6090 = vadd.f32 0.0, %v6089
      %v6091 = vpop.f32.mrf.mxu0
      %6092 = vmatprep.mubr.f32.mxu0 %v5608
      %6093 = vmatmul.mubr.f32.gmra.mxu0 %v5768
      %v6094 = vpop.f32.mrf.mxu0
      %v6095 = vadd.f32 0.0, %v6094
      %v6096 = vpop.f32.mrf.mxu0
      %6097 = vmatprep.mubr.f32.mxu0 %v5609
      %6098 = vmatmul.mubr.f32.gmra.mxu0 %v5769
      %v6099 = vpop.f32.mrf.mxu0
      %v6100 = vadd.f32 0.0, %v6099
      %v6101 = vpop.f32.mrf.mxu0
      %6102 = vmatprep.mubr.f32.mxu0 %v5610
      %6103 = vmatmul.mubr.f32.gmra.mxu0 %v5770
      %v6104 = vpop.f32.mrf.mxu0
      %v6105 = vadd.f32 0.0, %v6104
      %v6106 = vpop.f32.mrf.mxu0
      %6107 = vmatprep.mubr.f32.mxu0 %v5611
      %6108 = vmatmul.mubr.f32.gmra.mxu0 %v5771
      %v6109 = vpop.f32.mrf.mxu0
      %v6110 = vadd.f32 0.0, %v6109
      %v6111 = vpop.f32.mrf.mxu0
      %6112 = vmatprep.mubr.f32.mxu0 %v5612
      %6113 = vmatmul.mubr.f32.gmra.mxu0 %v5772
      %v6114 = vpop.f32.mrf.mxu0
      %v6115 = vadd.f32 0.0, %v6114
      %v6116 = vpop.f32.mrf.mxu0
      %6117 = vmatprep.mubr.f32.mxu0 %v5613
      %6118 = vmatmul.mubr.f32.gmra.mxu0 %v5773
      %v6119 = vpop.f32.mrf.mxu0
      %v6120 = vadd.f32 0.0, %v6119
      %v6121 = vpop.f32.mrf.mxu0
      %6122 = vmatprep.mubr.f32.mxu0 %v5614
      %6123 = vmatmul.mubr.f32.gmra.mxu0 %v5774
      %v6124 = vpop.f32.mrf.mxu0
      %v6125 = vadd.f32 0.0, %v6124
      %v6126 = vpop.f32.mrf.mxu0
      %6127 = vmatprep.mubr.f32.mxu0 %v5615
      %6128 = vmatmul.mubr.f32.gmra.mxu0 %v5775
      %v6129 = vpop.f32.mrf.mxu0
      %v6130 = vadd.f32 0.0, %v6129
      %v6131 = vpop.f32.mrf.mxu0
      %6132 = vmatprep.mubr.f32.mxu0 %v5616
      %6133 = vmatmul.mubr.f32.gmra.mxu0 %v5776
      %v6134 = vpop.f32.mrf.mxu0
      %v6135 = vadd.f32 0.0, %v6134
      %v6136 = vpop.f32.mrf.mxu0
      %6137 = vmatprep.mubr.f32.mxu0 %v5617
      %6138 = vmatmul.mubr.f32.gmra.mxu0 %v5777
      %v6139 = vpop.f32.mrf.mxu0
      %v6140 = vadd.f32 0.0, %v6139
      %v6141 = vpop.f32.mrf.mxu0
      %6142 = vmatprep.mubr.f32.mxu0 %v5618
      %6143 = vmatmul.mubr.f32.gmra.mxu0 %v5778
      %v6144 = vpop.f32.mrf.mxu0
      %v6145 = vadd.f32 0.0, %v6144
      %v6146 = vpop.f32.mrf.mxu0
      %6147 = vmatprep.mubr.f32.mxu0 %v5619
      %6148 = vmatmul.mubr.f32.gmra.mxu0 %v5779
      %v6149 = vpop.f32.mrf.mxu0
      %v6150 = vadd.f32 0.0, %v6149
      %v6151 = vpop.f32.mrf.mxu0
      %6152 = vmatprep.mubr.f32.mxu0 %v5620
      %6153 = vmatmul.mubr.f32.gmra.mxu0 %v5780
      %v6154 = vpop.f32.mrf.mxu0
      %v6155 = vadd.f32 0.0, %v6154
      %v6156 = vpop.f32.mrf.mxu0
      %6157 = vmatprep.mubr.f32.mxu0 %v5621
      %6158 = vmatmul.mubr.f32.gmra.mxu0 %v5781
      %v6159 = vpop.f32.mrf.mxu0
      %v6160 = vadd.f32 0.0, %v6159
      %v6161 = vpop.f32.mrf.mxu0
      %6162 = vmatprep.mubr.f32.mxu0 %v5622
      %6163 = vmatmul.mubr.f32.gmra.mxu0 %v5782
      %v6164 = vpop.f32.mrf.mxu0
      %v6165 = vadd.f32 0.0, %v6164
      %v6166 = vpop.f32.mrf.mxu0
      %6167 = vmatprep.mubr.f32.mxu0 %v5623
      %6168 = vmatmul.mubr.f32.gmra.mxu0 %v5783
      %v6169 = vpop.f32.mrf.mxu0
      %v6170 = vadd.f32 0.0, %v6169
      %v6171 = vpop.f32.mrf.mxu0
      %6172 = vmatprep.mubr.f32.mxu0 %v5624
      %6173 = vmatmul.mubr.f32.gmra.mxu0 %v5784
      %v6174 = vpop.f32.mrf.mxu0
      %v6175 = vadd.f32 0.0, %v6174
      %v6176 = vpop.f32.mrf.mxu0
      %6177 = vmatprep.mubr.f32.mxu0 %v5625
      %6178 = vmatmul.mubr.f32.gmra.mxu0 %v5785
      %v6179 = vpop.f32.mrf.mxu0
      %v6180 = vpop.f32.mrf.mxu0
      %6181 = vmatprep.mubr.f32.mxu0 %v5626
      %6182 = vmatmul.mubr.f32.gmra.mxu0 %v5786
      %v6183 = vpop.f32.mrf.mxu0
      %v6184 = vpop.f32.mrf.mxu0
      %6185 = vdwg.mxu0
      %6186 = vmatprep.subr.mxu0 0.0
      %6187 = vmatpush1.msra.mxu0 %v5962
      %6188 = vmatprep.subr.mxu0 0.0
      %6189 = vmatpush1.msra.mxu0 %v5961
      %6190 = vmatprep.subr.mxu0 0.0
      %6191 = vmatpush1.msra.mxu0 %v5960
      %6192 = vmatprep.subr.mxu0 0.0
      %6193 = vmatpush1.msra.mxu0 %v5959
      %6194 = vmatprep.subr.mxu0 0.0
      %6195 = vmatpush1.msra.mxu0 %v5958
      %6196 = vmatprep.subr.mxu0 0.0
      %6197 = vmatpush1.msra.mxu0 %v5957
      %6198 = vmatprep.subr.mxu0 0.0
      %6199 = vmatpush1.msra.mxu0 %v5956
      %6200 = vmatprep.subr.mxu0 0.0
      %6201 = vmatpush1.msra.mxu0 %v5955
      %6202 = vmatprep.subr.mxu0 0.0
      %6203 = vmatpush1.msra.mxu0 %v5954
      %6204 = vmatprep.subr.mxu0 0.0
      %6205 = vmatpush1.msra.mxu0 %v5953
      %6206 = vmatprep.subr.mxu0 0.0
      %6207 = vmatpush1.msra.mxu0 %v5952
      %6208 = vmatprep.subr.mxu0 0.0
      %6209 = vmatpush1.msra.mxu0 %v5951
      %6210 = vmatprep.subr.mxu0 0.0
      %6211 = vmatpush1.msra.mxu0 %v5950
      %6212 = vmatprep.subr.mxu0 0.0
      %6213 = vmatpush1.msra.mxu0 %v5949
      %6214 = vmatprep.subr.mxu0 0.0
      %6215 = vmatpush1.msra.mxu0 %v5948
      %6216 = vmatprep.subr.mxu0 0.0
      %6217 = vmatpush1.msra.mxu0 %v5947
      %6218 = vmatprep.subr.mxu0 0.0
      %6219 = vmatpush2.msra.mxu0 0.0
      %6220 = vmatprep.subr.mxu0 0.0
      %6221 = vmatpush2.msra.mxu0 0.0
      %6222 = vmatprep.subr.mxu0 0.0
      %6223 = vmatpush2.msra.mxu0 0.0
      %6224 = vmatprep.subr.mxu0 0.0
      %6225 = vmatpush2.msra.mxu0 0.0
      %6226 = vmatprep.subr.mxu0 0.0
      %6227 = vmatpush2.msra.mxu0 0.0
      %6228 = vmatprep.subr.mxu0 0.0
      %6229 = vmatpush2.msra.mxu0 0.0
      %6230 = vmatprep.subr.mxu0 0.0
      %6231 = vmatpush2.msra.mxu0 0.0
      %6232 = vmatprep.subr.mxu0 0.0
      %6233 = vmatpush2.msra.mxu0 0.0
      %6234 = vmatprep.subr.mxu0 0.0
      %6235 = vmatpush2.msra.mxu0 0.0
      %6236 = vmatprep.subr.mxu0 0.0
      %6237 = vmatpush2.msra.mxu0 0.0
      %6238 = vmatprep.subr.mxu0 0.0
      %6239 = vmatpush2.msra.mxu0 0.0
      %6240 = vmatprep.subr.mxu0 0.0
      %6241 = vmatpush2.msra.mxu0 0.0
      %6242 = vmatprep.subr.mxu0 0.0
      %6243 = vmatpush2.msra.mxu0 0.0
      %6244 = vmatprep.subr.mxu0 0.0
      %6245 = vmatpush2.msra.mxu0 0.0
      %6246 = vmatprep.subr.mxu0 0.0
      %6247 = vmatpush2.msra.mxu0 0.0
      %6248 = vmatprep.subr.mxu0 0.0
      %6249 = vmatpush2.msra.mxu0 0.0
      %6250 = vmatprep.mubr.f32.mxu0 0.0
      %6251 = vmatmul.mubr.f32.gmra.mxu0 %v5883
      %v6252 = vpop.f32.mrf.mxu0
      %v6253 = vadd.f32 %v6030, %v6252
      %v6254 = vpop.f32.mrf.mxu0
      %6255 = vmatprep.mubr.f32.mxu0 0.0
      %6256 = vmatmul.mubr.f32.gmra.mxu0 %v5884
      %v6257 = vpop.f32.mrf.mxu0
      %v6258 = vadd.f32 %v6035, %v6257
      %v6259 = vpop.f32.mrf.mxu0
      %6260 = vmatprep.mubr.f32.mxu0 0.0
      %6261 = vmatmul.mubr.f32.gmra.mxu0 %v5885
      %v6262 = vpop.f32.mrf.mxu0
      %v6263 = vadd.f32 %v6040, %v6262
      %v6264 = vpop.f32.mrf.mxu0
      %6265 = vmatprep.mubr.f32.mxu0 0.0
      %6266 = vmatmul.mubr.f32.gmra.mxu0 %v5886
      %v6267 = vpop.f32.mrf.mxu0
      %v6268 = vadd.f32 %v6045, %v6267
      %v6269 = vpop.f32.mrf.mxu0
      %6270 = vmatprep.mubr.f32.mxu0 0.0
      %6271 = vmatmul.mubr.f32.gmra.mxu0 %v5887
      %v6272 = vpop.f32.mrf.mxu0
      %v6273 = vadd.f32 %v6050, %v6272
      %v6274 = vpop.f32.mrf.mxu0
      %6275 = vmatprep.mubr.f32.mxu0 0.0
      %6276 = vmatmul.mubr.f32.gmra.mxu0 %v5888
      %v6277 = vpop.f32.mrf.mxu0
      %v6278 = vadd.f32 %v6055, %v6277
      %v6279 = vpop.f32.mrf.mxu0
      %6280 = vmatprep.mubr.f32.mxu0 0.0
      %6281 = vmatmul.mubr.f32.gmra.mxu0 %v5889
      %v6282 = vpop.f32.mrf.mxu0
      %v6283 = vadd.f32 %v6060, %v6282
      %v6284 = vpop.f32.mrf.mxu0
      %6285 = vmatprep.mubr.f32.mxu0 0.0
      %6286 = vmatmul.mubr.f32.gmra.mxu0 %v5890
      %v6287 = vpop.f32.mrf.mxu0
      %v6288 = vadd.f32 %v6065, %v6287
      %v6289 = vpop.f32.mrf.mxu0
      %6290 = vmatprep.mubr.f32.mxu0 0.0
      %6291 = vmatmul.mubr.f32.gmra.mxu0 %v5891
      %v6292 = vpop.f32.mrf.mxu0
      %v6293 = vadd.f32 %v6070, %v6292
      %v6294 = vpop.f32.mrf.mxu0
      %6295 = vmatprep.mubr.f32.mxu0 0.0
      %6296 = vmatmul.mubr.f32.gmra.mxu0 %v5892
      %v6297 = vpop.f32.mrf.mxu0
      %v6298 = vadd.f32 %v6075, %v6297
      %v6299 = vpop.f32.mrf.mxu0
      %6300 = vmatprep.mubr.f32.mxu0 0.0
      %6301 = vmatmul.mubr.f32.gmra.mxu0 %v5893
      %v6302 = vpop.f32.mrf.mxu0
      %v6303 = vadd.f32 %v6080, %v6302
      %v6304 = vpop.f32.mrf.mxu0
      %6305 = vmatprep.mubr.f32.mxu0 0.0
      %6306 = vmatmul.mubr.f32.gmra.mxu0 %v5894
      %v6307 = vpop.f32.mrf.mxu0
      %v6308 = vadd.f32 %v6085, %v6307
      %v6309 = vpop.f32.mrf.mxu0
      %6310 = vmatprep.mubr.f32.mxu0 0.0
      %6311 = vmatmul.mubr.f32.gmra.mxu0 %v5895
      %v6312 = vpop.f32.mrf.mxu0
      %v6313 = vadd.f32 %v6090, %v6312
      %v6314 = vpop.f32.mrf.mxu0
      %6315 = vmatprep.mubr.f32.mxu0 0.0
      %6316 = vmatmul.mubr.f32.gmra.mxu0 %v5896
      %v6317 = vpop.f32.mrf.mxu0
      %v6318 = vadd.f32 %v6095, %v6317
      %v6319 = vpop.f32.mrf.mxu0
      %6320 = vmatprep.mubr.f32.mxu0 0.0
      %6321 = vmatmul.mubr.f32.gmra.mxu0 %v5897
      %v6322 = vpop.f32.mrf.mxu0
      %v6323 = vadd.f32 %v6100, %v6322
      %v6324 = vpop.f32.mrf.mxu0
      %6325 = vmatprep.mubr.f32.mxu0 0.0
      %6326 = vmatmul.mubr.f32.gmra.mxu0 %v5898
      %v6327 = vpop.f32.mrf.mxu0
      %v6328 = vadd.f32 %v6105, %v6327
      %v6329 = vpop.f32.mrf.mxu0
      %6330 = vmatprep.mubr.f32.mxu0 0.0
      %6331 = vmatmul.mubr.f32.gmra.mxu0 %v5899
      %v6332 = vpop.f32.mrf.mxu0
      %v6333 = vadd.f32 %v6110, %v6332
      %v6334 = vpop.f32.mrf.mxu0
      %6335 = vmatprep.mubr.f32.mxu0 0.0
      %6336 = vmatmul.mubr.f32.gmra.mxu0 %v5900
      %v6337 = vpop.f32.mrf.mxu0
      %v6338 = vadd.f32 %v6115, %v6337
      %v6339 = vpop.f32.mrf.mxu0
      %6340 = vmatprep.mubr.f32.mxu0 0.0
      %6341 = vmatmul.mubr.f32.gmra.mxu0 %v5901
      %v6342 = vpop.f32.mrf.mxu0
      %v6343 = vadd.f32 %v6120, %v6342
      %v6344 = vpop.f32.mrf.mxu0
      %6345 = vmatprep.mubr.f32.mxu0 0.0
      %6346 = vmatmul.mubr.f32.gmra.mxu0 %v5902
      %v6347 = vpop.f32.mrf.mxu0
      %v6348 = vadd.f32 %v6125, %v6347
      %v6349 = vpop.f32.mrf.mxu0
      %6350 = vmatprep.mubr.f32.mxu0 0.0
      %6351 = vmatmul.mubr.f32.gmra.mxu0 %v5903
      %v6352 = vpop.f32.mrf.mxu0
      %v6353 = vadd.f32 %v6130, %v6352
      %v6354 = vpop.f32.mrf.mxu0
      %6355 = vmatprep.mubr.f32.mxu0 0.0
      %6356 = vmatmul.mubr.f32.gmra.mxu0 %v5904
      %v6357 = vpop.f32.mrf.mxu0
      %v6358 = vadd.f32 %v6135, %v6357
      %v6359 = vpop.f32.mrf.mxu0
      %6360 = vmatprep.mubr.f32.mxu0 0.0
      %6361 = vmatmul.mubr.f32.gmra.mxu0 %v5905
      %v6362 = vpop.f32.mrf.mxu0
      %v6363 = vadd.f32 %v6140, %v6362
      %v6364 = vpop.f32.mrf.mxu0
      %6365 = vmatprep.mubr.f32.mxu0 0.0
      %6366 = vmatmul.mubr.f32.gmra.mxu0 %v5906
      %v6367 = vpop.f32.mrf.mxu0
      %v6368 = vadd.f32 %v6145, %v6367
      %v6369 = vpop.f32.mrf.mxu0
      %6370 = vmatprep.mubr.f32.mxu0 0.0
      %6371 = vmatmul.mubr.f32.gmra.mxu0 %v5907
      %v6372 = vpop.f32.mrf.mxu0
      %v6373 = vadd.f32 %v6150, %v6372
      %v6374 = vpop.f32.mrf.mxu0
      %6375 = vmatprep.mubr.f32.mxu0 0.0
      %6376 = vmatmul.mubr.f32.gmra.mxu0 %v5908
      %v6377 = vpop.f32.mrf.mxu0
      %v6378 = vadd.f32 %v6155, %v6377
      %v6379 = vpop.f32.mrf.mxu0
      %6380 = vmatprep.mubr.f32.mxu0 0.0
      %6381 = vmatmul.mubr.f32.gmra.mxu0 %v5909
      %v6382 = vpop.f32.mrf.mxu0
      %v6383 = vadd.f32 %v6160, %v6382
      %v6384 = vpop.f32.mrf.mxu0
      %6385 = vmatprep.mubr.f32.mxu0 0.0
      %6386 = vmatmul.mubr.f32.gmra.mxu0 %v5910
      %v6387 = vpop.f32.mrf.mxu0
      %v6388 = vadd.f32 %v6165, %v6387
      %v6389 = vpop.f32.mrf.mxu0
      %6390 = vmatprep.mubr.f32.mxu0 0.0
      %6391 = vmatmul.mubr.f32.gmra.mxu0 %v5911
      %v6392 = vpop.f32.mrf.mxu0
      %v6393 = vadd.f32 %v6170, %v6392
      %v6394 = vpop.f32.mrf.mxu0
      %6395 = vmatprep.mubr.f32.mxu0 0.0
      %6396 = vmatmul.mubr.f32.gmra.mxu0 %v5912
      %v6397 = vpop.f32.mrf.mxu0
      %v6398 = vadd.f32 %v6175, %v6397
      %v6399 = vpop.f32.mrf.mxu0
      %6400 = vmatprep.mubr.f32.mxu0 0.0
      %6401 = vmatmul.mubr.f32.gmra.mxu0 %v5913
      %v6402 = vpop.f32.mrf.mxu0
      %v6403 = vpop.f32.mrf.mxu0
      %6404 = vmatprep.mubr.f32.mxu0 0.0
      %6405 = vmatmul.mubr.f32.gmra.mxu0 %v5914
      %v6406 = vpop.f32.mrf.mxu0
      %v6407 = vpop.f32.mrf.mxu0
      %6408 = vdwg.mxu0
      %s6409 = scalar_lea.vmem %s4, 384
      %v6410 = vld [vmem:[%s6409] sm:$0xff]
      %v6411 = vld [vmem:[%s6409 + $0x8] sm:$0xff]
      %v6412 = vld [vmem:[%s6409 + $0x10] sm:$0xff]
      %v6413 = vld [vmem:[%s6409 + $0x18] sm:$0xff]
      %v6414 = vld [vmem:[%s6409 + $0x20] sm:$0xff]
      %v6415 = vld [vmem:[%s6409 + $0x28] sm:$0xff]
      %v6416 = vld [vmem:[%s6409 + $0x30] sm:$0xff]
      %v6417 = vld [vmem:[%s6409 + $0x38] sm:$0xff]
      %v6418 = vld [vmem:[%s6409 + $0x40] sm:$0xff]
      %v6419 = vld [vmem:[%s6409 + $0x48] sm:$0xff]
      %v6420 = vld [vmem:[%s6409 + $0x50] sm:$0xff]
      %v6421 = vld [vmem:[%s6409 + $0x58] sm:$0xff]
      %v6422 = vld [vmem:[%s6409 + $0x60] sm:$0xff]
      %v6423 = vld [vmem:[%s6409 + $0x68] sm:$0xff]
      %v6424 = vld [vmem:[%s6409 + $0x70] sm:$0xff]
      %v6425 = vld [vmem:[%s6409 + $0x78] sm:$0xff]
      %v6426 = vld [vmem:[%s6409 + $0x80] sm:$0xff]
      %v6427 = vld [vmem:[%s6409 + $0x88] sm:$0xff]
      %v6428 = vld [vmem:[%s6409 + $0x90] sm:$0xff]
      %v6429 = vld [vmem:[%s6409 + $0x98] sm:$0xff]
      %v6430 = vld [vmem:[%s6409 + $0xa0] sm:$0xff]
      %v6431 = vld [vmem:[%s6409 + $0xa8] sm:$0xff]
      %v6432 = vld [vmem:[%s6409 + $0xb0] sm:$0xff]
      %v6433 = vld [vmem:[%s6409 + $0xb8] sm:$0xff]
      %v6434 = vld [vmem:[%s6409 + $0xc0] sm:$0xff]
      %v6435 = vld [vmem:[%s6409 + $0xc8] sm:$0xff]
      %v6436 = vld [vmem:[%s6409 + $0xd0] sm:$0xff]
      %v6437 = vld [vmem:[%s6409 + $0xd8] sm:$0xff]
      %v6438 = vld [vmem:[%s6409 + $0xe0] sm:$0xff]
      %v6439 = vld [vmem:[%s6409 + $0xe8] sm:$0xff]
      %v6440 = vld [vmem:[%s6409 + $0xf0] sm:$0xff]
      %v6441 = vld [vmem:[%s6409 + $0xf8] sm:$0xff]
      %v6442 = vld [vmem:[%s6409 + $0x100] sm:$0xff]
      %v6443 = vld [vmem:[%s6409 + $0x108] sm:$0xff]
      %v6444 = vld [vmem:[%s6409 + $0x110] sm:$0xff]
      %v6445 = vld [vmem:[%s6409 + $0x118] sm:$0xff]
      %v6446 = vld [vmem:[%s6409 + $0x120] sm:$0xff]
      %v6447 = vld [vmem:[%s6409 + $0x128] sm:$0xff]
      %v6448 = vld [vmem:[%s6409 + $0x130] sm:$0xff]
      %v6449 = vld [vmem:[%s6409 + $0x138] sm:$0xff]
      %v6450 = vld [vmem:[%s6409 + $0x140] sm:$0xff]
      %v6451 = vld [vmem:[%s6409 + $0x148] sm:$0xff]
      %v6452 = vld [vmem:[%s6409 + $0x150] sm:$0xff]
      %v6453 = vld [vmem:[%s6409 + $0x158] sm:$0xff]
      %v6454 = vld [vmem:[%s6409 + $0x160] sm:$0xff]
      %v6455 = vld [vmem:[%s6409 + $0x168] sm:$0xff]
      %v6456 = vld [vmem:[%s6409 + $0x170] sm:$0xff]
      %v6457 = vld [vmem:[%s6409 + $0x178] sm:$0xff]
      %s6458 = scalar_lea.vmem %s4, 768
      %v6459 = vld [vmem:[%s6458] sm:$0xff]
      %v6460 = vld [vmem:[%s6458 + $0x8] sm:$0xff]
      %v6461 = vld [vmem:[%s6458 + $0x10] sm:$0xff]
      %v6462 = vld [vmem:[%s6458 + $0x18] sm:$0xff]
      %v6463 = vld [vmem:[%s6458 + $0x20] sm:$0xff]
      %v6464 = vld [vmem:[%s6458 + $0x28] sm:$0xff]
      %v6465 = vld [vmem:[%s6458 + $0x30] sm:$0xff]
      %v6466 = vld [vmem:[%s6458 + $0x38] sm:$0xff]
      %v6467 = vld [vmem:[%s6458 + $0x40] sm:$0xff]
      %v6468 = vld [vmem:[%s6458 + $0x48] sm:$0xff]
      %v6469 = vld [vmem:[%s6458 + $0x50] sm:$0xff]
      %v6470 = vld [vmem:[%s6458 + $0x58] sm:$0xff]
      %v6471 = vld [vmem:[%s6458 + $0x60] sm:$0xff]
      %v6472 = vld [vmem:[%s6458 + $0x68] sm:$0xff]
      %v6473 = vld [vmem:[%s6458 + $0x70] sm:$0xff]
      %v6474 = vld [vmem:[%s6458 + $0x78] sm:$0xff]
      %v6475 = vld [vmem:[%s6458 + $0x80] sm:$0xff]
      %v6476 = vld [vmem:[%s6458 + $0x88] sm:$0xff]
      %v6477 = vld [vmem:[%s6458 + $0x90] sm:$0xff]
      %v6478 = vld [vmem:[%s6458 + $0x98] sm:$0xff]
      %v6479 = vld [vmem:[%s6458 + $0xa0] sm:$0xff]
      %v6480 = vld [vmem:[%s6458 + $0xa8] sm:$0xff]
      %v6481 = vld [vmem:[%s6458 + $0xb0] sm:$0xff]
      %v6482 = vld [vmem:[%s6458 + $0xb8] sm:$0xff]
      %v6483 = vld [vmem:[%s6458 + $0xc0] sm:$0xff]
      %v6484 = vld [vmem:[%s6458 + $0xc8] sm:$0xff]
      %v6485 = vld [vmem:[%s6458 + $0xd0] sm:$0xff]
      %v6486 = vld [vmem:[%s6458 + $0xd8] sm:$0xff]
      %v6487 = vld [vmem:[%s6458 + $0xe0] sm:$0xff]
      %v6488 = vld [vmem:[%s6458 + $0xe8] sm:$0xff]
      %v6489 = vld [vmem:[%s6458 + $0xf0] sm:$0xff]
      %v6490 = vld [vmem:[%s6458 + $0xf8] sm:$0xff]
      %v6491 = vld [vmem:[%s6458 + $0x100] sm:$0xff]
      %v6492 = vld [vmem:[%s6458 + $0x108] sm:$0xff]
      %v6493 = vld [vmem:[%s6458 + $0x110] sm:$0xff]
      %v6494 = vld [vmem:[%s6458 + $0x118] sm:$0xff]
      %v6495 = vld [vmem:[%s6458 + $0x120] sm:$0xff]
      %v6496 = vld [vmem:[%s6458 + $0x128] sm:$0xff]
      %v6497 = vld [vmem:[%s6458 + $0x130] sm:$0xff]
      %v6498 = vld [vmem:[%s6458 + $0x138] sm:$0xff]
      %v6499 = vld [vmem:[%s6458 + $0x140] sm:$0xff]
      %v6500 = vld [vmem:[%s6458 + $0x148] sm:$0xff]
      %v6501 = vld [vmem:[%s6458 + $0x150] sm:$0xff]
      %v6502 = vld [vmem:[%s6458 + $0x158] sm:$0xff]
      %v6503 = vld [vmem:[%s6458 + $0x160] sm:$0xff]
      %v6504 = vld [vmem:[%s6458 + $0x168] sm:$0xff]
      %v6505 = vld [vmem:[%s6458 + $0x170] sm:$0xff]
      %v6506 = vld [vmem:[%s6458 + $0x178] sm:$0xff]
      %6507 = vmatprep.subr.mxu0 0.0
      %6508 = vmatpush1.msra.mxu0 %v6474
      %6509 = vmatprep.subr.mxu0 0.0
      %6510 = vmatpush1.msra.mxu0 %v6473
      %6511 = vmatprep.subr.mxu0 0.0
      %6512 = vmatpush1.msra.mxu0 %v6472
      %6513 = vmatprep.subr.mxu0 0.0
      %6514 = vmatpush1.msra.mxu0 %v6471
      %6515 = vmatprep.subr.mxu0 0.0
      %6516 = vmatpush1.msra.mxu0 %v6470
      %6517 = vmatprep.subr.mxu0 0.0
      %6518 = vmatpush1.msra.mxu0 %v6469
      %6519 = vmatprep.subr.mxu0 0.0
      %6520 = vmatpush1.msra.mxu0 %v6468
      %6521 = vmatprep.subr.mxu0 0.0
      %6522 = vmatpush1.msra.mxu0 %v6467
      %6523 = vmatprep.subr.mxu0 0.0
      %6524 = vmatpush1.msra.mxu0 %v6466
      %6525 = vmatprep.subr.mxu0 0.0
      %6526 = vmatpush1.msra.mxu0 %v6465
      %6527 = vmatprep.subr.mxu0 0.0
      %6528 = vmatpush1.msra.mxu0 %v6464
      %6529 = vmatprep.subr.mxu0 0.0
      %6530 = vmatpush1.msra.mxu0 %v6463
      %6531 = vmatprep.subr.mxu0 0.0
      %6532 = vmatpush1.msra.mxu0 %v6462
      %6533 = vmatprep.subr.mxu0 0.0
      %6534 = vmatpush1.msra.mxu0 %v6461
      %6535 = vmatprep.subr.mxu0 0.0
      %6536 = vmatpush1.msra.mxu0 %v6460
      %6537 = vmatprep.subr.mxu0 0.0
      %6538 = vmatpush1.msra.mxu0 %v6459
      %6539 = vmatprep.subr.mxu0 0.0
      %6540 = vmatpush2.msra.mxu0 %v6490
      %6541 = vmatprep.subr.mxu0 0.0
      %6542 = vmatpush2.msra.mxu0 %v6489
      %6543 = vmatprep.subr.mxu0 0.0
      %6544 = vmatpush2.msra.mxu0 %v6488
      %6545 = vmatprep.subr.mxu0 0.0
      %6546 = vmatpush2.msra.mxu0 %v6487
      %6547 = vmatprep.subr.mxu0 0.0
      %6548 = vmatpush2.msra.mxu0 %v6486
      %6549 = vmatprep.subr.mxu0 0.0
      %6550 = vmatpush2.msra.mxu0 %v6485
      %6551 = vmatprep.subr.mxu0 0.0
      %6552 = vmatpush2.msra.mxu0 %v6484
      %6553 = vmatprep.subr.mxu0 0.0
      %6554 = vmatpush2.msra.mxu0 %v6483
      %6555 = vmatprep.subr.mxu0 0.0
      %6556 = vmatpush2.msra.mxu0 %v6482
      %6557 = vmatprep.subr.mxu0 0.0
      %6558 = vmatpush2.msra.mxu0 %v6481
      %6559 = vmatprep.subr.mxu0 0.0
      %6560 = vmatpush2.msra.mxu0 %v6480
      %6561 = vmatprep.subr.mxu0 0.0
      %6562 = vmatpush2.msra.mxu0 %v6479
      %6563 = vmatprep.subr.mxu0 0.0
      %6564 = vmatpush2.msra.mxu0 %v6478
      %6565 = vmatprep.subr.mxu0 0.0
      %6566 = vmatpush2.msra.mxu0 %v6477
      %6567 = vmatprep.subr.mxu0 0.0
      %6568 = vmatpush2.msra.mxu0 %v6476
      %6569 = vmatprep.subr.mxu0 0.0
      %6570 = vmatpush2.msra.mxu0 %v6475
      %6571 = vmatprep.mubr.f32.mxu0 %v5595
      %6572 = vmatmul.mubr.f32.gmra.mxu0 %v5755
      %v6573 = vpop.f32.mrf.mxu0
      %v6574 = vpop.f32.mrf.mxu0
      %6575 = vmatprep.mubr.f32.mxu0 %v5596
      %6576 = vmatmul.mubr.f32.gmra.mxu0 %v5756
      %v6577 = vpop.f32.mrf.mxu0
      %v6578 = vpop.f32.mrf.mxu0
      %6579 = vmatprep.mubr.f32.mxu0 %v5597
      %6580 = vmatmul.mubr.f32.gmra.mxu0 %v5757
      %v6581 = vpop.f32.mrf.mxu0
      %v6582 = vadd.f32 0.0, %v6581
      %v6583 = vpop.f32.mrf.mxu0
      %6584 = vmatprep.mubr.f32.mxu0 %v5598
      %6585 = vmatmul.mubr.f32.gmra.mxu0 %v5758
      %v6586 = vpop.f32.mrf.mxu0
      %v6587 = vadd.f32 0.0, %v6586
      %v6588 = vpop.f32.mrf.mxu0
      %6589 = vmatprep.mubr.f32.mxu0 %v5599
      %6590 = vmatmul.mubr.f32.gmra.mxu0 %v5759
      %v6591 = vpop.f32.mrf.mxu0
      %v6592 = vadd.f32 0.0, %v6591
      %v6593 = vpop.f32.mrf.mxu0
      %6594 = vmatprep.mubr.f32.mxu0 %v5600
      %6595 = vmatmul.mubr.f32.gmra.mxu0 %v5760
      %v6596 = vpop.f32.mrf.mxu0
      %v6597 = vadd.f32 0.0, %v6596
      %v6598 = vpop.f32.mrf.mxu0
      %6599 = vmatprep.mubr.f32.mxu0 %v5601
      %6600 = vmatmul.mubr.f32.gmra.mxu0 %v5761
      %v6601 = vpop.f32.mrf.mxu0
      %v6602 = vadd.f32 0.0, %v6601
      %v6603 = vpop.f32.mrf.mxu0
      %6604 = vmatprep.mubr.f32.mxu0 %v5602
      %6605 = vmatmul.mubr.f32.gmra.mxu0 %v5762
      %v6606 = vpop.f32.mrf.mxu0
      %v6607 = vadd.f32 0.0, %v6606
      %v6608 = vpop.f32.mrf.mxu0
      %6609 = vmatprep.mubr.f32.mxu0 %v5603
      %6610 = vmatmul.mubr.f32.gmra.mxu0 %v5763
      %v6611 = vpop.f32.mrf.mxu0
      %v6612 = vadd.f32 0.0, %v6611
      %v6613 = vpop.f32.mrf.mxu0
      %6614 = vmatprep.mubr.f32.mxu0 %v5604
      %6615 = vmatmul.mubr.f32.gmra.mxu0 %v5764
      %v6616 = vpop.f32.mrf.mxu0
      %v6617 = vadd.f32 0.0, %v6616
      %v6618 = vpop.f32.mrf.mxu0
      %6619 = vmatprep.mubr.f32.mxu0 %v5605
      %6620 = vmatmul.mubr.f32.gmra.mxu0 %v5765
      %v6621 = vpop.f32.mrf.mxu0
      %v6622 = vadd.f32 0.0, %v6621
      %v6623 = vpop.f32.mrf.mxu0
      %6624 = vmatprep.mubr.f32.mxu0 %v5606
      %6625 = vmatmul.mubr.f32.gmra.mxu0 %v5766
      %v6626 = vpop.f32.mrf.mxu0
      %v6627 = vadd.f32 0.0, %v6626
      %v6628 = vpop.f32.mrf.mxu0
      %6629 = vmatprep.mubr.f32.mxu0 %v5607
      %6630 = vmatmul.mubr.f32.gmra.mxu0 %v5767
      %v6631 = vpop.f32.mrf.mxu0
      %v6632 = vadd.f32 0.0, %v6631
      %v6633 = vpop.f32.mrf.mxu0
      %6634 = vmatprep.mubr.f32.mxu0 %v5608
      %6635 = vmatmul.mubr.f32.gmra.mxu0 %v5768
      %v6636 = vpop.f32.mrf.mxu0
      %v6637 = vadd.f32 0.0, %v6636
      %v6638 = vpop.f32.mrf.mxu0
      %6639 = vmatprep.mubr.f32.mxu0 %v5609
      %6640 = vmatmul.mubr.f32.gmra.mxu0 %v5769
      %v6641 = vpop.f32.mrf.mxu0
      %v6642 = vadd.f32 0.0, %v6641
      %v6643 = vpop.f32.mrf.mxu0
      %6644 = vmatprep.mubr.f32.mxu0 %v5610
      %6645 = vmatmul.mubr.f32.gmra.mxu0 %v5770
      %v6646 = vpop.f32.mrf.mxu0
      %v6647 = vadd.f32 0.0, %v6646
      %v6648 = vpop.f32.mrf.mxu0
      %6649 = vmatprep.mubr.f32.mxu0 %v5611
      %6650 = vmatmul.mubr.f32.gmra.mxu0 %v5771
      %v6651 = vpop.f32.mrf.mxu0
      %v6652 = vadd.f32 0.0, %v6651
      %v6653 = vpop.f32.mrf.mxu0
      %6654 = vmatprep.mubr.f32.mxu0 %v5612
      %6655 = vmatmul.mubr.f32.gmra.mxu0 %v5772
      %v6656 = vpop.f32.mrf.mxu0
      %v6657 = vadd.f32 0.0, %v6656
      %v6658 = vpop.f32.mrf.mxu0
      %6659 = vmatprep.mubr.f32.mxu0 %v5613
      %6660 = vmatmul.mubr.f32.gmra.mxu0 %v5773
      %v6661 = vpop.f32.mrf.mxu0
      %v6662 = vadd.f32 0.0, %v6661
      %v6663 = vpop.f32.mrf.mxu0
      %6664 = vmatprep.mubr.f32.mxu0 %v5614
      %6665 = vmatmul.mubr.f32.gmra.mxu0 %v5774
      %v6666 = vpop.f32.mrf.mxu0
      %v6667 = vadd.f32 0.0, %v6666
      %v6668 = vpop.f32.mrf.mxu0
      %6669 = vmatprep.mubr.f32.mxu0 %v5615
      %6670 = vmatmul.mubr.f32.gmra.mxu0 %v5775
      %v6671 = vpop.f32.mrf.mxu0
      %v6672 = vadd.f32 0.0, %v6671
      %v6673 = vpop.f32.mrf.mxu0
      %6674 = vmatprep.mubr.f32.mxu0 %v5616
      %6675 = vmatmul.mubr.f32.gmra.mxu0 %v5776
      %v6676 = vpop.f32.mrf.mxu0
      %v6677 = vadd.f32 0.0, %v6676
      %v6678 = vpop.f32.mrf.mxu0
      %6679 = vmatprep.mubr.f32.mxu0 %v5617
      %6680 = vmatmul.mubr.f32.gmra.mxu0 %v5777
      %v6681 = vpop.f32.mrf.mxu0
      %v6682 = vadd.f32 0.0, %v6681
      %v6683 = vpop.f32.mrf.mxu0
      %6684 = vmatprep.mubr.f32.mxu0 %v5618
      %6685 = vmatmul.mubr.f32.gmra.mxu0 %v5778
      %v6686 = vpop.f32.mrf.mxu0
      %v6687 = vadd.f32 0.0, %v6686
      %v6688 = vpop.f32.mrf.mxu0
      %6689 = vmatprep.mubr.f32.mxu0 %v5619
      %6690 = vmatmul.mubr.f32.gmra.mxu0 %v5779
      %v6691 = vpop.f32.mrf.mxu0
      %v6692 = vadd.f32 0.0, %v6691
      %v6693 = vpop.f32.mrf.mxu0
      %6694 = vmatprep.mubr.f32.mxu0 %v5620
      %6695 = vmatmul.mubr.f32.gmra.mxu0 %v5780
      %v6696 = vpop.f32.mrf.mxu0
      %v6697 = vadd.f32 0.0, %v6696
      %v6698 = vpop.f32.mrf.mxu0
      %6699 = vmatprep.mubr.f32.mxu0 %v5621
      %6700 = vmatmul.mubr.f32.gmra.mxu0 %v5781
      %v6701 = vpop.f32.mrf.mxu0
      %v6702 = vadd.f32 0.0, %v6701
      %v6703 = vpop.f32.mrf.mxu0
      %6704 = vmatprep.mubr.f32.mxu0 %v5622
      %6705 = vmatmul.mubr.f32.gmra.mxu0 %v5782
      %v6706 = vpop.f32.mrf.mxu0
      %v6707 = vadd.f32 0.0, %v6706
      %v6708 = vpop.f32.mrf.mxu0
      %6709 = vmatprep.mubr.f32.mxu0 %v5623
      %6710 = vmatmul.mubr.f32.gmra.mxu0 %v5783
      %v6711 = vpop.f32.mrf.mxu0
      %v6712 = vadd.f32 0.0, %v6711
      %v6713 = vpop.f32.mrf.mxu0
      %6714 = vmatprep.mubr.f32.mxu0 %v5624
      %6715 = vmatmul.mubr.f32.gmra.mxu0 %v5784
      %v6716 = vpop.f32.mrf.mxu0
      %v6717 = vadd.f32 0.0, %v6716
      %v6718 = vpop.f32.mrf.mxu0
      %6719 = vmatprep.mubr.f32.mxu0 %v5625
      %6720 = vmatmul.mubr.f32.gmra.mxu0 %v5785
      %v6721 = vpop.f32.mrf.mxu0
      %v6722 = vadd.f32 0.0, %v6721
      %v6723 = vpop.f32.mrf.mxu0
      %6724 = vmatprep.mubr.f32.mxu0 %v5626
      %6725 = vmatmul.mubr.f32.gmra.mxu0 %v5786
      %v6726 = vpop.f32.mrf.mxu0
      %v6727 = vadd.f32 0.0, %v6726
      %v6728 = vpop.f32.mrf.mxu0
      %6729 = vdwg.mxu0
      %6730 = vmatprep.subr.mxu0 0.0
      %6731 = vmatpush1.msra.mxu0 %v6506
      %6732 = vmatprep.subr.mxu0 0.0
      %6733 = vmatpush1.msra.mxu0 %v6505
      %6734 = vmatprep.subr.mxu0 0.0
      %6735 = vmatpush1.msra.mxu0 %v6504
      %6736 = vmatprep.subr.mxu0 0.0
      %6737 = vmatpush1.msra.mxu0 %v6503
      %6738 = vmatprep.subr.mxu0 0.0
      %6739 = vmatpush1.msra.mxu0 %v6502
      %6740 = vmatprep.subr.mxu0 0.0
      %6741 = vmatpush1.msra.mxu0 %v6501
      %6742 = vmatprep.subr.mxu0 0.0
      %6743 = vmatpush1.msra.mxu0 %v6500
      %6744 = vmatprep.subr.mxu0 0.0
      %6745 = vmatpush1.msra.mxu0 %v6499
      %6746 = vmatprep.subr.mxu0 0.0
      %6747 = vmatpush1.msra.mxu0 %v6498
      %6748 = vmatprep.subr.mxu0 0.0
      %6749 = vmatpush1.msra.mxu0 %v6497
      %6750 = vmatprep.subr.mxu0 0.0
      %6751 = vmatpush1.msra.mxu0 %v6496
      %6752 = vmatprep.subr.mxu0 0.0
      %6753 = vmatpush1.msra.mxu0 %v6495
      %6754 = vmatprep.subr.mxu0 0.0
      %6755 = vmatpush1.msra.mxu0 %v6494
      %6756 = vmatprep.subr.mxu0 0.0
      %6757 = vmatpush1.msra.mxu0 %v6493
      %6758 = vmatprep.subr.mxu0 0.0
      %6759 = vmatpush1.msra.mxu0 %v6492
      %6760 = vmatprep.subr.mxu0 0.0
      %6761 = vmatpush1.msra.mxu0 %v6491
      %6762 = vmatprep.subr.mxu0 0.0
      %6763 = vmatpush2.msra.mxu0 0.0
      %6764 = vmatprep.subr.mxu0 0.0
      %6765 = vmatpush2.msra.mxu0 0.0
      %6766 = vmatprep.subr.mxu0 0.0
      %6767 = vmatpush2.msra.mxu0 0.0
      %6768 = vmatprep.subr.mxu0 0.0
      %6769 = vmatpush2.msra.mxu0 0.0
      %6770 = vmatprep.subr.mxu0 0.0
      %6771 = vmatpush2.msra.mxu0 0.0
      %6772 = vmatprep.subr.mxu0 0.0
      %6773 = vmatpush2.msra.mxu0 0.0
      %6774 = vmatprep.subr.mxu0 0.0
      %6775 = vmatpush2.msra.mxu0 0.0
      %6776 = vmatprep.subr.mxu0 0.0
      %6777 = vmatpush2.msra.mxu0 0.0
      %6778 = vmatprep.subr.mxu0 0.0
      %6779 = vmatpush2.msra.mxu0 0.0
      %6780 = vmatprep.subr.mxu0 0.0
      %6781 = vmatpush2.msra.mxu0 0.0
      %6782 = vmatprep.subr.mxu0 0.0
      %6783 = vmatpush2.msra.mxu0 0.0
      %6784 = vmatprep.subr.mxu0 0.0
      %6785 = vmatpush2.msra.mxu0 0.0
      %6786 = vmatprep.subr.mxu0 0.0
      %6787 = vmatpush2.msra.mxu0 0.0
      %6788 = vmatprep.subr.mxu0 0.0
      %6789 = vmatpush2.msra.mxu0 0.0
      %6790 = vmatprep.subr.mxu0 0.0
      %6791 = vmatpush2.msra.mxu0 0.0
      %6792 = vmatprep.subr.mxu0 0.0
      %6793 = vmatpush2.msra.mxu0 0.0
      %6794 = vmatprep.mubr.f32.mxu0 0.0
      %6795 = vmatmul.mubr.f32.gmra.mxu0 %v5883
      %v6796 = vpop.f32.mrf.mxu0
      %v6797 = vpop.f32.mrf.mxu0
      %6798 = vmatprep.mubr.f32.mxu0 0.0
      %6799 = vmatmul.mubr.f32.gmra.mxu0 %v5884
      %v6800 = vpop.f32.mrf.mxu0
      %v6801 = vpop.f32.mrf.mxu0
      %6802 = vmatprep.mubr.f32.mxu0 0.0
      %6803 = vmatmul.mubr.f32.gmra.mxu0 %v5885
      %v6804 = vpop.f32.mrf.mxu0
      %v6805 = vadd.f32 %v6582, %v6804
      %v6806 = vpop.f32.mrf.mxu0
      %6807 = vmatprep.mubr.f32.mxu0 0.0
      %6808 = vmatmul.mubr.f32.gmra.mxu0 %v5886
      %v6809 = vpop.f32.mrf.mxu0
      %v6810 = vadd.f32 %v6587, %v6809
      %v6811 = vpop.f32.mrf.mxu0
      %6812 = vmatprep.mubr.f32.mxu0 0.0
      %6813 = vmatmul.mubr.f32.gmra.mxu0 %v5887
      %v6814 = vpop.f32.mrf.mxu0
      %v6815 = vadd.f32 %v6592, %v6814
      %v6816 = vpop.f32.mrf.mxu0
      %6817 = vmatprep.mubr.f32.mxu0 0.0
      %6818 = vmatmul.mubr.f32.gmra.mxu0 %v5888
      %v6819 = vpop.f32.mrf.mxu0
      %v6820 = vadd.f32 %v6597, %v6819
      %v6821 = vpop.f32.mrf.mxu0
      %6822 = vmatprep.mubr.f32.mxu0 0.0
      %6823 = vmatmul.mubr.f32.gmra.mxu0 %v5889
      %v6824 = vpop.f32.mrf.mxu0
      %v6825 = vadd.f32 %v6602, %v6824
      %v6826 = vpop.f32.mrf.mxu0
      %6827 = vmatprep.mubr.f32.mxu0 0.0
      %6828 = vmatmul.mubr.f32.gmra.mxu0 %v5890
      %v6829 = vpop.f32.mrf.mxu0
      %v6830 = vadd.f32 %v6607, %v6829
      %v6831 = vpop.f32.mrf.mxu0
      %6832 = vmatprep.mubr.f32.mxu0 0.0
      %6833 = vmatmul.mubr.f32.gmra.mxu0 %v5891
      %v6834 = vpop.f32.mrf.mxu0
      %v6835 = vadd.f32 %v6612, %v6834
      %v6836 = vpop.f32.mrf.mxu0
      %6837 = vmatprep.mubr.f32.mxu0 0.0
      %6838 = vmatmul.mubr.f32.gmra.mxu0 %v5892
      %v6839 = vpop.f32.mrf.mxu0
      %v6840 = vadd.f32 %v6617, %v6839
      %v6841 = vpop.f32.mrf.mxu0
      %6842 = vmatprep.mubr.f32.mxu0 0.0
      %6843 = vmatmul.mubr.f32.gmra.mxu0 %v5893
      %v6844 = vpop.f32.mrf.mxu0
      %v6845 = vadd.f32 %v6622, %v6844
      %v6846 = vpop.f32.mrf.mxu0
      %6847 = vmatprep.mubr.f32.mxu0 0.0
      %6848 = vmatmul.mubr.f32.gmra.mxu0 %v5894
      %v6849 = vpop.f32.mrf.mxu0
      %v6850 = vadd.f32 %v6627, %v6849
      %v6851 = vpop.f32.mrf.mxu0
      %6852 = vmatprep.mubr.f32.mxu0 0.0
      %6853 = vmatmul.mubr.f32.gmra.mxu0 %v5895
      %v6854 = vpop.f32.mrf.mxu0
      %v6855 = vadd.f32 %v6632, %v6854
      %v6856 = vpop.f32.mrf.mxu0
      %6857 = vmatprep.mubr.f32.mxu0 0.0
      %6858 = vmatmul.mubr.f32.gmra.mxu0 %v5896
      %v6859 = vpop.f32.mrf.mxu0
      %v6860 = vadd.f32 %v6637, %v6859
      %v6861 = vpop.f32.mrf.mxu0
      %6862 = vmatprep.mubr.f32.mxu0 0.0
      %6863 = vmatmul.mubr.f32.gmra.mxu0 %v5897
      %v6864 = vpop.f32.mrf.mxu0
      %v6865 = vadd.f32 %v6642, %v6864
      %v6866 = vpop.f32.mrf.mxu0
      %6867 = vmatprep.mubr.f32.mxu0 0.0
      %6868 = vmatmul.mubr.f32.gmra.mxu0 %v5898
      %v6869 = vpop.f32.mrf.mxu0
      %v6870 = vadd.f32 %v6647, %v6869
      %v6871 = vpop.f32.mrf.mxu0
      %6872 = vmatprep.mubr.f32.mxu0 0.0
      %6873 = vmatmul.mubr.f32.gmra.mxu0 %v5899
      %v6874 = vpop.f32.mrf.mxu0
      %v6875 = vadd.f32 %v6652, %v6874
      %v6876 = vpop.f32.mrf.mxu0
      %6877 = vmatprep.mubr.f32.mxu0 0.0
      %6878 = vmatmul.mubr.f32.gmra.mxu0 %v5900
      %v6879 = vpop.f32.mrf.mxu0
      %v6880 = vadd.f32 %v6657, %v6879
      %v6881 = vpop.f32.mrf.mxu0
      %6882 = vmatprep.mubr.f32.mxu0 0.0
      %6883 = vmatmul.mubr.f32.gmra.mxu0 %v5901
      %v6884 = vpop.f32.mrf.mxu0
      %v6885 = vadd.f32 %v6662, %v6884
      %v6886 = vpop.f32.mrf.mxu0
      %6887 = vmatprep.mubr.f32.mxu0 0.0
      %6888 = vmatmul.mubr.f32.gmra.mxu0 %v5902
      %v6889 = vpop.f32.mrf.mxu0
      %v6890 = vadd.f32 %v6667, %v6889
      %v6891 = vpop.f32.mrf.mxu0
      %6892 = vmatprep.mubr.f32.mxu0 0.0
      %6893 = vmatmul.mubr.f32.gmra.mxu0 %v5903
      %v6894 = vpop.f32.mrf.mxu0
      %v6895 = vadd.f32 %v6672, %v6894
      %v6896 = vpop.f32.mrf.mxu0
      %6897 = vmatprep.mubr.f32.mxu0 0.0
      %6898 = vmatmul.mubr.f32.gmra.mxu0 %v5904
      %v6899 = vpop.f32.mrf.mxu0
      %v6900 = vadd.f32 %v6677, %v6899
      %v6901 = vpop.f32.mrf.mxu0
      %6902 = vmatprep.mubr.f32.mxu0 0.0
      %6903 = vmatmul.mubr.f32.gmra.mxu0 %v5905
      %v6904 = vpop.f32.mrf.mxu0
      %v6905 = vadd.f32 %v6682, %v6904
      %v6906 = vpop.f32.mrf.mxu0
      %6907 = vmatprep.mubr.f32.mxu0 0.0
      %6908 = vmatmul.mubr.f32.gmra.mxu0 %v5906
      %v6909 = vpop.f32.mrf.mxu0
      %v6910 = vadd.f32 %v6687, %v6909
      %v6911 = vpop.f32.mrf.mxu0
      %6912 = vmatprep.mubr.f32.mxu0 0.0
      %6913 = vmatmul.mubr.f32.gmra.mxu0 %v5907
      %v6914 = vpop.f32.mrf.mxu0
      %v6915 = vadd.f32 %v6692, %v6914
      %v6916 = vpop.f32.mrf.mxu0
      %6917 = vmatprep.mubr.f32.mxu0 0.0
      %6918 = vmatmul.mubr.f32.gmra.mxu0 %v5908
      %v6919 = vpop.f32.mrf.mxu0
      %v6920 = vadd.f32 %v6697, %v6919
      %v6921 = vpop.f32.mrf.mxu0
      %6922 = vmatprep.mubr.f32.mxu0 0.0
      %6923 = vmatmul.mubr.f32.gmra.mxu0 %v5909
      %v6924 = vpop.f32.mrf.mxu0
      %v6925 = vadd.f32 %v6702, %v6924
      %v6926 = vpop.f32.mrf.mxu0
      %6927 = vmatprep.mubr.f32.mxu0 0.0
      %6928 = vmatmul.mubr.f32.gmra.mxu0 %v5910
      %v6929 = vpop.f32.mrf.mxu0
      %v6930 = vadd.f32 %v6707, %v6929
      %v6931 = vpop.f32.mrf.mxu0
      %6932 = vmatprep.mubr.f32.mxu0 0.0
      %6933 = vmatmul.mubr.f32.gmra.mxu0 %v5911
      %v6934 = vpop.f32.mrf.mxu0
      %v6935 = vadd.f32 %v6712, %v6934
      %v6936 = vpop.f32.mrf.mxu0
      %6937 = vmatprep.mubr.f32.mxu0 0.0
      %6938 = vmatmul.mubr.f32.gmra.mxu0 %v5912
      %v6939 = vpop.f32.mrf.mxu0
      %v6940 = vadd.f32 %v6717, %v6939
      %v6941 = vpop.f32.mrf.mxu0
      %6942 = vmatprep.mubr.f32.mxu0 0.0
      %6943 = vmatmul.mubr.f32.gmra.mxu0 %v5913
      %v6944 = vpop.f32.mrf.mxu0
      %v6945 = vadd.f32 %v6722, %v6944
      %v6946 = vpop.f32.mrf.mxu0
      %6947 = vmatprep.mubr.f32.mxu0 0.0
      %6948 = vmatmul.mubr.f32.gmra.mxu0 %v5914
      %v6949 = vpop.f32.mrf.mxu0
      %v6950 = vadd.f32 %v6727, %v6949
      %v6951 = vpop.f32.mrf.mxu0
      %6952 = vdwg.mxu0
      %v6953 = vmul.f32 %v1397, %v6253
      %v6954 = vmul.f32 %v1398, %v6258
      %v6955 = vmul.f32 %v1399, %v6263
      %v6956 = vmul.f32 %v1400, %v6268
      %v6957 = vmul.f32 %v1401, %v6273
      %v6958 = vmul.f32 %v1402, %v6278
      %v6959 = vmul.f32 %v1403, %v6283
      %v6960 = vmul.f32 %v1404, %v6288
      %v6961 = vmul.f32 %v1405, %v6293
      %v6962 = vmul.f32 %v1406, %v6298
      %v6963 = vmul.f32 %v1407, %v6303
      %v6964 = vmul.f32 %v1408, %v6308
      %v6965 = vmul.f32 %v1409, %v6313
      %v6966 = vmul.f32 %v1410, %v6318
      %v6967 = vmul.f32 %v1411, %v6323
      %v6968 = vmul.f32 %v1412, %v6328
      %v6969 = vmul.f32 %v1413, %v6333
      %v6970 = vmul.f32 %v1414, %v6338
      %v6971 = vmul.f32 %v1415, %v6343
      %v6972 = vmul.f32 %v1416, %v6348
      %v6973 = vmul.f32 %v1417, %v6353
      %v6974 = vmul.f32 %v1418, %v6358
      %v6975 = vmul.f32 %v1419, %v6363
      %v6976 = vmul.f32 %v1420, %v6368
      %v6977 = vmul.f32 %v1421, %v6373
      %v6978 = vmul.f32 %v1422, %v6378
      %v6979 = vmul.f32 %v1423, %v6383
      %v6980 = vmul.f32 %v1424, %v6388
      %v6981 = vmul.f32 %v1425, %v6393
      %v6982 = vmul.f32 %v1426, %v6398
      %6983 = vmatprep.subr.mxu0 0.0
      %6984 = vmatpush1.msra.mxu0 %v6425
      %6985 = vmatprep.subr.mxu0 0.0
      %6986 = vmatpush1.msra.mxu0 %v6424
      %6987 = vmatprep.subr.mxu0 0.0
      %6988 = vmatpush1.msra.mxu0 %v6423
      %6989 = vmatprep.subr.mxu0 0.0
      %6990 = vmatpush1.msra.mxu0 %v6422
      %6991 = vmatprep.subr.mxu0 0.0
      %6992 = vmatpush1.msra.mxu0 %v6421
      %6993 = vmatprep.subr.mxu0 0.0
      %6994 = vmatpush1.msra.mxu0 %v6420
      %6995 = vmatprep.subr.mxu0 0.0
      %6996 = vmatpush1.msra.mxu0 %v6419
      %6997 = vmatprep.subr.mxu0 0.0
      %6998 = vmatpush1.msra.mxu0 %v6418
      %6999 = vmatprep.subr.mxu0 0.0
      %7000 = vmatpush1.msra.mxu0 %v6417
      %7001 = vmatprep.subr.mxu0 0.0
      %7002 = vmatpush1.msra.mxu0 %v6416
      %7003 = vmatprep.subr.mxu0 0.0
      %7004 = vmatpush1.msra.mxu0 %v6415
      %7005 = vmatprep.subr.mxu0 0.0
      %7006 = vmatpush1.msra.mxu0 %v6414
      %7007 = vmatprep.subr.mxu0 0.0
      %7008 = vmatpush1.msra.mxu0 %v6413
      %7009 = vmatprep.subr.mxu0 0.0
      %7010 = vmatpush1.msra.mxu0 %v6412
      %7011 = vmatprep.subr.mxu0 0.0
      %7012 = vmatpush1.msra.mxu0 %v6411
      %7013 = vmatprep.subr.mxu0 0.0
      %7014 = vmatpush1.msra.mxu0 %v6410
      %7015 = vmatprep.subr.mxu0 0.0
      %7016 = vmatpush2.msra.mxu0 %v6441
      %7017 = vmatprep.subr.mxu0 0.0
      %7018 = vmatpush2.msra.mxu0 %v6440
      %7019 = vmatprep.subr.mxu0 0.0
      %7020 = vmatpush2.msra.mxu0 %v6439
      %7021 = vmatprep.subr.mxu0 0.0
      %7022 = vmatpush2.msra.mxu0 %v6438
      %7023 = vmatprep.subr.mxu0 0.0
      %7024 = vmatpush2.msra.mxu0 %v6437
      %7025 = vmatprep.subr.mxu0 0.0
      %7026 = vmatpush2.msra.mxu0 %v6436
      %7027 = vmatprep.subr.mxu0 0.0
      %7028 = vmatpush2.msra.mxu0 %v6435
      %7029 = vmatprep.subr.mxu0 0.0
      %7030 = vmatpush2.msra.mxu0 %v6434
      %7031 = vmatprep.subr.mxu0 0.0
      %7032 = vmatpush2.msra.mxu0 %v6433
      %7033 = vmatprep.subr.mxu0 0.0
      %7034 = vmatpush2.msra.mxu0 %v6432
      %7035 = vmatprep.subr.mxu0 0.0
      %7036 = vmatpush2.msra.mxu0 %v6431
      %7037 = vmatprep.subr.mxu0 0.0
      %7038 = vmatpush2.msra.mxu0 %v6430
      %7039 = vmatprep.subr.mxu0 0.0
      %7040 = vmatpush2.msra.mxu0 %v6429
      %7041 = vmatprep.subr.mxu0 0.0
      %7042 = vmatpush2.msra.mxu0 %v6428
      %7043 = vmatprep.subr.mxu0 0.0
      %7044 = vmatpush2.msra.mxu0 %v6427
      %7045 = vmatprep.subr.mxu0 0.0
      %7046 = vmatpush2.msra.mxu0 %v6426
      %7047 = vmatprep.mubr.f32.mxu0 %v5595
      %7048 = vmatmul.mubr.f32.gmra.mxu0 %v5755
      %v7049 = vpop.f32.mrf.mxu0
      %v7050 = vadd.f32 %v2852, %v7049
      %v7051 = vpop.f32.mrf.mxu0
      %7052 = vmatprep.mubr.f32.mxu0 %v5596
      %7053 = vmatmul.mubr.f32.gmra.mxu0 %v5756
      %v7054 = vpop.f32.mrf.mxu0
      %v7055 = vadd.f32 %v2853, %v7054
      %v7056 = vpop.f32.mrf.mxu0
      %7057 = vmatprep.mubr.f32.mxu0 %v5597
      %7058 = vmatmul.mubr.f32.gmra.mxu0 %v5757
      %v7059 = vpop.f32.mrf.mxu0
      %v7060 = vadd.f32 %v6953, %v7059
      %v7061 = vpop.f32.mrf.mxu0
      %7062 = vmatprep.mubr.f32.mxu0 %v5598
      %7063 = vmatmul.mubr.f32.gmra.mxu0 %v5758
      %v7064 = vpop.f32.mrf.mxu0
      %v7065 = vadd.f32 %v6954, %v7064
      %v7066 = vpop.f32.mrf.mxu0
      %7067 = vmatprep.mubr.f32.mxu0 %v5599
      %7068 = vmatmul.mubr.f32.gmra.mxu0 %v5759
      %v7069 = vpop.f32.mrf.mxu0
      %v7070 = vadd.f32 %v6955, %v7069
      %v7071 = vpop.f32.mrf.mxu0
      %7072 = vmatprep.mubr.f32.mxu0 %v5600
      %7073 = vmatmul.mubr.f32.gmra.mxu0 %v5760
      %v7074 = vpop.f32.mrf.mxu0
      %v7075 = vadd.f32 %v6956, %v7074
      %v7076 = vpop.f32.mrf.mxu0
      %7077 = vmatprep.mubr.f32.mxu0 %v5601
      %7078 = vmatmul.mubr.f32.gmra.mxu0 %v5761
      %v7079 = vpop.f32.mrf.mxu0
      %v7080 = vadd.f32 %v6957, %v7079
      %v7081 = vpop.f32.mrf.mxu0
      %7082 = vmatprep.mubr.f32.mxu0 %v5602
      %7083 = vmatmul.mubr.f32.gmra.mxu0 %v5762
      %v7084 = vpop.f32.mrf.mxu0
      %v7085 = vadd.f32 %v6958, %v7084
      %v7086 = vpop.f32.mrf.mxu0
      %7087 = vmatprep.mubr.f32.mxu0 %v5603
      %7088 = vmatmul.mubr.f32.gmra.mxu0 %v5763
      %v7089 = vpop.f32.mrf.mxu0
      %v7090 = vadd.f32 %v6959, %v7089
      %v7091 = vpop.f32.mrf.mxu0
      %7092 = vmatprep.mubr.f32.mxu0 %v5604
      %7093 = vmatmul.mubr.f32.gmra.mxu0 %v5764
      %v7094 = vpop.f32.mrf.mxu0
      %v7095 = vadd.f32 %v6960, %v7094
      %v7096 = vpop.f32.mrf.mxu0
      %7097 = vmatprep.mubr.f32.mxu0 %v5605
      %7098 = vmatmul.mubr.f32.gmra.mxu0 %v5765
      %v7099 = vpop.f32.mrf.mxu0
      %v7100 = vadd.f32 %v6961, %v7099
      %v7101 = vpop.f32.mrf.mxu0
      %7102 = vmatprep.mubr.f32.mxu0 %v5606
      %7103 = vmatmul.mubr.f32.gmra.mxu0 %v5766
      %v7104 = vpop.f32.mrf.mxu0
      %v7105 = vadd.f32 %v6962, %v7104
      %v7106 = vpop.f32.mrf.mxu0
      %7107 = vmatprep.mubr.f32.mxu0 %v5607
      %7108 = vmatmul.mubr.f32.gmra.mxu0 %v5767
      %v7109 = vpop.f32.mrf.mxu0
      %v7110 = vadd.f32 %v6963, %v7109
      %v7111 = vpop.f32.mrf.mxu0
      %7112 = vmatprep.mubr.f32.mxu0 %v5608
      %7113 = vmatmul.mubr.f32.gmra.mxu0 %v5768
      %v7114 = vpop.f32.mrf.mxu0
      %v7115 = vadd.f32 %v6964, %v7114
      %v7116 = vpop.f32.mrf.mxu0
      %7117 = vmatprep.mubr.f32.mxu0 %v5609
      %7118 = vmatmul.mubr.f32.gmra.mxu0 %v5769
      %v7119 = vpop.f32.mrf.mxu0
      %v7120 = vadd.f32 %v6965, %v7119
      %v7121 = vpop.f32.mrf.mxu0
      %7122 = vmatprep.mubr.f32.mxu0 %v5610
      %7123 = vmatmul.mubr.f32.gmra.mxu0 %v5770
      %v7124 = vpop.f32.mrf.mxu0
      %v7125 = vadd.f32 %v6966, %v7124
      %v7126 = vpop.f32.mrf.mxu0
      %7127 = vmatprep.mubr.f32.mxu0 %v5611
      %7128 = vmatmul.mubr.f32.gmra.mxu0 %v5771
      %v7129 = vpop.f32.mrf.mxu0
      %v7130 = vadd.f32 %v6967, %v7129
      %v7131 = vpop.f32.mrf.mxu0
      %7132 = vmatprep.mubr.f32.mxu0 %v5612
      %7133 = vmatmul.mubr.f32.gmra.mxu0 %v5772
      %v7134 = vpop.f32.mrf.mxu0
      %v7135 = vadd.f32 %v6968, %v7134
      %v7136 = vpop.f32.mrf.mxu0
      %7137 = vmatprep.mubr.f32.mxu0 %v5613
      %7138 = vmatmul.mubr.f32.gmra.mxu0 %v5773
      %v7139 = vpop.f32.mrf.mxu0
      %v7140 = vadd.f32 %v6969, %v7139
      %v7141 = vpop.f32.mrf.mxu0
      %7142 = vmatprep.mubr.f32.mxu0 %v5614
      %7143 = vmatmul.mubr.f32.gmra.mxu0 %v5774
      %v7144 = vpop.f32.mrf.mxu0
      %v7145 = vadd.f32 %v6970, %v7144
      %v7146 = vpop.f32.mrf.mxu0
      %7147 = vmatprep.mubr.f32.mxu0 %v5615
      %7148 = vmatmul.mubr.f32.gmra.mxu0 %v5775
      %v7149 = vpop.f32.mrf.mxu0
      %v7150 = vadd.f32 %v6971, %v7149
      %v7151 = vpop.f32.mrf.mxu0
      %7152 = vmatprep.mubr.f32.mxu0 %v5616
      %7153 = vmatmul.mubr.f32.gmra.mxu0 %v5776
      %v7154 = vpop.f32.mrf.mxu0
      %v7155 = vadd.f32 %v6972, %v7154
      %v7156 = vpop.f32.mrf.mxu0
      %7157 = vmatprep.mubr.f32.mxu0 %v5617
      %7158 = vmatmul.mubr.f32.gmra.mxu0 %v5777
      %v7159 = vpop.f32.mrf.mxu0
      %v7160 = vadd.f32 %v6973, %v7159
      %v7161 = vpop.f32.mrf.mxu0
      %7162 = vmatprep.mubr.f32.mxu0 %v5618
      %7163 = vmatmul.mubr.f32.gmra.mxu0 %v5778
      %v7164 = vpop.f32.mrf.mxu0
      %v7165 = vadd.f32 %v6974, %v7164
      %v7166 = vpop.f32.mrf.mxu0
      %7167 = vmatprep.mubr.f32.mxu0 %v5619
      %7168 = vmatmul.mubr.f32.gmra.mxu0 %v5779
      %v7169 = vpop.f32.mrf.mxu0
      %v7170 = vadd.f32 %v6975, %v7169
      %v7171 = vpop.f32.mrf.mxu0
      %7172 = vmatprep.mubr.f32.mxu0 %v5620
      %7173 = vmatmul.mubr.f32.gmra.mxu0 %v5780
      %v7174 = vpop.f32.mrf.mxu0
      %v7175 = vadd.f32 %v6976, %v7174
      %v7176 = vpop.f32.mrf.mxu0
      %7177 = vmatprep.mubr.f32.mxu0 %v5621
      %7178 = vmatmul.mubr.f32.gmra.mxu0 %v5781
      %v7179 = vpop.f32.mrf.mxu0
      %v7180 = vadd.f32 %v6977, %v7179
      %v7181 = vpop.f32.mrf.mxu0
      %7182 = vmatprep.mubr.f32.mxu0 %v5622
      %7183 = vmatmul.mubr.f32.gmra.mxu0 %v5782
      %v7184 = vpop.f32.mrf.mxu0
      %v7185 = vadd.f32 %v6978, %v7184
      %v7186 = vpop.f32.mrf.mxu0
      %7187 = vmatprep.mubr.f32.mxu0 %v5623
      %7188 = vmatmul.mubr.f32.gmra.mxu0 %v5783
      %v7189 = vpop.f32.mrf.mxu0
      %v7190 = vadd.f32 %v6979, %v7189
      %v7191 = vpop.f32.mrf.mxu0
      %7192 = vmatprep.mubr.f32.mxu0 %v5624
      %7193 = vmatmul.mubr.f32.gmra.mxu0 %v5784
      %v7194 = vpop.f32.mrf.mxu0
      %v7195 = vadd.f32 %v6980, %v7194
      %v7196 = vpop.f32.mrf.mxu0
      %7197 = vmatprep.mubr.f32.mxu0 %v5625
      %7198 = vmatmul.mubr.f32.gmra.mxu0 %v5785
      %v7199 = vpop.f32.mrf.mxu0
      %v7200 = vadd.f32 %v6981, %v7199
      %v7201 = vpop.f32.mrf.mxu0
      %7202 = vmatprep.mubr.f32.mxu0 %v5626
      %7203 = vmatmul.mubr.f32.gmra.mxu0 %v5786
      %v7204 = vpop.f32.mrf.mxu0
      %v7205 = vadd.f32 %v6982, %v7204
      %v7206 = vpop.f32.mrf.mxu0
      %7207 = vdwg.mxu0
      %7208 = vmatprep.subr.mxu0 0.0
      %7209 = vmatpush1.msra.mxu0 %v6457
      %7210 = vmatprep.subr.mxu0 0.0
      %7211 = vmatpush1.msra.mxu0 %v6456
      %7212 = vmatprep.subr.mxu0 0.0
      %7213 = vmatpush1.msra.mxu0 %v6455
      %7214 = vmatprep.subr.mxu0 0.0
      %7215 = vmatpush1.msra.mxu0 %v6454
      %7216 = vmatprep.subr.mxu0 0.0
      %7217 = vmatpush1.msra.mxu0 %v6453
      %7218 = vmatprep.subr.mxu0 0.0
      %7219 = vmatpush1.msra.mxu0 %v6452
      %7220 = vmatprep.subr.mxu0 0.0
      %7221 = vmatpush1.msra.mxu0 %v6451
      %7222 = vmatprep.subr.mxu0 0.0
      %7223 = vmatpush1.msra.mxu0 %v6450
      %7224 = vmatprep.subr.mxu0 0.0
      %7225 = vmatpush1.msra.mxu0 %v6449
      %7226 = vmatprep.subr.mxu0 0.0
      %7227 = vmatpush1.msra.mxu0 %v6448
      %7228 = vmatprep.subr.mxu0 0.0
      %7229 = vmatpush1.msra.mxu0 %v6447
      %7230 = vmatprep.subr.mxu0 0.0
      %7231 = vmatpush1.msra.mxu0 %v6446
      %7232 = vmatprep.subr.mxu0 0.0
      %7233 = vmatpush1.msra.mxu0 %v6445
      %7234 = vmatprep.subr.mxu0 0.0
      %7235 = vmatpush1.msra.mxu0 %v6444
      %7236 = vmatprep.subr.mxu0 0.0
      %7237 = vmatpush1.msra.mxu0 %v6443
      %7238 = vmatprep.subr.mxu0 0.0
      %7239 = vmatpush1.msra.mxu0 %v6442
      %7240 = vmatprep.subr.mxu0 0.0
      %7241 = vmatpush2.msra.mxu0 0.0
      %7242 = vmatprep.subr.mxu0 0.0
      %7243 = vmatpush2.msra.mxu0 0.0
      %7244 = vmatprep.subr.mxu0 0.0
      %7245 = vmatpush2.msra.mxu0 0.0
      %7246 = vmatprep.subr.mxu0 0.0
      %7247 = vmatpush2.msra.mxu0 0.0
      %7248 = vmatprep.subr.mxu0 0.0
      %7249 = vmatpush2.msra.mxu0 0.0
      %7250 = vmatprep.subr.mxu0 0.0
      %7251 = vmatpush2.msra.mxu0 0.0
      %7252 = vmatprep.subr.mxu0 0.0
      %7253 = vmatpush2.msra.mxu0 0.0
      %7254 = vmatprep.subr.mxu0 0.0
      %7255 = vmatpush2.msra.mxu0 0.0
      %7256 = vmatprep.subr.mxu0 0.0
      %7257 = vmatpush2.msra.mxu0 0.0
      %7258 = vmatprep.subr.mxu0 0.0
      %7259 = vmatpush2.msra.mxu0 0.0
      %7260 = vmatprep.subr.mxu0 0.0
      %7261 = vmatpush2.msra.mxu0 0.0
      %7262 = vmatprep.subr.mxu0 0.0
      %7263 = vmatpush2.msra.mxu0 0.0
      %7264 = vmatprep.subr.mxu0 0.0
      %7265 = vmatpush2.msra.mxu0 0.0
      %7266 = vmatprep.subr.mxu0 0.0
      %7267 = vmatpush2.msra.mxu0 0.0
      %7268 = vmatprep.subr.mxu0 0.0
      %7269 = vmatpush2.msra.mxu0 0.0
      %7270 = vmatprep.subr.mxu0 0.0
      %7271 = vmatpush2.msra.mxu0 0.0
      %7272 = vmatprep.mubr.f32.mxu0 0.0
      %7273 = vmatmul.mubr.f32.gmra.mxu0 %v5883
      %v7274 = vpop.f32.mrf.mxu0
      %v7275 = vadd.f32 %v7050, %v7274
      %v7276 = vpop.f32.mrf.mxu0
      %7277 = vmatprep.mubr.f32.mxu0 0.0
      %7278 = vmatmul.mubr.f32.gmra.mxu0 %v5884
      %v7279 = vpop.f32.mrf.mxu0
      %v7280 = vadd.f32 %v7055, %v7279
      %v7281 = vpop.f32.mrf.mxu0
      %7282 = vmatprep.mubr.f32.mxu0 0.0
      %7283 = vmatmul.mubr.f32.gmra.mxu0 %v5885
      %v7284 = vpop.f32.mrf.mxu0
      %v7285 = vadd.f32 %v7060, %v7284
      %v7286 = vpop.f32.mrf.mxu0
      %7287 = vmatprep.mubr.f32.mxu0 0.0
      %7288 = vmatmul.mubr.f32.gmra.mxu0 %v5886
      %v7289 = vpop.f32.mrf.mxu0
      %v7290 = vadd.f32 %v7065, %v7289
      %v7291 = vpop.f32.mrf.mxu0
      %7292 = vmatprep.mubr.f32.mxu0 0.0
      %7293 = vmatmul.mubr.f32.gmra.mxu0 %v5887
      %v7294 = vpop.f32.mrf.mxu0
      %v7295 = vadd.f32 %v7070, %v7294
      %v7296 = vpop.f32.mrf.mxu0
      %7297 = vmatprep.mubr.f32.mxu0 0.0
      %7298 = vmatmul.mubr.f32.gmra.mxu0 %v5888
      %v7299 = vpop.f32.mrf.mxu0
      %v7300 = vadd.f32 %v7075, %v7299
      %v7301 = vpop.f32.mrf.mxu0
      %7302 = vmatprep.mubr.f32.mxu0 0.0
      %7303 = vmatmul.mubr.f32.gmra.mxu0 %v5889
      %v7304 = vpop.f32.mrf.mxu0
      %v7305 = vadd.f32 %v7080, %v7304
      %v7306 = vpop.f32.mrf.mxu0
      %7307 = vmatprep.mubr.f32.mxu0 0.0
      %7308 = vmatmul.mubr.f32.gmra.mxu0 %v5890
      %v7309 = vpop.f32.mrf.mxu0
      %v7310 = vadd.f32 %v7085, %v7309
      %v7311 = vpop.f32.mrf.mxu0
      %7312 = vmatprep.mubr.f32.mxu0 0.0
      %7313 = vmatmul.mubr.f32.gmra.mxu0 %v5891
      %v7314 = vpop.f32.mrf.mxu0
      %v7315 = vadd.f32 %v7090, %v7314
      %v7316 = vpop.f32.mrf.mxu0
      %7317 = vmatprep.mubr.f32.mxu0 0.0
      %7318 = vmatmul.mubr.f32.gmra.mxu0 %v5892
      %v7319 = vpop.f32.mrf.mxu0
      %v7320 = vadd.f32 %v7095, %v7319
      %v7321 = vpop.f32.mrf.mxu0
      %7322 = vmatprep.mubr.f32.mxu0 0.0
      %7323 = vmatmul.mubr.f32.gmra.mxu0 %v5893
      %v7324 = vpop.f32.mrf.mxu0
      %v7325 = vadd.f32 %v7100, %v7324
      %v7326 = vpop.f32.mrf.mxu0
      %7327 = vmatprep.mubr.f32.mxu0 0.0
      %7328 = vmatmul.mubr.f32.gmra.mxu0 %v5894
      %v7329 = vpop.f32.mrf.mxu0
      %v7330 = vadd.f32 %v7105, %v7329
      %v7331 = vpop.f32.mrf.mxu0
      %7332 = vmatprep.mubr.f32.mxu0 0.0
      %7333 = vmatmul.mubr.f32.gmra.mxu0 %v5895
      %v7334 = vpop.f32.mrf.mxu0
      %v7335 = vadd.f32 %v7110, %v7334
      %v7336 = vpop.f32.mrf.mxu0
      %7337 = vmatprep.mubr.f32.mxu0 0.0
      %7338 = vmatmul.mubr.f32.gmra.mxu0 %v5896
      %v7339 = vpop.f32.mrf.mxu0
      %v7340 = vadd.f32 %v7115, %v7339
      %v7341 = vpop.f32.mrf.mxu0
      %7342 = vmatprep.mubr.f32.mxu0 0.0
      %7343 = vmatmul.mubr.f32.gmra.mxu0 %v5897
      %v7344 = vpop.f32.mrf.mxu0
      %v7345 = vadd.f32 %v7120, %v7344
      %v7346 = vpop.f32.mrf.mxu0
      %7347 = vmatprep.mubr.f32.mxu0 0.0
      %7348 = vmatmul.mubr.f32.gmra.mxu0 %v5898
      %v7349 = vpop.f32.mrf.mxu0
      %v7350 = vadd.f32 %v7125, %v7349
      %v7351 = vpop.f32.mrf.mxu0
      %7352 = vmatprep.mubr.f32.mxu0 0.0
      %7353 = vmatmul.mubr.f32.gmra.mxu0 %v5899
      %v7354 = vpop.f32.mrf.mxu0
      %v7355 = vadd.f32 %v7130, %v7354
      %v7356 = vpop.f32.mrf.mxu0
      %7357 = vmatprep.mubr.f32.mxu0 0.0
      %7358 = vmatmul.mubr.f32.gmra.mxu0 %v5900
      %v7359 = vpop.f32.mrf.mxu0
      %v7360 = vadd.f32 %v7135, %v7359
      %v7361 = vpop.f32.mrf.mxu0
      %7362 = vmatprep.mubr.f32.mxu0 0.0
      %7363 = vmatmul.mubr.f32.gmra.mxu0 %v5901
      %v7364 = vpop.f32.mrf.mxu0
      %v7365 = vadd.f32 %v7140, %v7364
      %v7366 = vpop.f32.mrf.mxu0
      %7367 = vmatprep.mubr.f32.mxu0 0.0
      %7368 = vmatmul.mubr.f32.gmra.mxu0 %v5902
      %v7369 = vpop.f32.mrf.mxu0
      %v7370 = vadd.f32 %v7145, %v7369
      %v7371 = vpop.f32.mrf.mxu0
      %7372 = vmatprep.mubr.f32.mxu0 0.0
      %7373 = vmatmul.mubr.f32.gmra.mxu0 %v5903
      %v7374 = vpop.f32.mrf.mxu0
      %v7375 = vadd.f32 %v7150, %v7374
      %v7376 = vpop.f32.mrf.mxu0
      %7377 = vmatprep.mubr.f32.mxu0 0.0
      %7378 = vmatmul.mubr.f32.gmra.mxu0 %v5904
      %v7379 = vpop.f32.mrf.mxu0
      %v7380 = vadd.f32 %v7155, %v7379
      %v7381 = vpop.f32.mrf.mxu0
      %7382 = vmatprep.mubr.f32.mxu0 0.0
      %7383 = vmatmul.mubr.f32.gmra.mxu0 %v5905
      %v7384 = vpop.f32.mrf.mxu0
      %v7385 = vadd.f32 %v7160, %v7384
      %v7386 = vpop.f32.mrf.mxu0
      %7387 = vmatprep.mubr.f32.mxu0 0.0
      %7388 = vmatmul.mubr.f32.gmra.mxu0 %v5906
      %v7389 = vpop.f32.mrf.mxu0
      %v7390 = vadd.f32 %v7165, %v7389
      %v7391 = vpop.f32.mrf.mxu0
      %7392 = vmatprep.mubr.f32.mxu0 0.0
      %7393 = vmatmul.mubr.f32.gmra.mxu0 %v5907
      %v7394 = vpop.f32.mrf.mxu0
      %v7395 = vadd.f32 %v7170, %v7394
      %v7396 = vpop.f32.mrf.mxu0
      %7397 = vmatprep.mubr.f32.mxu0 0.0
      %7398 = vmatmul.mubr.f32.gmra.mxu0 %v5908
      %v7399 = vpop.f32.mrf.mxu0
      %v7400 = vadd.f32 %v7175, %v7399
      %v7401 = vpop.f32.mrf.mxu0
      %7402 = vmatprep.mubr.f32.mxu0 0.0
      %7403 = vmatmul.mubr.f32.gmra.mxu0 %v5909
      %v7404 = vpop.f32.mrf.mxu0
      %v7405 = vadd.f32 %v7180, %v7404
      %v7406 = vpop.f32.mrf.mxu0
      %7407 = vmatprep.mubr.f32.mxu0 0.0
      %7408 = vmatmul.mubr.f32.gmra.mxu0 %v5910
      %v7409 = vpop.f32.mrf.mxu0
      %v7410 = vadd.f32 %v7185, %v7409
      %v7411 = vpop.f32.mrf.mxu0
      %7412 = vmatprep.mubr.f32.mxu0 0.0
      %7413 = vmatmul.mubr.f32.gmra.mxu0 %v5911
      %v7414 = vpop.f32.mrf.mxu0
      %v7415 = vadd.f32 %v7190, %v7414
      %v7416 = vpop.f32.mrf.mxu0
      %7417 = vmatprep.mubr.f32.mxu0 0.0
      %7418 = vmatmul.mubr.f32.gmra.mxu0 %v5912
      %v7419 = vpop.f32.mrf.mxu0
      %v7420 = vadd.f32 %v7195, %v7419
      %v7421 = vpop.f32.mrf.mxu0
      %7422 = vmatprep.mubr.f32.mxu0 0.0
      %7423 = vmatmul.mubr.f32.gmra.mxu0 %v5913
      %v7424 = vpop.f32.mrf.mxu0
      %v7425 = vadd.f32 %v7200, %v7424
      %v7426 = vpop.f32.mrf.mxu0
      %7427 = vmatprep.mubr.f32.mxu0 0.0
      %7428 = vmatmul.mubr.f32.gmra.mxu0 %v5914
      %v7429 = vpop.f32.mrf.mxu0
      %v7430 = vadd.f32 %v7205, %v7429
      %v7431 = vpop.f32.mrf.mxu0
      %7432 = vdwg.mxu0
      %v7433 = vmul.f32 %v1491, %v6805
      %v7434 = vmul.f32 %v1492, %v6810
      %v7435 = vmul.f32 %v1493, %v6815
      %v7436 = vmul.f32 %v1494, %v6820
      %v7437 = vmul.f32 %v1495, %v6825
      %v7438 = vmul.f32 %v1496, %v6830
      %v7439 = vmul.f32 %v1497, %v6835
      %v7440 = vmul.f32 %v1498, %v6840
      %v7441 = vmul.f32 %v1499, %v6845
      %v7442 = vmul.f32 %v1500, %v6850
      %v7443 = vmul.f32 %v1501, %v6855
      %v7444 = vmul.f32 %v1502, %v6860
      %v7445 = vmul.f32 %v1503, %v6865
      %v7446 = vmul.f32 %v1504, %v6870
      %v7447 = vmul.f32 %v1505, %v6875
      %v7448 = vmul.f32 %v1506, %v6880
      %v7449 = vmul.f32 %v1507, %v6885
      %v7450 = vmul.f32 %v1508, %v6890
      %v7451 = vmul.f32 %v1509, %v6895
      %v7452 = vmul.f32 %v1510, %v6900
      %v7453 = vmul.f32 %v1511, %v6905
      %v7454 = vmul.f32 %v1512, %v6910
      %v7455 = vmul.f32 %v1513, %v6915
      %v7456 = vmul.f32 %v1514, %v6920
      %v7457 = vmul.f32 %v1515, %v6925
      %v7458 = vmul.f32 %v1516, %v6930
      %v7459 = vmul.f32 %v1517, %v6935
      %v7460 = vmul.f32 %v1518, %v6940
      %v7461 = vmul.f32 %v1519, %v6945
      %v7462 = vmul.f32 %v1520, %v6950
      %v7463 = vadd.f32 %v7275, %v7433
      %v7464 = vadd.f32 %v7280, %v7434
      %v7465 = vadd.f32 %v7285, %v7435
      %v7466 = vadd.f32 %v7290, %v7436
      %v7467 = vadd.f32 %v7295, %v7437
      %v7468 = vadd.f32 %v7300, %v7438
      %v7469 = vadd.f32 %v7305, %v7439
      %v7470 = vadd.f32 %v7310, %v7440
      %v7471 = vadd.f32 %v7315, %v7441
      %v7472 = vadd.f32 %v7320, %v7442
      %v7473 = vadd.f32 %v7325, %v7443
      %v7474 = vadd.f32 %v7330, %v7444
      %v7475 = vadd.f32 %v7335, %v7445
      %v7476 = vadd.f32 %v7340, %v7446
      %v7477 = vadd.f32 %v7345, %v7447
      %v7478 = vadd.f32 %v7350, %v7448
      %v7479 = vadd.f32 %v7355, %v7449
      %v7480 = vadd.f32 %v7360, %v7450
      %v7481 = vadd.f32 %v7365, %v7451
      %v7482 = vadd.f32 %v7370, %v7452
      %v7483 = vadd.f32 %v7375, %v7453
      %v7484 = vadd.f32 %v7380, %v7454
      %v7485 = vadd.f32 %v7385, %v7455
      %v7486 = vadd.f32 %v7390, %v7456
      %v7487 = vadd.f32 %v7395, %v7457
      %v7488 = vadd.f32 %v7400, %v7458
      %v7489 = vadd.f32 %v7405, %v7459
      %v7490 = vadd.f32 %v7410, %v7460
      %v7491 = vadd.f32 %v7415, %v7461
      %v7492 = vadd.f32 %v7420, %v7462
      %v7493 = vadd.f32 %v7425, %v3364
      %v7494 = vadd.f32 %v7430, %v3365
      %v7495 = vlaneseq
      %v7496 = vshrl.u32 %v7495, 7
      %v7497 = vsub.s32 3, %v7496
      %v7498 = vrot.slane %v1523, %v7497
      %v7499 = vadd.f32 %v7463, %v7498
      %v7500 = vadd.f32 %v7464, %v7498
      %v7501 = vadd.f32 %v7465, %v7498
      %v7502 = vadd.f32 %v7466, %v7498
      %v7503 = vadd.f32 %v7467, %v7498
      %v7504 = vadd.f32 %v7468, %v7498
      %v7505 = vadd.f32 %v7469, %v7498
      %v7506 = vadd.f32 %v7470, %v7498
      %v7507 = vadd.f32 %v7471, %v7498
      %v7508 = vadd.f32 %v7472, %v7498
      %v7509 = vadd.f32 %v7473, %v7498
      %v7510 = vadd.f32 %v7474, %v7498
      %v7511 = vadd.f32 %v7475, %v7498
      %v7512 = vadd.f32 %v7476, %v7498
      %v7513 = vadd.f32 %v7477, %v7498
      %v7514 = vadd.f32 %v7478, %v7498
      %v7515 = vadd.f32 %v7479, %v7498
      %v7516 = vadd.f32 %v7480, %v7498
      %v7517 = vadd.f32 %v7481, %v7498
      %v7518 = vadd.f32 %v7482, %v7498
      %v7519 = vadd.f32 %v7483, %v7498
      %v7520 = vadd.f32 %v7484, %v7498
      %v7521 = vadd.f32 %v7485, %v7498
      %v7522 = vadd.f32 %v7486, %v7498
      %v7523 = vadd.f32 %v7487, %v7498
      %v7524 = vadd.f32 %v7488, %v7498
      %v7525 = vadd.f32 %v7489, %v7498
      %v7526 = vadd.f32 %v7490, %v7498
      %v7527 = vadd.f32 %v7491, %v7498
      %v7528 = vadd.f32 %v7492, %v7498
      %v7529 = vadd.f32 %v7493, %v7498
      %v7530 = vadd.f32 %v7494, %v7498
      %vm7531 = vcmp.gt.f32.partialorder %v7499, 0.0
      %vm7532 = vcmp.gt.f32.partialorder %v7500, 0.0
      %vm7533 = vcmp.gt.f32.partialorder %v7501, 0.0
      %vm7534 = vcmp.gt.f32.partialorder %v7502, 0.0
      %vm7535 = vcmp.gt.f32.partialorder %v7503, 0.0
      %vm7536 = vcmp.gt.f32.partialorder %v7504, 0.0
      %vm7537 = vcmp.gt.f32.partialorder %v7505, 0.0
      %vm7538 = vcmp.gt.f32.partialorder %v7506, 0.0
      %vm7539 = vcmp.gt.f32.partialorder %v7507, 0.0
      %vm7540 = vcmp.gt.f32.partialorder %v7508, 0.0
      %vm7541 = vcmp.gt.f32.partialorder %v7509, 0.0
      %vm7542 = vcmp.gt.f32.partialorder %v7510, 0.0
      %vm7543 = vcmp.gt.f32.partialorder %v7511, 0.0
      %vm7544 = vcmp.gt.f32.partialorder %v7512, 0.0
      %vm7545 = vcmp.gt.f32.partialorder %v7513, 0.0
      %vm7546 = vcmp.gt.f32.partialorder %v7514, 0.0
      %vm7547 = vcmp.gt.f32.partialorder %v7515, 0.0
      %vm7548 = vcmp.gt.f32.partialorder %v7516, 0.0
      %vm7549 = vcmp.gt.f32.partialorder %v7517, 0.0
      %vm7550 = vcmp.gt.f32.partialorder %v7518, 0.0
      %vm7551 = vcmp.gt.f32.partialorder %v7519, 0.0
      %vm7552 = vcmp.gt.f32.partialorder %v7520, 0.0
      %vm7553 = vcmp.gt.f32.partialorder %v7521, 0.0
      %vm7554 = vcmp.gt.f32.partialorder %v7522, 0.0
      %vm7555 = vcmp.gt.f32.partialorder %v7523, 0.0
      %vm7556 = vcmp.gt.f32.partialorder %v7524, 0.0
      %vm7557 = vcmp.gt.f32.partialorder %v7525, 0.0
      %vm7558 = vcmp.gt.f32.partialorder %v7526, 0.0
      %vm7559 = vcmp.gt.f32.partialorder %v7527, 0.0
      %vm7560 = vcmp.gt.f32.partialorder %v7528, 0.0
      %vm7561 = vcmp.gt.f32.partialorder %v7529, 0.0
      %vm7562 = vcmp.gt.f32.partialorder %v7530, 0.0
      %v7563 = vmul.f32 %v7499, 0.01
      %v7564 = vmul.f32 %v7500, 0.01
      %v7565 = vmul.f32 %v7501, 0.01
      %v7566 = vmul.f32 %v7502, 0.01
      %v7567 = vmul.f32 %v7503, 0.01
      %v7568 = vmul.f32 %v7504, 0.01
      %v7569 = vmul.f32 %v7505, 0.01
      %v7570 = vmul.f32 %v7506, 0.01
      %v7571 = vmul.f32 %v7507, 0.01
      %v7572 = vmul.f32 %v7508, 0.01
      %v7573 = vmul.f32 %v7509, 0.01
      %v7574 = vmul.f32 %v7510, 0.01
      %v7575 = vmul.f32 %v7511, 0.01
      %v7576 = vmul.f32 %v7512, 0.01
      %v7577 = vmul.f32 %v7513, 0.01
      %v7578 = vmul.f32 %v7514, 0.01
      %v7579 = vmul.f32 %v7515, 0.01
      %v7580 = vmul.f32 %v7516, 0.01
      %v7581 = vmul.f32 %v7517, 0.01
      %v7582 = vmul.f32 %v7518, 0.01
      %v7583 = vmul.f32 %v7519, 0.01
      %v7584 = vmul.f32 %v7520, 0.01
      %v7585 = vmul.f32 %v7521, 0.01
      %v7586 = vmul.f32 %v7522, 0.01
      %v7587 = vmul.f32 %v7523, 0.01
      %v7588 = vmul.f32 %v7524, 0.01
      %v7589 = vmul.f32 %v7525, 0.01
      %v7590 = vmul.f32 %v7526, 0.01
      %v7591 = vmul.f32 %v7527, 0.01
      %v7592 = vmul.f32 %v7528, 0.01
      %v7593 = vmul.f32 %v7529, 0.01
      %v7594 = vmul.f32 %v7530, 0.01
      %v7595 = vsel %vm7531, %v7499, %v7563
      %v7596 = vsel %vm7532, %v7500, %v7564
      %v7597 = vsel %vm7533, %v7501, %v7565
      %v7598 = vsel %vm7534, %v7502, %v7566
      %v7599 = vsel %vm7535, %v7503, %v7567
      %v7600 = vsel %vm7536, %v7504, %v7568
      %v7601 = vsel %vm7537, %v7505, %v7569
      %v7602 = vsel %vm7538, %v7506, %v7570
      %v7603 = vsel %vm7539, %v7507, %v7571
      %v7604 = vsel %vm7540, %v7508, %v7572
      %v7605 = vsel %vm7541, %v7509, %v7573
      %v7606 = vsel %vm7542, %v7510, %v7574
      %v7607 = vsel %vm7543, %v7511, %v7575
      %v7608 = vsel %vm7544, %v7512, %v7576
      %v7609 = vsel %vm7545, %v7513, %v7577
      %v7610 = vsel %vm7546, %v7514, %v7578
      %v7611 = vsel %vm7547, %v7515, %v7579
      %v7612 = vsel %vm7548, %v7516, %v7580
      %v7613 = vsel %vm7549, %v7517, %v7581
      %v7614 = vsel %vm7550, %v7518, %v7582
      %v7615 = vsel %vm7551, %v7519, %v7583
      %v7616 = vsel %vm7552, %v7520, %v7584
      %v7617 = vsel %vm7553, %v7521, %v7585
      %v7618 = vsel %vm7554, %v7522, %v7586
      %v7619 = vsel %vm7555, %v7523, %v7587
      %v7620 = vsel %vm7556, %v7524, %v7588
      %v7621 = vsel %vm7557, %v7525, %v7589
      %v7622 = vsel %vm7558, %v7526, %v7590
      %v7623 = vsel %vm7559, %v7527, %v7591
      %v7624 = vsel %vm7560, %v7528, %v7592
      %v7625 = vsel %vm7561, %v7529, %v7593
      %v7626 = vsel %vm7562, %v7530, %v7594
      %v7627 = vsel %vm4075, %v7595, 0.0
      %v7628 = vsel %vm4075, %v7596, 0.0
      %v7629 = vadd.f32 %v7627, %v7628
      %v7630 = vsel %vm4075, %v7597, 0.0
      %v7631 = vadd.f32 %v7629, %v7630
      %v7632 = vsel %vm4075, %v7598, 0.0
      %v7633 = vadd.f32 %v7631, %v7632
      %v7634 = vsel %vm4075, %v7599, 0.0
      %v7635 = vadd.f32 %v7633, %v7634
      %v7636 = vsel %vm4075, %v7600, 0.0
      %v7637 = vadd.f32 %v7635, %v7636
      %v7638 = vsel %vm4075, %v7601, 0.0
      %v7639 = vadd.f32 %v7637, %v7638
      %v7640 = vsel %vm4075, %v7602, 0.0
      %v7641 = vadd.f32 %v7639, %v7640
      %v7642 = vsel %vm4075, %v7603, 0.0
      %v7643 = vadd.f32 %v7641, %v7642
      %v7644 = vsel %vm4075, %v7604, 0.0
      %v7645 = vadd.f32 %v7643, %v7644
      %v7646 = vsel %vm4075, %v7605, 0.0
      %v7647 = vadd.f32 %v7645, %v7646
      %v7648 = vsel %vm4075, %v7606, 0.0
      %v7649 = vadd.f32 %v7647, %v7648
      %v7650 = vsel %vm4075, %v7607, 0.0
      %v7651 = vadd.f32 %v7649, %v7650
      %v7652 = vsel %vm4075, %v7608, 0.0
      %v7653 = vadd.f32 %v7651, %v7652
      %v7654 = vsel %vm4075, %v7609, 0.0
      %v7655 = vadd.f32 %v7653, %v7654
      %v7656 = vsel %vm4075, %v7610, 0.0
      %v7657 = vadd.f32 %v7655, %v7656
      %v7658 = vsel %vm4075, %v7611, 0.0
      %v7659 = vadd.f32 %v7657, %v7658
      %v7660 = vsel %vm4075, %v7612, 0.0
      %v7661 = vadd.f32 %v7659, %v7660
      %v7662 = vsel %vm4075, %v7613, 0.0
      %v7663 = vadd.f32 %v7661, %v7662
      %v7664 = vsel %vm4075, %v7614, 0.0
      %v7665 = vadd.f32 %v7663, %v7664
      %v7666 = vsel %vm4075, %v7615, 0.0
      %v7667 = vadd.f32 %v7665, %v7666
      %v7668 = vsel %vm4075, %v7616, 0.0
      %v7669 = vadd.f32 %v7667, %v7668
      %v7670 = vsel %vm4075, %v7617, 0.0
      %v7671 = vadd.f32 %v7669, %v7670
      %v7672 = vsel %vm4075, %v7618, 0.0
      %v7673 = vadd.f32 %v7671, %v7672
      %v7674 = vsel %vm4075, %v7619, 0.0
      %v7675 = vadd.f32 %v7673, %v7674
      %v7676 = vsel %vm4075, %v7620, 0.0
      %v7677 = vadd.f32 %v7675, %v7676
      %v7678 = vsel %vm4075, %v7621, 0.0
      %v7679 = vadd.f32 %v7677, %v7678
      %v7680 = vsel %vm4075, %v7622, 0.0
      %v7681 = vadd.f32 %v7679, %v7680
      %v7682 = vsel %vm4075, %v7623, 0.0
      %v7683 = vadd.f32 %v7681, %v7682
      %v7684 = vsel %vm4075, %v7624, 0.0
      %v7685 = vadd.f32 %v7683, %v7684
      %v7686 = vsel %vm4075, %v7625, 0.0
      %v7687 = vadd.f32 %v7685, %v7686
      %v7688 = vsel %vm4075, %v7626, 0.0
      %v7689 = vadd.f32 %v7687, %v7688
      %v7690 = vrot.slane %v7689, 4
      %v7691 = vadd.f32 %v7689, %v7690
      %v7692 = vrot.slane %v7691, 2
      %v7693 = vadd.f32 %v7691, %v7692
      %v7694 = vrot.slane %v7693, 1
      %v7695 = vadd.f32 %v7693, %v7694
      %v7696 = vrcp.pop 256.0
      %v7697 = vmul.f32 %v7695, %v7696
      %v7698 = vld [vmem:[%s5] sm:$0xff]
      %v7699 = vld [vmem:[%s5 + $0x8] sm:$0xff]
      %v7700 = vld [vmem:[%s5 + $0x10] sm:$0xff]
      %v7701 = vld [vmem:[%s5 + $0x18] sm:$0xff]
      %v7702 = vld [vmem:[%s5 + $0x20] sm:$0xff]
      %v7703 = vld [vmem:[%s5 + $0x28] sm:$0xff]
      %v7704 = vld [vmem:[%s5 + $0x30] sm:$0xff]
      %v7705 = vld [vmem:[%s5 + $0x38] sm:$0xff]
      %v7707 = vrot.slane %v1523, 4
      %v7710 = vsel %vm4075, %v7697, 0
      %7712 = vmatprep.subr.mxu0 0.0
      %7713 = vmatpush1.msra.mxu0 0.0
      %7714 = vmatprep.subr.mxu0 0.0
      %7715 = vmatpush1.msra.mxu0 0.0
      %7716 = vmatprep.subr.mxu0 0.0
      %7717 = vmatpush1.msra.mxu0 0.0
      %7718 = vmatprep.subr.mxu0 0.0
      %7719 = vmatpush1.msra.mxu0 0.0
      %7720 = vmatprep.subr.mxu0 0.0
      %7721 = vmatpush1.msra.mxu0 0.0
      %7722 = vmatprep.subr.mxu0 0.0
      %7723 = vmatpush1.msra.mxu0 0.0
      %7724 = vmatprep.subr.mxu0 0.0
      %7725 = vmatpush1.msra.mxu0 0.0
      %7726 = vmatprep.subr.mxu0 0.0
      %7727 = vmatpush1.msra.mxu0 0.0
      %7728 = vmatprep.subr.mxu0 0.0
      %7729 = vmatpush1.msra.mxu0 %v7705
      %7730 = vmatprep.subr.mxu0 0.0
      %7731 = vmatpush1.msra.mxu0 %v7704
      %7732 = vmatprep.subr.mxu0 0.0
      %7733 = vmatpush1.msra.mxu0 %v7703
      %7734 = vmatprep.subr.mxu0 0.0
      %7735 = vmatpush1.msra.mxu0 %v7702
      %7736 = vmatprep.subr.mxu0 0.0
      %7737 = vmatpush1.msra.mxu0 %v7701
      %7738 = vmatprep.subr.mxu0 0.0
      %7739 = vmatpush1.msra.mxu0 %v7700
      %7740 = vmatprep.subr.mxu0 0.0
      %7741 = vmatpush1.msra.mxu0 %v7699
      %7742 = vmatprep.subr.mxu0 0.0
      %7743 = vmatpush1.msra.mxu0 %v7698
      %7744 = vmatprep.subr.mxu0 0.0
      %7745 = vmatpush2.msra.mxu0 0.0
      %7746 = vmatprep.subr.mxu0 0.0
      %7747 = vmatpush2.msra.mxu0 0.0
      %7748 = vmatprep.subr.mxu0 0.0
      %7749 = vmatpush2.msra.mxu0 0.0
      %7750 = vmatprep.subr.mxu0 0.0
      %7751 = vmatpush2.msra.mxu0 0.0
      %7752 = vmatprep.subr.mxu0 0.0
      %7753 = vmatpush2.msra.mxu0 0.0
      %7754 = vmatprep.subr.mxu0 0.0
      %7755 = vmatpush2.msra.mxu0 0.0
      %7756 = vmatprep.subr.mxu0 0.0
      %7757 = vmatpush2.msra.mxu0 0.0
      %7758 = vmatprep.subr.mxu0 0.0
      %7759 = vmatpush2.msra.mxu0 0.0
      %7760 = vmatprep.subr.mxu0 0.0
      %7761 = vmatpush2.msra.mxu0 0.0
      %7762 = vmatprep.subr.mxu0 0.0
      %7763 = vmatpush2.msra.mxu0 0.0
      %7764 = vmatprep.subr.mxu0 0.0
      %7765 = vmatpush2.msra.mxu0 0.0
      %7766 = vmatprep.subr.mxu0 0.0
      %7767 = vmatpush2.msra.mxu0 0.0
      %7768 = vmatprep.subr.mxu0 0.0
      %7769 = vmatpush2.msra.mxu0 0.0
      %7770 = vmatprep.subr.mxu0 0.0
      %7771 = vmatpush2.msra.mxu0 0.0
      %7772 = vmatprep.subr.mxu0 0.0
      %7773 = vmatpush2.msra.mxu0 0.0
      %7774 = vmatprep.subr.mxu0 0.0
      %7775 = vmatpush2.msra.mxu0 0.0
      %7776 = vmatprep.mubr.f32.mxu0 0.0
      %7777 = vmatmul.mubr.f32.gmra.mxu0 %v7710
      %v7778 = vpop.f32.mrf.mxu0
      %v7779 = vadd.f32 %v7707, %v7778
      %v7780 = vpop.f32.mrf.mxu0
      %7781 = vdwg.mxu0
      %v7782 = vmax.f32 %v7779, 0.0
      %v7783 = vld [vmem:[%s6] sm:$0xff]
      %v7784 = vrot.slane %v1523, 5
      %vm7786 = vcmask 64512
      %v7788 = vsel %vm7786, %v7782, 0
      %7790 = vmatprep.subr.mxu0 0.0
      %7791 = vmatpush1.msra.mxu0 0.0
      %7792 = vmatprep.subr.mxu0 0.0
      %7793 = vmatpush1.msra.mxu0 0.0
      %7794 = vmatprep.subr.mxu0 0.0
      %7795 = vmatpush1.msra.mxu0 0.0
      %7796 = vmatprep.subr.mxu0 0.0
      %7797 = vmatpush1.msra.mxu0 0.0
      %7798 = vmatprep.subr.mxu0 0.0
      %7799 = vmatpush1.msra.mxu0 0.0
      %7800 = vmatprep.subr.mxu0 0.0
      %7801 = vmatpush1.msra.mxu0 0.0
      %7802 = vmatprep.subr.mxu0 0.0
      %7803 = vmatpush1.msra.mxu0 0.0
      %7804 = vmatprep.subr.mxu0 0.0
      %7805 = vmatpush1.msra.mxu0 0.0
      %7806 = vmatprep.subr.mxu0 0.0
      %7807 = vmatpush1.msra.mxu0 0.0
      %7808 = vmatprep.subr.mxu0 0.0
      %7809 = vmatpush1.msra.mxu0 0.0
      %7810 = vmatprep.subr.mxu0 0.0
      %7811 = vmatpush1.msra.mxu0 0.0
      %7812 = vmatprep.subr.mxu0 0.0
      %7813 = vmatpush1.msra.mxu0 0.0
      %7814 = vmatprep.subr.mxu0 0.0
      %7815 = vmatpush1.msra.mxu0 0.0
      %7816 = vmatprep.subr.mxu0 0.0
      %7817 = vmatpush1.msra.mxu0 0.0
      %7818 = vmatprep.subr.mxu0 0.0
      %7819 = vmatpush1.msra.mxu0 0.0
      %7820 = vmatprep.subr.mxu0 0.0
      %7821 = vmatpush1.msra.mxu0 %v7783
      %7822 = vmatprep.subr.mxu0 0.0
      %7823 = vmatpush2.msra.mxu0 0.0
      %7824 = vmatprep.subr.mxu0 0.0
      %7825 = vmatpush2.msra.mxu0 0.0
      %7826 = vmatprep.subr.mxu0 0.0
      %7827 = vmatpush2.msra.mxu0 0.0
      %7828 = vmatprep.subr.mxu0 0.0
      %7829 = vmatpush2.msra.mxu0 0.0
      %7830 = vmatprep.subr.mxu0 0.0
      %7831 = vmatpush2.msra.mxu0 0.0
      %7832 = vmatprep.subr.mxu0 0.0
      %7833 = vmatpush2.msra.mxu0 0.0
      %7834 = vmatprep.subr.mxu0 0.0
      %7835 = vmatpush2.msra.mxu0 0.0
      %7836 = vmatprep.subr.mxu0 0.0
      %7837 = vmatpush2.msra.mxu0 0.0
      %7838 = vmatprep.subr.mxu0 0.0
      %7839 = vmatpush2.msra.mxu0 0.0
      %7840 = vmatprep.subr.mxu0 0.0
      %7841 = vmatpush2.msra.mxu0 0.0
      %7842 = vmatprep.subr.mxu0 0.0
      %7843 = vmatpush2.msra.mxu0 0.0
      %7844 = vmatprep.subr.mxu0 0.0
      %7845 = vmatpush2.msra.mxu0 0.0
      %7846 = vmatprep.subr.mxu0 0.0
      %7847 = vmatpush2.msra.mxu0 0.0
      %7848 = vmatprep.subr.mxu0 0.0
      %7849 = vmatpush2.msra.mxu0 0.0
      %7850 = vmatprep.subr.mxu0 0.0
      %7851 = vmatpush2.msra.mxu0 0.0
      %7852 = vmatprep.subr.mxu0 0.0
      %7853 = vmatpush2.msra.mxu0 0.0
      %7854 = vmatprep.mubr.f32.mxu0 0.0
      %7855 = vmatmul.mubr.f32.gmra.mxu0 %v7788
      %v7856 = vpop.f32.mrf.mxu0
      %v7857 = vadd.f32 %v7784, %v7856
      %v7858 = vpop.f32.mrf.mxu0
      %7859 = vdwg.mxu0
      %v7860 = vmul.f32 %v7857, 0.5
      %v7861 = vtanh.pop %v7860
      %v7862 = vadd.f32 %v7861, 1.0
      %v7863 = vmul.f32 %v7862, 0.5
      %v7864 = vlaneseq
      %v7865 = vshrl.u32 %v7864, 7
      %v7866 = vsub.s32 0, %v7865
      %v7867 = vrot.slane %v7863, %v7866
      %v7868 = vmul.f32 %v7595, %v7867
      %v7869 = vmul.f32 %v7596, %v7867
      %v7870 = vmul.f32 %v7597, %v7867
      %v7871 = vmul.f32 %v7598, %v7867
      %v7872 = vmul.f32 %v7599, %v7867
      %v7873 = vmul.f32 %v7600, %v7867
      %v7874 = vmul.f32 %v7601, %v7867
      %v7875 = vmul.f32 %v7602, %v7867
      %v7876 = vmul.f32 %v7603, %v7867
      %v7877 = vmul.f32 %v7604, %v7867
      %v7878 = vmul.f32 %v7605, %v7867
      %v7879 = vmul.f32 %v7606, %v7867
      %v7880 = vmul.f32 %v7607, %v7867
      %v7881 = vmul.f32 %v7608, %v7867
      %v7882 = vmul.f32 %v7609, %v7867
      %v7883 = vmul.f32 %v7610, %v7867
      %v7884 = vmul.f32 %v7611, %v7867
      %v7885 = vmul.f32 %v7612, %v7867
      %v7886 = vmul.f32 %v7613, %v7867
      %v7887 = vmul.f32 %v7614, %v7867
      %v7888 = vmul.f32 %v7615, %v7867
      %v7889 = vmul.f32 %v7616, %v7867
      %v7890 = vmul.f32 %v7617, %v7867
      %v7891 = vmul.f32 %v7618, %v7867
      %v7892 = vmul.f32 %v7619, %v7867
      %v7893 = vmul.f32 %v7620, %v7867
      %v7894 = vmul.f32 %v7621, %v7867
      %v7895 = vmul.f32 %v7622, %v7867
      %v7896 = vmul.f32 %v7623, %v7867
      %v7897 = vmul.f32 %v7624, %v7867
      %v7898 = vmul.f32 %v7625, %v7867
      %v7899 = vmul.f32 %v7626, %v7867
      %7901 = vrot.lane.b32.xlu0 %v7867, 64
      %v7902 = vpop.permute.xlu0 %7901
      %v7904 = vmul.f32 %v7595, %v7902
      %v7905 = vmul.f32 %v7596, %v7902
      %v7906 = vmul.f32 %v7597, %v7902
      %v7907 = vmul.f32 %v7598, %v7902
      %v7908 = vmul.f32 %v7599, %v7902
      %v7909 = vmul.f32 %v7600, %v7902
      %v7910 = vmul.f32 %v7601, %v7902
      %v7911 = vmul.f32 %v7602, %v7902
      %v7912 = vmul.f32 %v7603, %v7902
      %v7913 = vmul.f32 %v7604, %v7902
      %v7914 = vmul.f32 %v7605, %v7902
      %v7915 = vmul.f32 %v7606, %v7902
      %v7916 = vmul.f32 %v7607, %v7902
      %v7917 = vmul.f32 %v7608, %v7902
      %v7918 = vmul.f32 %v7609, %v7902
      %v7919 = vmul.f32 %v7610, %v7902
      %v7920 = vmul.f32 %v7611, %v7902
      %v7921 = vmul.f32 %v7612, %v7902
      %v7922 = vmul.f32 %v7613, %v7902
      %v7923 = vmul.f32 %v7614, %v7902
      %v7924 = vmul.f32 %v7615, %v7902
      %v7925 = vmul.f32 %v7616, %v7902
      %v7926 = vmul.f32 %v7617, %v7902
      %v7927 = vmul.f32 %v7618, %v7902
      %v7928 = vmul.f32 %v7619, %v7902
      %v7929 = vmul.f32 %v7620, %v7902
      %v7930 = vmul.f32 %v7621, %v7902
      %v7931 = vmul.f32 %v7622, %v7902
      %v7932 = vmul.f32 %v7623, %v7902
      %v7933 = vmul.f32 %v7624, %v7902
      %v7934 = vmul.f32 %v7625, %v7902
      %v7935 = vmul.f32 %v7626, %v7902
      %7968 = vrot.lane.b32.xlu0 %v7904, 64
      %v7969 = vpop.permute.xlu0 %7968
      %7970 = vrot.lane.b32.xlu0 %v7905, 64
      %v7971 = vpop.permute.xlu0 %7970
      %7972 = vrot.lane.b32.xlu0 %v7906, 64
      %v7973 = vpop.permute.xlu0 %7972
      %7974 = vrot.lane.b32.xlu0 %v7907, 64
      %v7975 = vpop.permute.xlu0 %7974
      %7976 = vrot.lane.b32.xlu0 %v7908, 64
      %v7977 = vpop.permute.xlu0 %7976
      %7978 = vrot.lane.b32.xlu0 %v7909, 64
      %v7979 = vpop.permute.xlu0 %7978
      %7980 = vrot.lane.b32.xlu0 %v7910, 64
      %v7981 = vpop.permute.xlu0 %7980
      %7982 = vrot.lane.b32.xlu0 %v7911, 64
      %v7983 = vpop.permute.xlu0 %7982
      %7984 = vrot.lane.b32.xlu0 %v7912, 64
      %v7985 = vpop.permute.xlu0 %7984
      %7986 = vrot.lane.b32.xlu0 %v7913, 64
      %v7987 = vpop.permute.xlu0 %7986
      %7988 = vrot.lane.b32.xlu0 %v7914, 64
      %v7989 = vpop.permute.xlu0 %7988
      %7990 = vrot.lane.b32.xlu0 %v7915, 64
      %v7991 = vpop.permute.xlu0 %7990
      %7992 = vrot.lane.b32.xlu0 %v7916, 64
      %v7993 = vpop.permute.xlu0 %7992
      %7994 = vrot.lane.b32.xlu0 %v7917, 64
      %v7995 = vpop.permute.xlu0 %7994
      %7996 = vrot.lane.b32.xlu0 %v7918, 64
      %v7997 = vpop.permute.xlu0 %7996
      %7998 = vrot.lane.b32.xlu0 %v7919, 64
      %v7999 = vpop.permute.xlu0 %7998
      %8000 = vrot.lane.b32.xlu0 %v7920, 64
      %v8001 = vpop.permute.xlu0 %8000
      %8002 = vrot.lane.b32.xlu0 %v7921, 64
      %v8003 = vpop.permute.xlu0 %8002
      %8004 = vrot.lane.b32.xlu0 %v7922, 64
      %v8005 = vpop.permute.xlu0 %8004
      %8006 = vrot.lane.b32.xlu0 %v7923, 64
      %v8007 = vpop.permute.xlu0 %8006
      %8008 = vrot.lane.b32.xlu0 %v7924, 64
      %v8009 = vpop.permute.xlu0 %8008
      %8010 = vrot.lane.b32.xlu0 %v7925, 64
      %v8011 = vpop.permute.xlu0 %8010
      %8012 = vrot.lane.b32.xlu0 %v7926, 64
      %v8013 = vpop.permute.xlu0 %8012
      %8014 = vrot.lane.b32.xlu0 %v7927, 64
      %v8015 = vpop.permute.xlu0 %8014
      %8016 = vrot.lane.b32.xlu0 %v7928, 64
      %v8017 = vpop.permute.xlu0 %8016
      %8018 = vrot.lane.b32.xlu0 %v7929, 64
      %v8019 = vpop.permute.xlu0 %8018
      %8020 = vrot.lane.b32.xlu0 %v7930, 64
      %v8021 = vpop.permute.xlu0 %8020
      %8022 = vrot.lane.b32.xlu0 %v7931, 64
      %v8023 = vpop.permute.xlu0 %8022
      %8024 = vrot.lane.b32.xlu0 %v7932, 64
      %v8025 = vpop.permute.xlu0 %8024
      %8026 = vrot.lane.b32.xlu0 %v7933, 64
      %v8027 = vpop.permute.xlu0 %8026
      %8028 = vrot.lane.b32.xlu0 %v7934, 64
      %v8029 = vpop.permute.xlu0 %8028
      %8030 = vrot.lane.b32.xlu0 %v7935, 64
      %v8031 = vpop.permute.xlu0 %8030
      %v8064 = vsel %vm4075, %v7868, %v7969
      %v8065 = vsel %vm4075, %v7869, %v7971
      %v8066 = vsel %vm4075, %v7870, %v7973
      %v8067 = vsel %vm4075, %v7871, %v7975
      %v8068 = vsel %vm4075, %v7872, %v7977
      %v8069 = vsel %vm4075, %v7873, %v7979
      %v8070 = vsel %vm4075, %v7874, %v7981
      %v8071 = vsel %vm4075, %v7875, %v7983
      %v8072 = vsel %vm4075, %v7876, %v7985
      %v8073 = vsel %vm4075, %v7877, %v7987
      %v8074 = vsel %vm4075, %v7878, %v7989
      %v8075 = vsel %vm4075, %v7879, %v7991
      %v8076 = vsel %vm4075, %v7880, %v7993
      %v8077 = vsel %vm4075, %v7881, %v7995
      %v8078 = vsel %vm4075, %v7882, %v7997
      %v8079 = vsel %vm4075, %v7883, %v7999
      %v8080 = vsel %vm4075, %v7884, %v8001
      %v8081 = vsel %vm4075, %v7885, %v8003
      %v8082 = vsel %vm4075, %v7886, %v8005
      %v8083 = vsel %vm4075, %v7887, %v8007
      %v8084 = vsel %vm4075, %v7888, %v8009
      %v8085 = vsel %vm4075, %v7889, %v8011
      %v8086 = vsel %vm4075, %v7890, %v8013
      %v8087 = vsel %vm4075, %v7891, %v8015
      %v8088 = vsel %vm4075, %v7892, %v8017
      %v8089 = vsel %vm4075, %v7893, %v8019
      %v8090 = vsel %vm4075, %v7894, %v8021
      %v8091 = vsel %vm4075, %v7895, %v8023
      %v8092 = vsel %vm4075, %v7896, %v8025
      %v8093 = vsel %vm4075, %v7897, %v8027
      %v8094 = vsel %vm4075, %v7898, %v8029
      %v8095 = vsel %vm4075, %v7899, %v8031
      %v8096 = vadd.f32 %v8064, %v306
      %v8097 = vadd.f32 %v8065, %v307
      %v8098 = vadd.f32 %v8066, %v308
      %v8099 = vadd.f32 %v8067, %v309
      %v8100 = vadd.f32 %v8068, %v310
      %v8101 = vadd.f32 %v8069, %v311
      %v8102 = vadd.f32 %v8070, %v312
      %v8103 = vadd.f32 %v8071, %v313
      %v8104 = vadd.f32 %v8072, %v314
      %v8105 = vadd.f32 %v8073, %v315
      %v8106 = vadd.f32 %v8074, %v316
      %v8107 = vadd.f32 %v8075, %v317
      %v8108 = vadd.f32 %v8076, %v318
      %v8109 = vadd.f32 %v8077, %v319
      %v8110 = vadd.f32 %v8078, %v320
      %v8111 = vadd.f32 %v8079, %v321
      %v8112 = vadd.f32 %v8080, %v322
      %v8113 = vadd.f32 %v8081, %v323
      %v8114 = vadd.f32 %v8082, %v324
      %v8115 = vadd.f32 %v8083, %v325
      %v8116 = vadd.f32 %v8084, %v326
      %v8117 = vadd.f32 %v8085, %v327
      %v8118 = vadd.f32 %v8086, %v328
      %v8119 = vadd.f32 %v8087, %v329
      %v8120 = vadd.f32 %v8088, %v330
      %v8121 = vadd.f32 %v8089, %v331
      %v8122 = vadd.f32 %v8090, %v332
      %v8123 = vadd.f32 %v8091, %v333
      %v8124 = vadd.f32 %v8092, %v334
      %v8125 = vadd.f32 %v8093, %v335
      %v8126 = vadd.f32 %v8094, %v336
      %v8127 = vadd.f32 %v8095, %v337
      %8128 = vst [vmem:[%s305] sm:$0xff] %v8096
      %8129 = vst [vmem:[%s305 + $0x8] sm:$0xff] %v8097
      %8130 = vst [vmem:[%s305 + $0x10] sm:$0xff] %v8098
      %8131 = vst [vmem:[%s305 + $0x18] sm:$0xff] %v8099
      %8132 = vst [vmem:[%s305 + $0x20] sm:$0xff] %v8100
      %8133 = vst [vmem:[%s305 + $0x28] sm:$0xff] %v8101
      %8134 = vst [vmem:[%s305 + $0x30] sm:$0xff] %v8102
      %8135 = vst [vmem:[%s305 + $0x38] sm:$0xff] %v8103
      %8136 = vst [vmem:[%s305 + $0x40] sm:$0xff] %v8104
      %8137 = vst [vmem:[%s305 + $0x48] sm:$0xff] %v8105
      %8138 = vst [vmem:[%s305 + $0x50] sm:$0xff] %v8106
      %8139 = vst [vmem:[%s305 + $0x58] sm:$0xff] %v8107
      %8140 = vst [vmem:[%s305 + $0x60] sm:$0xff] %v8108
      %8141 = vst [vmem:[%s305 + $0x68] sm:$0xff] %v8109
      %8142 = vst [vmem:[%s305 + $0x70] sm:$0xff] %v8110
      %8143 = vst [vmem:[%s305 + $0x78] sm:$0xff] %v8111
      %8144 = vst [vmem:[%s305 + $0x80] sm:$0xff] %v8112
      %8145 = vst [vmem:[%s305 + $0x88] sm:$0xff] %v8113
      %8146 = vst [vmem:[%s305 + $0x90] sm:$0xff] %v8114
      %8147 = vst [vmem:[%s305 + $0x98] sm:$0xff] %v8115
      %8148 = vst [vmem:[%s305 + $0xa0] sm:$0xff] %v8116
      %8149 = vst [vmem:[%s305 + $0xa8] sm:$0xff] %v8117
      %8150 = vst [vmem:[%s305 + $0xb0] sm:$0xff] %v8118
      %8151 = vst [vmem:[%s305 + $0xb8] sm:$0xff] %v8119
      %8152 = vst [vmem:[%s305 + $0xc0] sm:$0xff] %v8120
      %8153 = vst [vmem:[%s305 + $0xc8] sm:$0xff] %v8121
      %8154 = vst [vmem:[%s305 + $0xd0] sm:$0xff] %v8122
      %8155 = vst [vmem:[%s305 + $0xd8] sm:$0xff] %v8123
      %8156 = vst [vmem:[%s305 + $0xe0] sm:$0xff] %v8124
      %8157 = vst [vmem:[%s305 + $0xe8] sm:$0xff] %v8125
      %8158 = vst [vmem:[%s305 + $0xf0] sm:$0xff] %v8126
      %8159 = vst [vmem:[%s305 + $0xf8] sm:$0xff] %v8127
      %p8160 = scmp.lt.s32.totalorder %s19, 1
      %s8161 = scalar_select %p8160, %s19, 1
      %s8162 = smul.addr %s8161, 32
      %s8163 = smul.addr %s8162, 8
      %s8164 = scalar_lea.vmem %s8, %s8163
      // Predicated region
      $region53: #{dense_2d_cr_add_sim.1} parent=51 // pred_check
        %p8165 = pneg %p210
      $region54: #{dense_2d_cr_add_sim.1} parent=51 // pred_check_branch
        %8167 = sbr.rel (%p8165) target = $region56
      $region55: #{dense_2d_cr_add_sim.1} parent=51 // pred_region
        _
      $region56: #{dense_2d_cr_add_sim.1} parent=51 // pred_fallthru
        _
    $region52: #{dense_2d_cr_add_sim.1} parent=5 // pred_fallthru
      _
    %p8168 = scmp.le.s32.totalorder 2, %s14
    // Predicated region
    $region57: #{dense_2d_cr_add_sim.1} parent=5 // pred_check
      %p8169 = pneg %p8168
    $region58: #{dense_2d_cr_add_sim.1} parent=5 // pred_check_branch
      %8171 = sbr.rel (%p8169) target = $region60
    $region59: #{dense_2d_cr_add_sim.1} parent=5 // pred_region
      %s8172 = ssub.s32 %s14, 2
      // Predicated region
      $region61: #{dense_2d_cr_add_sim.1} parent=59 // pred_check
        %p8173 = pneg %p216
      $region62: #{dense_2d_cr_add_sim.1} parent=59 // pred_check_branch
        %8175 = sbr.rel (%p8173) target = $region64
      $region63: #{dense_2d_cr_add_sim.1} parent=59 // pred_region
        %p8176 = scmp.lt.s32.totalorder %s20, 1
        %s8177 = scalar_select %p8176, %s20, 1
        %s8178 = smul.addr %s8177, 32
        %s8179 = smul.addr %s8178, 8
        %s8180 = scalar_lea.vmem %s8, %s8179
      $region64: #{dense_2d_cr_add_sim.1} parent=59 // pred_fallthru
        _
    $region60: #{dense_2d_cr_add_sim.1} parent=5 // pred_fallthru
      _
  $region6: #{dense_2d_cr_add_sim.1} parent=0 // loop_footer
    %s18 = sadd.s32 1, %s14
  $region7: #{dense_2d_cr_add_sim.1} parent=0 // loop_footer_branch
    %13 = sbr.rel target = $region3
  $region8: #{dense_2d_cr_add_sim.1} parent=0 // loop_exit
    _

</llo_original>
